<compile_context>
chip_gen: v7x
topology: tpu7x:2x2x1
jax: 0.10.0
libtpu: 0.0.40
codegen_flags: <defaults>
</compile_context>

<pallas_src>
from functools import partial

import jax
import jax.numpy as jnp
from jax.experimental import pallas as pl
from jax.experimental.pallas import tpu as pltpu


def mini_pointnet_kernel(x_ref, w1_ref, b1_ref, w2_ref, b2_ref,
                         w3g_ref, w3f_ref, b3_ref, w4_ref, b4_ref,
                         o_ref, *, tb, n, use_bf16, bf16_epilogue):
    rows = tb * n
    x = x_ref[0]                                               # (rows, C) f32

    mm = jnp.bfloat16 if use_bf16 else jnp.float32             # matmul operand dtype
    epi = jnp.bfloat16 if bf16_epilogue else jnp.float32       # h2 epilogue dtype
    cast = lambda a: a if a.dtype == mm else a.astype(mm)

    # ---- first_conv[0]: Conv1d(C,128,1) + BN folded.  C is tiny but the dot
    #      still goes to the (under-used) MXU; the VPU/vst slots are the
    #      bottleneck at these shapes.
    h1 = jnp.dot(cast(x), w1_ref[...], preferred_element_type=jnp.float32)
    h1 = jnp.maximum(h1 + b1_ref[...], 0.0)                    # (rows, 128) f32

    # ---- first_conv[3]: Conv1d(128,256,1).  Keep the f32 accumulator; gmax is
    #      taken from it for accuracy.
    feat = jnp.dot(cast(h1), w2_ref[...],
                   preferred_element_type=jnp.float32) + b2_ref[...]   # (rows,256) f32

    # ---- per-group global max over the N points (from the f32 accumulator)
    gmax = jnp.max(feat.reshape(tb, n, -1), axis=1)            # (tb, 256) f32

    # ---- second_conv[0]: Conv1d(512,512,1) + BN folded, with w3 split:
    #      relu(cat([gmax, feat]) @ w3 + b3)
    #        == relu(feat @ w3[256:] + (gmax @ w3[:256] + b3))
    #      b3 is folded into the small per-group term; the (rows,512) epilogue
    #      is a single broadcast-add + ReLU (bf16 on v6e/v7x).
    g3 = jnp.dot(cast(gmax), w3g_ref[...],
                 preferred_element_type=jnp.float32) + b3_ref[...]      # (tb,512) f32
    h2 = jnp.dot(cast(feat), w3f_ref[...], preferred_element_type=epi)  # (rows,512)
    h2 = jnp.maximum(h2.reshape(tb, n, -1) + g3.astype(epi)[:, None, :], 0.0)

    # ---- second_conv[3]: Conv1d(512, Dpad, 1)
    h2m = cast(h2.reshape(rows, -1))                           # no-op when epi == mm
    outf = jnp.dot(h2m, w4_ref[...],
                   preferred_element_type=jnp.float32) + b4_ref[...]    # (rows,Dp) f32

    # ---- final per-group max over points (f32)
    o_ref[...] = jnp.max(outf.reshape(tb, n, -1), axis=1)      # (tb, Dp)


def _tpu_traits():
    """Chip-generation-aware tiling defaults."""
    kind = ""
    try:
        dev = jax.devices()[0]
        if dev.platform == "tpu":
            kind = dev.device_kind.lower()
    except Exception:
        pass
    is_v5e = ("v5 lite" in kind) or ("v5e" in kind) or ("v5lite" in kind)
    is_v7 = "7" in kind
    multi_tc = is_v7 or (" v3" in kind) or (" v4" in kind)     # >1 TensorCore / chip

    vmem_phys = 64 * 1024 * 1024 if is_v7 else 128 * 1024 * 1024
    try:
        vmem_phys = int(pltpu.get_tpu_info().vmem_capacity_bytes)
    except Exception:
        pass

    if is_v7:
        row_budget, min_grid = 4096, 4        # 2 TCs: want >= 2 steps per core
    elif multi_tc:
        row_budget, min_grid = 8192, 2
    else:
        row_budget, min_grid = 8192, 1        # single TC: grid splitting only adds overhead

    return dict(is_v5e=is_v5e, is_v7=is_v7, multi_tc=multi_tc,
                vmem_phys=vmem_phys, row_budget=row_budget, min_grid=min_grid)


def _pick_tb(batch, n, row_budget, min_grid):
    """Largest TB dividing `batch` with TB*n <= row_budget, layout-aligned
    (TB % 8 == 0 or TB == batch), preferring at least `min_grid` grid steps."""
    def aligned(tb):
        return (tb % 8 == 0) or (tb == batch)

    def fits(tb):
        return batch % tb == 0 and tb * n <= row_budget

    for g_req in range(max(min_grid, 1), 0, -1):
        cands = [tb for tb in range(1, batch + 1)
                 if fits(tb) and aligned(tb) and batch // tb >= g_req]
        if cands:
            return max(cands)
    # Last resort: whole batch in one step (always layout-legal).
    return batch


def _vmem_limit_bytes(rows, c, dp, use_bf16, bf16_epi, weight_bytes, vmem_phys):
    """Rough per-step VMEM footprint (activations + double-buffered weights)."""
    per_row = 4 * c + 512 + 1024 + 4 * dp          # x, h1(f32), feat(f32), outf(f32)
    per_row += 1024 if bf16_epi else 2048          # h2
    if use_bf16:
        per_row += 256 + 512                       # bf16 copies of h1, feat
        if not bf16_epi:
            per_row += 1024                        # bf16 copy of h2
    est = int(rows * per_row * 1.25) + 2 * weight_bytes + (8 << 20)
    cap = int(vmem_phys * 0.7)
    return max(24 << 20, min(est, cap))


def mini_pointnet(points, params, *, use_bf16=None, tb=None, row_budget=None):
    """points: (B, N, C) float32 -> (B, output_dim) float32."""
    B, N, C = points.shape
    w1, b1, w2, b2, w3, b3, w4, b4 = params
    D = w4.shape[1]
    Dp = ((D + 127) // 128) * 128                  # lane-dense output channels

    traits = _tpu_traits()
    if use_bf16 is None:
        # v5e: no bf16 VPU and a single vst slot -> the duplicated bf16 copies
        # of the big intermediates can be a net loss; default to f32 there.
        use_bf16 = not traits["is_v5e"]
    bf16_epilogue = bool(use_bf16) and not traits["is_v5e"]
    if row_budget is None:
        row_budget = traits["row_budget"]

    if tb is None:
        tb = _pick_tb(B, N, row_budget, traits["min_grid"])
    assert B % tb == 0
    G = B // tb

    # Split w3 per the concat order cat([gmax, feat], channel axis).
    w3g, w3f = w3[:256, :], w3[256:, :]

    # Pad the last layer to a multiple of 128 output channels (zeros -> the
    # padded channels are dropped after the call).
    if Dp != D:
        w4p = jnp.pad(w4, ((0, 0), (0, Dp - D)))
        b4p = jnp.pad(b4, ((0, 0), (0, Dp - D)))
    else:
        w4p, b4p = w4, b4

    mm_dtype = jnp.bfloat16 if use_bf16 else jnp.float32
    w1c = w1.astype(mm_dtype)
    w2c = w2.astype(mm_dtype)
    w3gc = w3g.astype(mm_dtype)
    w3fc = w3f.astype(mm_dtype)
    w4c = w4p.astype(mm_dtype)

    # Fuse TB batch elements per grid step: (B, N, C) -> (G, TB*N, C).
    pts = points.reshape(G, tb * N, C)

    weight_bytes = sum(int(a.size) * a.dtype.itemsize
                       for a in (w1c, b1, w2c, b2, w3gc, w3fc, b3, w4c, b4p))
    vmem_limit = _vmem_limit_bytes(tb * N, C, Dp, use_bf16, bf16_epilogue,
                                   weight_bytes, traits["vmem_phys"])

    # Weights/biases: full blocks with a constant index map -> DMA'd once.
    full2 = lambda a: pl.BlockSpec(a.shape, lambda g: (0, 0))

    out = pl.pallas_call(
        partial(mini_pointnet_kernel, tb=tb, n=N,
                use_bf16=use_bf16, bf16_epilogue=bf16_epilogue),
        out_shape=jax.ShapeDtypeStruct((B, Dp), jnp.float32),
        grid_spec=pltpu.PrefetchScalarGridSpec(
            num_scalar_prefetch=0,
            grid=(G,),
            in_specs=[
                pl.BlockSpec((1, tb * N, C), lambda g: (g, 0, 0)),   # points
                full2(w1c), full2(b1),
                full2(w2c), full2(b2),
                full2(w3gc), full2(w3fc), full2(b3),
                full2(w4c), full2(b4p),
            ],
            out_specs=pl.BlockSpec((tb, Dp), lambda g: (g, 0)),
        ),
        compiler_params=pltpu.CompilerParams(
            dimension_semantics=("parallel",),
            vmem_limit_bytes=int(vmem_limit),
        ),
    )(pts, w1c, b1, w2c, b2, w3gc, w3fc, b3, w4c, b4p)

    return out[:, :D]


def init_params(key, input_channels, output_dim):
    """Deterministic synthetic parameters; BN (eval mode) folded into convs.

    Returns pre-transposed weights: W of shape (Cin, Cout), bias of shape (1, Cout).
    """
    ks = jax.random.split(key, 16)
    eps = 1e-5

    def conv(kw, kb, cin, cout, scale=0.05):
        w = scale * jax.random.normal(kw, (cin, cout), jnp.float32)
        b = scale * jax.random.normal(kb, (cout,), jnp.float32)
        return w, b

    def bn(kg, kb, km, kv, c):
        gamma = 1.0 + 0.1 * jax.random.normal(kg, (c,), jnp.float32)
        beta = 0.1 * jax.random.normal(kb, (c,), jnp.float32)
        mean = 0.1 * jax.random.normal(km, (c,), jnp.float32)
        var = jax.random.uniform(kv, (c,), jnp.float32, 0.5, 1.5)
        return gamma, beta, mean, var

    def fold(w, b, gamma, beta, mean, var):
        s = gamma / jnp.sqrt(var + eps)
        return w * s[None, :], (b - mean) * s + beta

    # first_conv
    w1, b1 = conv(ks[0], ks[1], input_channels, 128)
    g1, be1, m1, v1 = bn(ks[2], ks[3], ks[4], ks[5], 128)
    w1, b1 = fold(w1, b1, g1, be1, m1, v1)
    w2, b2 = conv(ks[6], ks[7], 128, 256)

    # second_conv
    w3, b3 = conv(ks[8], ks[9], 512, 512)
    g2, be2, m2, v2 = bn(ks[10], ks[11], ks[12], ks[13], 512)
    w3, b3 = fold(w3, b3, g2, be2, m2, v2)
    w4, b4 = conv(ks[14], ks[15], 512, output_dim)

    return (w1, b1.reshape(1, -1), w2, b2.reshape(1, -1),
            w3, b3.reshape(1, -1), w4, b4.reshape(1, -1))


def mini_pointnet_ref(points, params):
    """Pure-JAX reference matching the PyTorch forward (eval-mode BN folded)."""
    w1, b1, w2, b2, w3, b3, w4, b4 = params
    h1 = jnp.maximum(points @ w1 + b1, 0.0)                     # (B, N, 128)
    feat = h1 @ w2 + b2                                         # (B, N, 256)
    gmax = jnp.max(feat, axis=1, keepdims=True)                 # (B, 1, 256)
    combined = jnp.concatenate(
        [jnp.broadcast_to(gmax, feat.shape), feat], axis=-1)    # (B, N, 512)
    h2 = jnp.maximum(combined @ w3 + b3, 0.0)                   # (B, N, 512)
    outf = h2 @ w4 + b4                                         # (B, N, D)
    return jnp.max(outf, axis=1)                                # (B, D)


if __name__ == "__main__":
    # batch (B = batch*num_groups in PointMAE), points-per-group, channels, out dim
    B, N, C, D = 16, 64, 4, 32

    key = jax.random.PRNGKey(0)
    k_pts, k_par = jax.random.split(key)
    points = jax.random.normal(k_pts, (B, N, C), jnp.float32)
    params = init_params(k_par, C, D)

    ref = mini_pointnet_ref(points, params)

    # f32 path (all matmuls with f32 operands, f32 epilogues).
    out_f32 = jax.block_until_ready(mini_pointnet(points, params, use_bf16=False))
    assert out_f32.shape == (B, D), out_f32.shape
    err_f32 = float(jnp.max(jnp.abs(out_f32 - ref)))
    assert err_f32 < 2e-3, err_f32   # MXU default-precision f32 matmuls

    # bf16-operand / f32-accumulate path (bf16 h2 epilogue on v6e/v7x).
    out_fast = jax.block_until_ready(mini_pointnet(points, params, use_bf16=True))
    assert out_fast.shape == (B, D), out_fast.shape
    err_fast = float(jnp.max(jnp.abs(out_fast - ref)))
    assert err_fast < 5e-2, err_fast

    print("KERNEL_OK")
</pallas_src>

<mosaic_0001>
module attributes {stable_mosaic.version = 11 : i64} {
  func.func @mini_pointnet_kernel(%arg0: i32, %arg1: memref<1x1024x4xf32, #tpu.memory_space<vmem>>, %arg2: memref<4x128xf32, #tpu.memory_space<vmem>>, %arg3: memref<1x128xf32, #tpu.memory_space<vmem>>, %arg4: memref<128x256xf32, #tpu.memory_space<vmem>>, %arg5: memref<1x256xf32, #tpu.memory_space<vmem>>, %arg6: memref<256x512xf32, #tpu.memory_space<vmem>>, %arg7: memref<256x512xf32, #tpu.memory_space<vmem>>, %arg8: memref<1x512xf32, #tpu.memory_space<vmem>>, %arg9: memref<512x128xf32, #tpu.memory_space<vmem>>, %arg10: memref<1x128xf32, #tpu.memory_space<vmem>>, %arg11: memref<16x128xf32, #tpu.memory_space<vmem>>) attributes {dimension_semantics = [#tpu.dimension_semantics<parallel>], iteration_bounds = array<i64: 1>, scalar_prefetch = 0 : i64, scratch_operands = 0 : i64, tpu.core_type = #tpu.core_type<tc>, window_params = [{transform_indices = @transform_0, window_bounds = array<i64: 1, 1024, 4>}, {pipeline_mode = #tpu.pipeline_mode<synchronous>, transform_indices = @transform_1, window_bounds = array<i64: 4, 128>}, {pipeline_mode = #tpu.pipeline_mode<synchronous>, transform_indices = @transform_2, window_bounds = array<i64: 1, 128>}, {pipeline_mode = #tpu.pipeline_mode<synchronous>, transform_indices = @transform_3, window_bounds = array<i64: 128, 256>}, {pipeline_mode = #tpu.pipeline_mode<synchronous>, transform_indices = @transform_4, window_bounds = array<i64: 1, 256>}, {pipeline_mode = #tpu.pipeline_mode<synchronous>, transform_indices = @transform_5, window_bounds = array<i64: 256, 512>}, {pipeline_mode = #tpu.pipeline_mode<synchronous>, transform_indices = @transform_6, window_bounds = array<i64: 256, 512>}, {pipeline_mode = #tpu.pipeline_mode<synchronous>, transform_indices = @transform_7, window_bounds = array<i64: 1, 512>}, {pipeline_mode = #tpu.pipeline_mode<synchronous>, transform_indices = @transform_8, window_bounds = array<i64: 512, 128>}, {pipeline_mode = #tpu.pipeline_mode<synchronous>, transform_indices = @transform_9, window_bounds = array<i64: 1, 128>}, {transform_indices = @transform_10, window_bounds = array<i64: 16, 128>}]} {
    %c0 = arith.constant 0 : index
    %c0_0 = arith.constant 0 : index
    %c0_1 = arith.constant 0 : index
    %0 = vector.load %arg1[%c0, %c0_0, %c0_1] : memref<1x1024x4xf32, #tpu.memory_space<vmem>>, vector<1x1024x4xf32>
    %1 = vector.shape_cast %0 : vector<1x1024x4xf32> to vector<1024x4xf32>
    %c0_2 = arith.constant 0 : index
    %c0_3 = arith.constant 0 : index
    %2 = vector.load %arg2[%c0_2, %c0_3] : memref<4x128xf32, #tpu.memory_space<vmem>>, vector<4x128xf32>
    %cst = arith.constant dense<0.000000e+00> : vector<1024x128xf32>
    %3 = tpu.matmul %1, %2, %cst {dimension_numbers = #tpu.dot_dimension_numbers<[1], [0], [0], [1], [0, 0, 1, 1], [], []>} : vector<1024x4xf32>, vector<4x128xf32>, vector<1024x128xf32> -> vector<1024x128xf32>
    %c0_4 = arith.constant 0 : index
    %c0_5 = arith.constant 0 : index
    %4 = vector.load %arg3[%c0_4, %c0_5] : memref<1x128xf32, #tpu.memory_space<vmem>>, vector<1x128xf32>
    %5 = vector.broadcast %4 : vector<1x128xf32> to vector<1024x128xf32>
    %6 = arith.addf %3, %5 : vector<1024x128xf32>
    %cst_6 = arith.constant 0.000000e+00 : f32
    %7 = vector.broadcast %cst_6 : f32 to vector<1024x128xf32>
    %8 = arith.maximumf %6, %7 : vector<1024x128xf32>
    %c0_7 = arith.constant 0 : index
    %c0_8 = arith.constant 0 : index
    %9 = vector.load %arg4[%c0_7, %c0_8] : memref<128x256xf32, #tpu.memory_space<vmem>>, vector<128x256xf32>
    %cst_9 = arith.constant dense<0.000000e+00> : vector<1024x256xf32>
    %10 = tpu.matmul %8, %9, %cst_9 {dimension_numbers = #tpu.dot_dimension_numbers<[1], [0], [0], [1], [0, 0, 1, 1], [], []>} : vector<1024x128xf32>, vector<128x256xf32>, vector<1024x256xf32> -> vector<1024x256xf32>
    %c0_10 = arith.constant 0 : index
    %c0_11 = arith.constant 0 : index
    %11 = vector.load %arg5[%c0_10, %c0_11] : memref<1x256xf32, #tpu.memory_space<vmem>>, vector<1x256xf32>
    %12 = vector.broadcast %11 : vector<1x256xf32> to vector<1024x256xf32>
    %13 = arith.addf %10, %12 : vector<1024x256xf32>
    %14 = vector.shape_cast %13 : vector<1024x256xf32> to vector<16x64x256xf32>
    %cst_12 = arith.constant dense<0xFF800000> : vector<16x256xf32>
    %15 = vector.multi_reduction <maximumf>, %14, %cst_12 [1] : vector<16x64x256xf32> to vector<16x256xf32>
    %c0_13 = arith.constant 0 : index
    %c0_14 = arith.constant 0 : index
    %16 = vector.load %arg6[%c0_13, %c0_14] : memref<256x512xf32, #tpu.memory_space<vmem>>, vector<256x512xf32>
    %cst_15 = arith.constant dense<0.000000e+00> : vector<16x512xf32>
    %17 = tpu.matmul %15, %16, %cst_15 {dimension_numbers = #tpu.dot_dimension_numbers<[1], [0], [0], [1], [0, 0, 1, 1], [], []>} : vector<16x256xf32>, vector<256x512xf32>, vector<16x512xf32> -> vector<16x512xf32>
    %c0_16 = arith.constant 0 : index
    %c0_17 = arith.constant 0 : index
    %18 = vector.load %arg8[%c0_16, %c0_17] : memref<1x512xf32, #tpu.memory_space<vmem>>, vector<1x512xf32>
    %19 = vector.broadcast %18 : vector<1x512xf32> to vector<16x512xf32>
    %20 = arith.addf %17, %19 : vector<16x512xf32>
    %c0_18 = arith.constant 0 : index
    %c0_19 = arith.constant 0 : index
    %21 = vector.load %arg7[%c0_18, %c0_19] : memref<256x512xf32, #tpu.memory_space<vmem>>, vector<256x512xf32>
    %cst_20 = arith.constant dense<0.000000e+00> : vector<1024x512xf32>
    %22 = tpu.matmul %13, %21, %cst_20 {dimension_numbers = #tpu.dot_dimension_numbers<[1], [0], [0], [1], [0, 0, 1, 1], [], []>} : vector<1024x256xf32>, vector<256x512xf32>, vector<1024x512xf32> -> vector<1024x512xf32>
    %23 = vector.shape_cast %22 : vector<1024x512xf32> to vector<16x64x512xf32>
    %24 = vector.shape_cast %20 : vector<16x512xf32> to vector<16x1x512xf32>
    %25 = vector.broadcast %24 : vector<16x1x512xf32> to vector<16x64x512xf32>
    %26 = arith.addf %23, %25 : vector<16x64x512xf32>
    %cst_21 = arith.constant 0.000000e+00 : f32
    %27 = vector.broadcast %cst_21 : f32 to vector<16x64x512xf32>
    %28 = arith.maximumf %26, %27 : vector<16x64x512xf32>
    %29 = vector.shape_cast %28 : vector<16x64x512xf32> to vector<1024x512xf32>
    %c0_22 = arith.constant 0 : index
    %c0_23 = arith.constant 0 : index
    %30 = vector.load %arg9[%c0_22, %c0_23] : memref<512x128xf32, #tpu.memory_space<vmem>>, vector<512x128xf32>
    %cst_24 = arith.constant dense<0.000000e+00> : vector<1024x128xf32>
    %31 = tpu.matmul %29, %30, %cst_24 {dimension_numbers = #tpu.dot_dimension_numbers<[1], [0], [0], [1], [0, 0, 1, 1], [], []>} : vector<1024x512xf32>, vector<512x128xf32>, vector<1024x128xf32> -> vector<1024x128xf32>
    %c0_25 = arith.constant 0 : index
    %c0_26 = arith.constant 0 : index
    %32 = vector.load %arg10[%c0_25, %c0_26] : memref<1x128xf32, #tpu.memory_space<vmem>>, vector<1x128xf32>
    %33 = vector.broadcast %32 : vector<1x128xf32> to vector<1024x128xf32>
    %34 = arith.addf %31, %33 : vector<1024x128xf32>
    %35 = vector.shape_cast %34 : vector<1024x128xf32> to vector<16x64x128xf32>
    %cst_27 = arith.constant dense<0xFF800000> : vector<16x128xf32>
    %36 = vector.multi_reduction <maximumf>, %35, %cst_27 [1] : vector<16x64x128xf32> to vector<16x128xf32>
    %c0_28 = arith.constant 0 : index
    %c0_29 = arith.constant 0 : index
    %37 = vector.load %arg11[%c0_28, %c0_29] : memref<16x128xf32, #tpu.memory_space<vmem>>, vector<16x128xf32>
    tpu.vector_store %arg11[%c0_28, %c0_29], %36 {strides = array<i32>} : memref<16x128xf32, #tpu.memory_space<vmem>>, vector<16x128xf32>,
    return
  }
  func.func @transform_0(%arg0: i32) -> (i32, i32, i32) {
    %c0_i32 = arith.constant 0 : i32
    %c0_i32_0 = arith.constant 0 : i32
    %c0_i32_1 = arith.constant 0 : i32
    return %arg0, %c0_i32, %c0_i32_0 : i32, i32, i32
  }
  func.func @transform_1(%arg0: i32) -> (i32, i32) {
    %c0_i32 = arith.constant 0 : i32
    %c0_i32_0 = arith.constant 0 : i32
    %c0_i32_1 = arith.constant 0 : i32
    return %c0_i32, %c0_i32_0 : i32, i32
  }
  func.func @transform_2(%arg0: i32) -> (i32, i32) {
    %c0_i32 = arith.constant 0 : i32
    %c0_i32_0 = arith.constant 0 : i32
    %c0_i32_1 = arith.constant 0 : i32
    return %c0_i32, %c0_i32_0 : i32, i32
  }
  func.func @transform_3(%arg0: i32) -> (i32, i32) {
    %c0_i32 = arith.constant 0 : i32
    %c0_i32_0 = arith.constant 0 : i32
    %c0_i32_1 = arith.constant 0 : i32
    return %c0_i32, %c0_i32_0 : i32, i32
  }
  func.func @transform_4(%arg0: i32) -> (i32, i32) {
    %c0_i32 = arith.constant 0 : i32
    %c0_i32_0 = arith.constant 0 : i32
    %c0_i32_1 = arith.constant 0 : i32
    return %c0_i32, %c0_i32_0 : i32, i32
  }
  func.func @transform_5(%arg0: i32) -> (i32, i32) {
    %c0_i32 = arith.constant 0 : i32
    %c0_i32_0 = arith.constant 0 : i32
    %c0_i32_1 = arith.constant 0 : i32
    return %c0_i32, %c0_i32_0 : i32, i32
  }
  func.func @transform_6(%arg0: i32) -> (i32, i32) {
    %c0_i32 = arith.constant 0 : i32
    %c0_i32_0 = arith.constant 0 : i32
    %c0_i32_1 = arith.constant 0 : i32
    return %c0_i32, %c0_i32_0 : i32, i32
  }
  func.func @transform_7(%arg0: i32) -> (i32, i32) {
    %c0_i32 = arith.constant 0 : i32
    %c0_i32_0 = arith.constant 0 : i32
    %c0_i32_1 = arith.constant 0 : i32
    return %c0_i32, %c0_i32_0 : i32, i32
  }
  func.func @transform_8(%arg0: i32) -> (i32, i32) {
    %c0_i32 = arith.constant 0 : i32
    %c0_i32_0 = arith.constant 0 : i32
    %c0_i32_1 = arith.constant 0 : i32
    return %c0_i32, %c0_i32_0 : i32, i32
  }
  func.func @transform_9(%arg0: i32) -> (i32, i32) {
    %c0_i32 = arith.constant 0 : i32
    %c0_i32_0 = arith.constant 0 : i32
    %c0_i32_1 = arith.constant 0 : i32
    return %c0_i32, %c0_i32_0 : i32, i32
  }
  func.func @transform_10(%arg0: i32) -> (i32, i32) {
    %c0_i32 = arith.constant 0 : i32
    %c0_i32_0 = arith.constant 0 : i32
    return %arg0, %c0_i32 : i32, i32
  }
}

</mosaic_0001>

<llo_original>
// kernel: tpu_custom_call.1
$region0: #{tpu_custom_call.1}
  #allocation0 [shape = 'u32[]', space=smem, size = 0x4, offset = 0x4, fixed_abs, tag = 'smem constant byte address 0x4 - core index']
  #allocation1 [shape = 'u32[144,128]{1,0:T(1,128)}', space=vmem, size = 0x12000, scoped, tag = 'internal scratch']
  %s0 = inlined_call_operand.vmem [shape: f32[1,1024,4], index: 0, kind: input, shape index: {}]
  %s1 = inlined_call_operand.vmem [shape: f32[4,128], index: 1, kind: input, shape index: {}]
  %s2 = inlined_call_operand.vmem [shape: f32[1,128], index: 2, kind: input, shape index: {}]
  %s3 = inlined_call_operand.hbm [shape: f32[128,256], index: 3, kind: input, shape index: {}]
  %s4 = inlined_call_operand.vmem [shape: f32[1,256], index: 4, kind: input, shape index: {}]
  %s5 = inlined_call_operand.vmem [shape: f32[256,512], index: 5, kind: input, shape index: {}]
  %s6 = inlined_call_operand.hbm [shape: f32[256,512], index: 6, kind: input, shape index: {}]
  %s7 = inlined_call_operand.vmem [shape: f32[1,512], index: 7, kind: input, shape index: {}]
  %s8 = inlined_call_operand.hbm [shape: f32[512,128], index: 8, kind: input, shape index: {}]
  %s9 = inlined_call_operand.vmem [shape: f32[1,128], index: 9, kind: input, shape index: {}]
  %s10 = inlined_call_operand.hbm [shape: f32[16,128], index: 10, kind: output, shape index: {}]
  %s11 = sld [smem:[#allocation0]]
  $region62: #{tpu_custom_call.1} parent=0
    _
  %s13 = ssub.s32 1, %s11
  %s14 = scalar_select 0, %s13, %s11
  $region1: #{tpu_custom_call.1} parent=0
    #allocation2 [shape = 'u8[131072]{0}', space=vmem, size = 0x20000, scoped, tag = 'input window, operand 3, single buffered']
    #allocation3 [shape = 's32[1]{0}', space=sflag, size = 0x4, scoped, tag = 'scoped memory for tpu_custom_call.1']
    #allocation4 [shape = 's32[1]{0}', space=sflag, size = 0x4, scoped, tag = 'scoped memory for tpu_custom_call.1']
    #allocation5 [shape = 'u8[524288]{0}', space=vmem, size = 0x80000, scoped, tag = 'input window, operand 6, single buffered']
    #allocation6 [shape = 's32[1]{0}', space=sflag, size = 0x4, scoped, tag = 'scoped memory for tpu_custom_call.1']
    #allocation7 [shape = 'u8[262144]{0}', space=vmem, size = 0x40000, scoped, tag = 'input window, operand 8, single buffered']
    #allocation8 [shape = 'u8[8192]{0}', space=vmem, size = 0x2000, scoped, tag = 'output window, operand 0, single buffered']
    %15 = vsyncpa [#allocation3], 0
    %16 = vsyncpa [#allocation6], 0
    %17 = vsyncpa [#allocation4], 0
    // Predicated region
    $region2: #{tpu_custom_call.1} parent=1 // pred_check
      _
    $region3: #{tpu_custom_call.1} parent=1 // pred_check_branch
      %19 = sbr.rel (0) target = $region5
    $region4: #{tpu_custom_call.1} parent=1 // pred_region
      _
    $region5: #{tpu_custom_call.1} parent=1 // pred_fallthru
      _
    // Predicated region
    $region6: #{tpu_custom_call.1} parent=1 // pred_check
      _
    $region7: #{tpu_custom_call.1} parent=1 // pred_check_branch
      %21 = sbr.rel (0) target = $region9
    $region8: #{tpu_custom_call.1} parent=1 // pred_region
      _
    $region9: #{tpu_custom_call.1} parent=1 // pred_fallthru
      _
    // Predicated region
    $region10: #{tpu_custom_call.1} parent=1 // pred_check
      _
    $region11: #{tpu_custom_call.1} parent=1 // pred_check_branch
      %23 = sbr.rel (0) target = $region13
    $region12: #{tpu_custom_call.1} parent=1 // pred_region
      _
    $region13: #{tpu_custom_call.1} parent=1 // pred_fallthru
      _
    // Predicated region
    $region14: #{tpu_custom_call.1} parent=1 // pred_check
      _
    $region15: #{tpu_custom_call.1} parent=1 // pred_check_branch
      %25 = sbr.rel (0) target = $region17
    $region16: #{tpu_custom_call.1} parent=1 // pred_region
      %s27 = ssub.s32 4096, 4096
      %28 = vsyncadd [#allocation3], %s27
      %s29 = sshll.u32 [#allocation2], 4
      %s30 = int_to_ptr.vmem [resolvable:$true] %s29
      %35 = dma.hbm_to_vmem [thread:$0]  %s3, 4096, %s30, [#allocation3], 256, 256, 16
    $region17: #{tpu_custom_call.1} parent=1 // pred_fallthru
      _
    // Predicated region
    $region18: #{tpu_custom_call.1} parent=1 // pred_check
      _
    $region19: #{tpu_custom_call.1} parent=1 // pred_check_branch
      %37 = sbr.rel (0) target = $region21
    $region20: #{tpu_custom_call.1} parent=1 // pred_region
      _
    $region21: #{tpu_custom_call.1} parent=1 // pred_fallthru
      _
    // Predicated region
    $region22: #{tpu_custom_call.1} parent=1 // pred_check
      _
    $region23: #{tpu_custom_call.1} parent=1 // pred_check_branch
      %39 = sbr.rel (0) target = $region25
    $region24: #{tpu_custom_call.1} parent=1 // pred_region
      _
    $region25: #{tpu_custom_call.1} parent=1 // pred_fallthru
      _
    // Predicated region
    $region26: #{tpu_custom_call.1} parent=1 // pred_check
      _
    $region27: #{tpu_custom_call.1} parent=1 // pred_check_branch
      %41 = sbr.rel (0) target = $region29
    $region28: #{tpu_custom_call.1} parent=1 // pred_region
      %s43 = ssub.s32 16384, 16384
      %44 = vsyncadd [#allocation6], %s43
      %s45 = sshll.u32 [#allocation5], 4
      %s46 = int_to_ptr.vmem [resolvable:$true] %s45
      %51 = dma.hbm_to_vmem [thread:$0]  %s6, 16384, %s46, [#allocation6], 512, 512, 32
    $region29: #{tpu_custom_call.1} parent=1 // pred_fallthru
      _
    // Predicated region
    $region30: #{tpu_custom_call.1} parent=1 // pred_check
      _
    $region31: #{tpu_custom_call.1} parent=1 // pred_check_branch
      %53 = sbr.rel (0) target = $region33
    $region32: #{tpu_custom_call.1} parent=1 // pred_region
      _
    $region33: #{tpu_custom_call.1} parent=1 // pred_fallthru
      _
    // Predicated region
    $region34: #{tpu_custom_call.1} parent=1 // pred_check
      _
    $region35: #{tpu_custom_call.1} parent=1 // pred_check_branch
      %55 = sbr.rel (0) target = $region37
    $region36: #{tpu_custom_call.1} parent=1 // pred_region
      %s57 = ssub.s32 8192, 8192
      %58 = vsyncadd [#allocation6], %s57
      %s59 = sshll.u32 [#allocation7], 4
      %s60 = int_to_ptr.vmem [resolvable:$true] %s59
      %65 = dma.hbm_to_vmem [thread:$0]  %s8, 8192, %s60, [#allocation6], 128, 128, 8
    $region37: #{tpu_custom_call.1} parent=1 // pred_fallthru
      _
    // Predicated region
    $region38: #{tpu_custom_call.1} parent=1 // pred_check
      _
    $region39: #{tpu_custom_call.1} parent=1 // pred_check_branch
      %67 = sbr.rel (0) target = $region41
    $region40: #{tpu_custom_call.1} parent=1 // pred_region
      _
    $region41: #{tpu_custom_call.1} parent=1 // pred_fallthru
      _
    // Predicated region
    $region42: #{tpu_custom_call.1} parent=1 // pred_check
      _
    $region43: #{tpu_custom_call.1} parent=1 // pred_check_branch
      %69 = sbr.rel (0) target = $region45
    $region44: #{tpu_custom_call.1} parent=1 // pred_region
      %70 = dma.done [#allocation3], 4096
    $region45: #{tpu_custom_call.1} parent=1 // pred_fallthru
      _
    // Predicated region
    $region46: #{tpu_custom_call.1} parent=1 // pred_check
      _
    $region47: #{tpu_custom_call.1} parent=1 // pred_check_branch
      %72 = sbr.rel (0) target = $region49
    $region48: #{tpu_custom_call.1} parent=1 // pred_region
      %73 = dma.done [#allocation6], 16384
    $region49: #{tpu_custom_call.1} parent=1 // pred_fallthru
      _
    // Predicated region
    $region50: #{tpu_custom_call.1} parent=1 // pred_check
      _
    $region51: #{tpu_custom_call.1} parent=1 // pred_check_branch
      %75 = sbr.rel (0) target = $region53
    $region52: #{tpu_custom_call.1} parent=1 // pred_region
      %76 = dma.done [#allocation6], 8192
    $region53: #{tpu_custom_call.1} parent=1 // pred_fallthru
      _
    %v77 = vld [vmem:[%s0] sm:$0xff]
    %v78 = vld [vmem:[%s0 + $0x8] sm:$0xff]
    %v79 = vld [vmem:[%s0 + $0x10] sm:$0xff]
    %v80 = vld [vmem:[%s0 + $0x18] sm:$0xff]
    %v81 = vld [vmem:[%s0 + $0x20] sm:$0xff]
    %v82 = vld [vmem:[%s0 + $0x28] sm:$0xff]
    %v83 = vld [vmem:[%s0 + $0x30] sm:$0xff]
    %v84 = vld [vmem:[%s0 + $0x38] sm:$0xff]
    %v85 = vld [vmem:[%s0 + $0x40] sm:$0xff]
    %v86 = vld [vmem:[%s0 + $0x48] sm:$0xff]
    %v87 = vld [vmem:[%s0 + $0x50] sm:$0xff]
    %v88 = vld [vmem:[%s0 + $0x58] sm:$0xff]
    %v89 = vld [vmem:[%s0 + $0x60] sm:$0xff]
    %v90 = vld [vmem:[%s0 + $0x68] sm:$0xff]
    %v91 = vld [vmem:[%s0 + $0x70] sm:$0xff]
    %v92 = vld [vmem:[%s0 + $0x78] sm:$0xff]
    %v93 = vld [vmem:[%s0 + $0x80] sm:$0xff]
    %v94 = vld [vmem:[%s0 + $0x88] sm:$0xff]
    %v95 = vld [vmem:[%s0 + $0x90] sm:$0xff]
    %v96 = vld [vmem:[%s0 + $0x98] sm:$0xff]
    %v97 = vld [vmem:[%s0 + $0xa0] sm:$0xff]
    %v98 = vld [vmem:[%s0 + $0xa8] sm:$0xff]
    %v99 = vld [vmem:[%s0 + $0xb0] sm:$0xff]
    %v100 = vld [vmem:[%s0 + $0xb8] sm:$0xff]
    %v101 = vld [vmem:[%s0 + $0xc0] sm:$0xff]
    %v102 = vld [vmem:[%s0 + $0xc8] sm:$0xff]
    %v103 = vld [vmem:[%s0 + $0xd0] sm:$0xff]
    %v104 = vld [vmem:[%s0 + $0xd8] sm:$0xff]
    %v105 = vld [vmem:[%s0 + $0xe0] sm:$0xff]
    %v106 = vld [vmem:[%s0 + $0xe8] sm:$0xff]
    %v107 = vld [vmem:[%s0 + $0xf0] sm:$0xff]
    %v108 = vld [vmem:[%s0 + $0xf8] sm:$0xff]
    %v109 = vld [vmem:[%s0 + $0x100] sm:$0xff]
    %v110 = vld [vmem:[%s0 + $0x108] sm:$0xff]
    %v111 = vld [vmem:[%s0 + $0x110] sm:$0xff]
    %v112 = vld [vmem:[%s0 + $0x118] sm:$0xff]
    %v113 = vld [vmem:[%s0 + $0x120] sm:$0xff]
    %v114 = vld [vmem:[%s0 + $0x128] sm:$0xff]
    %v115 = vld [vmem:[%s0 + $0x130] sm:$0xff]
    %v116 = vld [vmem:[%s0 + $0x138] sm:$0xff]
    %v117 = vld [vmem:[%s0 + $0x140] sm:$0xff]
    %v118 = vld [vmem:[%s0 + $0x148] sm:$0xff]
    %v119 = vld [vmem:[%s0 + $0x150] sm:$0xff]
    %v120 = vld [vmem:[%s0 + $0x158] sm:$0xff]
    %v121 = vld [vmem:[%s0 + $0x160] sm:$0xff]
    %v122 = vld [vmem:[%s0 + $0x168] sm:$0xff]
    %v123 = vld [vmem:[%s0 + $0x170] sm:$0xff]
    %v124 = vld [vmem:[%s0 + $0x178] sm:$0xff]
    %v125 = vld [vmem:[%s0 + $0x180] sm:$0xff]
    %v126 = vld [vmem:[%s0 + $0x188] sm:$0xff]
    %v127 = vld [vmem:[%s0 + $0x190] sm:$0xff]
    %v128 = vld [vmem:[%s0 + $0x198] sm:$0xff]
    %v129 = vld [vmem:[%s0 + $0x1a0] sm:$0xff]
    %v130 = vld [vmem:[%s0 + $0x1a8] sm:$0xff]
    %v131 = vld [vmem:[%s0 + $0x1b0] sm:$0xff]
    %v132 = vld [vmem:[%s0 + $0x1b8] sm:$0xff]
    %v133 = vld [vmem:[%s0 + $0x1c0] sm:$0xff]
    %v134 = vld [vmem:[%s0 + $0x1c8] sm:$0xff]
    %v135 = vld [vmem:[%s0 + $0x1d0] sm:$0xff]
    %v136 = vld [vmem:[%s0 + $0x1d8] sm:$0xff]
    %v137 = vld [vmem:[%s0 + $0x1e0] sm:$0xff]
    %v138 = vld [vmem:[%s0 + $0x1e8] sm:$0xff]
    %v139 = vld [vmem:[%s0 + $0x1f0] sm:$0xff]
    %v140 = vld [vmem:[%s0 + $0x1f8] sm:$0xff]
    %v141 = vld [vmem:[%s0 + $0x200] sm:$0xff]
    %v142 = vld [vmem:[%s0 + $0x208] sm:$0xff]
    %v143 = vld [vmem:[%s0 + $0x210] sm:$0xff]
    %v144 = vld [vmem:[%s0 + $0x218] sm:$0xff]
    %v145 = vld [vmem:[%s0 + $0x220] sm:$0xff]
    %v146 = vld [vmem:[%s0 + $0x228] sm:$0xff]
    %v147 = vld [vmem:[%s0 + $0x230] sm:$0xff]
    %v148 = vld [vmem:[%s0 + $0x238] sm:$0xff]
    %v149 = vld [vmem:[%s0 + $0x240] sm:$0xff]
    %v150 = vld [vmem:[%s0 + $0x248] sm:$0xff]
    %v151 = vld [vmem:[%s0 + $0x250] sm:$0xff]
    %v152 = vld [vmem:[%s0 + $0x258] sm:$0xff]
    %v153 = vld [vmem:[%s0 + $0x260] sm:$0xff]
    %v154 = vld [vmem:[%s0 + $0x268] sm:$0xff]
    %v155 = vld [vmem:[%s0 + $0x270] sm:$0xff]
    %v156 = vld [vmem:[%s0 + $0x278] sm:$0xff]
    %v157 = vld [vmem:[%s0 + $0x280] sm:$0xff]
    %v158 = vld [vmem:[%s0 + $0x288] sm:$0xff]
    %v159 = vld [vmem:[%s0 + $0x290] sm:$0xff]
    %v160 = vld [vmem:[%s0 + $0x298] sm:$0xff]
    %v161 = vld [vmem:[%s0 + $0x2a0] sm:$0xff]
    %v162 = vld [vmem:[%s0 + $0x2a8] sm:$0xff]
    %v163 = vld [vmem:[%s0 + $0x2b0] sm:$0xff]
    %v164 = vld [vmem:[%s0 + $0x2b8] sm:$0xff]
    %v165 = vld [vmem:[%s0 + $0x2c0] sm:$0xff]
    %v166 = vld [vmem:[%s0 + $0x2c8] sm:$0xff]
    %v167 = vld [vmem:[%s0 + $0x2d0] sm:$0xff]
    %v168 = vld [vmem:[%s0 + $0x2d8] sm:$0xff]
    %v169 = vld [vmem:[%s0 + $0x2e0] sm:$0xff]
    %v170 = vld [vmem:[%s0 + $0x2e8] sm:$0xff]
    %v171 = vld [vmem:[%s0 + $0x2f0] sm:$0xff]
    %v172 = vld [vmem:[%s0 + $0x2f8] sm:$0xff]
    %v173 = vld [vmem:[%s0 + $0x300] sm:$0xff]
    %v174 = vld [vmem:[%s0 + $0x308] sm:$0xff]
    %v175 = vld [vmem:[%s0 + $0x310] sm:$0xff]
    %v176 = vld [vmem:[%s0 + $0x318] sm:$0xff]
    %v177 = vld [vmem:[%s0 + $0x320] sm:$0xff]
    %v178 = vld [vmem:[%s0 + $0x328] sm:$0xff]
    %v179 = vld [vmem:[%s0 + $0x330] sm:$0xff]
    %v180 = vld [vmem:[%s0 + $0x338] sm:$0xff]
    %v181 = vld [vmem:[%s0 + $0x340] sm:$0xff]
    %v182 = vld [vmem:[%s0 + $0x348] sm:$0xff]
    %v183 = vld [vmem:[%s0 + $0x350] sm:$0xff]
    %v184 = vld [vmem:[%s0 + $0x358] sm:$0xff]
    %v185 = vld [vmem:[%s0 + $0x360] sm:$0xff]
    %v186 = vld [vmem:[%s0 + $0x368] sm:$0xff]
    %v187 = vld [vmem:[%s0 + $0x370] sm:$0xff]
    %v188 = vld [vmem:[%s0 + $0x378] sm:$0xff]
    %v189 = vld [vmem:[%s0 + $0x380] sm:$0xff]
    %v190 = vld [vmem:[%s0 + $0x388] sm:$0xff]
    %v191 = vld [vmem:[%s0 + $0x390] sm:$0xff]
    %v192 = vld [vmem:[%s0 + $0x398] sm:$0xff]
    %v193 = vld [vmem:[%s0 + $0x3a0] sm:$0xff]
    %v194 = vld [vmem:[%s0 + $0x3a8] sm:$0xff]
    %v195 = vld [vmem:[%s0 + $0x3b0] sm:$0xff]
    %v196 = vld [vmem:[%s0 + $0x3b8] sm:$0xff]
    %v197 = vld [vmem:[%s0 + $0x3c0] sm:$0xff]
    %v198 = vld [vmem:[%s0 + $0x3c8] sm:$0xff]
    %v199 = vld [vmem:[%s0 + $0x3d0] sm:$0xff]
    %v200 = vld [vmem:[%s0 + $0x3d8] sm:$0xff]
    %v201 = vld [vmem:[%s0 + $0x3e0] sm:$0xff]
    %v202 = vld [vmem:[%s0 + $0x3e8] sm:$0xff]
    %v203 = vld [vmem:[%s0 + $0x3f0] sm:$0xff]
    %v204 = vld [vmem:[%s0 + $0x3f8] sm:$0xff]
    %v205 = vld [vmem:[%s1] sm:$0xf]
    %v206 = vld [vmem:[%s2] sm:$0x1]
    %v208 = vlaneseq
    %v209 = vshrl.u32 %v208, 7
    %v210 = vsub.s32 0, %v209
    %v211 = vrot.slane %v206, %v210
    %vm213 = vcmask 31744
    %v215 = vsel %vm213, %v77, 0
    %v218 = vsel %vm213, %v78, 0
    %v221 = vsel %vm213, %v79, 0
    %v224 = vsel %vm213, %v80, 0
    %v227 = vsel %vm213, %v81, 0
    %v230 = vsel %vm213, %v82, 0
    %v233 = vsel %vm213, %v83, 0
    %v236 = vsel %vm213, %v84, 0
    %v239 = vsel %vm213, %v85, 0
    %v242 = vsel %vm213, %v86, 0
    %v245 = vsel %vm213, %v87, 0
    %v248 = vsel %vm213, %v88, 0
    %v251 = vsel %vm213, %v89, 0
    %v254 = vsel %vm213, %v90, 0
    %v257 = vsel %vm213, %v91, 0
    %v260 = vsel %vm213, %v92, 0
    %v263 = vsel %vm213, %v93, 0
    %v266 = vsel %vm213, %v94, 0
    %v269 = vsel %vm213, %v95, 0
    %v272 = vsel %vm213, %v96, 0
    %v275 = vsel %vm213, %v97, 0
    %v278 = vsel %vm213, %v98, 0
    %v281 = vsel %vm213, %v99, 0
    %v284 = vsel %vm213, %v100, 0
    %v287 = vsel %vm213, %v101, 0
    %v290 = vsel %vm213, %v102, 0
    %v293 = vsel %vm213, %v103, 0
    %v296 = vsel %vm213, %v104, 0
    %v299 = vsel %vm213, %v105, 0
    %v302 = vsel %vm213, %v106, 0
    %v305 = vsel %vm213, %v107, 0
    %v308 = vsel %vm213, %v108, 0
    %v311 = vsel %vm213, %v109, 0
    %v314 = vsel %vm213, %v110, 0
    %v317 = vsel %vm213, %v111, 0
    %v320 = vsel %vm213, %v112, 0
    %v323 = vsel %vm213, %v113, 0
    %v326 = vsel %vm213, %v114, 0
    %v329 = vsel %vm213, %v115, 0
    %v332 = vsel %vm213, %v116, 0
    %v335 = vsel %vm213, %v117, 0
    %v338 = vsel %vm213, %v118, 0
    %v341 = vsel %vm213, %v119, 0
    %v344 = vsel %vm213, %v120, 0
    %v347 = vsel %vm213, %v121, 0
    %v350 = vsel %vm213, %v122, 0
    %v353 = vsel %vm213, %v123, 0
    %v356 = vsel %vm213, %v124, 0
    %v359 = vsel %vm213, %v125, 0
    %v362 = vsel %vm213, %v126, 0
    %v365 = vsel %vm213, %v127, 0
    %v368 = vsel %vm213, %v128, 0
    %v371 = vsel %vm213, %v129, 0
    %v374 = vsel %vm213, %v130, 0
    %v377 = vsel %vm213, %v131, 0
    %v380 = vsel %vm213, %v132, 0
    %v383 = vsel %vm213, %v133, 0
    %v386 = vsel %vm213, %v134, 0
    %v389 = vsel %vm213, %v135, 0
    %v392 = vsel %vm213, %v136, 0
    %v395 = vsel %vm213, %v137, 0
    %v398 = vsel %vm213, %v138, 0
    %v401 = vsel %vm213, %v139, 0
    %v404 = vsel %vm213, %v140, 0
    %v407 = vsel %vm213, %v141, 0
    %v410 = vsel %vm213, %v142, 0
    %v413 = vsel %vm213, %v143, 0
    %v416 = vsel %vm213, %v144, 0
    %v419 = vsel %vm213, %v145, 0
    %v422 = vsel %vm213, %v146, 0
    %v425 = vsel %vm213, %v147, 0
    %v428 = vsel %vm213, %v148, 0
    %v431 = vsel %vm213, %v149, 0
    %v434 = vsel %vm213, %v150, 0
    %v437 = vsel %vm213, %v151, 0
    %v440 = vsel %vm213, %v152, 0
    %v443 = vsel %vm213, %v153, 0
    %v446 = vsel %vm213, %v154, 0
    %v449 = vsel %vm213, %v155, 0
    %v452 = vsel %vm213, %v156, 0
    %v455 = vsel %vm213, %v157, 0
    %v458 = vsel %vm213, %v158, 0
    %v461 = vsel %vm213, %v159, 0
    %v464 = vsel %vm213, %v160, 0
    %v467 = vsel %vm213, %v161, 0
    %v470 = vsel %vm213, %v162, 0
    %v473 = vsel %vm213, %v163, 0
    %v476 = vsel %vm213, %v164, 0
    %v479 = vsel %vm213, %v165, 0
    %v482 = vsel %vm213, %v166, 0
    %v485 = vsel %vm213, %v167, 0
    %v488 = vsel %vm213, %v168, 0
    %v491 = vsel %vm213, %v169, 0
    %v494 = vsel %vm213, %v170, 0
    %v497 = vsel %vm213, %v171, 0
    %v500 = vsel %vm213, %v172, 0
    %v503 = vsel %vm213, %v173, 0
    %v506 = vsel %vm213, %v174, 0
    %v509 = vsel %vm213, %v175, 0
    %v512 = vsel %vm213, %v176, 0
    %v515 = vsel %vm213, %v177, 0
    %v518 = vsel %vm213, %v178, 0
    %v521 = vsel %vm213, %v179, 0
    %v524 = vsel %vm213, %v180, 0
    %v527 = vsel %vm213, %v181, 0
    %v530 = vsel %vm213, %v182, 0
    %v533 = vsel %vm213, %v183, 0
    %v536 = vsel %vm213, %v184, 0
    %v539 = vsel %vm213, %v185, 0
    %v542 = vsel %vm213, %v186, 0
    %v545 = vsel %vm213, %v187, 0
    %v548 = vsel %vm213, %v188, 0
    %v551 = vsel %vm213, %v189, 0
    %v554 = vsel %vm213, %v190, 0
    %v557 = vsel %vm213, %v191, 0
    %v560 = vsel %vm213, %v192, 0
    %v563 = vsel %vm213, %v193, 0
    %v566 = vsel %vm213, %v194, 0
    %v569 = vsel %vm213, %v195, 0
    %v572 = vsel %vm213, %v196, 0
    %v575 = vsel %vm213, %v197, 0
    %v578 = vsel %vm213, %v198, 0
    %v581 = vsel %vm213, %v199, 0
    %v584 = vsel %vm213, %v200, 0
    %v587 = vsel %vm213, %v201, 0
    %v590 = vsel %vm213, %v202, 0
    %v593 = vsel %vm213, %v203, 0
    %v596 = vsel %vm213, %v204, 0
    %vm598 = vcmask 1043456
    %v600 = vsel %vm598, %v205, 0
    %602 = vmatprep.subr.mxu0 0.0
    %603 = vmatpush1.msra.mxu0 %v600
    %604 = vmatprep.subr.mxu0 0.0
    %605 = vmatpush1.msra.mxu0 0.0
    %606 = vmatprep.subr.mxu0 0.0
    %607 = vmatpush1.msra.mxu0 0.0
    %608 = vmatprep.subr.mxu0 0.0
    %609 = vmatpush1.msra.mxu0 0.0
    %610 = vmatprep.subr.mxu0 0.0
    %611 = vmatpush1.msra.mxu0 0.0
    %612 = vmatprep.subr.mxu0 0.0
    %613 = vmatpush1.msra.mxu0 0.0
    %614 = vmatprep.subr.mxu0 0.0
    %615 = vmatpush1.msra.mxu0 0.0
    %616 = vmatprep.subr.mxu0 0.0
    %617 = vmatpush1.msra.mxu0 0.0
    %618 = vmatprep.subr.mxu0 0.0
    %619 = vmatpush1.msra.mxu0 0.0
    %620 = vmatprep.subr.mxu0 0.0
    %621 = vmatpush1.msra.mxu0 0.0
    %622 = vmatprep.subr.mxu0 0.0
    %623 = vmatpush1.msra.mxu0 0.0
    %624 = vmatprep.subr.mxu0 0.0
    %625 = vmatpush1.msra.mxu0 0.0
    %626 = vmatprep.subr.mxu0 0.0
    %627 = vmatpush1.msra.mxu0 0.0
    %628 = vmatprep.subr.mxu0 0.0
    %629 = vmatpush1.msra.mxu0 0.0
    %630 = vmatprep.subr.mxu0 0.0
    %631 = vmatpush1.msra.mxu0 0.0
    %632 = vmatprep.subr.mxu0 0.0
    %633 = vmatpush1.msra.mxu0 0.0
    %634 = vmatprep.subr.mxu0 0.0
    %635 = vmatpush1.msra.mxu0 0.0
    %636 = vmatprep.subr.mxu0 0.0
    %637 = vmatpush1.msra.mxu0 0.0
    %638 = vmatprep.subr.mxu0 0.0
    %639 = vmatpush1.msra.mxu0 0.0
    %640 = vmatprep.subr.mxu0 0.0
    %641 = vmatpush1.msra.mxu0 0.0
    %642 = vmatprep.subr.mxu0 0.0
    %643 = vmatpush1.msra.mxu0 0.0
    %644 = vmatprep.subr.mxu0 0.0
    %645 = vmatpush1.msra.mxu0 0.0
    %646 = vmatprep.subr.mxu0 0.0
    %647 = vmatpush1.msra.mxu0 0.0
    %648 = vmatprep.subr.mxu0 0.0
    %649 = vmatpush1.msra.mxu0 0.0
    %650 = vmatprep.subr.mxu0 0.0
    %651 = vmatpush1.msra.mxu0 0.0
    %652 = vmatprep.subr.mxu0 0.0
    %653 = vmatpush1.msra.mxu0 0.0
    %654 = vmatprep.subr.mxu0 0.0
    %655 = vmatpush1.msra.mxu0 0.0
    %656 = vmatprep.subr.mxu0 0.0
    %657 = vmatpush1.msra.mxu0 0.0
    %658 = vmatprep.subr.mxu0 0.0
    %659 = vmatpush1.msra.mxu0 0.0
    %660 = vmatprep.subr.mxu0 0.0
    %661 = vmatpush1.msra.mxu0 0.0
    %662 = vmatprep.subr.mxu0 0.0
    %663 = vmatpush1.msra.mxu0 0.0
    %664 = vmatprep.subr.mxu0 0.0
    %665 = vmatpush1.msra.mxu0 0.0
    %666 = vmatprep.mubr.f32.mxu0 0.0
    %667 = vmatmul.mubr.f32.gmra.mrb[0].mxu0 %v215
    %v668 = vpop.f32.mrb[0].mxu0
    %v669 = vadd.f32 %v211, %v668
    %v670 = vpop.f32.mrb[0].mxu0
    %671 = vmatprep.mubr.f32.mxu0 0.0
    %672 = vmatmul.mubr.f32.gmra.mrb[0].mxu0 %v218
    %v673 = vpop.f32.mrb[0].mxu0
    %v674 = vadd.f32 %v211, %v673
    %v675 = vpop.f32.mrb[0].mxu0
    %676 = vmatprep.mubr.f32.mxu0 0.0
    %677 = vmatmul.mubr.f32.gmra.mrb[0].mxu0 %v221
    %v678 = vpop.f32.mrb[0].mxu0
    %v679 = vadd.f32 %v211, %v678
    %v680 = vpop.f32.mrb[0].mxu0
    %681 = vmatprep.mubr.f32.mxu0 0.0
    %682 = vmatmul.mubr.f32.gmra.mrb[0].mxu0 %v224
    %v683 = vpop.f32.mrb[0].mxu0
    %v684 = vadd.f32 %v211, %v683
    %v685 = vpop.f32.mrb[0].mxu0
    %686 = vmatprep.mubr.f32.mxu0 0.0
    %687 = vmatmul.mubr.f32.gmra.mrb[0].mxu0 %v227
    %v688 = vpop.f32.mrb[0].mxu0
    %v689 = vadd.f32 %v211, %v688
    %v690 = vpop.f32.mrb[0].mxu0
    %691 = vmatprep.mubr.f32.mxu0 0.0
    %692 = vmatmul.mubr.f32.gmra.mrb[0].mxu0 %v230
    %v693 = vpop.f32.mrb[0].mxu0
    %v694 = vadd.f32 %v211, %v693
    %v695 = vpop.f32.mrb[0].mxu0
    %696 = vmatprep.mubr.f32.mxu0 0.0
    %697 = vmatmul.mubr.f32.gmra.mrb[0].mxu0 %v233
    %v698 = vpop.f32.mrb[0].mxu0
    %v699 = vadd.f32 %v211, %v698
    %v700 = vpop.f32.mrb[0].mxu0
    %701 = vmatprep.mubr.f32.mxu0 0.0
    %702 = vmatmul.mubr.f32.gmra.mrb[0].mxu0 %v236
    %v703 = vpop.f32.mrb[0].mxu0
    %v704 = vadd.f32 %v211, %v703
    %v705 = vpop.f32.mrb[0].mxu0
    %706 = vmatprep.mubr.f32.mxu0 0.0
    %707 = vmatmul.mubr.f32.gmra.mrb[0].mxu0 %v239
    %v708 = vpop.f32.mrb[0].mxu0
    %v709 = vadd.f32 %v211, %v708
    %v710 = vpop.f32.mrb[0].mxu0
    %711 = vmatprep.mubr.f32.mxu0 0.0
    %712 = vmatmul.mubr.f32.gmra.mrb[0].mxu0 %v242
    %v713 = vpop.f32.mrb[0].mxu0
    %v714 = vadd.f32 %v211, %v713
    %v715 = vpop.f32.mrb[0].mxu0
    %716 = vmatprep.mubr.f32.mxu0 0.0
    %717 = vmatmul.mubr.f32.gmra.mrb[0].mxu0 %v245
    %v718 = vpop.f32.mrb[0].mxu0
    %v719 = vadd.f32 %v211, %v718
    %v720 = vpop.f32.mrb[0].mxu0
    %721 = vmatprep.mubr.f32.mxu0 0.0
    %722 = vmatmul.mubr.f32.gmra.mrb[0].mxu0 %v248
    %v723 = vpop.f32.mrb[0].mxu0
    %v724 = vadd.f32 %v211, %v723
    %v725 = vpop.f32.mrb[0].mxu0
    %726 = vmatprep.mubr.f32.mxu0 0.0
    %727 = vmatmul.mubr.f32.gmra.mrb[0].mxu0 %v251
    %v728 = vpop.f32.mrb[0].mxu0
    %v729 = vadd.f32 %v211, %v728
    %v730 = vpop.f32.mrb[0].mxu0
    %731 = vmatprep.mubr.f32.mxu0 0.0
    %732 = vmatmul.mubr.f32.gmra.mrb[0].mxu0 %v254
    %v733 = vpop.f32.mrb[0].mxu0
    %v734 = vadd.f32 %v211, %v733
    %v735 = vpop.f32.mrb[0].mxu0
    %736 = vmatprep.mubr.f32.mxu0 0.0
    %737 = vmatmul.mubr.f32.gmra.mrb[0].mxu0 %v257
    %v738 = vpop.f32.mrb[0].mxu0
    %v739 = vadd.f32 %v211, %v738
    %v740 = vpop.f32.mrb[0].mxu0
    %741 = vmatprep.mubr.f32.mxu0 0.0
    %742 = vmatmul.mubr.f32.gmra.mrb[0].mxu0 %v260
    %v743 = vpop.f32.mrb[0].mxu0
    %v744 = vadd.f32 %v211, %v743
    %v745 = vpop.f32.mrb[0].mxu0
    %746 = vmatprep.mubr.f32.mxu0 0.0
    %747 = vmatmul.mubr.f32.gmra.mrb[0].mxu0 %v263
    %v748 = vpop.f32.mrb[0].mxu0
    %v749 = vadd.f32 %v211, %v748
    %v750 = vpop.f32.mrb[0].mxu0
    %751 = vmatprep.mubr.f32.mxu0 0.0
    %752 = vmatmul.mubr.f32.gmra.mrb[0].mxu0 %v266
    %v753 = vpop.f32.mrb[0].mxu0
    %v754 = vadd.f32 %v211, %v753
    %v755 = vpop.f32.mrb[0].mxu0
    %756 = vmatprep.mubr.f32.mxu0 0.0
    %757 = vmatmul.mubr.f32.gmra.mrb[0].mxu0 %v269
    %v758 = vpop.f32.mrb[0].mxu0
    %v759 = vadd.f32 %v211, %v758
    %v760 = vpop.f32.mrb[0].mxu0
    %761 = vmatprep.mubr.f32.mxu0 0.0
    %762 = vmatmul.mubr.f32.gmra.mrb[0].mxu0 %v272
    %v763 = vpop.f32.mrb[0].mxu0
    %v764 = vadd.f32 %v211, %v763
    %v765 = vpop.f32.mrb[0].mxu0
    %766 = vmatprep.mubr.f32.mxu0 0.0
    %767 = vmatmul.mubr.f32.gmra.mrb[0].mxu0 %v275
    %v768 = vpop.f32.mrb[0].mxu0
    %v769 = vadd.f32 %v211, %v768
    %v770 = vpop.f32.mrb[0].mxu0
    %771 = vmatprep.mubr.f32.mxu0 0.0
    %772 = vmatmul.mubr.f32.gmra.mrb[0].mxu0 %v278
    %v773 = vpop.f32.mrb[0].mxu0
    %v774 = vadd.f32 %v211, %v773
    %v775 = vpop.f32.mrb[0].mxu0
    %776 = vmatprep.mubr.f32.mxu0 0.0
    %777 = vmatmul.mubr.f32.gmra.mrb[0].mxu0 %v281
    %v778 = vpop.f32.mrb[0].mxu0
    %v779 = vadd.f32 %v211, %v778
    %v780 = vpop.f32.mrb[0].mxu0
    %781 = vmatprep.mubr.f32.mxu0 0.0
    %782 = vmatmul.mubr.f32.gmra.mrb[0].mxu0 %v284
    %v783 = vpop.f32.mrb[0].mxu0
    %v784 = vadd.f32 %v211, %v783
    %v785 = vpop.f32.mrb[0].mxu0
    %786 = vmatprep.mubr.f32.mxu0 0.0
    %787 = vmatmul.mubr.f32.gmra.mrb[0].mxu0 %v287
    %v788 = vpop.f32.mrb[0].mxu0
    %v789 = vadd.f32 %v211, %v788
    %v790 = vpop.f32.mrb[0].mxu0
    %791 = vmatprep.mubr.f32.mxu0 0.0
    %792 = vmatmul.mubr.f32.gmra.mrb[0].mxu0 %v290
    %v793 = vpop.f32.mrb[0].mxu0
    %v794 = vadd.f32 %v211, %v793
    %v795 = vpop.f32.mrb[0].mxu0
    %796 = vmatprep.mubr.f32.mxu0 0.0
    %797 = vmatmul.mubr.f32.gmra.mrb[0].mxu0 %v293
    %v798 = vpop.f32.mrb[0].mxu0
    %v799 = vadd.f32 %v211, %v798
    %v800 = vpop.f32.mrb[0].mxu0
    %801 = vmatprep.mubr.f32.mxu0 0.0
    %802 = vmatmul.mubr.f32.gmra.mrb[0].mxu0 %v296
    %v803 = vpop.f32.mrb[0].mxu0
    %v804 = vadd.f32 %v211, %v803
    %v805 = vpop.f32.mrb[0].mxu0
    %806 = vmatprep.mubr.f32.mxu0 0.0
    %807 = vmatmul.mubr.f32.gmra.mrb[0].mxu0 %v299
    %v808 = vpop.f32.mrb[0].mxu0
    %v809 = vadd.f32 %v211, %v808
    %v810 = vpop.f32.mrb[0].mxu0
    %811 = vmatprep.mubr.f32.mxu0 0.0
    %812 = vmatmul.mubr.f32.gmra.mrb[0].mxu0 %v302
    %v813 = vpop.f32.mrb[0].mxu0
    %v814 = vadd.f32 %v211, %v813
    %v815 = vpop.f32.mrb[0].mxu0
    %816 = vmatprep.mubr.f32.mxu0 0.0
    %817 = vmatmul.mubr.f32.gmra.mrb[0].mxu0 %v305
    %v818 = vpop.f32.mrb[0].mxu0
    %v819 = vadd.f32 %v211, %v818
    %v820 = vpop.f32.mrb[0].mxu0
    %821 = vmatprep.mubr.f32.mxu0 0.0
    %822 = vmatmul.mubr.f32.gmra.mrb[0].mxu0 %v308
    %v823 = vpop.f32.mrb[0].mxu0
    %v824 = vadd.f32 %v211, %v823
    %v825 = vpop.f32.mrb[0].mxu0
    %826 = vmatprep.mubr.f32.mxu0 0.0
    %827 = vmatmul.mubr.f32.gmra.mrb[0].mxu0 %v311
    %v828 = vpop.f32.mrb[0].mxu0
    %v829 = vadd.f32 %v211, %v828
    %v830 = vpop.f32.mrb[0].mxu0
    %831 = vmatprep.mubr.f32.mxu0 0.0
    %832 = vmatmul.mubr.f32.gmra.mrb[0].mxu0 %v314
    %v833 = vpop.f32.mrb[0].mxu0
    %v834 = vadd.f32 %v211, %v833
    %v835 = vpop.f32.mrb[0].mxu0
    %836 = vmatprep.mubr.f32.mxu0 0.0
    %837 = vmatmul.mubr.f32.gmra.mrb[0].mxu0 %v317
    %v838 = vpop.f32.mrb[0].mxu0
    %v839 = vadd.f32 %v211, %v838
    %v840 = vpop.f32.mrb[0].mxu0
    %841 = vmatprep.mubr.f32.mxu0 0.0
    %842 = vmatmul.mubr.f32.gmra.mrb[0].mxu0 %v320
    %v843 = vpop.f32.mrb[0].mxu0
    %v844 = vadd.f32 %v211, %v843
    %v845 = vpop.f32.mrb[0].mxu0
    %846 = vmatprep.mubr.f32.mxu0 0.0
    %847 = vmatmul.mubr.f32.gmra.mrb[0].mxu0 %v323
    %v848 = vpop.f32.mrb[0].mxu0
    %v849 = vadd.f32 %v211, %v848
    %v850 = vpop.f32.mrb[0].mxu0
    %851 = vmatprep.mubr.f32.mxu0 0.0
    %852 = vmatmul.mubr.f32.gmra.mrb[0].mxu0 %v326
    %v853 = vpop.f32.mrb[0].mxu0
    %v854 = vadd.f32 %v211, %v853
    %v855 = vpop.f32.mrb[0].mxu0
    %856 = vmatprep.mubr.f32.mxu0 0.0
    %857 = vmatmul.mubr.f32.gmra.mrb[0].mxu0 %v329
    %v858 = vpop.f32.mrb[0].mxu0
    %v859 = vadd.f32 %v211, %v858
    %v860 = vpop.f32.mrb[0].mxu0
    %861 = vmatprep.mubr.f32.mxu0 0.0
    %862 = vmatmul.mubr.f32.gmra.mrb[0].mxu0 %v332
    %v863 = vpop.f32.mrb[0].mxu0
    %v864 = vadd.f32 %v211, %v863
    %v865 = vpop.f32.mrb[0].mxu0
    %866 = vmatprep.mubr.f32.mxu0 0.0
    %867 = vmatmul.mubr.f32.gmra.mrb[0].mxu0 %v335
    %v868 = vpop.f32.mrb[0].mxu0
    %v869 = vadd.f32 %v211, %v868
    %v870 = vpop.f32.mrb[0].mxu0
    %871 = vmatprep.mubr.f32.mxu0 0.0
    %872 = vmatmul.mubr.f32.gmra.mrb[0].mxu0 %v338
    %v873 = vpop.f32.mrb[0].mxu0
    %v874 = vadd.f32 %v211, %v873
    %v875 = vpop.f32.mrb[0].mxu0
    %876 = vmatprep.mubr.f32.mxu0 0.0
    %877 = vmatmul.mubr.f32.gmra.mrb[0].mxu0 %v341
    %v878 = vpop.f32.mrb[0].mxu0
    %v879 = vadd.f32 %v211, %v878
    %v880 = vpop.f32.mrb[0].mxu0
    %881 = vmatprep.mubr.f32.mxu0 0.0
    %882 = vmatmul.mubr.f32.gmra.mrb[0].mxu0 %v344
    %v883 = vpop.f32.mrb[0].mxu0
    %v884 = vadd.f32 %v211, %v883
    %v885 = vpop.f32.mrb[0].mxu0
    %886 = vmatprep.mubr.f32.mxu0 0.0
    %887 = vmatmul.mubr.f32.gmra.mrb[0].mxu0 %v347
    %v888 = vpop.f32.mrb[0].mxu0
    %v889 = vadd.f32 %v211, %v888
    %v890 = vpop.f32.mrb[0].mxu0
    %891 = vmatprep.mubr.f32.mxu0 0.0
    %892 = vmatmul.mubr.f32.gmra.mrb[0].mxu0 %v350
    %v893 = vpop.f32.mrb[0].mxu0
    %v894 = vadd.f32 %v211, %v893
    %v895 = vpop.f32.mrb[0].mxu0
    %896 = vmatprep.mubr.f32.mxu0 0.0
    %897 = vmatmul.mubr.f32.gmra.mrb[0].mxu0 %v353
    %v898 = vpop.f32.mrb[0].mxu0
    %v899 = vadd.f32 %v211, %v898
    %v900 = vpop.f32.mrb[0].mxu0
    %901 = vmatprep.mubr.f32.mxu0 0.0
    %902 = vmatmul.mubr.f32.gmra.mrb[0].mxu0 %v356
    %v903 = vpop.f32.mrb[0].mxu0
    %v904 = vadd.f32 %v211, %v903
    %v905 = vpop.f32.mrb[0].mxu0
    %906 = vmatprep.mubr.f32.mxu0 0.0
    %907 = vmatmul.mubr.f32.gmra.mrb[0].mxu0 %v359
    %v908 = vpop.f32.mrb[0].mxu0
    %v909 = vadd.f32 %v211, %v908
    %v910 = vpop.f32.mrb[0].mxu0
    %911 = vmatprep.mubr.f32.mxu0 0.0
    %912 = vmatmul.mubr.f32.gmra.mrb[0].mxu0 %v362
    %v913 = vpop.f32.mrb[0].mxu0
    %v914 = vadd.f32 %v211, %v913
    %v915 = vpop.f32.mrb[0].mxu0
    %916 = vmatprep.mubr.f32.mxu0 0.0
    %917 = vmatmul.mubr.f32.gmra.mrb[0].mxu0 %v365
    %v918 = vpop.f32.mrb[0].mxu0
    %v919 = vadd.f32 %v211, %v918
    %v920 = vpop.f32.mrb[0].mxu0
    %921 = vmatprep.mubr.f32.mxu0 0.0
    %922 = vmatmul.mubr.f32.gmra.mrb[0].mxu0 %v368
    %v923 = vpop.f32.mrb[0].mxu0
    %v924 = vadd.f32 %v211, %v923
    %v925 = vpop.f32.mrb[0].mxu0
    %926 = vmatprep.mubr.f32.mxu0 0.0
    %927 = vmatmul.mubr.f32.gmra.mrb[0].mxu0 %v371
    %v928 = vpop.f32.mrb[0].mxu0
    %v929 = vadd.f32 %v211, %v928
    %v930 = vpop.f32.mrb[0].mxu0
    %931 = vmatprep.mubr.f32.mxu0 0.0
    %932 = vmatmul.mubr.f32.gmra.mrb[0].mxu0 %v374
    %v933 = vpop.f32.mrb[0].mxu0
    %v934 = vadd.f32 %v211, %v933
    %v935 = vpop.f32.mrb[0].mxu0
    %936 = vmatprep.mubr.f32.mxu0 0.0
    %937 = vmatmul.mubr.f32.gmra.mrb[0].mxu0 %v377
    %v938 = vpop.f32.mrb[0].mxu0
    %v939 = vadd.f32 %v211, %v938
    %v940 = vpop.f32.mrb[0].mxu0
    %941 = vmatprep.mubr.f32.mxu0 0.0
    %942 = vmatmul.mubr.f32.gmra.mrb[0].mxu0 %v380
    %v943 = vpop.f32.mrb[0].mxu0
    %v944 = vadd.f32 %v211, %v943
    %v945 = vpop.f32.mrb[0].mxu0
    %946 = vmatprep.mubr.f32.mxu0 0.0
    %947 = vmatmul.mubr.f32.gmra.mrb[0].mxu0 %v383
    %v948 = vpop.f32.mrb[0].mxu0
    %v949 = vadd.f32 %v211, %v948
    %v950 = vpop.f32.mrb[0].mxu0
    %951 = vmatprep.mubr.f32.mxu0 0.0
    %952 = vmatmul.mubr.f32.gmra.mrb[0].mxu0 %v386
    %v953 = vpop.f32.mrb[0].mxu0
    %v954 = vadd.f32 %v211, %v953
    %v955 = vpop.f32.mrb[0].mxu0
    %956 = vmatprep.mubr.f32.mxu0 0.0
    %957 = vmatmul.mubr.f32.gmra.mrb[0].mxu0 %v389
    %v958 = vpop.f32.mrb[0].mxu0
    %v959 = vadd.f32 %v211, %v958
    %v960 = vpop.f32.mrb[0].mxu0
    %961 = vmatprep.mubr.f32.mxu0 0.0
    %962 = vmatmul.mubr.f32.gmra.mrb[0].mxu0 %v392
    %v963 = vpop.f32.mrb[0].mxu0
    %v964 = vadd.f32 %v211, %v963
    %v965 = vpop.f32.mrb[0].mxu0
    %966 = vmatprep.mubr.f32.mxu0 0.0
    %967 = vmatmul.mubr.f32.gmra.mrb[0].mxu0 %v395
    %v968 = vpop.f32.mrb[0].mxu0
    %v969 = vadd.f32 %v211, %v968
    %v970 = vpop.f32.mrb[0].mxu0
    %971 = vmatprep.mubr.f32.mxu0 0.0
    %972 = vmatmul.mubr.f32.gmra.mrb[0].mxu0 %v398
    %v973 = vpop.f32.mrb[0].mxu0
    %v974 = vadd.f32 %v211, %v973
    %v975 = vpop.f32.mrb[0].mxu0
    %976 = vmatprep.mubr.f32.mxu0 0.0
    %977 = vmatmul.mubr.f32.gmra.mrb[0].mxu0 %v401
    %v978 = vpop.f32.mrb[0].mxu0
    %v979 = vadd.f32 %v211, %v978
    %v980 = vpop.f32.mrb[0].mxu0
    %981 = vmatprep.mubr.f32.mxu0 0.0
    %982 = vmatmul.mubr.f32.gmra.mrb[0].mxu0 %v404
    %v983 = vpop.f32.mrb[0].mxu0
    %v984 = vadd.f32 %v211, %v983
    %v985 = vpop.f32.mrb[0].mxu0
    %986 = vmatprep.mubr.f32.mxu0 0.0
    %987 = vmatmul.mubr.f32.gmra.mrb[0].mxu0 %v407
    %v988 = vpop.f32.mrb[0].mxu0
    %v989 = vadd.f32 %v211, %v988
    %v990 = vpop.f32.mrb[0].mxu0
    %991 = vmatprep.mubr.f32.mxu0 0.0
    %992 = vmatmul.mubr.f32.gmra.mrb[0].mxu0 %v410
    %v993 = vpop.f32.mrb[0].mxu0
    %v994 = vadd.f32 %v211, %v993
    %v995 = vpop.f32.mrb[0].mxu0
    %996 = vmatprep.mubr.f32.mxu0 0.0
    %997 = vmatmul.mubr.f32.gmra.mrb[0].mxu0 %v413
    %v998 = vpop.f32.mrb[0].mxu0
    %v999 = vadd.f32 %v211, %v998
    %v1000 = vpop.f32.mrb[0].mxu0
    %1001 = vmatprep.mubr.f32.mxu0 0.0
    %1002 = vmatmul.mubr.f32.gmra.mrb[0].mxu0 %v416
    %v1003 = vpop.f32.mrb[0].mxu0
    %v1004 = vadd.f32 %v211, %v1003
    %v1005 = vpop.f32.mrb[0].mxu0
    %1006 = vmatprep.mubr.f32.mxu0 0.0
    %1007 = vmatmul.mubr.f32.gmra.mrb[0].mxu0 %v419
    %v1008 = vpop.f32.mrb[0].mxu0
    %v1009 = vadd.f32 %v211, %v1008
    %v1010 = vpop.f32.mrb[0].mxu0
    %1011 = vmatprep.mubr.f32.mxu0 0.0
    %1012 = vmatmul.mubr.f32.gmra.mrb[0].mxu0 %v422
    %v1013 = vpop.f32.mrb[0].mxu0
    %v1014 = vadd.f32 %v211, %v1013
    %v1015 = vpop.f32.mrb[0].mxu0
    %1016 = vmatprep.mubr.f32.mxu0 0.0
    %1017 = vmatmul.mubr.f32.gmra.mrb[0].mxu0 %v425
    %v1018 = vpop.f32.mrb[0].mxu0
    %v1019 = vadd.f32 %v211, %v1018
    %v1020 = vpop.f32.mrb[0].mxu0
    %1021 = vmatprep.mubr.f32.mxu0 0.0
    %1022 = vmatmul.mubr.f32.gmra.mrb[0].mxu0 %v428
    %v1023 = vpop.f32.mrb[0].mxu0
    %v1024 = vadd.f32 %v211, %v1023
    %v1025 = vpop.f32.mrb[0].mxu0
    %1026 = vmatprep.mubr.f32.mxu0 0.0
    %1027 = vmatmul.mubr.f32.gmra.mrb[0].mxu0 %v431
    %v1028 = vpop.f32.mrb[0].mxu0
    %v1029 = vadd.f32 %v211, %v1028
    %v1030 = vpop.f32.mrb[0].mxu0
    %1031 = vmatprep.mubr.f32.mxu0 0.0
    %1032 = vmatmul.mubr.f32.gmra.mrb[0].mxu0 %v434
    %v1033 = vpop.f32.mrb[0].mxu0
    %v1034 = vadd.f32 %v211, %v1033
    %v1035 = vpop.f32.mrb[0].mxu0
    %1036 = vmatprep.mubr.f32.mxu0 0.0
    %1037 = vmatmul.mubr.f32.gmra.mrb[0].mxu0 %v437
    %v1038 = vpop.f32.mrb[0].mxu0
    %v1039 = vadd.f32 %v211, %v1038
    %v1040 = vpop.f32.mrb[0].mxu0
    %1041 = vmatprep.mubr.f32.mxu0 0.0
    %1042 = vmatmul.mubr.f32.gmra.mrb[0].mxu0 %v440
    %v1043 = vpop.f32.mrb[0].mxu0
    %v1044 = vadd.f32 %v211, %v1043
    %v1045 = vpop.f32.mrb[0].mxu0
    %1046 = vmatprep.mubr.f32.mxu0 0.0
    %1047 = vmatmul.mubr.f32.gmra.mrb[0].mxu0 %v443
    %v1048 = vpop.f32.mrb[0].mxu0
    %v1049 = vadd.f32 %v211, %v1048
    %v1050 = vpop.f32.mrb[0].mxu0
    %1051 = vmatprep.mubr.f32.mxu0 0.0
    %1052 = vmatmul.mubr.f32.gmra.mrb[0].mxu0 %v446
    %v1053 = vpop.f32.mrb[0].mxu0
    %v1054 = vadd.f32 %v211, %v1053
    %v1055 = vpop.f32.mrb[0].mxu0
    %1056 = vmatprep.mubr.f32.mxu0 0.0
    %1057 = vmatmul.mubr.f32.gmra.mrb[0].mxu0 %v449
    %v1058 = vpop.f32.mrb[0].mxu0
    %v1059 = vadd.f32 %v211, %v1058
    %v1060 = vpop.f32.mrb[0].mxu0
    %1061 = vmatprep.mubr.f32.mxu0 0.0
    %1062 = vmatmul.mubr.f32.gmra.mrb[0].mxu0 %v452
    %v1063 = vpop.f32.mrb[0].mxu0
    %v1064 = vadd.f32 %v211, %v1063
    %v1065 = vpop.f32.mrb[0].mxu0
    %1066 = vmatprep.mubr.f32.mxu0 0.0
    %1067 = vmatmul.mubr.f32.gmra.mrb[0].mxu0 %v455
    %v1068 = vpop.f32.mrb[0].mxu0
    %v1069 = vadd.f32 %v211, %v1068
    %v1070 = vpop.f32.mrb[0].mxu0
    %1071 = vmatprep.mubr.f32.mxu0 0.0
    %1072 = vmatmul.mubr.f32.gmra.mrb[0].mxu0 %v458
    %v1073 = vpop.f32.mrb[0].mxu0
    %v1074 = vadd.f32 %v211, %v1073
    %v1075 = vpop.f32.mrb[0].mxu0
    %1076 = vmatprep.mubr.f32.mxu0 0.0
    %1077 = vmatmul.mubr.f32.gmra.mrb[0].mxu0 %v461
    %v1078 = vpop.f32.mrb[0].mxu0
    %v1079 = vadd.f32 %v211, %v1078
    %v1080 = vpop.f32.mrb[0].mxu0
    %1081 = vmatprep.mubr.f32.mxu0 0.0
    %1082 = vmatmul.mubr.f32.gmra.mrb[0].mxu0 %v464
    %v1083 = vpop.f32.mrb[0].mxu0
    %v1084 = vadd.f32 %v211, %v1083
    %v1085 = vpop.f32.mrb[0].mxu0
    %1086 = vmatprep.mubr.f32.mxu0 0.0
    %1087 = vmatmul.mubr.f32.gmra.mrb[0].mxu0 %v467
    %v1088 = vpop.f32.mrb[0].mxu0
    %v1089 = vadd.f32 %v211, %v1088
    %v1090 = vpop.f32.mrb[0].mxu0
    %1091 = vmatprep.mubr.f32.mxu0 0.0
    %1092 = vmatmul.mubr.f32.gmra.mrb[0].mxu0 %v470
    %v1093 = vpop.f32.mrb[0].mxu0
    %v1094 = vadd.f32 %v211, %v1093
    %v1095 = vpop.f32.mrb[0].mxu0
    %1096 = vmatprep.mubr.f32.mxu0 0.0
    %1097 = vmatmul.mubr.f32.gmra.mrb[0].mxu0 %v473
    %v1098 = vpop.f32.mrb[0].mxu0
    %v1099 = vadd.f32 %v211, %v1098
    %v1100 = vpop.f32.mrb[0].mxu0
    %1101 = vmatprep.mubr.f32.mxu0 0.0
    %1102 = vmatmul.mubr.f32.gmra.mrb[0].mxu0 %v476
    %v1103 = vpop.f32.mrb[0].mxu0
    %v1104 = vadd.f32 %v211, %v1103
    %v1105 = vpop.f32.mrb[0].mxu0
    %1106 = vmatprep.mubr.f32.mxu0 0.0
    %1107 = vmatmul.mubr.f32.gmra.mrb[0].mxu0 %v479
    %v1108 = vpop.f32.mrb[0].mxu0
    %v1109 = vadd.f32 %v211, %v1108
    %v1110 = vpop.f32.mrb[0].mxu0
    %1111 = vmatprep.mubr.f32.mxu0 0.0
    %1112 = vmatmul.mubr.f32.gmra.mrb[0].mxu0 %v482
    %v1113 = vpop.f32.mrb[0].mxu0
    %v1114 = vadd.f32 %v211, %v1113
    %v1115 = vpop.f32.mrb[0].mxu0
    %1116 = vmatprep.mubr.f32.mxu0 0.0
    %1117 = vmatmul.mubr.f32.gmra.mrb[0].mxu0 %v485
    %v1118 = vpop.f32.mrb[0].mxu0
    %v1119 = vadd.f32 %v211, %v1118
    %v1120 = vpop.f32.mrb[0].mxu0
    %1121 = vmatprep.mubr.f32.mxu0 0.0
    %1122 = vmatmul.mubr.f32.gmra.mrb[0].mxu0 %v488
    %v1123 = vpop.f32.mrb[0].mxu0
    %v1124 = vadd.f32 %v211, %v1123
    %v1125 = vpop.f32.mrb[0].mxu0
    %1126 = vmatprep.mubr.f32.mxu0 0.0
    %1127 = vmatmul.mubr.f32.gmra.mrb[0].mxu0 %v491
    %v1128 = vpop.f32.mrb[0].mxu0
    %v1129 = vadd.f32 %v211, %v1128
    %v1130 = vpop.f32.mrb[0].mxu0
    %1131 = vmatprep.mubr.f32.mxu0 0.0
    %1132 = vmatmul.mubr.f32.gmra.mrb[0].mxu0 %v494
    %v1133 = vpop.f32.mrb[0].mxu0
    %v1134 = vadd.f32 %v211, %v1133
    %v1135 = vpop.f32.mrb[0].mxu0
    %1136 = vmatprep.mubr.f32.mxu0 0.0
    %1137 = vmatmul.mubr.f32.gmra.mrb[0].mxu0 %v497
    %v1138 = vpop.f32.mrb[0].mxu0
    %v1139 = vadd.f32 %v211, %v1138
    %v1140 = vpop.f32.mrb[0].mxu0
    %1141 = vmatprep.mubr.f32.mxu0 0.0
    %1142 = vmatmul.mubr.f32.gmra.mrb[0].mxu0 %v500
    %v1143 = vpop.f32.mrb[0].mxu0
    %v1144 = vadd.f32 %v211, %v1143
    %v1145 = vpop.f32.mrb[0].mxu0
    %1146 = vmatprep.mubr.f32.mxu0 0.0
    %1147 = vmatmul.mubr.f32.gmra.mrb[0].mxu0 %v503
    %v1148 = vpop.f32.mrb[0].mxu0
    %v1149 = vadd.f32 %v211, %v1148
    %v1150 = vpop.f32.mrb[0].mxu0
    %1151 = vmatprep.mubr.f32.mxu0 0.0
    %1152 = vmatmul.mubr.f32.gmra.mrb[0].mxu0 %v506
    %v1153 = vpop.f32.mrb[0].mxu0
    %v1154 = vadd.f32 %v211, %v1153
    %v1155 = vpop.f32.mrb[0].mxu0
    %1156 = vmatprep.mubr.f32.mxu0 0.0
    %1157 = vmatmul.mubr.f32.gmra.mrb[0].mxu0 %v509
    %v1158 = vpop.f32.mrb[0].mxu0
    %v1159 = vadd.f32 %v211, %v1158
    %v1160 = vpop.f32.mrb[0].mxu0
    %1161 = vmatprep.mubr.f32.mxu0 0.0
    %1162 = vmatmul.mubr.f32.gmra.mrb[0].mxu0 %v512
    %v1163 = vpop.f32.mrb[0].mxu0
    %v1164 = vadd.f32 %v211, %v1163
    %v1165 = vpop.f32.mrb[0].mxu0
    %1166 = vmatprep.mubr.f32.mxu0 0.0
    %1167 = vmatmul.mubr.f32.gmra.mrb[0].mxu0 %v515
    %v1168 = vpop.f32.mrb[0].mxu0
    %v1169 = vadd.f32 %v211, %v1168
    %v1170 = vpop.f32.mrb[0].mxu0
    %1171 = vmatprep.mubr.f32.mxu0 0.0
    %1172 = vmatmul.mubr.f32.gmra.mrb[0].mxu0 %v518
    %v1173 = vpop.f32.mrb[0].mxu0
    %v1174 = vadd.f32 %v211, %v1173
    %v1175 = vpop.f32.mrb[0].mxu0
    %1176 = vmatprep.mubr.f32.mxu0 0.0
    %1177 = vmatmul.mubr.f32.gmra.mrb[0].mxu0 %v521
    %v1178 = vpop.f32.mrb[0].mxu0
    %v1179 = vadd.f32 %v211, %v1178
    %v1180 = vpop.f32.mrb[0].mxu0
    %1181 = vmatprep.mubr.f32.mxu0 0.0
    %1182 = vmatmul.mubr.f32.gmra.mrb[0].mxu0 %v524
    %v1183 = vpop.f32.mrb[0].mxu0
    %v1184 = vadd.f32 %v211, %v1183
    %v1185 = vpop.f32.mrb[0].mxu0
    %1186 = vmatprep.mubr.f32.mxu0 0.0
    %1187 = vmatmul.mubr.f32.gmra.mrb[0].mxu0 %v527
    %v1188 = vpop.f32.mrb[0].mxu0
    %v1189 = vadd.f32 %v211, %v1188
    %v1190 = vpop.f32.mrb[0].mxu0
    %1191 = vmatprep.mubr.f32.mxu0 0.0
    %1192 = vmatmul.mubr.f32.gmra.mrb[0].mxu0 %v530
    %v1193 = vpop.f32.mrb[0].mxu0
    %v1194 = vadd.f32 %v211, %v1193
    %v1195 = vpop.f32.mrb[0].mxu0
    %1196 = vmatprep.mubr.f32.mxu0 0.0
    %1197 = vmatmul.mubr.f32.gmra.mrb[0].mxu0 %v533
    %v1198 = vpop.f32.mrb[0].mxu0
    %v1199 = vadd.f32 %v211, %v1198
    %v1200 = vpop.f32.mrb[0].mxu0
    %1201 = vmatprep.mubr.f32.mxu0 0.0
    %1202 = vmatmul.mubr.f32.gmra.mrb[0].mxu0 %v536
    %v1203 = vpop.f32.mrb[0].mxu0
    %v1204 = vadd.f32 %v211, %v1203
    %v1205 = vpop.f32.mrb[0].mxu0
    %1206 = vmatprep.mubr.f32.mxu0 0.0
    %1207 = vmatmul.mubr.f32.gmra.mrb[0].mxu0 %v539
    %v1208 = vpop.f32.mrb[0].mxu0
    %v1209 = vadd.f32 %v211, %v1208
    %v1210 = vpop.f32.mrb[0].mxu0
    %1211 = vmatprep.mubr.f32.mxu0 0.0
    %1212 = vmatmul.mubr.f32.gmra.mrb[0].mxu0 %v542
    %v1213 = vpop.f32.mrb[0].mxu0
    %v1214 = vadd.f32 %v211, %v1213
    %v1215 = vpop.f32.mrb[0].mxu0
    %1216 = vmatprep.mubr.f32.mxu0 0.0
    %1217 = vmatmul.mubr.f32.gmra.mrb[0].mxu0 %v545
    %v1218 = vpop.f32.mrb[0].mxu0
    %v1219 = vadd.f32 %v211, %v1218
    %v1220 = vpop.f32.mrb[0].mxu0
    %1221 = vmatprep.mubr.f32.mxu0 0.0
    %1222 = vmatmul.mubr.f32.gmra.mrb[0].mxu0 %v548
    %v1223 = vpop.f32.mrb[0].mxu0
    %v1224 = vadd.f32 %v211, %v1223
    %v1225 = vpop.f32.mrb[0].mxu0
    %1226 = vmatprep.mubr.f32.mxu0 0.0
    %1227 = vmatmul.mubr.f32.gmra.mrb[0].mxu0 %v551
    %v1228 = vpop.f32.mrb[0].mxu0
    %v1229 = vadd.f32 %v211, %v1228
    %v1230 = vpop.f32.mrb[0].mxu0
    %1231 = vmatprep.mubr.f32.mxu0 0.0
    %1232 = vmatmul.mubr.f32.gmra.mrb[0].mxu0 %v554
    %v1233 = vpop.f32.mrb[0].mxu0
    %v1234 = vadd.f32 %v211, %v1233
    %v1235 = vpop.f32.mrb[0].mxu0
    %1236 = vmatprep.mubr.f32.mxu0 0.0
    %1237 = vmatmul.mubr.f32.gmra.mrb[0].mxu0 %v557
    %v1238 = vpop.f32.mrb[0].mxu0
    %v1239 = vadd.f32 %v211, %v1238
    %v1240 = vpop.f32.mrb[0].mxu0
    %1241 = vmatprep.mubr.f32.mxu0 0.0
    %1242 = vmatmul.mubr.f32.gmra.mrb[0].mxu0 %v560
    %v1243 = vpop.f32.mrb[0].mxu0
    %v1244 = vadd.f32 %v211, %v1243
    %v1245 = vpop.f32.mrb[0].mxu0
    %1246 = vmatprep.mubr.f32.mxu0 0.0
    %1247 = vmatmul.mubr.f32.gmra.mrb[0].mxu0 %v563
    %v1248 = vpop.f32.mrb[0].mxu0
    %v1249 = vadd.f32 %v211, %v1248
    %v1250 = vpop.f32.mrb[0].mxu0
    %1251 = vmatprep.mubr.f32.mxu0 0.0
    %1252 = vmatmul.mubr.f32.gmra.mrb[0].mxu0 %v566
    %v1253 = vpop.f32.mrb[0].mxu0
    %v1254 = vadd.f32 %v211, %v1253
    %v1255 = vpop.f32.mrb[0].mxu0
    %1256 = vmatprep.mubr.f32.mxu0 0.0
    %1257 = vmatmul.mubr.f32.gmra.mrb[0].mxu0 %v569
    %v1258 = vpop.f32.mrb[0].mxu0
    %v1259 = vadd.f32 %v211, %v1258
    %v1260 = vpop.f32.mrb[0].mxu0
    %1261 = vmatprep.mubr.f32.mxu0 0.0
    %1262 = vmatmul.mubr.f32.gmra.mrb[0].mxu0 %v572
    %v1263 = vpop.f32.mrb[0].mxu0
    %v1264 = vadd.f32 %v211, %v1263
    %v1265 = vpop.f32.mrb[0].mxu0
    %1266 = vmatprep.mubr.f32.mxu0 0.0
    %1267 = vmatmul.mubr.f32.gmra.mrb[0].mxu0 %v575
    %v1268 = vpop.f32.mrb[0].mxu0
    %v1269 = vadd.f32 %v211, %v1268
    %v1270 = vpop.f32.mrb[0].mxu0
    %1271 = vmatprep.mubr.f32.mxu0 0.0
    %1272 = vmatmul.mubr.f32.gmra.mrb[0].mxu0 %v578
    %v1273 = vpop.f32.mrb[0].mxu0
    %v1274 = vadd.f32 %v211, %v1273
    %v1275 = vpop.f32.mrb[0].mxu0
    %1276 = vmatprep.mubr.f32.mxu0 0.0
    %1277 = vmatmul.mubr.f32.gmra.mrb[0].mxu0 %v581
    %v1278 = vpop.f32.mrb[0].mxu0
    %v1279 = vadd.f32 %v211, %v1278
    %v1280 = vpop.f32.mrb[0].mxu0
    %1281 = vmatprep.mubr.f32.mxu0 0.0
    %1282 = vmatmul.mubr.f32.gmra.mrb[0].mxu0 %v584
    %v1283 = vpop.f32.mrb[0].mxu0
    %v1284 = vadd.f32 %v211, %v1283
    %v1285 = vpop.f32.mrb[0].mxu0
    %1286 = vmatprep.mubr.f32.mxu0 0.0
    %1287 = vmatmul.mubr.f32.gmra.mrb[0].mxu0 %v587
    %v1288 = vpop.f32.mrb[0].mxu0
    %v1289 = vadd.f32 %v211, %v1288
    %v1290 = vpop.f32.mrb[0].mxu0
    %1291 = vmatprep.mubr.f32.mxu0 0.0
    %1292 = vmatmul.mubr.f32.gmra.mrb[0].mxu0 %v590
    %v1293 = vpop.f32.mrb[0].mxu0
    %v1294 = vadd.f32 %v211, %v1293
    %v1295 = vpop.f32.mrb[0].mxu0
    %1296 = vmatprep.mubr.f32.mxu0 0.0
    %1297 = vmatmul.mubr.f32.gmra.mrb[0].mxu0 %v593
    %v1298 = vpop.f32.mrb[0].mxu0
    %v1299 = vadd.f32 %v211, %v1298
    %v1300 = vpop.f32.mrb[0].mxu0
    %1301 = vmatprep.mubr.f32.mxu0 0.0
    %1302 = vmatmul.mubr.f32.gmra.mrb[0].mxu0 %v596
    %v1303 = vpop.f32.mrb[0].mxu0
    %v1304 = vadd.f32 %v211, %v1303
    %v1305 = vpop.f32.mrb[0].mxu0
    %1306 = vdwg.mxu0
    %v1307 = vmax.f32 %v669, 0.0
    %v1308 = vmax.f32 %v674, 0.0
    %v1309 = vmax.f32 %v679, 0.0
    %v1310 = vmax.f32 %v684, 0.0
    %v1311 = vmax.f32 %v689, 0.0
    %v1312 = vmax.f32 %v694, 0.0
    %v1313 = vmax.f32 %v699, 0.0
    %v1314 = vmax.f32 %v704, 0.0
    %v1315 = vmax.f32 %v709, 0.0
    %v1316 = vmax.f32 %v714, 0.0
    %v1317 = vmax.f32 %v719, 0.0
    %v1318 = vmax.f32 %v724, 0.0
    %v1319 = vmax.f32 %v729, 0.0
    %v1320 = vmax.f32 %v734, 0.0
    %v1321 = vmax.f32 %v739, 0.0
    %v1322 = vmax.f32 %v744, 0.0
    %v1323 = vmax.f32 %v749, 0.0
    %v1324 = vmax.f32 %v754, 0.0
    %v1325 = vmax.f32 %v759, 0.0
    %v1326 = vmax.f32 %v764, 0.0
    %v1327 = vmax.f32 %v769, 0.0
    %v1328 = vmax.f32 %v774, 0.0
    %v1329 = vmax.f32 %v779, 0.0
    %v1330 = vmax.f32 %v784, 0.0
    %v1331 = vmax.f32 %v789, 0.0
    %v1332 = vmax.f32 %v794, 0.0
    %v1333 = vmax.f32 %v799, 0.0
    %v1334 = vmax.f32 %v804, 0.0
    %v1335 = vmax.f32 %v809, 0.0
    %v1336 = vmax.f32 %v814, 0.0
    %v1337 = vmax.f32 %v819, 0.0
    %v1338 = vmax.f32 %v824, 0.0
    %v1339 = vmax.f32 %v829, 0.0
    %v1340 = vmax.f32 %v834, 0.0
    %v1341 = vmax.f32 %v839, 0.0
    %v1342 = vmax.f32 %v844, 0.0
    %v1343 = vmax.f32 %v849, 0.0
    %v1344 = vmax.f32 %v854, 0.0
    %v1345 = vmax.f32 %v859, 0.0
    %v1346 = vmax.f32 %v864, 0.0
    %v1347 = vmax.f32 %v869, 0.0
    %v1348 = vmax.f32 %v874, 0.0
    %v1349 = vmax.f32 %v879, 0.0
    %v1350 = vmax.f32 %v884, 0.0
    %v1351 = vmax.f32 %v889, 0.0
    %v1352 = vmax.f32 %v894, 0.0
    %v1353 = vmax.f32 %v899, 0.0
    %v1354 = vmax.f32 %v904, 0.0
    %v1355 = vmax.f32 %v909, 0.0
    %v1356 = vmax.f32 %v914, 0.0
    %v1357 = vmax.f32 %v919, 0.0
    %v1358 = vmax.f32 %v924, 0.0
    %v1359 = vmax.f32 %v929, 0.0
    %v1360 = vmax.f32 %v934, 0.0
    %v1361 = vmax.f32 %v939, 0.0
    %v1362 = vmax.f32 %v944, 0.0
    %v1363 = vmax.f32 %v949, 0.0
    %v1364 = vmax.f32 %v954, 0.0
    %v1365 = vmax.f32 %v959, 0.0
    %v1366 = vmax.f32 %v964, 0.0
    %v1367 = vmax.f32 %v969, 0.0
    %v1368 = vmax.f32 %v974, 0.0
    %v1369 = vmax.f32 %v979, 0.0
    %v1370 = vmax.f32 %v984, 0.0
    %v1371 = vmax.f32 %v989, 0.0
    %v1372 = vmax.f32 %v994, 0.0
    %v1373 = vmax.f32 %v999, 0.0
    %v1374 = vmax.f32 %v1004, 0.0
    %v1375 = vmax.f32 %v1009, 0.0
    %v1376 = vmax.f32 %v1014, 0.0
    %v1377 = vmax.f32 %v1019, 0.0
    %v1378 = vmax.f32 %v1024, 0.0
    %v1379 = vmax.f32 %v1029, 0.0
    %v1380 = vmax.f32 %v1034, 0.0
    %v1381 = vmax.f32 %v1039, 0.0
    %v1382 = vmax.f32 %v1044, 0.0
    %v1383 = vmax.f32 %v1049, 0.0
    %v1384 = vmax.f32 %v1054, 0.0
    %v1385 = vmax.f32 %v1059, 0.0
    %v1386 = vmax.f32 %v1064, 0.0
    %v1387 = vmax.f32 %v1069, 0.0
    %v1388 = vmax.f32 %v1074, 0.0
    %v1389 = vmax.f32 %v1079, 0.0
    %v1390 = vmax.f32 %v1084, 0.0
    %v1391 = vmax.f32 %v1089, 0.0
    %v1392 = vmax.f32 %v1094, 0.0
    %v1393 = vmax.f32 %v1099, 0.0
    %v1394 = vmax.f32 %v1104, 0.0
    %v1395 = vmax.f32 %v1109, 0.0
    %v1396 = vmax.f32 %v1114, 0.0
    %v1397 = vmax.f32 %v1119, 0.0
    %v1398 = vmax.f32 %v1124, 0.0
    %v1399 = vmax.f32 %v1129, 0.0
    %v1400 = vmax.f32 %v1134, 0.0
    %v1401 = vmax.f32 %v1139, 0.0
    %v1402 = vmax.f32 %v1144, 0.0
    %v1403 = vmax.f32 %v1149, 0.0
    %v1404 = vmax.f32 %v1154, 0.0
    %v1405 = vmax.f32 %v1159, 0.0
    %v1406 = vmax.f32 %v1164, 0.0
    %v1407 = vmax.f32 %v1169, 0.0
    %v1408 = vmax.f32 %v1174, 0.0
    %v1409 = vmax.f32 %v1179, 0.0
    %v1410 = vmax.f32 %v1184, 0.0
    %v1411 = vmax.f32 %v1189, 0.0
    %v1412 = vmax.f32 %v1194, 0.0
    %v1413 = vmax.f32 %v1199, 0.0
    %v1414 = vmax.f32 %v1204, 0.0
    %v1415 = vmax.f32 %v1209, 0.0
    %v1416 = vmax.f32 %v1214, 0.0
    %v1417 = vmax.f32 %v1219, 0.0
    %v1418 = vmax.f32 %v1224, 0.0
    %v1419 = vmax.f32 %v1229, 0.0
    %v1420 = vmax.f32 %v1234, 0.0
    %v1421 = vmax.f32 %v1239, 0.0
    %v1422 = vmax.f32 %v1244, 0.0
    %v1423 = vmax.f32 %v1249, 0.0
    %v1424 = vmax.f32 %v1254, 0.0
    %v1425 = vmax.f32 %v1259, 0.0
    %v1426 = vmax.f32 %v1264, 0.0
    %v1427 = vmax.f32 %v1269, 0.0
    %v1428 = vmax.f32 %v1274, 0.0
    %v1429 = vmax.f32 %v1279, 0.0
    %v1430 = vmax.f32 %v1284, 0.0
    %v1431 = vmax.f32 %v1289, 0.0
    %v1432 = vmax.f32 %v1294, 0.0
    %v1433 = vmax.f32 %v1299, 0.0
    %v1434 = vmax.f32 %v1304, 0.0
    %v1435 = vld [vmem:[#allocation2] sm:$0xff]
    %v1436 = vld [vmem:[#allocation2 + $0x8] sm:$0xff]
    %v1437 = vld [vmem:[#allocation2 + $0x10] sm:$0xff]
    %v1438 = vld [vmem:[#allocation2 + $0x18] sm:$0xff]
    %v1439 = vld [vmem:[#allocation2 + $0x20] sm:$0xff]
    %v1440 = vld [vmem:[#allocation2 + $0x28] sm:$0xff]
    %v1441 = vld [vmem:[#allocation2 + $0x30] sm:$0xff]
    %v1442 = vld [vmem:[#allocation2 + $0x38] sm:$0xff]
    %v1443 = vld [vmem:[#allocation2 + $0x40] sm:$0xff]
    %v1444 = vld [vmem:[#allocation2 + $0x48] sm:$0xff]
    %v1445 = vld [vmem:[#allocation2 + $0x50] sm:$0xff]
    %v1446 = vld [vmem:[#allocation2 + $0x58] sm:$0xff]
    %v1447 = vld [vmem:[#allocation2 + $0x60] sm:$0xff]
    %v1448 = vld [vmem:[#allocation2 + $0x68] sm:$0xff]
    %v1449 = vld [vmem:[#allocation2 + $0x70] sm:$0xff]
    %v1450 = vld [vmem:[#allocation2 + $0x78] sm:$0xff]
    %v1451 = vld [vmem:[#allocation2 + $0x80] sm:$0xff]
    %v1452 = vld [vmem:[#allocation2 + $0x88] sm:$0xff]
    %v1453 = vld [vmem:[#allocation2 + $0x90] sm:$0xff]
    %v1454 = vld [vmem:[#allocation2 + $0x98] sm:$0xff]
    %v1455 = vld [vmem:[#allocation2 + $0xa0] sm:$0xff]
    %v1456 = vld [vmem:[#allocation2 + $0xa8] sm:$0xff]
    %v1457 = vld [vmem:[#allocation2 + $0xb0] sm:$0xff]
    %v1458 = vld [vmem:[#allocation2 + $0xb8] sm:$0xff]
    %v1459 = vld [vmem:[#allocation2 + $0xc0] sm:$0xff]
    %v1460 = vld [vmem:[#allocation2 + $0xc8] sm:$0xff]
    %v1461 = vld [vmem:[#allocation2 + $0xd0] sm:$0xff]
    %v1462 = vld [vmem:[#allocation2 + $0xd8] sm:$0xff]
    %v1463 = vld [vmem:[#allocation2 + $0xe0] sm:$0xff]
    %v1464 = vld [vmem:[#allocation2 + $0xe8] sm:$0xff]
    %v1465 = vld [vmem:[#allocation2 + $0xf0] sm:$0xff]
    %v1466 = vld [vmem:[#allocation2 + $0xf8] sm:$0xff]
    %v1467 = vld [vmem:[%s4] sm:$0x3]
    %v1469 = vlaneseq
    %v1470 = vshrl.u32 %v1469, 7
    %v1471 = vsub.s32 0, %v1470
    %v1472 = vrot.slane %v1467, %v1471
    %v1473 = vlaneseq
    %v1474 = vshrl.u32 %v1473, 7
    %v1475 = vsub.s32 1, %v1474
    %v1476 = vrot.slane %v1467, %v1475
    %1479 = vmatprep.subr.mxu0 %v1436
    %1480 = vmatpush1.msra.mxu0 %v1435
    %1481 = vmatprep.subr.mxu0 %v1438
    %1482 = vmatpush1.msra.mxu0 %v1437
    %1483 = vmatprep.subr.mxu0 %v1440
    %1484 = vmatpush1.msra.mxu0 %v1439
    %1485 = vmatprep.subr.mxu0 %v1442
    %1486 = vmatpush1.msra.mxu0 %v1441
    %1487 = vmatprep.subr.mxu0 %v1444
    %1488 = vmatpush1.msra.mxu0 %v1443
    %1489 = vmatprep.subr.mxu0 %v1446
    %1490 = vmatpush1.msra.mxu0 %v1445
    %1491 = vmatprep.subr.mxu0 %v1448
    %1492 = vmatpush1.msra.mxu0 %v1447
    %1493 = vmatprep.subr.mxu0 %v1450
    %1494 = vmatpush1.msra.mxu0 %v1449
    %1495 = vmatprep.subr.mxu0 %v1452
    %1496 = vmatpush1.msra.mxu0 %v1451
    %1497 = vmatprep.subr.mxu0 %v1454
    %1498 = vmatpush1.msra.mxu0 %v1453
    %1499 = vmatprep.subr.mxu0 %v1456
    %1500 = vmatpush1.msra.mxu0 %v1455
    %1501 = vmatprep.subr.mxu0 %v1458
    %1502 = vmatpush1.msra.mxu0 %v1457
    %1503 = vmatprep.subr.mxu0 %v1460
    %1504 = vmatpush1.msra.mxu0 %v1459
    %1505 = vmatprep.subr.mxu0 %v1462
    %1506 = vmatpush1.msra.mxu0 %v1461
    %1507 = vmatprep.subr.mxu0 %v1464
    %1508 = vmatpush1.msra.mxu0 %v1463
    %1509 = vmatprep.subr.mxu0 %v1466
    %1510 = vmatpush1.msra.mxu0 %v1465
    %1511 = vmatprep.subr.mxu0 0.0
    %1512 = vmatpush1.msra.mxu0 0.0
    %1513 = vmatprep.subr.mxu0 0.0
    %1514 = vmatpush1.msra.mxu0 0.0
    %1515 = vmatprep.subr.mxu0 0.0
    %1516 = vmatpush1.msra.mxu0 0.0
    %1517 = vmatprep.subr.mxu0 0.0
    %1518 = vmatpush1.msra.mxu0 0.0
    %1519 = vmatprep.subr.mxu0 0.0
    %1520 = vmatpush1.msra.mxu0 0.0
    %1521 = vmatprep.subr.mxu0 0.0
    %1522 = vmatpush1.msra.mxu0 0.0
    %1523 = vmatprep.subr.mxu0 0.0
    %1524 = vmatpush1.msra.mxu0 0.0
    %1525 = vmatprep.subr.mxu0 0.0
    %1526 = vmatpush1.msra.mxu0 0.0
    %1527 = vmatprep.subr.mxu0 0.0
    %1528 = vmatpush1.msra.mxu0 0.0
    %1529 = vmatprep.subr.mxu0 0.0
    %1530 = vmatpush1.msra.mxu0 0.0
    %1531 = vmatprep.subr.mxu0 0.0
    %1532 = vmatpush1.msra.mxu0 0.0
    %1533 = vmatprep.subr.mxu0 0.0
    %1534 = vmatpush1.msra.mxu0 0.0
    %1535 = vmatprep.subr.mxu0 0.0
    %1536 = vmatpush1.msra.mxu0 0.0
    %1537 = vmatprep.subr.mxu0 0.0
    %1538 = vmatpush1.msra.mxu0 0.0
    %1539 = vmatprep.subr.mxu0 0.0
    %1540 = vmatpush1.msra.mxu0 0.0
    %1541 = vmatprep.subr.mxu0 0.0
    %1542 = vmatpush1.msra.mxu0 0.0
    %1543 = vmatprep.mubr.f32.mxu0 0.0
    %1544 = vmatmul.mubr.f32.gmra.mrb[0].mxu0 %v1307
    %v1545 = vpop.f32.mrb[0].mxu0
    %v1546 = vadd.f32 %v1472, %v1545
    %v1547 = vpop.f32.mrb[0].mxu0
    %v1548 = vadd.f32 %v1476, %v1547
    %1549 = vmatprep.mubr.f32.mxu0 0.0
    %1550 = vmatmul.mubr.f32.gmra.mrb[0].mxu0 %v1308
    %v1551 = vpop.f32.mrb[0].mxu0
    %v1552 = vadd.f32 %v1472, %v1551
    %v1553 = vpop.f32.mrb[0].mxu0
    %v1554 = vadd.f32 %v1476, %v1553
    %1555 = vmatprep.mubr.f32.mxu0 0.0
    %1556 = vmatmul.mubr.f32.gmra.mrb[0].mxu0 %v1309
    %v1557 = vpop.f32.mrb[0].mxu0
    %v1558 = vadd.f32 %v1472, %v1557
    %v1559 = vpop.f32.mrb[0].mxu0
    %v1560 = vadd.f32 %v1476, %v1559
    %1561 = vmatprep.mubr.f32.mxu0 0.0
    %1562 = vmatmul.mubr.f32.gmra.mrb[0].mxu0 %v1310
    %v1563 = vpop.f32.mrb[0].mxu0
    %v1564 = vadd.f32 %v1472, %v1563
    %v1565 = vpop.f32.mrb[0].mxu0
    %v1566 = vadd.f32 %v1476, %v1565
    %1567 = vmatprep.mubr.f32.mxu0 0.0
    %1568 = vmatmul.mubr.f32.gmra.mrb[0].mxu0 %v1311
    %v1569 = vpop.f32.mrb[0].mxu0
    %v1570 = vadd.f32 %v1472, %v1569
    %v1571 = vpop.f32.mrb[0].mxu0
    %v1572 = vadd.f32 %v1476, %v1571
    %1573 = vmatprep.mubr.f32.mxu0 0.0
    %1574 = vmatmul.mubr.f32.gmra.mrb[0].mxu0 %v1312
    %v1575 = vpop.f32.mrb[0].mxu0
    %v1576 = vadd.f32 %v1472, %v1575
    %v1577 = vpop.f32.mrb[0].mxu0
    %v1578 = vadd.f32 %v1476, %v1577
    %1579 = vmatprep.mubr.f32.mxu0 0.0
    %1580 = vmatmul.mubr.f32.gmra.mrb[0].mxu0 %v1313
    %v1581 = vpop.f32.mrb[0].mxu0
    %v1582 = vadd.f32 %v1472, %v1581
    %v1583 = vpop.f32.mrb[0].mxu0
    %v1584 = vadd.f32 %v1476, %v1583
    %1585 = vmatprep.mubr.f32.mxu0 0.0
    %1586 = vmatmul.mubr.f32.gmra.mrb[0].mxu0 %v1314
    %v1587 = vpop.f32.mrb[0].mxu0
    %v1588 = vadd.f32 %v1472, %v1587
    %v1589 = vpop.f32.mrb[0].mxu0
    %v1590 = vadd.f32 %v1476, %v1589
    %1591 = vmatprep.mubr.f32.mxu0 0.0
    %1592 = vmatmul.mubr.f32.gmra.mrb[0].mxu0 %v1315
    %v1593 = vpop.f32.mrb[0].mxu0
    %v1594 = vadd.f32 %v1472, %v1593
    %v1595 = vpop.f32.mrb[0].mxu0
    %v1596 = vadd.f32 %v1476, %v1595
    %1597 = vmatprep.mubr.f32.mxu0 0.0
    %1598 = vmatmul.mubr.f32.gmra.mrb[0].mxu0 %v1316
    %v1599 = vpop.f32.mrb[0].mxu0
    %v1600 = vadd.f32 %v1472, %v1599
    %v1601 = vpop.f32.mrb[0].mxu0
    %v1602 = vadd.f32 %v1476, %v1601
    %1603 = vmatprep.mubr.f32.mxu0 0.0
    %1604 = vmatmul.mubr.f32.gmra.mrb[0].mxu0 %v1317
    %v1605 = vpop.f32.mrb[0].mxu0
    %v1606 = vadd.f32 %v1472, %v1605
    %v1607 = vpop.f32.mrb[0].mxu0
    %v1608 = vadd.f32 %v1476, %v1607
    %1609 = vmatprep.mubr.f32.mxu0 0.0
    %1610 = vmatmul.mubr.f32.gmra.mrb[0].mxu0 %v1318
    %v1611 = vpop.f32.mrb[0].mxu0
    %v1612 = vadd.f32 %v1472, %v1611
    %v1613 = vpop.f32.mrb[0].mxu0
    %v1614 = vadd.f32 %v1476, %v1613
    %1615 = vmatprep.mubr.f32.mxu0 0.0
    %1616 = vmatmul.mubr.f32.gmra.mrb[0].mxu0 %v1319
    %v1617 = vpop.f32.mrb[0].mxu0
    %v1618 = vadd.f32 %v1472, %v1617
    %v1619 = vpop.f32.mrb[0].mxu0
    %v1620 = vadd.f32 %v1476, %v1619
    %1621 = vmatprep.mubr.f32.mxu0 0.0
    %1622 = vmatmul.mubr.f32.gmra.mrb[0].mxu0 %v1320
    %v1623 = vpop.f32.mrb[0].mxu0
    %v1624 = vadd.f32 %v1472, %v1623
    %v1625 = vpop.f32.mrb[0].mxu0
    %v1626 = vadd.f32 %v1476, %v1625
    %1627 = vmatprep.mubr.f32.mxu0 0.0
    %1628 = vmatmul.mubr.f32.gmra.mrb[0].mxu0 %v1321
    %v1629 = vpop.f32.mrb[0].mxu0
    %v1630 = vadd.f32 %v1472, %v1629
    %v1631 = vpop.f32.mrb[0].mxu0
    %v1632 = vadd.f32 %v1476, %v1631
    %1633 = vmatprep.mubr.f32.mxu0 0.0
    %1634 = vmatmul.mubr.f32.gmra.mrb[0].mxu0 %v1322
    %v1635 = vpop.f32.mrb[0].mxu0
    %v1636 = vadd.f32 %v1472, %v1635
    %v1637 = vpop.f32.mrb[0].mxu0
    %v1638 = vadd.f32 %v1476, %v1637
    %1639 = vmatprep.mubr.f32.mxu0 0.0
    %1640 = vmatmul.mubr.f32.gmra.mrb[0].mxu0 %v1323
    %v1641 = vpop.f32.mrb[0].mxu0
    %v1642 = vadd.f32 %v1472, %v1641
    %v1643 = vpop.f32.mrb[0].mxu0
    %v1644 = vadd.f32 %v1476, %v1643
    %1645 = vmatprep.mubr.f32.mxu0 0.0
    %1646 = vmatmul.mubr.f32.gmra.mrb[0].mxu0 %v1324
    %v1647 = vpop.f32.mrb[0].mxu0
    %v1648 = vadd.f32 %v1472, %v1647
    %v1649 = vpop.f32.mrb[0].mxu0
    %v1650 = vadd.f32 %v1476, %v1649
    %1651 = vmatprep.mubr.f32.mxu0 0.0
    %1652 = vmatmul.mubr.f32.gmra.mrb[0].mxu0 %v1325
    %v1653 = vpop.f32.mrb[0].mxu0
    %v1654 = vadd.f32 %v1472, %v1653
    %v1655 = vpop.f32.mrb[0].mxu0
    %v1656 = vadd.f32 %v1476, %v1655
    %1657 = vmatprep.mubr.f32.mxu0 0.0
    %1658 = vmatmul.mubr.f32.gmra.mrb[0].mxu0 %v1326
    %v1659 = vpop.f32.mrb[0].mxu0
    %v1660 = vadd.f32 %v1472, %v1659
    %v1661 = vpop.f32.mrb[0].mxu0
    %v1662 = vadd.f32 %v1476, %v1661
    %1663 = vmatprep.mubr.f32.mxu0 0.0
    %1664 = vmatmul.mubr.f32.gmra.mrb[0].mxu0 %v1327
    %v1665 = vpop.f32.mrb[0].mxu0
    %v1666 = vadd.f32 %v1472, %v1665
    %v1667 = vpop.f32.mrb[0].mxu0
    %v1668 = vadd.f32 %v1476, %v1667
    %1669 = vmatprep.mubr.f32.mxu0 0.0
    %1670 = vmatmul.mubr.f32.gmra.mrb[0].mxu0 %v1328
    %v1671 = vpop.f32.mrb[0].mxu0
    %v1672 = vadd.f32 %v1472, %v1671
    %v1673 = vpop.f32.mrb[0].mxu0
    %v1674 = vadd.f32 %v1476, %v1673
    %1675 = vmatprep.mubr.f32.mxu0 0.0
    %1676 = vmatmul.mubr.f32.gmra.mrb[0].mxu0 %v1329
    %v1677 = vpop.f32.mrb[0].mxu0
    %v1678 = vadd.f32 %v1472, %v1677
    %v1679 = vpop.f32.mrb[0].mxu0
    %v1680 = vadd.f32 %v1476, %v1679
    %1681 = vmatprep.mubr.f32.mxu0 0.0
    %1682 = vmatmul.mubr.f32.gmra.mrb[0].mxu0 %v1330
    %v1683 = vpop.f32.mrb[0].mxu0
    %v1684 = vadd.f32 %v1472, %v1683
    %v1685 = vpop.f32.mrb[0].mxu0
    %v1686 = vadd.f32 %v1476, %v1685
    %1687 = vmatprep.mubr.f32.mxu0 0.0
    %1688 = vmatmul.mubr.f32.gmra.mrb[0].mxu0 %v1331
    %v1689 = vpop.f32.mrb[0].mxu0
    %v1690 = vadd.f32 %v1472, %v1689
    %v1691 = vpop.f32.mrb[0].mxu0
    %v1692 = vadd.f32 %v1476, %v1691
    %1693 = vmatprep.mubr.f32.mxu0 0.0
    %1694 = vmatmul.mubr.f32.gmra.mrb[0].mxu0 %v1332
    %v1695 = vpop.f32.mrb[0].mxu0
    %v1696 = vadd.f32 %v1472, %v1695
    %v1697 = vpop.f32.mrb[0].mxu0
    %v1698 = vadd.f32 %v1476, %v1697
    %1699 = vmatprep.mubr.f32.mxu0 0.0
    %1700 = vmatmul.mubr.f32.gmra.mrb[0].mxu0 %v1333
    %v1701 = vpop.f32.mrb[0].mxu0
    %v1702 = vadd.f32 %v1472, %v1701
    %v1703 = vpop.f32.mrb[0].mxu0
    %v1704 = vadd.f32 %v1476, %v1703
    %1705 = vmatprep.mubr.f32.mxu0 0.0
    %1706 = vmatmul.mubr.f32.gmra.mrb[0].mxu0 %v1334
    %v1707 = vpop.f32.mrb[0].mxu0
    %v1708 = vadd.f32 %v1472, %v1707
    %v1709 = vpop.f32.mrb[0].mxu0
    %v1710 = vadd.f32 %v1476, %v1709
    %1711 = vmatprep.mubr.f32.mxu0 0.0
    %1712 = vmatmul.mubr.f32.gmra.mrb[0].mxu0 %v1335
    %v1713 = vpop.f32.mrb[0].mxu0
    %v1714 = vadd.f32 %v1472, %v1713
    %v1715 = vpop.f32.mrb[0].mxu0
    %v1716 = vadd.f32 %v1476, %v1715
    %1717 = vmatprep.mubr.f32.mxu0 0.0
    %1718 = vmatmul.mubr.f32.gmra.mrb[0].mxu0 %v1336
    %v1719 = vpop.f32.mrb[0].mxu0
    %v1720 = vadd.f32 %v1472, %v1719
    %v1721 = vpop.f32.mrb[0].mxu0
    %v1722 = vadd.f32 %v1476, %v1721
    %1723 = vmatprep.mubr.f32.mxu0 0.0
    %1724 = vmatmul.mubr.f32.gmra.mrb[0].mxu0 %v1337
    %v1725 = vpop.f32.mrb[0].mxu0
    %v1726 = vadd.f32 %v1472, %v1725
    %v1727 = vpop.f32.mrb[0].mxu0
    %v1728 = vadd.f32 %v1476, %v1727
    %1729 = vmatprep.mubr.f32.mxu0 0.0
    %1730 = vmatmul.mubr.f32.gmra.mrb[0].mxu0 %v1338
    %v1731 = vpop.f32.mrb[0].mxu0
    %v1732 = vadd.f32 %v1472, %v1731
    %v1733 = vpop.f32.mrb[0].mxu0
    %v1734 = vadd.f32 %v1476, %v1733
    %1735 = vmatprep.mubr.f32.mxu0 0.0
    %1736 = vmatmul.mubr.f32.gmra.mrb[0].mxu0 %v1339
    %v1737 = vpop.f32.mrb[0].mxu0
    %v1738 = vadd.f32 %v1472, %v1737
    %v1739 = vpop.f32.mrb[0].mxu0
    %v1740 = vadd.f32 %v1476, %v1739
    %1741 = vmatprep.mubr.f32.mxu0 0.0
    %1742 = vmatmul.mubr.f32.gmra.mrb[0].mxu0 %v1340
    %v1743 = vpop.f32.mrb[0].mxu0
    %v1744 = vadd.f32 %v1472, %v1743
    %v1745 = vpop.f32.mrb[0].mxu0
    %v1746 = vadd.f32 %v1476, %v1745
    %1747 = vmatprep.mubr.f32.mxu0 0.0
    %1748 = vmatmul.mubr.f32.gmra.mrb[0].mxu0 %v1341
    %v1749 = vpop.f32.mrb[0].mxu0
    %v1750 = vadd.f32 %v1472, %v1749
    %v1751 = vpop.f32.mrb[0].mxu0
    %v1752 = vadd.f32 %v1476, %v1751
    %1753 = vmatprep.mubr.f32.mxu0 0.0
    %1754 = vmatmul.mubr.f32.gmra.mrb[0].mxu0 %v1342
    %v1755 = vpop.f32.mrb[0].mxu0
    %v1756 = vadd.f32 %v1472, %v1755
    %v1757 = vpop.f32.mrb[0].mxu0
    %v1758 = vadd.f32 %v1476, %v1757
    %1759 = vmatprep.mubr.f32.mxu0 0.0
    %1760 = vmatmul.mubr.f32.gmra.mrb[0].mxu0 %v1343
    %v1761 = vpop.f32.mrb[0].mxu0
    %v1762 = vadd.f32 %v1472, %v1761
    %v1763 = vpop.f32.mrb[0].mxu0
    %v1764 = vadd.f32 %v1476, %v1763
    %1765 = vmatprep.mubr.f32.mxu0 0.0
    %1766 = vmatmul.mubr.f32.gmra.mrb[0].mxu0 %v1344
    %v1767 = vpop.f32.mrb[0].mxu0
    %v1768 = vadd.f32 %v1472, %v1767
    %v1769 = vpop.f32.mrb[0].mxu0
    %v1770 = vadd.f32 %v1476, %v1769
    %1771 = vmatprep.mubr.f32.mxu0 0.0
    %1772 = vmatmul.mubr.f32.gmra.mrb[0].mxu0 %v1345
    %v1773 = vpop.f32.mrb[0].mxu0
    %v1774 = vadd.f32 %v1472, %v1773
    %v1775 = vpop.f32.mrb[0].mxu0
    %v1776 = vadd.f32 %v1476, %v1775
    %1777 = vmatprep.mubr.f32.mxu0 0.0
    %1778 = vmatmul.mubr.f32.gmra.mrb[0].mxu0 %v1346
    %v1779 = vpop.f32.mrb[0].mxu0
    %v1780 = vadd.f32 %v1472, %v1779
    %v1781 = vpop.f32.mrb[0].mxu0
    %v1782 = vadd.f32 %v1476, %v1781
    %1783 = vmatprep.mubr.f32.mxu0 0.0
    %1784 = vmatmul.mubr.f32.gmra.mrb[0].mxu0 %v1347
    %v1785 = vpop.f32.mrb[0].mxu0
    %v1786 = vadd.f32 %v1472, %v1785
    %v1787 = vpop.f32.mrb[0].mxu0
    %v1788 = vadd.f32 %v1476, %v1787
    %1789 = vmatprep.mubr.f32.mxu0 0.0
    %1790 = vmatmul.mubr.f32.gmra.mrb[0].mxu0 %v1348
    %v1791 = vpop.f32.mrb[0].mxu0
    %v1792 = vadd.f32 %v1472, %v1791
    %v1793 = vpop.f32.mrb[0].mxu0
    %v1794 = vadd.f32 %v1476, %v1793
    %1795 = vmatprep.mubr.f32.mxu0 0.0
    %1796 = vmatmul.mubr.f32.gmra.mrb[0].mxu0 %v1349
    %v1797 = vpop.f32.mrb[0].mxu0
    %v1798 = vadd.f32 %v1472, %v1797
    %v1799 = vpop.f32.mrb[0].mxu0
    %v1800 = vadd.f32 %v1476, %v1799
    %1801 = vmatprep.mubr.f32.mxu0 0.0
    %1802 = vmatmul.mubr.f32.gmra.mrb[0].mxu0 %v1350
    %v1803 = vpop.f32.mrb[0].mxu0
    %v1804 = vadd.f32 %v1472, %v1803
    %v1805 = vpop.f32.mrb[0].mxu0
    %v1806 = vadd.f32 %v1476, %v1805
    %1807 = vmatprep.mubr.f32.mxu0 0.0
    %1808 = vmatmul.mubr.f32.gmra.mrb[0].mxu0 %v1351
    %v1809 = vpop.f32.mrb[0].mxu0
    %v1810 = vadd.f32 %v1472, %v1809
    %v1811 = vpop.f32.mrb[0].mxu0
    %v1812 = vadd.f32 %v1476, %v1811
    %1813 = vmatprep.mubr.f32.mxu0 0.0
    %1814 = vmatmul.mubr.f32.gmra.mrb[0].mxu0 %v1352
    %v1815 = vpop.f32.mrb[0].mxu0
    %v1816 = vadd.f32 %v1472, %v1815
    %v1817 = vpop.f32.mrb[0].mxu0
    %v1818 = vadd.f32 %v1476, %v1817
    %1819 = vmatprep.mubr.f32.mxu0 0.0
    %1820 = vmatmul.mubr.f32.gmra.mrb[0].mxu0 %v1353
    %v1821 = vpop.f32.mrb[0].mxu0
    %v1822 = vadd.f32 %v1472, %v1821
    %v1823 = vpop.f32.mrb[0].mxu0
    %v1824 = vadd.f32 %v1476, %v1823
    %1825 = vmatprep.mubr.f32.mxu0 0.0
    %1826 = vmatmul.mubr.f32.gmra.mrb[0].mxu0 %v1354
    %v1827 = vpop.f32.mrb[0].mxu0
    %v1828 = vadd.f32 %v1472, %v1827
    %v1829 = vpop.f32.mrb[0].mxu0
    %v1830 = vadd.f32 %v1476, %v1829
    %1831 = vmatprep.mubr.f32.mxu0 0.0
    %1832 = vmatmul.mubr.f32.gmra.mrb[0].mxu0 %v1355
    %v1833 = vpop.f32.mrb[0].mxu0
    %v1834 = vadd.f32 %v1472, %v1833
    %v1835 = vpop.f32.mrb[0].mxu0
    %v1836 = vadd.f32 %v1476, %v1835
    %1837 = vmatprep.mubr.f32.mxu0 0.0
    %1838 = vmatmul.mubr.f32.gmra.mrb[0].mxu0 %v1356
    %v1839 = vpop.f32.mrb[0].mxu0
    %v1840 = vadd.f32 %v1472, %v1839
    %v1841 = vpop.f32.mrb[0].mxu0
    %v1842 = vadd.f32 %v1476, %v1841
    %1843 = vmatprep.mubr.f32.mxu0 0.0
    %1844 = vmatmul.mubr.f32.gmra.mrb[0].mxu0 %v1357
    %v1845 = vpop.f32.mrb[0].mxu0
    %v1846 = vadd.f32 %v1472, %v1845
    %v1847 = vpop.f32.mrb[0].mxu0
    %v1848 = vadd.f32 %v1476, %v1847
    %1849 = vmatprep.mubr.f32.mxu0 0.0
    %1850 = vmatmul.mubr.f32.gmra.mrb[0].mxu0 %v1358
    %v1851 = vpop.f32.mrb[0].mxu0
    %v1852 = vadd.f32 %v1472, %v1851
    %v1853 = vpop.f32.mrb[0].mxu0
    %v1854 = vadd.f32 %v1476, %v1853
    %1855 = vmatprep.mubr.f32.mxu0 0.0
    %1856 = vmatmul.mubr.f32.gmra.mrb[0].mxu0 %v1359
    %v1857 = vpop.f32.mrb[0].mxu0
    %v1858 = vadd.f32 %v1472, %v1857
    %v1859 = vpop.f32.mrb[0].mxu0
    %v1860 = vadd.f32 %v1476, %v1859
    %1861 = vmatprep.mubr.f32.mxu0 0.0
    %1862 = vmatmul.mubr.f32.gmra.mrb[0].mxu0 %v1360
    %v1863 = vpop.f32.mrb[0].mxu0
    %v1864 = vadd.f32 %v1472, %v1863
    %v1865 = vpop.f32.mrb[0].mxu0
    %v1866 = vadd.f32 %v1476, %v1865
    %1867 = vmatprep.mubr.f32.mxu0 0.0
    %1868 = vmatmul.mubr.f32.gmra.mrb[0].mxu0 %v1361
    %v1869 = vpop.f32.mrb[0].mxu0
    %v1870 = vadd.f32 %v1472, %v1869
    %v1871 = vpop.f32.mrb[0].mxu0
    %v1872 = vadd.f32 %v1476, %v1871
    %1873 = vmatprep.mubr.f32.mxu0 0.0
    %1874 = vmatmul.mubr.f32.gmra.mrb[0].mxu0 %v1362
    %v1875 = vpop.f32.mrb[0].mxu0
    %v1876 = vadd.f32 %v1472, %v1875
    %v1877 = vpop.f32.mrb[0].mxu0
    %v1878 = vadd.f32 %v1476, %v1877
    %1879 = vmatprep.mubr.f32.mxu0 0.0
    %1880 = vmatmul.mubr.f32.gmra.mrb[0].mxu0 %v1363
    %v1881 = vpop.f32.mrb[0].mxu0
    %v1882 = vadd.f32 %v1472, %v1881
    %v1883 = vpop.f32.mrb[0].mxu0
    %v1884 = vadd.f32 %v1476, %v1883
    %1885 = vmatprep.mubr.f32.mxu0 0.0
    %1886 = vmatmul.mubr.f32.gmra.mrb[0].mxu0 %v1364
    %v1887 = vpop.f32.mrb[0].mxu0
    %v1888 = vadd.f32 %v1472, %v1887
    %v1889 = vpop.f32.mrb[0].mxu0
    %v1890 = vadd.f32 %v1476, %v1889
    %1891 = vmatprep.mubr.f32.mxu0 0.0
    %1892 = vmatmul.mubr.f32.gmra.mrb[0].mxu0 %v1365
    %v1893 = vpop.f32.mrb[0].mxu0
    %v1894 = vadd.f32 %v1472, %v1893
    %v1895 = vpop.f32.mrb[0].mxu0
    %v1896 = vadd.f32 %v1476, %v1895
    %1897 = vmatprep.mubr.f32.mxu0 0.0
    %1898 = vmatmul.mubr.f32.gmra.mrb[0].mxu0 %v1366
    %v1899 = vpop.f32.mrb[0].mxu0
    %v1900 = vadd.f32 %v1472, %v1899
    %v1901 = vpop.f32.mrb[0].mxu0
    %v1902 = vadd.f32 %v1476, %v1901
    %1903 = vmatprep.mubr.f32.mxu0 0.0
    %1904 = vmatmul.mubr.f32.gmra.mrb[0].mxu0 %v1367
    %v1905 = vpop.f32.mrb[0].mxu0
    %v1906 = vadd.f32 %v1472, %v1905
    %v1907 = vpop.f32.mrb[0].mxu0
    %v1908 = vadd.f32 %v1476, %v1907
    %1909 = vmatprep.mubr.f32.mxu0 0.0
    %1910 = vmatmul.mubr.f32.gmra.mrb[0].mxu0 %v1368
    %v1911 = vpop.f32.mrb[0].mxu0
    %v1912 = vadd.f32 %v1472, %v1911
    %v1913 = vpop.f32.mrb[0].mxu0
    %v1914 = vadd.f32 %v1476, %v1913
    %1915 = vmatprep.mubr.f32.mxu0 0.0
    %1916 = vmatmul.mubr.f32.gmra.mrb[0].mxu0 %v1369
    %v1917 = vpop.f32.mrb[0].mxu0
    %v1918 = vadd.f32 %v1472, %v1917
    %v1919 = vpop.f32.mrb[0].mxu0
    %v1920 = vadd.f32 %v1476, %v1919
    %1921 = vmatprep.mubr.f32.mxu0 0.0
    %1922 = vmatmul.mubr.f32.gmra.mrb[0].mxu0 %v1370
    %v1923 = vpop.f32.mrb[0].mxu0
    %v1924 = vadd.f32 %v1472, %v1923
    %v1925 = vpop.f32.mrb[0].mxu0
    %v1926 = vadd.f32 %v1476, %v1925
    %1927 = vmatprep.mubr.f32.mxu0 0.0
    %1928 = vmatmul.mubr.f32.gmra.mrb[0].mxu0 %v1371
    %v1929 = vpop.f32.mrb[0].mxu0
    %v1930 = vadd.f32 %v1472, %v1929
    %v1931 = vpop.f32.mrb[0].mxu0
    %v1932 = vadd.f32 %v1476, %v1931
    %1933 = vmatprep.mubr.f32.mxu0 0.0
    %1934 = vmatmul.mubr.f32.gmra.mrb[0].mxu0 %v1372
    %v1935 = vpop.f32.mrb[0].mxu0
    %v1936 = vadd.f32 %v1472, %v1935
    %v1937 = vpop.f32.mrb[0].mxu0
    %v1938 = vadd.f32 %v1476, %v1937
    %1939 = vmatprep.mubr.f32.mxu0 0.0
    %1940 = vmatmul.mubr.f32.gmra.mrb[0].mxu0 %v1373
    %v1941 = vpop.f32.mrb[0].mxu0
    %v1942 = vadd.f32 %v1472, %v1941
    %v1943 = vpop.f32.mrb[0].mxu0
    %v1944 = vadd.f32 %v1476, %v1943
    %1945 = vmatprep.mubr.f32.mxu0 0.0
    %1946 = vmatmul.mubr.f32.gmra.mrb[0].mxu0 %v1374
    %v1947 = vpop.f32.mrb[0].mxu0
    %v1948 = vadd.f32 %v1472, %v1947
    %v1949 = vpop.f32.mrb[0].mxu0
    %v1950 = vadd.f32 %v1476, %v1949
    %1951 = vmatprep.mubr.f32.mxu0 0.0
    %1952 = vmatmul.mubr.f32.gmra.mrb[0].mxu0 %v1375
    %v1953 = vpop.f32.mrb[0].mxu0
    %v1954 = vadd.f32 %v1472, %v1953
    %v1955 = vpop.f32.mrb[0].mxu0
    %v1956 = vadd.f32 %v1476, %v1955
    %1957 = vmatprep.mubr.f32.mxu0 0.0
    %1958 = vmatmul.mubr.f32.gmra.mrb[0].mxu0 %v1376
    %v1959 = vpop.f32.mrb[0].mxu0
    %v1960 = vadd.f32 %v1472, %v1959
    %v1961 = vpop.f32.mrb[0].mxu0
    %v1962 = vadd.f32 %v1476, %v1961
    %1963 = vmatprep.mubr.f32.mxu0 0.0
    %1964 = vmatmul.mubr.f32.gmra.mrb[0].mxu0 %v1377
    %v1965 = vpop.f32.mrb[0].mxu0
    %v1966 = vadd.f32 %v1472, %v1965
    %v1967 = vpop.f32.mrb[0].mxu0
    %v1968 = vadd.f32 %v1476, %v1967
    %1969 = vmatprep.mubr.f32.mxu0 0.0
    %1970 = vmatmul.mubr.f32.gmra.mrb[0].mxu0 %v1378
    %v1971 = vpop.f32.mrb[0].mxu0
    %v1972 = vadd.f32 %v1472, %v1971
    %v1973 = vpop.f32.mrb[0].mxu0
    %v1974 = vadd.f32 %v1476, %v1973
    %1975 = vmatprep.mubr.f32.mxu0 0.0
    %1976 = vmatmul.mubr.f32.gmra.mrb[0].mxu0 %v1379
    %v1977 = vpop.f32.mrb[0].mxu0
    %v1978 = vadd.f32 %v1472, %v1977
    %v1979 = vpop.f32.mrb[0].mxu0
    %v1980 = vadd.f32 %v1476, %v1979
    %1981 = vmatprep.mubr.f32.mxu0 0.0
    %1982 = vmatmul.mubr.f32.gmra.mrb[0].mxu0 %v1380
    %v1983 = vpop.f32.mrb[0].mxu0
    %v1984 = vadd.f32 %v1472, %v1983
    %v1985 = vpop.f32.mrb[0].mxu0
    %v1986 = vadd.f32 %v1476, %v1985
    %1987 = vmatprep.mubr.f32.mxu0 0.0
    %1988 = vmatmul.mubr.f32.gmra.mrb[0].mxu0 %v1381
    %v1989 = vpop.f32.mrb[0].mxu0
    %v1990 = vadd.f32 %v1472, %v1989
    %v1991 = vpop.f32.mrb[0].mxu0
    %v1992 = vadd.f32 %v1476, %v1991
    %1993 = vmatprep.mubr.f32.mxu0 0.0
    %1994 = vmatmul.mubr.f32.gmra.mrb[0].mxu0 %v1382
    %v1995 = vpop.f32.mrb[0].mxu0
    %v1996 = vadd.f32 %v1472, %v1995
    %v1997 = vpop.f32.mrb[0].mxu0
    %v1998 = vadd.f32 %v1476, %v1997
    %1999 = vmatprep.mubr.f32.mxu0 0.0
    %2000 = vmatmul.mubr.f32.gmra.mrb[0].mxu0 %v1383
    %v2001 = vpop.f32.mrb[0].mxu0
    %v2002 = vadd.f32 %v1472, %v2001
    %v2003 = vpop.f32.mrb[0].mxu0
    %v2004 = vadd.f32 %v1476, %v2003
    %2005 = vmatprep.mubr.f32.mxu0 0.0
    %2006 = vmatmul.mubr.f32.gmra.mrb[0].mxu0 %v1384
    %v2007 = vpop.f32.mrb[0].mxu0
    %v2008 = vadd.f32 %v1472, %v2007
    %v2009 = vpop.f32.mrb[0].mxu0
    %v2010 = vadd.f32 %v1476, %v2009
    %2011 = vmatprep.mubr.f32.mxu0 0.0
    %2012 = vmatmul.mubr.f32.gmra.mrb[0].mxu0 %v1385
    %v2013 = vpop.f32.mrb[0].mxu0
    %v2014 = vadd.f32 %v1472, %v2013
    %v2015 = vpop.f32.mrb[0].mxu0
    %v2016 = vadd.f32 %v1476, %v2015
    %2017 = vmatprep.mubr.f32.mxu0 0.0
    %2018 = vmatmul.mubr.f32.gmra.mrb[0].mxu0 %v1386
    %v2019 = vpop.f32.mrb[0].mxu0
    %v2020 = vadd.f32 %v1472, %v2019
    %v2021 = vpop.f32.mrb[0].mxu0
    %v2022 = vadd.f32 %v1476, %v2021
    %2023 = vmatprep.mubr.f32.mxu0 0.0
    %2024 = vmatmul.mubr.f32.gmra.mrb[0].mxu0 %v1387
    %v2025 = vpop.f32.mrb[0].mxu0
    %v2026 = vadd.f32 %v1472, %v2025
    %v2027 = vpop.f32.mrb[0].mxu0
    %v2028 = vadd.f32 %v1476, %v2027
    %2029 = vmatprep.mubr.f32.mxu0 0.0
    %2030 = vmatmul.mubr.f32.gmra.mrb[0].mxu0 %v1388
    %v2031 = vpop.f32.mrb[0].mxu0
    %v2032 = vadd.f32 %v1472, %v2031
    %v2033 = vpop.f32.mrb[0].mxu0
    %v2034 = vadd.f32 %v1476, %v2033
    %2035 = vmatprep.mubr.f32.mxu0 0.0
    %2036 = vmatmul.mubr.f32.gmra.mrb[0].mxu0 %v1389
    %v2037 = vpop.f32.mrb[0].mxu0
    %v2038 = vadd.f32 %v1472, %v2037
    %v2039 = vpop.f32.mrb[0].mxu0
    %v2040 = vadd.f32 %v1476, %v2039
    %2041 = vmatprep.mubr.f32.mxu0 0.0
    %2042 = vmatmul.mubr.f32.gmra.mrb[0].mxu0 %v1390
    %v2043 = vpop.f32.mrb[0].mxu0
    %v2044 = vadd.f32 %v1472, %v2043
    %v2045 = vpop.f32.mrb[0].mxu0
    %v2046 = vadd.f32 %v1476, %v2045
    %2047 = vmatprep.mubr.f32.mxu0 0.0
    %2048 = vmatmul.mubr.f32.gmra.mrb[0].mxu0 %v1391
    %v2049 = vpop.f32.mrb[0].mxu0
    %v2050 = vadd.f32 %v1472, %v2049
    %v2051 = vpop.f32.mrb[0].mxu0
    %v2052 = vadd.f32 %v1476, %v2051
    %2053 = vmatprep.mubr.f32.mxu0 0.0
    %2054 = vmatmul.mubr.f32.gmra.mrb[0].mxu0 %v1392
    %v2055 = vpop.f32.mrb[0].mxu0
    %v2056 = vadd.f32 %v1472, %v2055
    %v2057 = vpop.f32.mrb[0].mxu0
    %v2058 = vadd.f32 %v1476, %v2057
    %2059 = vmatprep.mubr.f32.mxu0 0.0
    %2060 = vmatmul.mubr.f32.gmra.mrb[0].mxu0 %v1393
    %v2061 = vpop.f32.mrb[0].mxu0
    %v2062 = vadd.f32 %v1472, %v2061
    %v2063 = vpop.f32.mrb[0].mxu0
    %v2064 = vadd.f32 %v1476, %v2063
    %2065 = vmatprep.mubr.f32.mxu0 0.0
    %2066 = vmatmul.mubr.f32.gmra.mrb[0].mxu0 %v1394
    %v2067 = vpop.f32.mrb[0].mxu0
    %v2068 = vadd.f32 %v1472, %v2067
    %v2069 = vpop.f32.mrb[0].mxu0
    %v2070 = vadd.f32 %v1476, %v2069
    %2071 = vmatprep.mubr.f32.mxu0 0.0
    %2072 = vmatmul.mubr.f32.gmra.mrb[0].mxu0 %v1395
    %v2073 = vpop.f32.mrb[0].mxu0
    %v2074 = vadd.f32 %v1472, %v2073
    %v2075 = vpop.f32.mrb[0].mxu0
    %v2076 = vadd.f32 %v1476, %v2075
    %2077 = vmatprep.mubr.f32.mxu0 0.0
    %2078 = vmatmul.mubr.f32.gmra.mrb[0].mxu0 %v1396
    %v2079 = vpop.f32.mrb[0].mxu0
    %v2080 = vadd.f32 %v1472, %v2079
    %v2081 = vpop.f32.mrb[0].mxu0
    %v2082 = vadd.f32 %v1476, %v2081
    %2083 = vmatprep.mubr.f32.mxu0 0.0
    %2084 = vmatmul.mubr.f32.gmra.mrb[0].mxu0 %v1397
    %v2085 = vpop.f32.mrb[0].mxu0
    %v2086 = vadd.f32 %v1472, %v2085
    %v2087 = vpop.f32.mrb[0].mxu0
    %v2088 = vadd.f32 %v1476, %v2087
    %2089 = vmatprep.mubr.f32.mxu0 0.0
    %2090 = vmatmul.mubr.f32.gmra.mrb[0].mxu0 %v1398
    %v2091 = vpop.f32.mrb[0].mxu0
    %v2092 = vadd.f32 %v1472, %v2091
    %v2093 = vpop.f32.mrb[0].mxu0
    %v2094 = vadd.f32 %v1476, %v2093
    %2095 = vmatprep.mubr.f32.mxu0 0.0
    %2096 = vmatmul.mubr.f32.gmra.mrb[0].mxu0 %v1399
    %v2097 = vpop.f32.mrb[0].mxu0
    %v2098 = vadd.f32 %v1472, %v2097
    %v2099 = vpop.f32.mrb[0].mxu0
    %v2100 = vadd.f32 %v1476, %v2099
    %2101 = vmatprep.mubr.f32.mxu0 0.0
    %2102 = vmatmul.mubr.f32.gmra.mrb[0].mxu0 %v1400
    %v2103 = vpop.f32.mrb[0].mxu0
    %v2104 = vadd.f32 %v1472, %v2103
    %v2105 = vpop.f32.mrb[0].mxu0
    %v2106 = vadd.f32 %v1476, %v2105
    %2107 = vmatprep.mubr.f32.mxu0 0.0
    %2108 = vmatmul.mubr.f32.gmra.mrb[0].mxu0 %v1401
    %v2109 = vpop.f32.mrb[0].mxu0
    %v2110 = vadd.f32 %v1472, %v2109
    %v2111 = vpop.f32.mrb[0].mxu0
    %v2112 = vadd.f32 %v1476, %v2111
    %2113 = vmatprep.mubr.f32.mxu0 0.0
    %2114 = vmatmul.mubr.f32.gmra.mrb[0].mxu0 %v1402
    %v2115 = vpop.f32.mrb[0].mxu0
    %v2116 = vadd.f32 %v1472, %v2115
    %v2117 = vpop.f32.mrb[0].mxu0
    %v2118 = vadd.f32 %v1476, %v2117
    %2119 = vmatprep.mubr.f32.mxu0 0.0
    %2120 = vmatmul.mubr.f32.gmra.mrb[0].mxu0 %v1403
    %v2121 = vpop.f32.mrb[0].mxu0
    %v2122 = vadd.f32 %v1472, %v2121
    %v2123 = vpop.f32.mrb[0].mxu0
    %v2124 = vadd.f32 %v1476, %v2123
    %2125 = vmatprep.mubr.f32.mxu0 0.0
    %2126 = vmatmul.mubr.f32.gmra.mrb[0].mxu0 %v1404
    %v2127 = vpop.f32.mrb[0].mxu0
    %v2128 = vadd.f32 %v1472, %v2127
    %v2129 = vpop.f32.mrb[0].mxu0
    %v2130 = vadd.f32 %v1476, %v2129
    %2131 = vmatprep.mubr.f32.mxu0 0.0
    %2132 = vmatmul.mubr.f32.gmra.mrb[0].mxu0 %v1405
    %v2133 = vpop.f32.mrb[0].mxu0
    %v2134 = vadd.f32 %v1472, %v2133
    %v2135 = vpop.f32.mrb[0].mxu0
    %v2136 = vadd.f32 %v1476, %v2135
    %2137 = vmatprep.mubr.f32.mxu0 0.0
    %2138 = vmatmul.mubr.f32.gmra.mrb[0].mxu0 %v1406
    %v2139 = vpop.f32.mrb[0].mxu0
    %v2140 = vadd.f32 %v1472, %v2139
    %v2141 = vpop.f32.mrb[0].mxu0
    %v2142 = vadd.f32 %v1476, %v2141
    %2143 = vmatprep.mubr.f32.mxu0 0.0
    %2144 = vmatmul.mubr.f32.gmra.mrb[0].mxu0 %v1407
    %v2145 = vpop.f32.mrb[0].mxu0
    %v2146 = vadd.f32 %v1472, %v2145
    %v2147 = vpop.f32.mrb[0].mxu0
    %v2148 = vadd.f32 %v1476, %v2147
    %2149 = vmatprep.mubr.f32.mxu0 0.0
    %2150 = vmatmul.mubr.f32.gmra.mrb[0].mxu0 %v1408
    %v2151 = vpop.f32.mrb[0].mxu0
    %v2152 = vadd.f32 %v1472, %v2151
    %v2153 = vpop.f32.mrb[0].mxu0
    %v2154 = vadd.f32 %v1476, %v2153
    %2155 = vmatprep.mubr.f32.mxu0 0.0
    %2156 = vmatmul.mubr.f32.gmra.mrb[0].mxu0 %v1409
    %v2157 = vpop.f32.mrb[0].mxu0
    %v2158 = vadd.f32 %v1472, %v2157
    %v2159 = vpop.f32.mrb[0].mxu0
    %v2160 = vadd.f32 %v1476, %v2159
    %2161 = vmatprep.mubr.f32.mxu0 0.0
    %2162 = vmatmul.mubr.f32.gmra.mrb[0].mxu0 %v1410
    %v2163 = vpop.f32.mrb[0].mxu0
    %v2164 = vadd.f32 %v1472, %v2163
    %v2165 = vpop.f32.mrb[0].mxu0
    %v2166 = vadd.f32 %v1476, %v2165
    %2167 = vmatprep.mubr.f32.mxu0 0.0
    %2168 = vmatmul.mubr.f32.gmra.mrb[0].mxu0 %v1411
    %v2169 = vpop.f32.mrb[0].mxu0
    %v2170 = vadd.f32 %v1472, %v2169
    %v2171 = vpop.f32.mrb[0].mxu0
    %v2172 = vadd.f32 %v1476, %v2171
    %2173 = vmatprep.mubr.f32.mxu0 0.0
    %2174 = vmatmul.mubr.f32.gmra.mrb[0].mxu0 %v1412
    %v2175 = vpop.f32.mrb[0].mxu0
    %v2176 = vadd.f32 %v1472, %v2175
    %v2177 = vpop.f32.mrb[0].mxu0
    %v2178 = vadd.f32 %v1476, %v2177
    %2179 = vmatprep.mubr.f32.mxu0 0.0
    %2180 = vmatmul.mubr.f32.gmra.mrb[0].mxu0 %v1413
    %v2181 = vpop.f32.mrb[0].mxu0
    %v2182 = vadd.f32 %v1472, %v2181
    %v2183 = vpop.f32.mrb[0].mxu0
    %v2184 = vadd.f32 %v1476, %v2183
    %2185 = vmatprep.mubr.f32.mxu0 0.0
    %2186 = vmatmul.mubr.f32.gmra.mrb[0].mxu0 %v1414
    %v2187 = vpop.f32.mrb[0].mxu0
    %v2188 = vadd.f32 %v1472, %v2187
    %v2189 = vpop.f32.mrb[0].mxu0
    %v2190 = vadd.f32 %v1476, %v2189
    %2191 = vmatprep.mubr.f32.mxu0 0.0
    %2192 = vmatmul.mubr.f32.gmra.mrb[0].mxu0 %v1415
    %v2193 = vpop.f32.mrb[0].mxu0
    %v2194 = vadd.f32 %v1472, %v2193
    %v2195 = vpop.f32.mrb[0].mxu0
    %v2196 = vadd.f32 %v1476, %v2195
    %2197 = vmatprep.mubr.f32.mxu0 0.0
    %2198 = vmatmul.mubr.f32.gmra.mrb[0].mxu0 %v1416
    %v2199 = vpop.f32.mrb[0].mxu0
    %v2200 = vadd.f32 %v1472, %v2199
    %v2201 = vpop.f32.mrb[0].mxu0
    %v2202 = vadd.f32 %v1476, %v2201
    %2203 = vmatprep.mubr.f32.mxu0 0.0
    %2204 = vmatmul.mubr.f32.gmra.mrb[0].mxu0 %v1417
    %v2205 = vpop.f32.mrb[0].mxu0
    %v2206 = vadd.f32 %v1472, %v2205
    %v2207 = vpop.f32.mrb[0].mxu0
    %v2208 = vadd.f32 %v1476, %v2207
    %2209 = vmatprep.mubr.f32.mxu0 0.0
    %2210 = vmatmul.mubr.f32.gmra.mrb[0].mxu0 %v1418
    %v2211 = vpop.f32.mrb[0].mxu0
    %v2212 = vadd.f32 %v1472, %v2211
    %v2213 = vpop.f32.mrb[0].mxu0
    %v2214 = vadd.f32 %v1476, %v2213
    %2215 = vmatprep.mubr.f32.mxu0 0.0
    %2216 = vmatmul.mubr.f32.gmra.mrb[0].mxu0 %v1419
    %v2217 = vpop.f32.mrb[0].mxu0
    %v2218 = vadd.f32 %v1472, %v2217
    %v2219 = vpop.f32.mrb[0].mxu0
    %v2220 = vadd.f32 %v1476, %v2219
    %2221 = vmatprep.mubr.f32.mxu0 0.0
    %2222 = vmatmul.mubr.f32.gmra.mrb[0].mxu0 %v1420
    %v2223 = vpop.f32.mrb[0].mxu0
    %v2224 = vadd.f32 %v1472, %v2223
    %v2225 = vpop.f32.mrb[0].mxu0
    %v2226 = vadd.f32 %v1476, %v2225
    %2227 = vmatprep.mubr.f32.mxu0 0.0
    %2228 = vmatmul.mubr.f32.gmra.mrb[0].mxu0 %v1421
    %v2229 = vpop.f32.mrb[0].mxu0
    %v2230 = vadd.f32 %v1472, %v2229
    %v2231 = vpop.f32.mrb[0].mxu0
    %v2232 = vadd.f32 %v1476, %v2231
    %2233 = vmatprep.mubr.f32.mxu0 0.0
    %2234 = vmatmul.mubr.f32.gmra.mrb[0].mxu0 %v1422
    %v2235 = vpop.f32.mrb[0].mxu0
    %v2236 = vadd.f32 %v1472, %v2235
    %v2237 = vpop.f32.mrb[0].mxu0
    %v2238 = vadd.f32 %v1476, %v2237
    %2239 = vmatprep.mubr.f32.mxu0 0.0
    %2240 = vmatmul.mubr.f32.gmra.mrb[0].mxu0 %v1423
    %v2241 = vpop.f32.mrb[0].mxu0
    %v2242 = vadd.f32 %v1472, %v2241
    %v2243 = vpop.f32.mrb[0].mxu0
    %v2244 = vadd.f32 %v1476, %v2243
    %2245 = vmatprep.mubr.f32.mxu0 0.0
    %2246 = vmatmul.mubr.f32.gmra.mrb[0].mxu0 %v1424
    %v2247 = vpop.f32.mrb[0].mxu0
    %v2248 = vadd.f32 %v1472, %v2247
    %v2249 = vpop.f32.mrb[0].mxu0
    %v2250 = vadd.f32 %v1476, %v2249
    %2251 = vmatprep.mubr.f32.mxu0 0.0
    %2252 = vmatmul.mubr.f32.gmra.mrb[0].mxu0 %v1425
    %v2253 = vpop.f32.mrb[0].mxu0
    %v2254 = vadd.f32 %v1472, %v2253
    %v2255 = vpop.f32.mrb[0].mxu0
    %v2256 = vadd.f32 %v1476, %v2255
    %2257 = vmatprep.mubr.f32.mxu0 0.0
    %2258 = vmatmul.mubr.f32.gmra.mrb[0].mxu0 %v1426
    %v2259 = vpop.f32.mrb[0].mxu0
    %v2260 = vadd.f32 %v1472, %v2259
    %v2261 = vpop.f32.mrb[0].mxu0
    %v2262 = vadd.f32 %v1476, %v2261
    %2263 = vmatprep.mubr.f32.mxu0 0.0
    %2264 = vmatmul.mubr.f32.gmra.mrb[0].mxu0 %v1427
    %v2265 = vpop.f32.mrb[0].mxu0
    %v2266 = vadd.f32 %v1472, %v2265
    %v2267 = vpop.f32.mrb[0].mxu0
    %v2268 = vadd.f32 %v1476, %v2267
    %2269 = vmatprep.mubr.f32.mxu0 0.0
    %2270 = vmatmul.mubr.f32.gmra.mrb[0].mxu0 %v1428
    %v2271 = vpop.f32.mrb[0].mxu0
    %v2272 = vadd.f32 %v1472, %v2271
    %v2273 = vpop.f32.mrb[0].mxu0
    %v2274 = vadd.f32 %v1476, %v2273
    %2275 = vmatprep.mubr.f32.mxu0 0.0
    %2276 = vmatmul.mubr.f32.gmra.mrb[0].mxu0 %v1429
    %v2277 = vpop.f32.mrb[0].mxu0
    %v2278 = vadd.f32 %v1472, %v2277
    %v2279 = vpop.f32.mrb[0].mxu0
    %v2280 = vadd.f32 %v1476, %v2279
    %2281 = vmatprep.mubr.f32.mxu0 0.0
    %2282 = vmatmul.mubr.f32.gmra.mrb[0].mxu0 %v1430
    %v2283 = vpop.f32.mrb[0].mxu0
    %v2284 = vadd.f32 %v1472, %v2283
    %v2285 = vpop.f32.mrb[0].mxu0
    %v2286 = vadd.f32 %v1476, %v2285
    %2287 = vmatprep.mubr.f32.mxu0 0.0
    %2288 = vmatmul.mubr.f32.gmra.mrb[0].mxu0 %v1431
    %v2289 = vpop.f32.mrb[0].mxu0
    %v2290 = vadd.f32 %v1472, %v2289
    %v2291 = vpop.f32.mrb[0].mxu0
    %v2292 = vadd.f32 %v1476, %v2291
    %2293 = vmatprep.mubr.f32.mxu0 0.0
    %2294 = vmatmul.mubr.f32.gmra.mrb[0].mxu0 %v1432
    %v2295 = vpop.f32.mrb[0].mxu0
    %v2296 = vadd.f32 %v1472, %v2295
    %v2297 = vpop.f32.mrb[0].mxu0
    %v2298 = vadd.f32 %v1476, %v2297
    %2299 = vmatprep.mubr.f32.mxu0 0.0
    %2300 = vmatmul.mubr.f32.gmra.mrb[0].mxu0 %v1433
    %v2301 = vpop.f32.mrb[0].mxu0
    %v2302 = vadd.f32 %v1472, %v2301
    %v2303 = vpop.f32.mrb[0].mxu0
    %v2304 = vadd.f32 %v1476, %v2303
    %2305 = vmatprep.mubr.f32.mxu0 0.0
    %2306 = vmatmul.mubr.f32.gmra.mrb[0].mxu0 %v1434
    %v2307 = vpop.f32.mrb[0].mxu0
    %v2308 = vadd.f32 %v1472, %v2307
    %v2309 = vpop.f32.mrb[0].mxu0
    %v2310 = vadd.f32 %v1476, %v2309
    %2311 = vdwg.mxu0
    %v2312 = vmax.f32 %v1546, %v1552
    %v2313 = vmax.f32 %v2312, %v1558
    %v2314 = vmax.f32 %v2313, %v1564
    %v2315 = vmax.f32 %v2314, %v1570
    %v2316 = vmax.f32 %v2315, %v1576
    %v2317 = vmax.f32 %v2316, %v1582
    %v2318 = vmax.f32 %v2317, %v1588
    %v2319 = vrot.slane %v2318, 4
    %v2320 = vmax.f32 %v2318, %v2319
    %v2321 = vrot.slane %v2320, 2
    %v2322 = vmax.f32 %v2320, %v2321
    %v2323 = vrot.slane %v2322, 1
    %v2324 = vmax.f32 %v2322, %v2323
    %v2325 = vmax.f32 %v1548, %v1554
    %v2326 = vmax.f32 %v2325, %v1560
    %v2327 = vmax.f32 %v2326, %v1566
    %v2328 = vmax.f32 %v2327, %v1572
    %v2329 = vmax.f32 %v2328, %v1578
    %v2330 = vmax.f32 %v2329, %v1584
    %v2331 = vmax.f32 %v2330, %v1590
    %v2332 = vrot.slane %v2331, 4
    %v2333 = vmax.f32 %v2331, %v2332
    %v2334 = vrot.slane %v2333, 2
    %v2335 = vmax.f32 %v2333, %v2334
    %v2336 = vrot.slane %v2335, 1
    %v2337 = vmax.f32 %v2335, %v2336
    %v2338 = vmax.f32 %v1594, %v1600
    %v2339 = vmax.f32 %v2338, %v1606
    %v2340 = vmax.f32 %v2339, %v1612
    %v2341 = vmax.f32 %v2340, %v1618
    %v2342 = vmax.f32 %v2341, %v1624
    %v2343 = vmax.f32 %v2342, %v1630
    %v2344 = vmax.f32 %v2343, %v1636
    %v2345 = vrot.slane %v2344, 4
    %v2346 = vmax.f32 %v2344, %v2345
    %v2347 = vrot.slane %v2346, 2
    %v2348 = vmax.f32 %v2346, %v2347
    %v2349 = vrot.slane %v2348, 1
    %v2350 = vmax.f32 %v2348, %v2349
    %v2351 = vmax.f32 %v1596, %v1602
    %v2352 = vmax.f32 %v2351, %v1608
    %v2353 = vmax.f32 %v2352, %v1614
    %v2354 = vmax.f32 %v2353, %v1620
    %v2355 = vmax.f32 %v2354, %v1626
    %v2356 = vmax.f32 %v2355, %v1632
    %v2357 = vmax.f32 %v2356, %v1638
    %v2358 = vrot.slane %v2357, 4
    %v2359 = vmax.f32 %v2357, %v2358
    %v2360 = vrot.slane %v2359, 2
    %v2361 = vmax.f32 %v2359, %v2360
    %v2362 = vrot.slane %v2361, 1
    %v2363 = vmax.f32 %v2361, %v2362
    %v2364 = vmax.f32 %v1642, %v1648
    %v2365 = vmax.f32 %v2364, %v1654
    %v2366 = vmax.f32 %v2365, %v1660
    %v2367 = vmax.f32 %v2366, %v1666
    %v2368 = vmax.f32 %v2367, %v1672
    %v2369 = vmax.f32 %v2368, %v1678
    %v2370 = vmax.f32 %v2369, %v1684
    %v2371 = vrot.slane %v2370, 4
    %v2372 = vmax.f32 %v2370, %v2371
    %v2373 = vrot.slane %v2372, 2
    %v2374 = vmax.f32 %v2372, %v2373
    %v2375 = vrot.slane %v2374, 1
    %v2376 = vmax.f32 %v2374, %v2375
    %v2377 = vmax.f32 %v1644, %v1650
    %v2378 = vmax.f32 %v2377, %v1656
    %v2379 = vmax.f32 %v2378, %v1662
    %v2380 = vmax.f32 %v2379, %v1668
    %v2381 = vmax.f32 %v2380, %v1674
    %v2382 = vmax.f32 %v2381, %v1680
    %v2383 = vmax.f32 %v2382, %v1686
    %v2384 = vrot.slane %v2383, 4
    %v2385 = vmax.f32 %v2383, %v2384
    %v2386 = vrot.slane %v2385, 2
    %v2387 = vmax.f32 %v2385, %v2386
    %v2388 = vrot.slane %v2387, 1
    %v2389 = vmax.f32 %v2387, %v2388
    %v2390 = vmax.f32 %v1690, %v1696
    %v2391 = vmax.f32 %v2390, %v1702
    %v2392 = vmax.f32 %v2391, %v1708
    %v2393 = vmax.f32 %v2392, %v1714
    %v2394 = vmax.f32 %v2393, %v1720
    %v2395 = vmax.f32 %v2394, %v1726
    %v2396 = vmax.f32 %v2395, %v1732
    %v2397 = vrot.slane %v2396, 4
    %v2398 = vmax.f32 %v2396, %v2397
    %v2399 = vrot.slane %v2398, 2
    %v2400 = vmax.f32 %v2398, %v2399
    %v2401 = vrot.slane %v2400, 1
    %v2402 = vmax.f32 %v2400, %v2401
    %v2403 = vmax.f32 %v1692, %v1698
    %v2404 = vmax.f32 %v2403, %v1704
    %v2405 = vmax.f32 %v2404, %v1710
    %v2406 = vmax.f32 %v2405, %v1716
    %v2407 = vmax.f32 %v2406, %v1722
    %v2408 = vmax.f32 %v2407, %v1728
    %v2409 = vmax.f32 %v2408, %v1734
    %v2410 = vrot.slane %v2409, 4
    %v2411 = vmax.f32 %v2409, %v2410
    %v2412 = vrot.slane %v2411, 2
    %v2413 = vmax.f32 %v2411, %v2412
    %v2414 = vrot.slane %v2413, 1
    %v2415 = vmax.f32 %v2413, %v2414
    %v2416 = vmax.f32 %v1738, %v1744
    %v2417 = vmax.f32 %v2416, %v1750
    %v2418 = vmax.f32 %v2417, %v1756
    %v2419 = vmax.f32 %v2418, %v1762
    %v2420 = vmax.f32 %v2419, %v1768
    %v2421 = vmax.f32 %v2420, %v1774
    %v2422 = vmax.f32 %v2421, %v1780
    %v2423 = vrot.slane %v2422, 4
    %v2424 = vmax.f32 %v2422, %v2423
    %v2425 = vrot.slane %v2424, 2
    %v2426 = vmax.f32 %v2424, %v2425
    %v2427 = vrot.slane %v2426, 1
    %v2428 = vmax.f32 %v2426, %v2427
    %v2429 = vmax.f32 %v1740, %v1746
    %v2430 = vmax.f32 %v2429, %v1752
    %v2431 = vmax.f32 %v2430, %v1758
    %v2432 = vmax.f32 %v2431, %v1764
    %v2433 = vmax.f32 %v2432, %v1770
    %v2434 = vmax.f32 %v2433, %v1776
    %v2435 = vmax.f32 %v2434, %v1782
    %v2436 = vrot.slane %v2435, 4
    %v2437 = vmax.f32 %v2435, %v2436
    %v2438 = vrot.slane %v2437, 2
    %v2439 = vmax.f32 %v2437, %v2438
    %v2440 = vrot.slane %v2439, 1
    %v2441 = vmax.f32 %v2439, %v2440
    %v2442 = vmax.f32 %v1786, %v1792
    %v2443 = vmax.f32 %v2442, %v1798
    %v2444 = vmax.f32 %v2443, %v1804
    %v2445 = vmax.f32 %v2444, %v1810
    %v2446 = vmax.f32 %v2445, %v1816
    %v2447 = vmax.f32 %v2446, %v1822
    %v2448 = vmax.f32 %v2447, %v1828
    %v2449 = vrot.slane %v2448, 4
    %v2450 = vmax.f32 %v2448, %v2449
    %v2451 = vrot.slane %v2450, 2
    %v2452 = vmax.f32 %v2450, %v2451
    %v2453 = vrot.slane %v2452, 1
    %v2454 = vmax.f32 %v2452, %v2453
    %v2455 = vmax.f32 %v1788, %v1794
    %v2456 = vmax.f32 %v2455, %v1800
    %v2457 = vmax.f32 %v2456, %v1806
    %v2458 = vmax.f32 %v2457, %v1812
    %v2459 = vmax.f32 %v2458, %v1818
    %v2460 = vmax.f32 %v2459, %v1824
    %v2461 = vmax.f32 %v2460, %v1830
    %v2462 = vrot.slane %v2461, 4
    %v2463 = vmax.f32 %v2461, %v2462
    %v2464 = vrot.slane %v2463, 2
    %v2465 = vmax.f32 %v2463, %v2464
    %v2466 = vrot.slane %v2465, 1
    %v2467 = vmax.f32 %v2465, %v2466
    %v2468 = vmax.f32 %v1834, %v1840
    %v2469 = vmax.f32 %v2468, %v1846
    %v2470 = vmax.f32 %v2469, %v1852
    %v2471 = vmax.f32 %v2470, %v1858
    %v2472 = vmax.f32 %v2471, %v1864
    %v2473 = vmax.f32 %v2472, %v1870
    %v2474 = vmax.f32 %v2473, %v1876
    %v2475 = vrot.slane %v2474, 4
    %v2476 = vmax.f32 %v2474, %v2475
    %v2477 = vrot.slane %v2476, 2
    %v2478 = vmax.f32 %v2476, %v2477
    %v2479 = vrot.slane %v2478, 1
    %v2480 = vmax.f32 %v2478, %v2479
    %v2481 = vmax.f32 %v1836, %v1842
    %v2482 = vmax.f32 %v2481, %v1848
    %v2483 = vmax.f32 %v2482, %v1854
    %v2484 = vmax.f32 %v2483, %v1860
    %v2485 = vmax.f32 %v2484, %v1866
    %v2486 = vmax.f32 %v2485, %v1872
    %v2487 = vmax.f32 %v2486, %v1878
    %v2488 = vrot.slane %v2487, 4
    %v2489 = vmax.f32 %v2487, %v2488
    %v2490 = vrot.slane %v2489, 2
    %v2491 = vmax.f32 %v2489, %v2490
    %v2492 = vrot.slane %v2491, 1
    %v2493 = vmax.f32 %v2491, %v2492
    %v2494 = vmax.f32 %v1882, %v1888
    %v2495 = vmax.f32 %v2494, %v1894
    %v2496 = vmax.f32 %v2495, %v1900
    %v2497 = vmax.f32 %v2496, %v1906
    %v2498 = vmax.f32 %v2497, %v1912
    %v2499 = vmax.f32 %v2498, %v1918
    %v2500 = vmax.f32 %v2499, %v1924
    %v2501 = vrot.slane %v2500, 4
    %v2502 = vmax.f32 %v2500, %v2501
    %v2503 = vrot.slane %v2502, 2
    %v2504 = vmax.f32 %v2502, %v2503
    %v2505 = vrot.slane %v2504, 1
    %v2506 = vmax.f32 %v2504, %v2505
    %v2507 = vmax.f32 %v1884, %v1890
    %v2508 = vmax.f32 %v2507, %v1896
    %v2509 = vmax.f32 %v2508, %v1902
    %v2510 = vmax.f32 %v2509, %v1908
    %v2511 = vmax.f32 %v2510, %v1914
    %v2512 = vmax.f32 %v2511, %v1920
    %v2513 = vmax.f32 %v2512, %v1926
    %v2514 = vrot.slane %v2513, 4
    %v2515 = vmax.f32 %v2513, %v2514
    %v2516 = vrot.slane %v2515, 2
    %v2517 = vmax.f32 %v2515, %v2516
    %v2518 = vrot.slane %v2517, 1
    %v2519 = vmax.f32 %v2517, %v2518
    %v2520 = vmax.f32 %v1930, %v1936
    %v2521 = vmax.f32 %v2520, %v1942
    %v2522 = vmax.f32 %v2521, %v1948
    %v2523 = vmax.f32 %v2522, %v1954
    %v2524 = vmax.f32 %v2523, %v1960
    %v2525 = vmax.f32 %v2524, %v1966
    %v2526 = vmax.f32 %v2525, %v1972
    %v2527 = vrot.slane %v2526, 4
    %v2528 = vmax.f32 %v2526, %v2527
    %v2529 = vrot.slane %v2528, 2
    %v2530 = vmax.f32 %v2528, %v2529
    %v2531 = vrot.slane %v2530, 1
    %v2532 = vmax.f32 %v2530, %v2531
    %v2533 = vmax.f32 %v1932, %v1938
    %v2534 = vmax.f32 %v2533, %v1944
    %v2535 = vmax.f32 %v2534, %v1950
    %v2536 = vmax.f32 %v2535, %v1956
    %v2537 = vmax.f32 %v2536, %v1962
    %v2538 = vmax.f32 %v2537, %v1968
    %v2539 = vmax.f32 %v2538, %v1974
    %v2540 = vrot.slane %v2539, 4
    %v2541 = vmax.f32 %v2539, %v2540
    %v2542 = vrot.slane %v2541, 2
    %v2543 = vmax.f32 %v2541, %v2542
    %v2544 = vrot.slane %v2543, 1
    %v2545 = vmax.f32 %v2543, %v2544
    %v2546 = vmax.f32 %v1978, %v1984
    %v2547 = vmax.f32 %v2546, %v1990
    %v2548 = vmax.f32 %v2547, %v1996
    %v2549 = vmax.f32 %v2548, %v2002
    %v2550 = vmax.f32 %v2549, %v2008
    %v2551 = vmax.f32 %v2550, %v2014
    %v2552 = vmax.f32 %v2551, %v2020
    %v2553 = vrot.slane %v2552, 4
    %v2554 = vmax.f32 %v2552, %v2553
    %v2555 = vrot.slane %v2554, 2
    %v2556 = vmax.f32 %v2554, %v2555
    %v2557 = vrot.slane %v2556, 1
    %v2558 = vmax.f32 %v2556, %v2557
    %v2559 = vmax.f32 %v1980, %v1986
    %v2560 = vmax.f32 %v2559, %v1992
    %v2561 = vmax.f32 %v2560, %v1998
    %v2562 = vmax.f32 %v2561, %v2004
    %v2563 = vmax.f32 %v2562, %v2010
    %v2564 = vmax.f32 %v2563, %v2016
    %v2565 = vmax.f32 %v2564, %v2022
    %v2566 = vrot.slane %v2565, 4
    %v2567 = vmax.f32 %v2565, %v2566
    %v2568 = vrot.slane %v2567, 2
    %v2569 = vmax.f32 %v2567, %v2568
    %v2570 = vrot.slane %v2569, 1
    %v2571 = vmax.f32 %v2569, %v2570
    %v2572 = vmax.f32 %v2026, %v2032
    %v2573 = vmax.f32 %v2572, %v2038
    %v2574 = vmax.f32 %v2573, %v2044
    %v2575 = vmax.f32 %v2574, %v2050
    %v2576 = vmax.f32 %v2575, %v2056
    %v2577 = vmax.f32 %v2576, %v2062
    %v2578 = vmax.f32 %v2577, %v2068
    %v2579 = vrot.slane %v2578, 4
    %v2580 = vmax.f32 %v2578, %v2579
    %v2581 = vrot.slane %v2580, 2
    %v2582 = vmax.f32 %v2580, %v2581
    %v2583 = vrot.slane %v2582, 1
    %v2584 = vmax.f32 %v2582, %v2583
    %v2585 = vmax.f32 %v2028, %v2034
    %v2586 = vmax.f32 %v2585, %v2040
    %v2587 = vmax.f32 %v2586, %v2046
    %v2588 = vmax.f32 %v2587, %v2052
    %v2589 = vmax.f32 %v2588, %v2058
    %v2590 = vmax.f32 %v2589, %v2064
    %v2591 = vmax.f32 %v2590, %v2070
    %v2592 = vrot.slane %v2591, 4
    %v2593 = vmax.f32 %v2591, %v2592
    %v2594 = vrot.slane %v2593, 2
    %v2595 = vmax.f32 %v2593, %v2594
    %v2596 = vrot.slane %v2595, 1
    %v2597 = vmax.f32 %v2595, %v2596
    %v2598 = vmax.f32 %v2074, %v2080
    %v2599 = vmax.f32 %v2598, %v2086
    %v2600 = vmax.f32 %v2599, %v2092
    %v2601 = vmax.f32 %v2600, %v2098
    %v2602 = vmax.f32 %v2601, %v2104
    %v2603 = vmax.f32 %v2602, %v2110
    %v2604 = vmax.f32 %v2603, %v2116
    %v2605 = vrot.slane %v2604, 4
    %v2606 = vmax.f32 %v2604, %v2605
    %v2607 = vrot.slane %v2606, 2
    %v2608 = vmax.f32 %v2606, %v2607
    %v2609 = vrot.slane %v2608, 1
    %v2610 = vmax.f32 %v2608, %v2609
    %v2611 = vmax.f32 %v2076, %v2082
    %v2612 = vmax.f32 %v2611, %v2088
    %v2613 = vmax.f32 %v2612, %v2094
    %v2614 = vmax.f32 %v2613, %v2100
    %v2615 = vmax.f32 %v2614, %v2106
    %v2616 = vmax.f32 %v2615, %v2112
    %v2617 = vmax.f32 %v2616, %v2118
    %v2618 = vrot.slane %v2617, 4
    %v2619 = vmax.f32 %v2617, %v2618
    %v2620 = vrot.slane %v2619, 2
    %v2621 = vmax.f32 %v2619, %v2620
    %v2622 = vrot.slane %v2621, 1
    %v2623 = vmax.f32 %v2621, %v2622
    %v2624 = vmax.f32 %v2122, %v2128
    %v2625 = vmax.f32 %v2624, %v2134
    %v2626 = vmax.f32 %v2625, %v2140
    %v2627 = vmax.f32 %v2626, %v2146
    %v2628 = vmax.f32 %v2627, %v2152
    %v2629 = vmax.f32 %v2628, %v2158
    %v2630 = vmax.f32 %v2629, %v2164
    %v2631 = vrot.slane %v2630, 4
    %v2632 = vmax.f32 %v2630, %v2631
    %v2633 = vrot.slane %v2632, 2
    %v2634 = vmax.f32 %v2632, %v2633
    %v2635 = vrot.slane %v2634, 1
    %v2636 = vmax.f32 %v2634, %v2635
    %v2637 = vmax.f32 %v2124, %v2130
    %v2638 = vmax.f32 %v2637, %v2136
    %v2639 = vmax.f32 %v2638, %v2142
    %v2640 = vmax.f32 %v2639, %v2148
    %v2641 = vmax.f32 %v2640, %v2154
    %v2642 = vmax.f32 %v2641, %v2160
    %v2643 = vmax.f32 %v2642, %v2166
    %v2644 = vrot.slane %v2643, 4
    %v2645 = vmax.f32 %v2643, %v2644
    %v2646 = vrot.slane %v2645, 2
    %v2647 = vmax.f32 %v2645, %v2646
    %v2648 = vrot.slane %v2647, 1
    %v2649 = vmax.f32 %v2647, %v2648
    %v2650 = vmax.f32 %v2170, %v2176
    %v2651 = vmax.f32 %v2650, %v2182
    %v2652 = vmax.f32 %v2651, %v2188
    %v2653 = vmax.f32 %v2652, %v2194
    %v2654 = vmax.f32 %v2653, %v2200
    %v2655 = vmax.f32 %v2654, %v2206
    %v2656 = vmax.f32 %v2655, %v2212
    %v2657 = vrot.slane %v2656, 4
    %v2658 = vmax.f32 %v2656, %v2657
    %v2659 = vrot.slane %v2658, 2
    %v2660 = vmax.f32 %v2658, %v2659
    %v2661 = vrot.slane %v2660, 1
    %v2662 = vmax.f32 %v2660, %v2661
    %v2663 = vmax.f32 %v2172, %v2178
    %v2664 = vmax.f32 %v2663, %v2184
    %v2665 = vmax.f32 %v2664, %v2190
    %v2666 = vmax.f32 %v2665, %v2196
    %v2667 = vmax.f32 %v2666, %v2202
    %v2668 = vmax.f32 %v2667, %v2208
    %v2669 = vmax.f32 %v2668, %v2214
    %v2670 = vrot.slane %v2669, 4
    %v2671 = vmax.f32 %v2669, %v2670
    %v2672 = vrot.slane %v2671, 2
    %v2673 = vmax.f32 %v2671, %v2672
    %v2674 = vrot.slane %v2673, 1
    %v2675 = vmax.f32 %v2673, %v2674
    %v2676 = vmax.f32 %v2218, %v2224
    %v2677 = vmax.f32 %v2676, %v2230
    %v2678 = vmax.f32 %v2677, %v2236
    %v2679 = vmax.f32 %v2678, %v2242
    %v2680 = vmax.f32 %v2679, %v2248
    %v2681 = vmax.f32 %v2680, %v2254
    %v2682 = vmax.f32 %v2681, %v2260
    %v2683 = vrot.slane %v2682, 4
    %v2684 = vmax.f32 %v2682, %v2683
    %v2685 = vrot.slane %v2684, 2
    %v2686 = vmax.f32 %v2684, %v2685
    %v2687 = vrot.slane %v2686, 1
    %v2688 = vmax.f32 %v2686, %v2687
    %v2689 = vmax.f32 %v2220, %v2226
    %v2690 = vmax.f32 %v2689, %v2232
    %v2691 = vmax.f32 %v2690, %v2238
    %v2692 = vmax.f32 %v2691, %v2244
    %v2693 = vmax.f32 %v2692, %v2250
    %v2694 = vmax.f32 %v2693, %v2256
    %v2695 = vmax.f32 %v2694, %v2262
    %v2696 = vrot.slane %v2695, 4
    %v2697 = vmax.f32 %v2695, %v2696
    %v2698 = vrot.slane %v2697, 2
    %v2699 = vmax.f32 %v2697, %v2698
    %v2700 = vrot.slane %v2699, 1
    %v2701 = vmax.f32 %v2699, %v2700
    %v2702 = vmax.f32 %v2266, %v2272
    %v2703 = vmax.f32 %v2702, %v2278
    %v2704 = vmax.f32 %v2703, %v2284
    %v2705 = vmax.f32 %v2704, %v2290
    %v2706 = vmax.f32 %v2705, %v2296
    %v2707 = vmax.f32 %v2706, %v2302
    %v2708 = vmax.f32 %v2707, %v2308
    %v2709 = vrot.slane %v2708, 4
    %v2710 = vmax.f32 %v2708, %v2709
    %v2711 = vrot.slane %v2710, 2
    %v2712 = vmax.f32 %v2710, %v2711
    %v2713 = vrot.slane %v2712, 1
    %v2714 = vmax.f32 %v2712, %v2713
    %v2715 = vmax.f32 %v2268, %v2274
    %v2716 = vmax.f32 %v2715, %v2280
    %v2717 = vmax.f32 %v2716, %v2286
    %v2718 = vmax.f32 %v2717, %v2292
    %v2719 = vmax.f32 %v2718, %v2298
    %v2720 = vmax.f32 %v2719, %v2304
    %v2721 = vmax.f32 %v2720, %v2310
    %v2722 = vrot.slane %v2721, 4
    %v2723 = vmax.f32 %v2721, %v2722
    %v2724 = vrot.slane %v2723, 2
    %v2725 = vmax.f32 %v2723, %v2724
    %v2726 = vrot.slane %v2725, 1
    %v2727 = vmax.f32 %v2725, %v2726
    %v2728 = vld [vmem:[%s5] sm:$0xff]
    %v2729 = vld [vmem:[%s5 + $0x8] sm:$0xff]
    %v2730 = vld [vmem:[%s5 + $0x10] sm:$0xff]
    %v2731 = vld [vmem:[%s5 + $0x18] sm:$0xff]
    %v2732 = vld [vmem:[%s5 + $0x20] sm:$0xff]
    %v2733 = vld [vmem:[%s5 + $0x28] sm:$0xff]
    %v2734 = vld [vmem:[%s5 + $0x30] sm:$0xff]
    %v2735 = vld [vmem:[%s5 + $0x38] sm:$0xff]
    %v2736 = vld [vmem:[%s5 + $0x40] sm:$0xff]
    %v2737 = vld [vmem:[%s5 + $0x48] sm:$0xff]
    %v2738 = vld [vmem:[%s5 + $0x50] sm:$0xff]
    %v2739 = vld [vmem:[%s5 + $0x58] sm:$0xff]
    %v2740 = vld [vmem:[%s5 + $0x60] sm:$0xff]
    %v2741 = vld [vmem:[%s5 + $0x68] sm:$0xff]
    %v2742 = vld [vmem:[%s5 + $0x70] sm:$0xff]
    %v2743 = vld [vmem:[%s5 + $0x78] sm:$0xff]
    %v2744 = vld [vmem:[%s5 + $0x80] sm:$0xff]
    %v2745 = vld [vmem:[%s5 + $0x88] sm:$0xff]
    %v2746 = vld [vmem:[%s5 + $0x90] sm:$0xff]
    %v2747 = vld [vmem:[%s5 + $0x98] sm:$0xff]
    %v2748 = vld [vmem:[%s5 + $0xa0] sm:$0xff]
    %v2749 = vld [vmem:[%s5 + $0xa8] sm:$0xff]
    %v2750 = vld [vmem:[%s5 + $0xb0] sm:$0xff]
    %v2751 = vld [vmem:[%s5 + $0xb8] sm:$0xff]
    %v2752 = vld [vmem:[%s5 + $0xc0] sm:$0xff]
    %v2753 = vld [vmem:[%s5 + $0xc8] sm:$0xff]
    %v2754 = vld [vmem:[%s5 + $0xd0] sm:$0xff]
    %v2755 = vld [vmem:[%s5 + $0xd8] sm:$0xff]
    %v2756 = vld [vmem:[%s5 + $0xe0] sm:$0xff]
    %v2757 = vld [vmem:[%s5 + $0xe8] sm:$0xff]
    %v2758 = vld [vmem:[%s5 + $0xf0] sm:$0xff]
    %v2759 = vld [vmem:[%s5 + $0xf8] sm:$0xff]
    %v2760 = vld [vmem:[%s5 + $0x100] sm:$0xff]
    %v2761 = vld [vmem:[%s5 + $0x108] sm:$0xff]
    %v2762 = vld [vmem:[%s5 + $0x110] sm:$0xff]
    %v2763 = vld [vmem:[%s5 + $0x118] sm:$0xff]
    %v2764 = vld [vmem:[%s5 + $0x120] sm:$0xff]
    %v2765 = vld [vmem:[%s5 + $0x128] sm:$0xff]
    %v2766 = vld [vmem:[%s5 + $0x130] sm:$0xff]
    %v2767 = vld [vmem:[%s5 + $0x138] sm:$0xff]
    %v2768 = vld [vmem:[%s5 + $0x140] sm:$0xff]
    %v2769 = vld [vmem:[%s5 + $0x148] sm:$0xff]
    %v2770 = vld [vmem:[%s5 + $0x150] sm:$0xff]
    %v2771 = vld [vmem:[%s5 + $0x158] sm:$0xff]
    %v2772 = vld [vmem:[%s5 + $0x160] sm:$0xff]
    %v2773 = vld [vmem:[%s5 + $0x168] sm:$0xff]
    %v2774 = vld [vmem:[%s5 + $0x170] sm:$0xff]
    %v2775 = vld [vmem:[%s5 + $0x178] sm:$0xff]
    %v2776 = vld [vmem:[%s5 + $0x180] sm:$0xff]
    %v2777 = vld [vmem:[%s5 + $0x188] sm:$0xff]
    %v2778 = vld [vmem:[%s5 + $0x190] sm:$0xff]
    %v2779 = vld [vmem:[%s5 + $0x198] sm:$0xff]
    %v2780 = vld [vmem:[%s5 + $0x1a0] sm:$0xff]
    %v2781 = vld [vmem:[%s5 + $0x1a8] sm:$0xff]
    %v2782 = vld [vmem:[%s5 + $0x1b0] sm:$0xff]
    %v2783 = vld [vmem:[%s5 + $0x1b8] sm:$0xff]
    %v2784 = vld [vmem:[%s5 + $0x1c0] sm:$0xff]
    %v2785 = vld [vmem:[%s5 + $0x1c8] sm:$0xff]
    %v2786 = vld [vmem:[%s5 + $0x1d0] sm:$0xff]
    %v2787 = vld [vmem:[%s5 + $0x1d8] sm:$0xff]
    %v2788 = vld [vmem:[%s5 + $0x1e0] sm:$0xff]
    %v2789 = vld [vmem:[%s5 + $0x1e8] sm:$0xff]
    %v2790 = vld [vmem:[%s5 + $0x1f0] sm:$0xff]
    %v2791 = vld [vmem:[%s5 + $0x1f8] sm:$0xff]
    %v2792 = vld [vmem:[%s5 + $0x200] sm:$0xff]
    %v2793 = vld [vmem:[%s5 + $0x208] sm:$0xff]
    %v2794 = vld [vmem:[%s5 + $0x210] sm:$0xff]
    %v2795 = vld [vmem:[%s5 + $0x218] sm:$0xff]
    %v2796 = vld [vmem:[%s5 + $0x220] sm:$0xff]
    %v2797 = vld [vmem:[%s5 + $0x228] sm:$0xff]
    %v2798 = vld [vmem:[%s5 + $0x230] sm:$0xff]
    %v2799 = vld [vmem:[%s5 + $0x238] sm:$0xff]
    %v2800 = vld [vmem:[%s5 + $0x240] sm:$0xff]
    %v2801 = vld [vmem:[%s5 + $0x248] sm:$0xff]
    %v2802 = vld [vmem:[%s5 + $0x250] sm:$0xff]
    %v2803 = vld [vmem:[%s5 + $0x258] sm:$0xff]
    %v2804 = vld [vmem:[%s5 + $0x260] sm:$0xff]
    %v2805 = vld [vmem:[%s5 + $0x268] sm:$0xff]
    %v2806 = vld [vmem:[%s5 + $0x270] sm:$0xff]
    %v2807 = vld [vmem:[%s5 + $0x278] sm:$0xff]
    %v2808 = vld [vmem:[%s5 + $0x280] sm:$0xff]
    %v2809 = vld [vmem:[%s5 + $0x288] sm:$0xff]
    %v2810 = vld [vmem:[%s5 + $0x290] sm:$0xff]
    %v2811 = vld [vmem:[%s5 + $0x298] sm:$0xff]
    %v2812 = vld [vmem:[%s5 + $0x2a0] sm:$0xff]
    %v2813 = vld [vmem:[%s5 + $0x2a8] sm:$0xff]
    %v2814 = vld [vmem:[%s5 + $0x2b0] sm:$0xff]
    %v2815 = vld [vmem:[%s5 + $0x2b8] sm:$0xff]
    %v2816 = vld [vmem:[%s5 + $0x2c0] sm:$0xff]
    %v2817 = vld [vmem:[%s5 + $0x2c8] sm:$0xff]
    %v2818 = vld [vmem:[%s5 + $0x2d0] sm:$0xff]
    %v2819 = vld [vmem:[%s5 + $0x2d8] sm:$0xff]
    %v2820 = vld [vmem:[%s5 + $0x2e0] sm:$0xff]
    %v2821 = vld [vmem:[%s5 + $0x2e8] sm:$0xff]
    %v2822 = vld [vmem:[%s5 + $0x2f0] sm:$0xff]
    %v2823 = vld [vmem:[%s5 + $0x2f8] sm:$0xff]
    %v2824 = vld [vmem:[%s5 + $0x300] sm:$0xff]
    %v2825 = vld [vmem:[%s5 + $0x308] sm:$0xff]
    %v2826 = vld [vmem:[%s5 + $0x310] sm:$0xff]
    %v2827 = vld [vmem:[%s5 + $0x318] sm:$0xff]
    %v2828 = vld [vmem:[%s5 + $0x320] sm:$0xff]
    %v2829 = vld [vmem:[%s5 + $0x328] sm:$0xff]
    %v2830 = vld [vmem:[%s5 + $0x330] sm:$0xff]
    %v2831 = vld [vmem:[%s5 + $0x338] sm:$0xff]
    %v2832 = vld [vmem:[%s5 + $0x340] sm:$0xff]
    %v2833 = vld [vmem:[%s5 + $0x348] sm:$0xff]
    %v2834 = vld [vmem:[%s5 + $0x350] sm:$0xff]
    %v2835 = vld [vmem:[%s5 + $0x358] sm:$0xff]
    %v2836 = vld [vmem:[%s5 + $0x360] sm:$0xff]
    %v2837 = vld [vmem:[%s5 + $0x368] sm:$0xff]
    %v2838 = vld [vmem:[%s5 + $0x370] sm:$0xff]
    %v2839 = vld [vmem:[%s5 + $0x378] sm:$0xff]
    %v2840 = vld [vmem:[%s5 + $0x380] sm:$0xff]
    %v2841 = vld [vmem:[%s5 + $0x388] sm:$0xff]
    %v2842 = vld [vmem:[%s5 + $0x390] sm:$0xff]
    %v2843 = vld [vmem:[%s5 + $0x398] sm:$0xff]
    %v2844 = vld [vmem:[%s5 + $0x3a0] sm:$0xff]
    %v2845 = vld [vmem:[%s5 + $0x3a8] sm:$0xff]
    %v2846 = vld [vmem:[%s5 + $0x3b0] sm:$0xff]
    %v2847 = vld [vmem:[%s5 + $0x3b8] sm:$0xff]
    %v2848 = vld [vmem:[%s5 + $0x3c0] sm:$0xff]
    %v2849 = vld [vmem:[%s5 + $0x3c8] sm:$0xff]
    %v2850 = vld [vmem:[%s5 + $0x3d0] sm:$0xff]
    %v2851 = vld [vmem:[%s5 + $0x3d8] sm:$0xff]
    %v2852 = vld [vmem:[%s5 + $0x3e0] sm:$0xff]
    %v2853 = vld [vmem:[%s5 + $0x3e8] sm:$0xff]
    %v2854 = vld [vmem:[%s5 + $0x3f0] sm:$0xff]
    %v2855 = vld [vmem:[%s5 + $0x3f8] sm:$0xff]
    %v2856 = vld [vmem:[%s7] sm:$0xf]
    %v2858 = vlaneseq
    %v2859 = vshrl.u32 %v2858, 7
    %v2860 = vsub.s32 0, %v2859
    %v2861 = vrot.slane %v2856, %v2860
    %v2862 = vlaneseq
    %v2863 = vshrl.u32 %v2862, 7
    %v2864 = vsub.s32 1, %v2863
    %v2865 = vrot.slane %v2856, %v2864
    %v2866 = vlaneseq
    %v2867 = vshrl.u32 %v2866, 7
    %v2868 = vsub.s32 2, %v2867
    %v2869 = vrot.slane %v2856, %v2868
    %v2870 = vlaneseq
    %v2871 = vshrl.u32 %v2870, 7
    %v2872 = vsub.s32 3, %v2871
    %v2873 = vrot.slane %v2856, %v2872
    %vm2910 = vcmask 1041409
    %v2911 = vsel %vm2910, %v2350, %v2324
    %vm2912 = vcmask 1042434
    %v2913 = vsel %vm2912, %v2376, %v2911
    %vm2914 = vcmask 1043459
    %v2915 = vsel %vm2914, %v2402, %v2913
    %vm2916 = vcmask 1044484
    %v2917 = vsel %vm2916, %v2428, %v2915
    %vm2918 = vcmask 1045509
    %v2919 = vsel %vm2918, %v2454, %v2917
    %vm2920 = vcmask 1046534
    %v2921 = vsel %vm2920, %v2480, %v2919
    %vm2922 = vcmask 1047559
    %v2923 = vsel %vm2922, %v2506, %v2921
    %v2924 = vsel %vm2910, %v2363, %v2337
    %v2925 = vsel %vm2912, %v2389, %v2924
    %v2926 = vsel %vm2914, %v2415, %v2925
    %v2927 = vsel %vm2916, %v2441, %v2926
    %v2928 = vsel %vm2918, %v2467, %v2927
    %v2929 = vsel %vm2920, %v2493, %v2928
    %v2930 = vsel %vm2922, %v2519, %v2929
    %v2931 = vsel %vm2910, %v2558, %v2532
    %v2932 = vsel %vm2912, %v2584, %v2931
    %v2933 = vsel %vm2914, %v2610, %v2932
    %v2934 = vsel %vm2916, %v2636, %v2933
    %v2935 = vsel %vm2918, %v2662, %v2934
    %v2936 = vsel %vm2920, %v2688, %v2935
    %v2937 = vsel %vm2922, %v2714, %v2936
    %v2938 = vsel %vm2910, %v2571, %v2545
    %v2939 = vsel %vm2912, %v2597, %v2938
    %v2940 = vsel %vm2914, %v2623, %v2939
    %v2941 = vsel %vm2916, %v2649, %v2940
    %v2942 = vsel %vm2918, %v2675, %v2941
    %v2943 = vsel %vm2920, %v2701, %v2942
    %v2944 = vsel %vm2922, %v2727, %v2943
    %2949 = vmatprep.subr.mxu0 %v2729
    %2950 = vmatpush1.msra.mxu0 %v2728
    %2951 = vmatprep.subr.mxu0 %v2733
    %2952 = vmatpush1.msra.mxu0 %v2732
    %2953 = vmatprep.subr.mxu0 %v2737
    %2954 = vmatpush1.msra.mxu0 %v2736
    %2955 = vmatprep.subr.mxu0 %v2741
    %2956 = vmatpush1.msra.mxu0 %v2740
    %2957 = vmatprep.subr.mxu0 %v2745
    %2958 = vmatpush1.msra.mxu0 %v2744
    %2959 = vmatprep.subr.mxu0 %v2749
    %2960 = vmatpush1.msra.mxu0 %v2748
    %2961 = vmatprep.subr.mxu0 %v2753
    %2962 = vmatpush1.msra.mxu0 %v2752
    %2963 = vmatprep.subr.mxu0 %v2757
    %2964 = vmatpush1.msra.mxu0 %v2756
    %2965 = vmatprep.subr.mxu0 %v2761
    %2966 = vmatpush1.msra.mxu0 %v2760
    %2967 = vmatprep.subr.mxu0 %v2765
    %2968 = vmatpush1.msra.mxu0 %v2764
    %2969 = vmatprep.subr.mxu0 %v2769
    %2970 = vmatpush1.msra.mxu0 %v2768
    %2971 = vmatprep.subr.mxu0 %v2773
    %2972 = vmatpush1.msra.mxu0 %v2772
    %2973 = vmatprep.subr.mxu0 %v2777
    %2974 = vmatpush1.msra.mxu0 %v2776
    %2975 = vmatprep.subr.mxu0 %v2781
    %2976 = vmatpush1.msra.mxu0 %v2780
    %2977 = vmatprep.subr.mxu0 %v2785
    %2978 = vmatpush1.msra.mxu0 %v2784
    %2979 = vmatprep.subr.mxu0 %v2789
    %2980 = vmatpush1.msra.mxu0 %v2788
    %2981 = vmatprep.subr.mxu0 %v2793
    %2982 = vmatpush1.msra.mxu0 %v2792
    %2983 = vmatprep.subr.mxu0 %v2797
    %2984 = vmatpush1.msra.mxu0 %v2796
    %2985 = vmatprep.subr.mxu0 %v2801
    %2986 = vmatpush1.msra.mxu0 %v2800
    %2987 = vmatprep.subr.mxu0 %v2805
    %2988 = vmatpush1.msra.mxu0 %v2804
    %2989 = vmatprep.subr.mxu0 %v2809
    %2990 = vmatpush1.msra.mxu0 %v2808
    %2991 = vmatprep.subr.mxu0 %v2813
    %2992 = vmatpush1.msra.mxu0 %v2812
    %2993 = vmatprep.subr.mxu0 %v2817
    %2994 = vmatpush1.msra.mxu0 %v2816
    %2995 = vmatprep.subr.mxu0 %v2821
    %2996 = vmatpush1.msra.mxu0 %v2820
    %2997 = vmatprep.subr.mxu0 %v2825
    %2998 = vmatpush1.msra.mxu0 %v2824
    %2999 = vmatprep.subr.mxu0 %v2829
    %3000 = vmatpush1.msra.mxu0 %v2828
    %3001 = vmatprep.subr.mxu0 %v2833
    %3002 = vmatpush1.msra.mxu0 %v2832
    %3003 = vmatprep.subr.mxu0 %v2837
    %3004 = vmatpush1.msra.mxu0 %v2836
    %3005 = vmatprep.subr.mxu0 %v2841
    %3006 = vmatpush1.msra.mxu0 %v2840
    %3007 = vmatprep.subr.mxu0 %v2845
    %3008 = vmatpush1.msra.mxu0 %v2844
    %3009 = vmatprep.subr.mxu0 %v2849
    %3010 = vmatpush1.msra.mxu0 %v2848
    %3011 = vmatprep.subr.mxu0 %v2853
    %3012 = vmatpush1.msra.mxu0 %v2852
    %3013 = vmatprep.mubr.f32.mxu0 %v2930
    %3014 = vmatmul.mubr.f32.gmra.mrb[0].mxu0 %v2923
    %v3015 = vpop.f32.mrb[0].mxu0
    %v3016 = vadd.f32 %v2861, %v3015
    %v3017 = vpop.f32.mrb[0].mxu0
    %v3018 = vadd.f32 %v2865, %v3017
    %3019 = vmatprep.mubr.f32.mxu0 %v2944
    %3020 = vmatmul.mubr.f32.gmra.mrb[0].mxu0 %v2937
    %v3021 = vpop.f32.mrb[0].mxu0
    %v3022 = vadd.f32 %v2861, %v3021
    %v3023 = vpop.f32.mrb[0].mxu0
    %v3024 = vadd.f32 %v2865, %v3023
    %3025 = vdwg.mxu0
    %3026 = vmatprep.subr.mxu0 %v2731
    %3027 = vmatpush1.msra.mxu0 %v2730
    %3028 = vmatprep.subr.mxu0 %v2735
    %3029 = vmatpush1.msra.mxu0 %v2734
    %3030 = vmatprep.subr.mxu0 %v2739
    %3031 = vmatpush1.msra.mxu0 %v2738
    %3032 = vmatprep.subr.mxu0 %v2743
    %3033 = vmatpush1.msra.mxu0 %v2742
    %3034 = vmatprep.subr.mxu0 %v2747
    %3035 = vmatpush1.msra.mxu0 %v2746
    %3036 = vmatprep.subr.mxu0 %v2751
    %3037 = vmatpush1.msra.mxu0 %v2750
    %3038 = vmatprep.subr.mxu0 %v2755
    %3039 = vmatpush1.msra.mxu0 %v2754
    %3040 = vmatprep.subr.mxu0 %v2759
    %3041 = vmatpush1.msra.mxu0 %v2758
    %3042 = vmatprep.subr.mxu0 %v2763
    %3043 = vmatpush1.msra.mxu0 %v2762
    %3044 = vmatprep.subr.mxu0 %v2767
    %3045 = vmatpush1.msra.mxu0 %v2766
    %3046 = vmatprep.subr.mxu0 %v2771
    %3047 = vmatpush1.msra.mxu0 %v2770
    %3048 = vmatprep.subr.mxu0 %v2775
    %3049 = vmatpush1.msra.mxu0 %v2774
    %3050 = vmatprep.subr.mxu0 %v2779
    %3051 = vmatpush1.msra.mxu0 %v2778
    %3052 = vmatprep.subr.mxu0 %v2783
    %3053 = vmatpush1.msra.mxu0 %v2782
    %3054 = vmatprep.subr.mxu0 %v2787
    %3055 = vmatpush1.msra.mxu0 %v2786
    %3056 = vmatprep.subr.mxu0 %v2791
    %3057 = vmatpush1.msra.mxu0 %v2790
    %3058 = vmatprep.subr.mxu0 %v2795
    %3059 = vmatpush1.msra.mxu0 %v2794
    %3060 = vmatprep.subr.mxu0 %v2799
    %3061 = vmatpush1.msra.mxu0 %v2798
    %3062 = vmatprep.subr.mxu0 %v2803
    %3063 = vmatpush1.msra.mxu0 %v2802
    %3064 = vmatprep.subr.mxu0 %v2807
    %3065 = vmatpush1.msra.mxu0 %v2806
    %3066 = vmatprep.subr.mxu0 %v2811
    %3067 = vmatpush1.msra.mxu0 %v2810
    %3068 = vmatprep.subr.mxu0 %v2815
    %3069 = vmatpush1.msra.mxu0 %v2814
    %3070 = vmatprep.subr.mxu0 %v2819
    %3071 = vmatpush1.msra.mxu0 %v2818
    %3072 = vmatprep.subr.mxu0 %v2823
    %3073 = vmatpush1.msra.mxu0 %v2822
    %3074 = vmatprep.subr.mxu0 %v2827
    %3075 = vmatpush1.msra.mxu0 %v2826
    %3076 = vmatprep.subr.mxu0 %v2831
    %3077 = vmatpush1.msra.mxu0 %v2830
    %3078 = vmatprep.subr.mxu0 %v2835
    %3079 = vmatpush1.msra.mxu0 %v2834
    %3080 = vmatprep.subr.mxu0 %v2839
    %3081 = vmatpush1.msra.mxu0 %v2838
    %3082 = vmatprep.subr.mxu0 %v2843
    %3083 = vmatpush1.msra.mxu0 %v2842
    %3084 = vmatprep.subr.mxu0 %v2847
    %3085 = vmatpush1.msra.mxu0 %v2846
    %3086 = vmatprep.subr.mxu0 %v2851
    %3087 = vmatpush1.msra.mxu0 %v2850
    %3088 = vmatprep.subr.mxu0 %v2855
    %3089 = vmatpush1.msra.mxu0 %v2854
    %3090 = vmatprep.mubr.f32.mxu0 %v2930
    %3091 = vmatmul.mubr.f32.gmra.mrb[0].mxu0 %v2923
    %v3092 = vpop.f32.mrb[0].mxu0
    %v3093 = vadd.f32 %v2869, %v3092
    %v3094 = vpop.f32.mrb[0].mxu0
    %v3095 = vadd.f32 %v2873, %v3094
    %3096 = vmatprep.mubr.f32.mxu0 %v2944
    %3097 = vmatmul.mubr.f32.gmra.mrb[0].mxu0 %v2937
    %v3098 = vpop.f32.mrb[0].mxu0
    %v3099 = vadd.f32 %v2869, %v3098
    %v3100 = vpop.f32.mrb[0].mxu0
    %v3101 = vadd.f32 %v2873, %v3100
    %3102 = vdwg.mxu0
    %v3103 = vld [vmem:[#allocation5] sm:$0xff]
    %v3104 = vld [vmem:[#allocation5 + $0x8] sm:$0xff]
    %v3105 = vld [vmem:[#allocation5 + $0x10] sm:$0xff]
    %v3106 = vld [vmem:[#allocation5 + $0x18] sm:$0xff]
    %v3107 = vld [vmem:[#allocation5 + $0x20] sm:$0xff]
    %v3108 = vld [vmem:[#allocation5 + $0x28] sm:$0xff]
    %v3109 = vld [vmem:[#allocation5 + $0x30] sm:$0xff]
    %v3110 = vld [vmem:[#allocation5 + $0x38] sm:$0xff]
    %v3111 = vld [vmem:[#allocation5 + $0x40] sm:$0xff]
    %v3112 = vld [vmem:[#allocation5 + $0x48] sm:$0xff]
    %v3113 = vld [vmem:[#allocation5 + $0x50] sm:$0xff]
    %v3114 = vld [vmem:[#allocation5 + $0x58] sm:$0xff]
    %v3115 = vld [vmem:[#allocation5 + $0x60] sm:$0xff]
    %v3116 = vld [vmem:[#allocation5 + $0x68] sm:$0xff]
    %v3117 = vld [vmem:[#allocation5 + $0x70] sm:$0xff]
    %v3118 = vld [vmem:[#allocation5 + $0x78] sm:$0xff]
    %v3119 = vld [vmem:[#allocation5 + $0x80] sm:$0xff]
    %v3120 = vld [vmem:[#allocation5 + $0x88] sm:$0xff]
    %v3121 = vld [vmem:[#allocation5 + $0x90] sm:$0xff]
    %v3122 = vld [vmem:[#allocation5 + $0x98] sm:$0xff]
    %v3123 = vld [vmem:[#allocation5 + $0xa0] sm:$0xff]
    %v3124 = vld [vmem:[#allocation5 + $0xa8] sm:$0xff]
    %v3125 = vld [vmem:[#allocation5 + $0xb0] sm:$0xff]
    %v3126 = vld [vmem:[#allocation5 + $0xb8] sm:$0xff]
    %v3127 = vld [vmem:[#allocation5 + $0xc0] sm:$0xff]
    %v3128 = vld [vmem:[#allocation5 + $0xc8] sm:$0xff]
    %v3129 = vld [vmem:[#allocation5 + $0xd0] sm:$0xff]
    %v3130 = vld [vmem:[#allocation5 + $0xd8] sm:$0xff]
    %v3131 = vld [vmem:[#allocation5 + $0xe0] sm:$0xff]
    %v3132 = vld [vmem:[#allocation5 + $0xe8] sm:$0xff]
    %v3133 = vld [vmem:[#allocation5 + $0xf0] sm:$0xff]
    %v3134 = vld [vmem:[#allocation5 + $0xf8] sm:$0xff]
    %v3135 = vld [vmem:[#allocation5 + $0x100] sm:$0xff]
    %v3136 = vld [vmem:[#allocation5 + $0x108] sm:$0xff]
    %v3137 = vld [vmem:[#allocation5 + $0x110] sm:$0xff]
    %v3138 = vld [vmem:[#allocation5 + $0x118] sm:$0xff]
    %v3139 = vld [vmem:[#allocation5 + $0x120] sm:$0xff]
    %v3140 = vld [vmem:[#allocation5 + $0x128] sm:$0xff]
    %v3141 = vld [vmem:[#allocation5 + $0x130] sm:$0xff]
    %v3142 = vld [vmem:[#allocation5 + $0x138] sm:$0xff]
    %v3143 = vld [vmem:[#allocation5 + $0x140] sm:$0xff]
    %v3144 = vld [vmem:[#allocation5 + $0x148] sm:$0xff]
    %v3145 = vld [vmem:[#allocation5 + $0x150] sm:$0xff]
    %v3146 = vld [vmem:[#allocation5 + $0x158] sm:$0xff]
    %v3147 = vld [vmem:[#allocation5 + $0x160] sm:$0xff]
    %v3148 = vld [vmem:[#allocation5 + $0x168] sm:$0xff]
    %v3149 = vld [vmem:[#allocation5 + $0x170] sm:$0xff]
    %v3150 = vld [vmem:[#allocation5 + $0x178] sm:$0xff]
    %v3151 = vld [vmem:[#allocation5 + $0x180] sm:$0xff]
    %v3152 = vld [vmem:[#allocation5 + $0x188] sm:$0xff]
    %v3153 = vld [vmem:[#allocation5 + $0x190] sm:$0xff]
    %v3154 = vld [vmem:[#allocation5 + $0x198] sm:$0xff]
    %v3155 = vld [vmem:[#allocation5 + $0x1a0] sm:$0xff]
    %v3156 = vld [vmem:[#allocation5 + $0x1a8] sm:$0xff]
    %v3157 = vld [vmem:[#allocation5 + $0x1b0] sm:$0xff]
    %v3158 = vld [vmem:[#allocation5 + $0x1b8] sm:$0xff]
    %v3159 = vld [vmem:[#allocation5 + $0x1c0] sm:$0xff]
    %v3160 = vld [vmem:[#allocation5 + $0x1c8] sm:$0xff]
    %v3161 = vld [vmem:[#allocation5 + $0x1d0] sm:$0xff]
    %v3162 = vld [vmem:[#allocation5 + $0x1d8] sm:$0xff]
    %v3163 = vld [vmem:[#allocation5 + $0x1e0] sm:$0xff]
    %v3164 = vld [vmem:[#allocation5 + $0x1e8] sm:$0xff]
    %v3165 = vld [vmem:[#allocation5 + $0x1f0] sm:$0xff]
    %v3166 = vld [vmem:[#allocation5 + $0x1f8] sm:$0xff]
    %v3167 = vld [vmem:[#allocation5 + $0x200] sm:$0xff]
    %v3168 = vld [vmem:[#allocation5 + $0x208] sm:$0xff]
    %v3169 = vld [vmem:[#allocation5 + $0x210] sm:$0xff]
    %v3170 = vld [vmem:[#allocation5 + $0x218] sm:$0xff]
    %v3171 = vld [vmem:[#allocation5 + $0x220] sm:$0xff]
    %v3172 = vld [vmem:[#allocation5 + $0x228] sm:$0xff]
    %v3173 = vld [vmem:[#allocation5 + $0x230] sm:$0xff]
    %v3174 = vld [vmem:[#allocation5 + $0x238] sm:$0xff]
    %v3175 = vld [vmem:[#allocation5 + $0x240] sm:$0xff]
    %v3176 = vld [vmem:[#allocation5 + $0x248] sm:$0xff]
    %v3177 = vld [vmem:[#allocation5 + $0x250] sm:$0xff]
    %v3178 = vld [vmem:[#allocation5 + $0x258] sm:$0xff]
    %v3179 = vld [vmem:[#allocation5 + $0x260] sm:$0xff]
    %v3180 = vld [vmem:[#allocation5 + $0x268] sm:$0xff]
    %v3181 = vld [vmem:[#allocation5 + $0x270] sm:$0xff]
    %v3182 = vld [vmem:[#allocation5 + $0x278] sm:$0xff]
    %v3183 = vld [vmem:[#allocation5 + $0x280] sm:$0xff]
    %v3184 = vld [vmem:[#allocation5 + $0x288] sm:$0xff]
    %v3185 = vld [vmem:[#allocation5 + $0x290] sm:$0xff]
    %v3186 = vld [vmem:[#allocation5 + $0x298] sm:$0xff]
    %v3187 = vld [vmem:[#allocation5 + $0x2a0] sm:$0xff]
    %v3188 = vld [vmem:[#allocation5 + $0x2a8] sm:$0xff]
    %v3189 = vld [vmem:[#allocation5 + $0x2b0] sm:$0xff]
    %v3190 = vld [vmem:[#allocation5 + $0x2b8] sm:$0xff]
    %v3191 = vld [vmem:[#allocation5 + $0x2c0] sm:$0xff]
    %v3192 = vld [vmem:[#allocation5 + $0x2c8] sm:$0xff]
    %v3193 = vld [vmem:[#allocation5 + $0x2d0] sm:$0xff]
    %v3194 = vld [vmem:[#allocation5 + $0x2d8] sm:$0xff]
    %v3195 = vld [vmem:[#allocation5 + $0x2e0] sm:$0xff]
    %v3196 = vld [vmem:[#allocation5 + $0x2e8] sm:$0xff]
    %v3197 = vld [vmem:[#allocation5 + $0x2f0] sm:$0xff]
    %v3198 = vld [vmem:[#allocation5 + $0x2f8] sm:$0xff]
    %v3199 = vld [vmem:[#allocation5 + $0x300] sm:$0xff]
    %v3200 = vld [vmem:[#allocation5 + $0x308] sm:$0xff]
    %v3201 = vld [vmem:[#allocation5 + $0x310] sm:$0xff]
    %v3202 = vld [vmem:[#allocation5 + $0x318] sm:$0xff]
    %v3203 = vld [vmem:[#allocation5 + $0x320] sm:$0xff]
    %v3204 = vld [vmem:[#allocation5 + $0x328] sm:$0xff]
    %v3205 = vld [vmem:[#allocation5 + $0x330] sm:$0xff]
    %v3206 = vld [vmem:[#allocation5 + $0x338] sm:$0xff]
    %v3207 = vld [vmem:[#allocation5 + $0x340] sm:$0xff]
    %v3208 = vld [vmem:[#allocation5 + $0x348] sm:$0xff]
    %v3209 = vld [vmem:[#allocation5 + $0x350] sm:$0xff]
    %v3210 = vld [vmem:[#allocation5 + $0x358] sm:$0xff]
    %v3211 = vld [vmem:[#allocation5 + $0x360] sm:$0xff]
    %v3212 = vld [vmem:[#allocation5 + $0x368] sm:$0xff]
    %v3213 = vld [vmem:[#allocation5 + $0x370] sm:$0xff]
    %v3214 = vld [vmem:[#allocation5 + $0x378] sm:$0xff]
    %v3215 = vld [vmem:[#allocation5 + $0x380] sm:$0xff]
    %v3216 = vld [vmem:[#allocation5 + $0x388] sm:$0xff]
    %v3217 = vld [vmem:[#allocation5 + $0x390] sm:$0xff]
    %v3218 = vld [vmem:[#allocation5 + $0x398] sm:$0xff]
    %v3219 = vld [vmem:[#allocation5 + $0x3a0] sm:$0xff]
    %v3220 = vld [vmem:[#allocation5 + $0x3a8] sm:$0xff]
    %v3221 = vld [vmem:[#allocation5 + $0x3b0] sm:$0xff]
    %v3222 = vld [vmem:[#allocation5 + $0x3b8] sm:$0xff]
    %v3223 = vld [vmem:[#allocation5 + $0x3c0] sm:$0xff]
    %v3224 = vld [vmem:[#allocation5 + $0x3c8] sm:$0xff]
    %v3225 = vld [vmem:[#allocation5 + $0x3d0] sm:$0xff]
    %v3226 = vld [vmem:[#allocation5 + $0x3d8] sm:$0xff]
    %v3227 = vld [vmem:[#allocation5 + $0x3e0] sm:$0xff]
    %v3228 = vld [vmem:[#allocation5 + $0x3e8] sm:$0xff]
    %v3229 = vld [vmem:[#allocation5 + $0x3f0] sm:$0xff]
    %v3230 = vld [vmem:[#allocation5 + $0x3f8] sm:$0xff]
    %3231 = vmatprep.subr.mxu0 %v3104
    %3232 = vmatpush1.msra.mxu0 %v3103
    %3233 = vmatprep.subr.mxu0 %v3108
    %3234 = vmatpush1.msra.mxu0 %v3107
    %3235 = vmatprep.subr.mxu0 %v3112
    %3236 = vmatpush1.msra.mxu0 %v3111
    %3237 = vmatprep.subr.mxu0 %v3116
    %3238 = vmatpush1.msra.mxu0 %v3115
    %3239 = vmatprep.subr.mxu0 %v3120
    %3240 = vmatpush1.msra.mxu0 %v3119
    %3241 = vmatprep.subr.mxu0 %v3124
    %3242 = vmatpush1.msra.mxu0 %v3123
    %3243 = vmatprep.subr.mxu0 %v3128
    %3244 = vmatpush1.msra.mxu0 %v3127
    %3245 = vmatprep.subr.mxu0 %v3132
    %3246 = vmatpush1.msra.mxu0 %v3131
    %3247 = vmatprep.subr.mxu0 %v3136
    %3248 = vmatpush1.msra.mxu0 %v3135
    %3249 = vmatprep.subr.mxu0 %v3140
    %3250 = vmatpush1.msra.mxu0 %v3139
    %3251 = vmatprep.subr.mxu0 %v3144
    %3252 = vmatpush1.msra.mxu0 %v3143
    %3253 = vmatprep.subr.mxu0 %v3148
    %3254 = vmatpush1.msra.mxu0 %v3147
    %3255 = vmatprep.subr.mxu0 %v3152
    %3256 = vmatpush1.msra.mxu0 %v3151
    %3257 = vmatprep.subr.mxu0 %v3156
    %3258 = vmatpush1.msra.mxu0 %v3155
    %3259 = vmatprep.subr.mxu0 %v3160
    %3260 = vmatpush1.msra.mxu0 %v3159
    %3261 = vmatprep.subr.mxu0 %v3164
    %3262 = vmatpush1.msra.mxu0 %v3163
    %3263 = vmatprep.subr.mxu0 %v3168
    %3264 = vmatpush1.msra.mxu0 %v3167
    %3265 = vmatprep.subr.mxu0 %v3172
    %3266 = vmatpush1.msra.mxu0 %v3171
    %3267 = vmatprep.subr.mxu0 %v3176
    %3268 = vmatpush1.msra.mxu0 %v3175
    %3269 = vmatprep.subr.mxu0 %v3180
    %3270 = vmatpush1.msra.mxu0 %v3179
    %3271 = vmatprep.subr.mxu0 %v3184
    %3272 = vmatpush1.msra.mxu0 %v3183
    %3273 = vmatprep.subr.mxu0 %v3188
    %3274 = vmatpush1.msra.mxu0 %v3187
    %3275 = vmatprep.subr.mxu0 %v3192
    %3276 = vmatpush1.msra.mxu0 %v3191
    %3277 = vmatprep.subr.mxu0 %v3196
    %3278 = vmatpush1.msra.mxu0 %v3195
    %3279 = vmatprep.subr.mxu0 %v3200
    %3280 = vmatpush1.msra.mxu0 %v3199
    %3281 = vmatprep.subr.mxu0 %v3204
    %3282 = vmatpush1.msra.mxu0 %v3203
    %3283 = vmatprep.subr.mxu0 %v3208
    %3284 = vmatpush1.msra.mxu0 %v3207
    %3285 = vmatprep.subr.mxu0 %v3212
    %3286 = vmatpush1.msra.mxu0 %v3211
    %3287 = vmatprep.subr.mxu0 %v3216
    %3288 = vmatpush1.msra.mxu0 %v3215
    %3289 = vmatprep.subr.mxu0 %v3220
    %3290 = vmatpush1.msra.mxu0 %v3219
    %3291 = vmatprep.subr.mxu0 %v3224
    %3292 = vmatpush1.msra.mxu0 %v3223
    %3293 = vmatprep.subr.mxu0 %v3228
    %3294 = vmatpush1.msra.mxu0 %v3227
    %3295 = vmatprep.mubr.f32.mxu0 %v1548
    %3296 = vmatmul.mubr.f32.gmra.mrb[0].mxu0 %v1546
    %v3297 = vpop.f32.mrb[0].mxu0
    %v3298 = vadd.f32 0.0, %v3297
    %v3299 = vpop.f32.mrb[0].mxu0
    %v3300 = vadd.f32 0.0, %v3299
    %3301 = vmatprep.mubr.f32.mxu0 %v1554
    %3302 = vmatmul.mubr.f32.gmra.mrb[0].mxu0 %v1552
    %v3303 = vpop.f32.mrb[0].mxu0
    %v3304 = vadd.f32 0.0, %v3303
    %v3305 = vpop.f32.mrb[0].mxu0
    %v3306 = vadd.f32 0.0, %v3305
    %3307 = vmatprep.mubr.f32.mxu0 %v1560
    %3308 = vmatmul.mubr.f32.gmra.mrb[0].mxu0 %v1558
    %v3309 = vpop.f32.mrb[0].mxu0
    %v3310 = vadd.f32 0.0, %v3309
    %v3311 = vpop.f32.mrb[0].mxu0
    %v3312 = vadd.f32 0.0, %v3311
    %3313 = vmatprep.mubr.f32.mxu0 %v1566
    %3314 = vmatmul.mubr.f32.gmra.mrb[0].mxu0 %v1564
    %v3315 = vpop.f32.mrb[0].mxu0
    %v3316 = vadd.f32 0.0, %v3315
    %v3317 = vpop.f32.mrb[0].mxu0
    %v3318 = vadd.f32 0.0, %v3317
    %3319 = vmatprep.mubr.f32.mxu0 %v1572
    %3320 = vmatmul.mubr.f32.gmra.mrb[0].mxu0 %v1570
    %v3321 = vpop.f32.mrb[0].mxu0
    %v3322 = vadd.f32 0.0, %v3321
    %v3323 = vpop.f32.mrb[0].mxu0
    %v3324 = vadd.f32 0.0, %v3323
    %3325 = vmatprep.mubr.f32.mxu0 %v1578
    %3326 = vmatmul.mubr.f32.gmra.mrb[0].mxu0 %v1576
    %v3327 = vpop.f32.mrb[0].mxu0
    %v3328 = vadd.f32 0.0, %v3327
    %v3329 = vpop.f32.mrb[0].mxu0
    %v3330 = vadd.f32 0.0, %v3329
    %3331 = vmatprep.mubr.f32.mxu0 %v1584
    %3332 = vmatmul.mubr.f32.gmra.mrb[0].mxu0 %v1582
    %v3333 = vpop.f32.mrb[0].mxu0
    %v3334 = vadd.f32 0.0, %v3333
    %v3335 = vpop.f32.mrb[0].mxu0
    %v3336 = vadd.f32 0.0, %v3335
    %3337 = vmatprep.mubr.f32.mxu0 %v1590
    %3338 = vmatmul.mubr.f32.gmra.mrb[0].mxu0 %v1588
    %v3339 = vpop.f32.mrb[0].mxu0
    %v3340 = vadd.f32 0.0, %v3339
    %v3341 = vpop.f32.mrb[0].mxu0
    %v3342 = vadd.f32 0.0, %v3341
    %3343 = vmatprep.mubr.f32.mxu0 %v1596
    %3344 = vmatmul.mubr.f32.gmra.mrb[0].mxu0 %v1594
    %v3345 = vpop.f32.mrb[0].mxu0
    %v3346 = vadd.f32 0.0, %v3345
    %v3347 = vpop.f32.mrb[0].mxu0
    %v3348 = vadd.f32 0.0, %v3347
    %3349 = vmatprep.mubr.f32.mxu0 %v1602
    %3350 = vmatmul.mubr.f32.gmra.mrb[0].mxu0 %v1600
    %v3351 = vpop.f32.mrb[0].mxu0
    %v3352 = vadd.f32 0.0, %v3351
    %v3353 = vpop.f32.mrb[0].mxu0
    %v3354 = vadd.f32 0.0, %v3353
    %3355 = vmatprep.mubr.f32.mxu0 %v1608
    %3356 = vmatmul.mubr.f32.gmra.mrb[0].mxu0 %v1606
    %v3357 = vpop.f32.mrb[0].mxu0
    %v3358 = vadd.f32 0.0, %v3357
    %v3359 = vpop.f32.mrb[0].mxu0
    %v3360 = vadd.f32 0.0, %v3359
    %3361 = vmatprep.mubr.f32.mxu0 %v1614
    %3362 = vmatmul.mubr.f32.gmra.mrb[0].mxu0 %v1612
    %v3363 = vpop.f32.mrb[0].mxu0
    %v3364 = vadd.f32 0.0, %v3363
    %v3365 = vpop.f32.mrb[0].mxu0
    %v3366 = vadd.f32 0.0, %v3365
    %3367 = vmatprep.mubr.f32.mxu0 %v1620
    %3368 = vmatmul.mubr.f32.gmra.mrb[0].mxu0 %v1618
    %v3369 = vpop.f32.mrb[0].mxu0
    %v3370 = vadd.f32 0.0, %v3369
    %v3371 = vpop.f32.mrb[0].mxu0
    %v3372 = vadd.f32 0.0, %v3371
    %3373 = vmatprep.mubr.f32.mxu0 %v1626
    %3374 = vmatmul.mubr.f32.gmra.mrb[0].mxu0 %v1624
    %v3375 = vpop.f32.mrb[0].mxu0
    %v3376 = vadd.f32 0.0, %v3375
    %v3377 = vpop.f32.mrb[0].mxu0
    %v3378 = vadd.f32 0.0, %v3377
    %3379 = vmatprep.mubr.f32.mxu0 %v1632
    %3380 = vmatmul.mubr.f32.gmra.mrb[0].mxu0 %v1630
    %v3381 = vpop.f32.mrb[0].mxu0
    %v3382 = vadd.f32 0.0, %v3381
    %v3383 = vpop.f32.mrb[0].mxu0
    %v3384 = vadd.f32 0.0, %v3383
    %3385 = vmatprep.mubr.f32.mxu0 %v1638
    %3386 = vmatmul.mubr.f32.gmra.mrb[0].mxu0 %v1636
    %v3387 = vpop.f32.mrb[0].mxu0
    %v3388 = vadd.f32 0.0, %v3387
    %v3389 = vpop.f32.mrb[0].mxu0
    %v3390 = vadd.f32 0.0, %v3389
    %3391 = vmatprep.mubr.f32.mxu0 %v1644
    %3392 = vmatmul.mubr.f32.gmra.mrb[0].mxu0 %v1642
    %v3393 = vpop.f32.mrb[0].mxu0
    %v3394 = vadd.f32 0.0, %v3393
    %v3395 = vpop.f32.mrb[0].mxu0
    %v3396 = vadd.f32 0.0, %v3395
    %3397 = vmatprep.mubr.f32.mxu0 %v1650
    %3398 = vmatmul.mubr.f32.gmra.mrb[0].mxu0 %v1648
    %v3399 = vpop.f32.mrb[0].mxu0
    %v3400 = vadd.f32 0.0, %v3399
    %v3401 = vpop.f32.mrb[0].mxu0
    %v3402 = vadd.f32 0.0, %v3401
    %3403 = vmatprep.mubr.f32.mxu0 %v1656
    %3404 = vmatmul.mubr.f32.gmra.mrb[0].mxu0 %v1654
    %v3405 = vpop.f32.mrb[0].mxu0
    %v3406 = vadd.f32 0.0, %v3405
    %v3407 = vpop.f32.mrb[0].mxu0
    %v3408 = vadd.f32 0.0, %v3407
    %3409 = vmatprep.mubr.f32.mxu0 %v1662
    %3410 = vmatmul.mubr.f32.gmra.mrb[0].mxu0 %v1660
    %v3411 = vpop.f32.mrb[0].mxu0
    %v3412 = vadd.f32 0.0, %v3411
    %v3413 = vpop.f32.mrb[0].mxu0
    %v3414 = vadd.f32 0.0, %v3413
    %3415 = vmatprep.mubr.f32.mxu0 %v1668
    %3416 = vmatmul.mubr.f32.gmra.mrb[0].mxu0 %v1666
    %v3417 = vpop.f32.mrb[0].mxu0
    %v3418 = vadd.f32 0.0, %v3417
    %v3419 = vpop.f32.mrb[0].mxu0
    %v3420 = vadd.f32 0.0, %v3419
    %3421 = vmatprep.mubr.f32.mxu0 %v1674
    %3422 = vmatmul.mubr.f32.gmra.mrb[0].mxu0 %v1672
    %v3423 = vpop.f32.mrb[0].mxu0
    %v3424 = vadd.f32 0.0, %v3423
    %v3425 = vpop.f32.mrb[0].mxu0
    %v3426 = vadd.f32 0.0, %v3425
    %3427 = vmatprep.mubr.f32.mxu0 %v1680
    %3428 = vmatmul.mubr.f32.gmra.mrb[0].mxu0 %v1678
    %v3429 = vpop.f32.mrb[0].mxu0
    %v3430 = vadd.f32 0.0, %v3429
    %v3431 = vpop.f32.mrb[0].mxu0
    %v3432 = vadd.f32 0.0, %v3431
    %3433 = vmatprep.mubr.f32.mxu0 %v1686
    %3434 = vmatmul.mubr.f32.gmra.mrb[0].mxu0 %v1684
    %v3435 = vpop.f32.mrb[0].mxu0
    %v3436 = vadd.f32 0.0, %v3435
    %v3437 = vpop.f32.mrb[0].mxu0
    %v3438 = vadd.f32 0.0, %v3437
    %3439 = vmatprep.mubr.f32.mxu0 %v1692
    %3440 = vmatmul.mubr.f32.gmra.mrb[0].mxu0 %v1690
    %v3441 = vpop.f32.mrb[0].mxu0
    %v3442 = vadd.f32 0.0, %v3441
    %v3443 = vpop.f32.mrb[0].mxu0
    %v3444 = vadd.f32 0.0, %v3443
    %3445 = vmatprep.mubr.f32.mxu0 %v1698
    %3446 = vmatmul.mubr.f32.gmra.mrb[0].mxu0 %v1696
    %v3447 = vpop.f32.mrb[0].mxu0
    %v3448 = vadd.f32 0.0, %v3447
    %v3449 = vpop.f32.mrb[0].mxu0
    %v3450 = vadd.f32 0.0, %v3449
    %3451 = vmatprep.mubr.f32.mxu0 %v1704
    %3452 = vmatmul.mubr.f32.gmra.mrb[0].mxu0 %v1702
    %v3453 = vpop.f32.mrb[0].mxu0
    %v3454 = vadd.f32 0.0, %v3453
    %v3455 = vpop.f32.mrb[0].mxu0
    %v3456 = vadd.f32 0.0, %v3455
    %3457 = vmatprep.mubr.f32.mxu0 %v1710
    %3458 = vmatmul.mubr.f32.gmra.mrb[0].mxu0 %v1708
    %v3459 = vpop.f32.mrb[0].mxu0
    %v3460 = vadd.f32 0.0, %v3459
    %v3461 = vpop.f32.mrb[0].mxu0
    %v3462 = vadd.f32 0.0, %v3461
    %3463 = vmatprep.mubr.f32.mxu0 %v1716
    %3464 = vmatmul.mubr.f32.gmra.mrb[0].mxu0 %v1714
    %v3465 = vpop.f32.mrb[0].mxu0
    %v3466 = vadd.f32 0.0, %v3465
    %v3467 = vpop.f32.mrb[0].mxu0
    %v3468 = vadd.f32 0.0, %v3467
    %3469 = vmatprep.mubr.f32.mxu0 %v1722
    %3470 = vmatmul.mubr.f32.gmra.mrb[0].mxu0 %v1720
    %v3471 = vpop.f32.mrb[0].mxu0
    %v3472 = vadd.f32 0.0, %v3471
    %v3473 = vpop.f32.mrb[0].mxu0
    %v3474 = vadd.f32 0.0, %v3473
    %3475 = vmatprep.mubr.f32.mxu0 %v1728
    %3476 = vmatmul.mubr.f32.gmra.mrb[0].mxu0 %v1726
    %v3477 = vpop.f32.mrb[0].mxu0
    %v3478 = vadd.f32 0.0, %v3477
    %v3479 = vpop.f32.mrb[0].mxu0
    %v3480 = vadd.f32 0.0, %v3479
    %3481 = vmatprep.mubr.f32.mxu0 %v1734
    %3482 = vmatmul.mubr.f32.gmra.mrb[0].mxu0 %v1732
    %v3483 = vpop.f32.mrb[0].mxu0
    %v3484 = vadd.f32 0.0, %v3483
    %v3485 = vpop.f32.mrb[0].mxu0
    %v3486 = vadd.f32 0.0, %v3485
    %3487 = vmatprep.mubr.f32.mxu0 %v1740
    %3488 = vmatmul.mubr.f32.gmra.mrb[0].mxu0 %v1738
    %v3489 = vpop.f32.mrb[0].mxu0
    %v3490 = vadd.f32 0.0, %v3489
    %v3491 = vpop.f32.mrb[0].mxu0
    %v3492 = vadd.f32 0.0, %v3491
    %3493 = vmatprep.mubr.f32.mxu0 %v1746
    %3494 = vmatmul.mubr.f32.gmra.mrb[0].mxu0 %v1744
    %v3495 = vpop.f32.mrb[0].mxu0
    %v3496 = vadd.f32 0.0, %v3495
    %v3497 = vpop.f32.mrb[0].mxu0
    %v3498 = vadd.f32 0.0, %v3497
    %3499 = vmatprep.mubr.f32.mxu0 %v1752
    %3500 = vmatmul.mubr.f32.gmra.mrb[0].mxu0 %v1750
    %v3501 = vpop.f32.mrb[0].mxu0
    %v3502 = vadd.f32 0.0, %v3501
    %v3503 = vpop.f32.mrb[0].mxu0
    %v3504 = vadd.f32 0.0, %v3503
    %3505 = vmatprep.mubr.f32.mxu0 %v1758
    %3506 = vmatmul.mubr.f32.gmra.mrb[0].mxu0 %v1756
    %v3507 = vpop.f32.mrb[0].mxu0
    %v3508 = vadd.f32 0.0, %v3507
    %v3509 = vpop.f32.mrb[0].mxu0
    %v3510 = vadd.f32 0.0, %v3509
    %3511 = vmatprep.mubr.f32.mxu0 %v1764
    %3512 = vmatmul.mubr.f32.gmra.mrb[0].mxu0 %v1762
    %v3513 = vpop.f32.mrb[0].mxu0
    %v3514 = vadd.f32 0.0, %v3513
    %v3515 = vpop.f32.mrb[0].mxu0
    %v3516 = vadd.f32 0.0, %v3515
    %3517 = vmatprep.mubr.f32.mxu0 %v1770
    %3518 = vmatmul.mubr.f32.gmra.mrb[0].mxu0 %v1768
    %v3519 = vpop.f32.mrb[0].mxu0
    %v3520 = vadd.f32 0.0, %v3519
    %v3521 = vpop.f32.mrb[0].mxu0
    %v3522 = vadd.f32 0.0, %v3521
    %3523 = vmatprep.mubr.f32.mxu0 %v1776
    %3524 = vmatmul.mubr.f32.gmra.mrb[0].mxu0 %v1774
    %v3525 = vpop.f32.mrb[0].mxu0
    %v3526 = vadd.f32 0.0, %v3525
    %v3527 = vpop.f32.mrb[0].mxu0
    %v3528 = vadd.f32 0.0, %v3527
    %3529 = vmatprep.mubr.f32.mxu0 %v1782
    %3530 = vmatmul.mubr.f32.gmra.mrb[0].mxu0 %v1780
    %v3531 = vpop.f32.mrb[0].mxu0
    %v3532 = vadd.f32 0.0, %v3531
    %v3533 = vpop.f32.mrb[0].mxu0
    %v3534 = vadd.f32 0.0, %v3533
    %3535 = vmatprep.mubr.f32.mxu0 %v1788
    %3536 = vmatmul.mubr.f32.gmra.mrb[0].mxu0 %v1786
    %v3537 = vpop.f32.mrb[0].mxu0
    %v3538 = vadd.f32 0.0, %v3537
    %v3539 = vpop.f32.mrb[0].mxu0
    %v3540 = vadd.f32 0.0, %v3539
    %3541 = vmatprep.mubr.f32.mxu0 %v1794
    %3542 = vmatmul.mubr.f32.gmra.mrb[0].mxu0 %v1792
    %v3543 = vpop.f32.mrb[0].mxu0
    %v3544 = vadd.f32 0.0, %v3543
    %v3545 = vpop.f32.mrb[0].mxu0
    %v3546 = vadd.f32 0.0, %v3545
    %3547 = vmatprep.mubr.f32.mxu0 %v1800
    %3548 = vmatmul.mubr.f32.gmra.mrb[0].mxu0 %v1798
    %v3549 = vpop.f32.mrb[0].mxu0
    %v3550 = vadd.f32 0.0, %v3549
    %v3551 = vpop.f32.mrb[0].mxu0
    %v3552 = vadd.f32 0.0, %v3551
    %3553 = vmatprep.mubr.f32.mxu0 %v1806
    %3554 = vmatmul.mubr.f32.gmra.mrb[0].mxu0 %v1804
    %v3555 = vpop.f32.mrb[0].mxu0
    %v3556 = vadd.f32 0.0, %v3555
    %v3557 = vpop.f32.mrb[0].mxu0
    %v3558 = vadd.f32 0.0, %v3557
    %3559 = vmatprep.mubr.f32.mxu0 %v1812
    %3560 = vmatmul.mubr.f32.gmra.mrb[0].mxu0 %v1810
    %v3561 = vpop.f32.mrb[0].mxu0
    %v3562 = vadd.f32 0.0, %v3561
    %v3563 = vpop.f32.mrb[0].mxu0
    %v3564 = vadd.f32 0.0, %v3563
    %3565 = vmatprep.mubr.f32.mxu0 %v1818
    %3566 = vmatmul.mubr.f32.gmra.mrb[0].mxu0 %v1816
    %v3567 = vpop.f32.mrb[0].mxu0
    %v3568 = vadd.f32 0.0, %v3567
    %v3569 = vpop.f32.mrb[0].mxu0
    %v3570 = vadd.f32 0.0, %v3569
    %3571 = vmatprep.mubr.f32.mxu0 %v1824
    %3572 = vmatmul.mubr.f32.gmra.mrb[0].mxu0 %v1822
    %v3573 = vpop.f32.mrb[0].mxu0
    %v3574 = vadd.f32 0.0, %v3573
    %v3575 = vpop.f32.mrb[0].mxu0
    %v3576 = vadd.f32 0.0, %v3575
    %3577 = vmatprep.mubr.f32.mxu0 %v1830
    %3578 = vmatmul.mubr.f32.gmra.mrb[0].mxu0 %v1828
    %v3579 = vpop.f32.mrb[0].mxu0
    %v3580 = vadd.f32 0.0, %v3579
    %v3581 = vpop.f32.mrb[0].mxu0
    %v3582 = vadd.f32 0.0, %v3581
    %3583 = vmatprep.mubr.f32.mxu0 %v1836
    %3584 = vmatmul.mubr.f32.gmra.mrb[0].mxu0 %v1834
    %v3585 = vpop.f32.mrb[0].mxu0
    %v3586 = vadd.f32 0.0, %v3585
    %v3587 = vpop.f32.mrb[0].mxu0
    %v3588 = vadd.f32 0.0, %v3587
    %3589 = vmatprep.mubr.f32.mxu0 %v1842
    %3590 = vmatmul.mubr.f32.gmra.mrb[0].mxu0 %v1840
    %v3591 = vpop.f32.mrb[0].mxu0
    %v3592 = vadd.f32 0.0, %v3591
    %v3593 = vpop.f32.mrb[0].mxu0
    %v3594 = vadd.f32 0.0, %v3593
    %3595 = vmatprep.mubr.f32.mxu0 %v1848
    %3596 = vmatmul.mubr.f32.gmra.mrb[0].mxu0 %v1846
    %v3597 = vpop.f32.mrb[0].mxu0
    %v3598 = vadd.f32 0.0, %v3597
    %v3599 = vpop.f32.mrb[0].mxu0
    %v3600 = vadd.f32 0.0, %v3599
    %3601 = vmatprep.mubr.f32.mxu0 %v1854
    %3602 = vmatmul.mubr.f32.gmra.mrb[0].mxu0 %v1852
    %v3603 = vpop.f32.mrb[0].mxu0
    %v3604 = vadd.f32 0.0, %v3603
    %v3605 = vpop.f32.mrb[0].mxu0
    %v3606 = vadd.f32 0.0, %v3605
    %3607 = vmatprep.mubr.f32.mxu0 %v1860
    %3608 = vmatmul.mubr.f32.gmra.mrb[0].mxu0 %v1858
    %v3609 = vpop.f32.mrb[0].mxu0
    %v3610 = vadd.f32 0.0, %v3609
    %v3611 = vpop.f32.mrb[0].mxu0
    %v3612 = vadd.f32 0.0, %v3611
    %3613 = vmatprep.mubr.f32.mxu0 %v1866
    %3614 = vmatmul.mubr.f32.gmra.mrb[0].mxu0 %v1864
    %v3615 = vpop.f32.mrb[0].mxu0
    %v3616 = vadd.f32 0.0, %v3615
    %v3617 = vpop.f32.mrb[0].mxu0
    %v3618 = vadd.f32 0.0, %v3617
    %3619 = vmatprep.mubr.f32.mxu0 %v1872
    %3620 = vmatmul.mubr.f32.gmra.mrb[0].mxu0 %v1870
    %v3621 = vpop.f32.mrb[0].mxu0
    %v3622 = vadd.f32 0.0, %v3621
    %v3623 = vpop.f32.mrb[0].mxu0
    %v3624 = vadd.f32 0.0, %v3623
    %3625 = vmatprep.mubr.f32.mxu0 %v1878
    %3626 = vmatmul.mubr.f32.gmra.mrb[0].mxu0 %v1876
    %v3627 = vpop.f32.mrb[0].mxu0
    %v3628 = vadd.f32 0.0, %v3627
    %v3629 = vpop.f32.mrb[0].mxu0
    %v3630 = vadd.f32 0.0, %v3629
    %3631 = vmatprep.mubr.f32.mxu0 %v1884
    %3632 = vmatmul.mubr.f32.gmra.mrb[0].mxu0 %v1882
    %v3633 = vpop.f32.mrb[0].mxu0
    %v3634 = vadd.f32 0.0, %v3633
    %v3635 = vpop.f32.mrb[0].mxu0
    %v3636 = vadd.f32 0.0, %v3635
    %3637 = vmatprep.mubr.f32.mxu0 %v1890
    %3638 = vmatmul.mubr.f32.gmra.mrb[0].mxu0 %v1888
    %v3639 = vpop.f32.mrb[0].mxu0
    %v3640 = vadd.f32 0.0, %v3639
    %v3641 = vpop.f32.mrb[0].mxu0
    %v3642 = vadd.f32 0.0, %v3641
    %3643 = vmatprep.mubr.f32.mxu0 %v1896
    %3644 = vmatmul.mubr.f32.gmra.mrb[0].mxu0 %v1894
    %v3645 = vpop.f32.mrb[0].mxu0
    %v3646 = vadd.f32 0.0, %v3645
    %v3647 = vpop.f32.mrb[0].mxu0
    %v3648 = vadd.f32 0.0, %v3647
    %3649 = vmatprep.mubr.f32.mxu0 %v1902
    %3650 = vmatmul.mubr.f32.gmra.mrb[0].mxu0 %v1900
    %v3651 = vpop.f32.mrb[0].mxu0
    %v3652 = vadd.f32 0.0, %v3651
    %v3653 = vpop.f32.mrb[0].mxu0
    %v3654 = vadd.f32 0.0, %v3653
    %3655 = vmatprep.mubr.f32.mxu0 %v1908
    %3656 = vmatmul.mubr.f32.gmra.mrb[0].mxu0 %v1906
    %v3657 = vpop.f32.mrb[0].mxu0
    %v3658 = vadd.f32 0.0, %v3657
    %v3659 = vpop.f32.mrb[0].mxu0
    %v3660 = vadd.f32 0.0, %v3659
    %3661 = vmatprep.mubr.f32.mxu0 %v1914
    %3662 = vmatmul.mubr.f32.gmra.mrb[0].mxu0 %v1912
    %v3663 = vpop.f32.mrb[0].mxu0
    %v3664 = vadd.f32 0.0, %v3663
    %v3665 = vpop.f32.mrb[0].mxu0
    %v3666 = vadd.f32 0.0, %v3665
    %3667 = vmatprep.mubr.f32.mxu0 %v1920
    %3668 = vmatmul.mubr.f32.gmra.mrb[0].mxu0 %v1918
    %v3669 = vpop.f32.mrb[0].mxu0
    %v3670 = vadd.f32 0.0, %v3669
    %v3671 = vpop.f32.mrb[0].mxu0
    %v3672 = vadd.f32 0.0, %v3671
    %3673 = vmatprep.mubr.f32.mxu0 %v1926
    %3674 = vmatmul.mubr.f32.gmra.mrb[0].mxu0 %v1924
    %v3675 = vpop.f32.mrb[0].mxu0
    %v3676 = vadd.f32 0.0, %v3675
    %v3677 = vpop.f32.mrb[0].mxu0
    %v3678 = vadd.f32 0.0, %v3677
    %3679 = vmatprep.mubr.f32.mxu0 %v1932
    %3680 = vmatmul.mubr.f32.gmra.mrb[0].mxu0 %v1930
    %v3681 = vpop.f32.mrb[0].mxu0
    %v3682 = vadd.f32 0.0, %v3681
    %v3683 = vpop.f32.mrb[0].mxu0
    %v3684 = vadd.f32 0.0, %v3683
    %3685 = vmatprep.mubr.f32.mxu0 %v1938
    %3686 = vmatmul.mubr.f32.gmra.mrb[0].mxu0 %v1936
    %v3687 = vpop.f32.mrb[0].mxu0
    %v3688 = vadd.f32 0.0, %v3687
    %v3689 = vpop.f32.mrb[0].mxu0
    %v3690 = vadd.f32 0.0, %v3689
    %3691 = vmatprep.mubr.f32.mxu0 %v1944
    %3692 = vmatmul.mubr.f32.gmra.mrb[0].mxu0 %v1942
    %v3693 = vpop.f32.mrb[0].mxu0
    %v3694 = vadd.f32 0.0, %v3693
    %v3695 = vpop.f32.mrb[0].mxu0
    %v3696 = vadd.f32 0.0, %v3695
    %3697 = vmatprep.mubr.f32.mxu0 %v1950
    %3698 = vmatmul.mubr.f32.gmra.mrb[0].mxu0 %v1948
    %v3699 = vpop.f32.mrb[0].mxu0
    %v3700 = vadd.f32 0.0, %v3699
    %v3701 = vpop.f32.mrb[0].mxu0
    %v3702 = vadd.f32 0.0, %v3701
    %3703 = vmatprep.mubr.f32.mxu0 %v1956
    %3704 = vmatmul.mubr.f32.gmra.mrb[0].mxu0 %v1954
    %v3705 = vpop.f32.mrb[0].mxu0
    %v3706 = vadd.f32 0.0, %v3705
    %v3707 = vpop.f32.mrb[0].mxu0
    %v3708 = vadd.f32 0.0, %v3707
    %3709 = vmatprep.mubr.f32.mxu0 %v1962
    %3710 = vmatmul.mubr.f32.gmra.mrb[0].mxu0 %v1960
    %v3711 = vpop.f32.mrb[0].mxu0
    %v3712 = vadd.f32 0.0, %v3711
    %v3713 = vpop.f32.mrb[0].mxu0
    %v3714 = vadd.f32 0.0, %v3713
    %3715 = vmatprep.mubr.f32.mxu0 %v1968
    %3716 = vmatmul.mubr.f32.gmra.mrb[0].mxu0 %v1966
    %v3717 = vpop.f32.mrb[0].mxu0
    %v3718 = vadd.f32 0.0, %v3717
    %v3719 = vpop.f32.mrb[0].mxu0
    %v3720 = vadd.f32 0.0, %v3719
    %3721 = vmatprep.mubr.f32.mxu0 %v1974
    %3722 = vmatmul.mubr.f32.gmra.mrb[0].mxu0 %v1972
    %v3723 = vpop.f32.mrb[0].mxu0
    %v3724 = vadd.f32 0.0, %v3723
    %v3725 = vpop.f32.mrb[0].mxu0
    %v3726 = vadd.f32 0.0, %v3725
    %3727 = vmatprep.mubr.f32.mxu0 %v1980
    %3728 = vmatmul.mubr.f32.gmra.mrb[0].mxu0 %v1978
    %v3729 = vpop.f32.mrb[0].mxu0
    %v3730 = vadd.f32 0.0, %v3729
    %v3731 = vpop.f32.mrb[0].mxu0
    %v3732 = vadd.f32 0.0, %v3731
    %3733 = vmatprep.mubr.f32.mxu0 %v1986
    %3734 = vmatmul.mubr.f32.gmra.mrb[0].mxu0 %v1984
    %v3735 = vpop.f32.mrb[0].mxu0
    %v3736 = vadd.f32 0.0, %v3735
    %v3737 = vpop.f32.mrb[0].mxu0
    %v3738 = vadd.f32 0.0, %v3737
    %3739 = vmatprep.mubr.f32.mxu0 %v1992
    %3740 = vmatmul.mubr.f32.gmra.mrb[0].mxu0 %v1990
    %v3741 = vpop.f32.mrb[0].mxu0
    %v3742 = vadd.f32 0.0, %v3741
    %v3743 = vpop.f32.mrb[0].mxu0
    %v3744 = vadd.f32 0.0, %v3743
    %3745 = vmatprep.mubr.f32.mxu0 %v1998
    %3746 = vmatmul.mubr.f32.gmra.mrb[0].mxu0 %v1996
    %v3747 = vpop.f32.mrb[0].mxu0
    %v3748 = vadd.f32 0.0, %v3747
    %v3749 = vpop.f32.mrb[0].mxu0
    %v3750 = vadd.f32 0.0, %v3749
    %3751 = vmatprep.mubr.f32.mxu0 %v2004
    %3752 = vmatmul.mubr.f32.gmra.mrb[0].mxu0 %v2002
    %v3753 = vpop.f32.mrb[0].mxu0
    %v3754 = vadd.f32 0.0, %v3753
    %v3755 = vpop.f32.mrb[0].mxu0
    %v3756 = vadd.f32 0.0, %v3755
    %3757 = vmatprep.mubr.f32.mxu0 %v2010
    %3758 = vmatmul.mubr.f32.gmra.mrb[0].mxu0 %v2008
    %v3759 = vpop.f32.mrb[0].mxu0
    %v3760 = vadd.f32 0.0, %v3759
    %v3761 = vpop.f32.mrb[0].mxu0
    %v3762 = vadd.f32 0.0, %v3761
    %3763 = vmatprep.mubr.f32.mxu0 %v2016
    %3764 = vmatmul.mubr.f32.gmra.mrb[0].mxu0 %v2014
    %v3765 = vpop.f32.mrb[0].mxu0
    %v3766 = vadd.f32 0.0, %v3765
    %v3767 = vpop.f32.mrb[0].mxu0
    %v3768 = vadd.f32 0.0, %v3767
    %3769 = vmatprep.mubr.f32.mxu0 %v2022
    %3770 = vmatmul.mubr.f32.gmra.mrb[0].mxu0 %v2020
    %v3771 = vpop.f32.mrb[0].mxu0
    %v3772 = vadd.f32 0.0, %v3771
    %v3773 = vpop.f32.mrb[0].mxu0
    %v3774 = vadd.f32 0.0, %v3773
    %3775 = vmatprep.mubr.f32.mxu0 %v2028
    %3776 = vmatmul.mubr.f32.gmra.mrb[0].mxu0 %v2026
    %v3777 = vpop.f32.mrb[0].mxu0
    %v3778 = vadd.f32 0.0, %v3777
    %v3779 = vpop.f32.mrb[0].mxu0
    %v3780 = vadd.f32 0.0, %v3779
    %3781 = vmatprep.mubr.f32.mxu0 %v2034
    %3782 = vmatmul.mubr.f32.gmra.mrb[0].mxu0 %v2032
    %v3783 = vpop.f32.mrb[0].mxu0
    %v3784 = vadd.f32 0.0, %v3783
    %v3785 = vpop.f32.mrb[0].mxu0
    %v3786 = vadd.f32 0.0, %v3785
    %3787 = vmatprep.mubr.f32.mxu0 %v2040
    %3788 = vmatmul.mubr.f32.gmra.mrb[0].mxu0 %v2038
    %v3789 = vpop.f32.mrb[0].mxu0
    %v3790 = vadd.f32 0.0, %v3789
    %v3791 = vpop.f32.mrb[0].mxu0
    %v3792 = vadd.f32 0.0, %v3791
    %3793 = vmatprep.mubr.f32.mxu0 %v2046
    %3794 = vmatmul.mubr.f32.gmra.mrb[0].mxu0 %v2044
    %v3795 = vpop.f32.mrb[0].mxu0
    %v3796 = vadd.f32 0.0, %v3795
    %v3797 = vpop.f32.mrb[0].mxu0
    %v3798 = vadd.f32 0.0, %v3797
    %3799 = vmatprep.mubr.f32.mxu0 %v2052
    %3800 = vmatmul.mubr.f32.gmra.mrb[0].mxu0 %v2050
    %v3801 = vpop.f32.mrb[0].mxu0
    %v3802 = vadd.f32 0.0, %v3801
    %v3803 = vpop.f32.mrb[0].mxu0
    %v3804 = vadd.f32 0.0, %v3803
    %3805 = vmatprep.mubr.f32.mxu0 %v2058
    %3806 = vmatmul.mubr.f32.gmra.mrb[0].mxu0 %v2056
    %v3807 = vpop.f32.mrb[0].mxu0
    %v3808 = vadd.f32 0.0, %v3807
    %v3809 = vpop.f32.mrb[0].mxu0
    %v3810 = vadd.f32 0.0, %v3809
    %3811 = vmatprep.mubr.f32.mxu0 %v2064
    %3812 = vmatmul.mubr.f32.gmra.mrb[0].mxu0 %v2062
    %v3813 = vpop.f32.mrb[0].mxu0
    %v3814 = vadd.f32 0.0, %v3813
    %v3815 = vpop.f32.mrb[0].mxu0
    %v3816 = vadd.f32 0.0, %v3815
    %3817 = vmatprep.mubr.f32.mxu0 %v2070
    %3818 = vmatmul.mubr.f32.gmra.mrb[0].mxu0 %v2068
    %v3819 = vpop.f32.mrb[0].mxu0
    %v3820 = vadd.f32 0.0, %v3819
    %v3821 = vpop.f32.mrb[0].mxu0
    %v3822 = vadd.f32 0.0, %v3821
    %3823 = vmatprep.mubr.f32.mxu0 %v2076
    %3824 = vmatmul.mubr.f32.gmra.mrb[0].mxu0 %v2074
    %v3825 = vpop.f32.mrb[0].mxu0
    %v3826 = vadd.f32 0.0, %v3825
    %v3827 = vpop.f32.mrb[0].mxu0
    %v3828 = vadd.f32 0.0, %v3827
    %3829 = vmatprep.mubr.f32.mxu0 %v2082
    %3830 = vmatmul.mubr.f32.gmra.mrb[0].mxu0 %v2080
    %v3831 = vpop.f32.mrb[0].mxu0
    %v3832 = vadd.f32 0.0, %v3831
    %v3833 = vpop.f32.mrb[0].mxu0
    %v3834 = vadd.f32 0.0, %v3833
    %3835 = vmatprep.mubr.f32.mxu0 %v2088
    %3836 = vmatmul.mubr.f32.gmra.mrb[0].mxu0 %v2086
    %v3837 = vpop.f32.mrb[0].mxu0
    %v3838 = vadd.f32 0.0, %v3837
    %v3839 = vpop.f32.mrb[0].mxu0
    %v3840 = vadd.f32 0.0, %v3839
    %3841 = vmatprep.mubr.f32.mxu0 %v2094
    %3842 = vmatmul.mubr.f32.gmra.mrb[0].mxu0 %v2092
    %v3843 = vpop.f32.mrb[0].mxu0
    %v3844 = vadd.f32 0.0, %v3843
    %v3845 = vpop.f32.mrb[0].mxu0
    %v3846 = vadd.f32 0.0, %v3845
    %3847 = vmatprep.mubr.f32.mxu0 %v2100
    %3848 = vmatmul.mubr.f32.gmra.mrb[0].mxu0 %v2098
    %v3849 = vpop.f32.mrb[0].mxu0
    %v3850 = vadd.f32 0.0, %v3849
    %v3851 = vpop.f32.mrb[0].mxu0
    %v3852 = vadd.f32 0.0, %v3851
    %3853 = vmatprep.mubr.f32.mxu0 %v2106
    %3854 = vmatmul.mubr.f32.gmra.mrb[0].mxu0 %v2104
    %v3855 = vpop.f32.mrb[0].mxu0
    %v3856 = vadd.f32 0.0, %v3855
    %v3857 = vpop.f32.mrb[0].mxu0
    %v3858 = vadd.f32 0.0, %v3857
    %3859 = vmatprep.mubr.f32.mxu0 %v2112
    %3860 = vmatmul.mubr.f32.gmra.mrb[0].mxu0 %v2110
    %v3861 = vpop.f32.mrb[0].mxu0
    %v3862 = vadd.f32 0.0, %v3861
    %v3863 = vpop.f32.mrb[0].mxu0
    %v3864 = vadd.f32 0.0, %v3863
    %3865 = vmatprep.mubr.f32.mxu0 %v2118
    %3866 = vmatmul.mubr.f32.gmra.mrb[0].mxu0 %v2116
    %v3867 = vpop.f32.mrb[0].mxu0
    %v3868 = vadd.f32 0.0, %v3867
    %v3869 = vpop.f32.mrb[0].mxu0
    %v3870 = vadd.f32 0.0, %v3869
    %3871 = vmatprep.mubr.f32.mxu0 %v2124
    %3872 = vmatmul.mubr.f32.gmra.mrb[0].mxu0 %v2122
    %v3873 = vpop.f32.mrb[0].mxu0
    %v3874 = vadd.f32 0.0, %v3873
    %v3875 = vpop.f32.mrb[0].mxu0
    %v3876 = vadd.f32 0.0, %v3875
    %3877 = vmatprep.mubr.f32.mxu0 %v2130
    %3878 = vmatmul.mubr.f32.gmra.mrb[0].mxu0 %v2128
    %v3879 = vpop.f32.mrb[0].mxu0
    %v3880 = vadd.f32 0.0, %v3879
    %v3881 = vpop.f32.mrb[0].mxu0
    %v3882 = vadd.f32 0.0, %v3881
    %3883 = vmatprep.mubr.f32.mxu0 %v2136
    %3884 = vmatmul.mubr.f32.gmra.mrb[0].mxu0 %v2134
    %v3885 = vpop.f32.mrb[0].mxu0
    %v3886 = vadd.f32 0.0, %v3885
    %v3887 = vpop.f32.mrb[0].mxu0
    %v3888 = vadd.f32 0.0, %v3887
    %3889 = vmatprep.mubr.f32.mxu0 %v2142
    %3890 = vmatmul.mubr.f32.gmra.mrb[0].mxu0 %v2140
    %v3891 = vpop.f32.mrb[0].mxu0
    %v3892 = vadd.f32 0.0, %v3891
    %v3893 = vpop.f32.mrb[0].mxu0
    %v3894 = vadd.f32 0.0, %v3893
    %3895 = vmatprep.mubr.f32.mxu0 %v2148
    %3896 = vmatmul.mubr.f32.gmra.mrb[0].mxu0 %v2146
    %v3897 = vpop.f32.mrb[0].mxu0
    %v3898 = vadd.f32 0.0, %v3897
    %v3899 = vpop.f32.mrb[0].mxu0
    %v3900 = vadd.f32 0.0, %v3899
    %3901 = vmatprep.mubr.f32.mxu0 %v2154
    %3902 = vmatmul.mubr.f32.gmra.mrb[0].mxu0 %v2152
    %v3903 = vpop.f32.mrb[0].mxu0
    %v3904 = vadd.f32 0.0, %v3903
    %v3905 = vpop.f32.mrb[0].mxu0
    %v3906 = vadd.f32 0.0, %v3905
    %3907 = vmatprep.mubr.f32.mxu0 %v2160
    %3908 = vmatmul.mubr.f32.gmra.mrb[0].mxu0 %v2158
    %v3909 = vpop.f32.mrb[0].mxu0
    %v3910 = vadd.f32 0.0, %v3909
    %v3911 = vpop.f32.mrb[0].mxu0
    %v3912 = vadd.f32 0.0, %v3911
    %3913 = vmatprep.mubr.f32.mxu0 %v2166
    %3914 = vmatmul.mubr.f32.gmra.mrb[0].mxu0 %v2164
    %v3915 = vpop.f32.mrb[0].mxu0
    %v3916 = vadd.f32 0.0, %v3915
    %v3917 = vpop.f32.mrb[0].mxu0
    %v3918 = vadd.f32 0.0, %v3917
    %3919 = vmatprep.mubr.f32.mxu0 %v2172
    %3920 = vmatmul.mubr.f32.gmra.mrb[0].mxu0 %v2170
    %v3921 = vpop.f32.mrb[0].mxu0
    %v3922 = vadd.f32 0.0, %v3921
    %v3923 = vpop.f32.mrb[0].mxu0
    %v3924 = vadd.f32 0.0, %v3923
    %3925 = vmatprep.mubr.f32.mxu0 %v2178
    %3926 = vmatmul.mubr.f32.gmra.mrb[0].mxu0 %v2176
    %v3927 = vpop.f32.mrb[0].mxu0
    %v3928 = vadd.f32 0.0, %v3927
    %v3929 = vpop.f32.mrb[0].mxu0
    %v3930 = vadd.f32 0.0, %v3929
    %3931 = vmatprep.mubr.f32.mxu0 %v2184
    %3932 = vmatmul.mubr.f32.gmra.mrb[0].mxu0 %v2182
    %v3933 = vpop.f32.mrb[0].mxu0
    %v3934 = vadd.f32 0.0, %v3933
    %v3935 = vpop.f32.mrb[0].mxu0
    %v3936 = vadd.f32 0.0, %v3935
    %3937 = vmatprep.mubr.f32.mxu0 %v2190
    %3938 = vmatmul.mubr.f32.gmra.mrb[0].mxu0 %v2188
    %v3939 = vpop.f32.mrb[0].mxu0
    %v3940 = vadd.f32 0.0, %v3939
    %v3941 = vpop.f32.mrb[0].mxu0
    %v3942 = vadd.f32 0.0, %v3941
    %3943 = vmatprep.mubr.f32.mxu0 %v2196
    %3944 = vmatmul.mubr.f32.gmra.mrb[0].mxu0 %v2194
    %v3945 = vpop.f32.mrb[0].mxu0
    %v3946 = vadd.f32 0.0, %v3945
    %v3947 = vpop.f32.mrb[0].mxu0
    %v3948 = vadd.f32 0.0, %v3947
    %3949 = vmatprep.mubr.f32.mxu0 %v2202
    %3950 = vmatmul.mubr.f32.gmra.mrb[0].mxu0 %v2200
    %v3951 = vpop.f32.mrb[0].mxu0
    %v3952 = vadd.f32 0.0, %v3951
    %v3953 = vpop.f32.mrb[0].mxu0
    %v3954 = vadd.f32 0.0, %v3953
    %3955 = vmatprep.mubr.f32.mxu0 %v2208
    %3956 = vmatmul.mubr.f32.gmra.mrb[0].mxu0 %v2206
    %v3957 = vpop.f32.mrb[0].mxu0
    %v3958 = vadd.f32 0.0, %v3957
    %v3959 = vpop.f32.mrb[0].mxu0
    %v3960 = vadd.f32 0.0, %v3959
    %3961 = vmatprep.mubr.f32.mxu0 %v2214
    %3962 = vmatmul.mubr.f32.gmra.mrb[0].mxu0 %v2212
    %v3963 = vpop.f32.mrb[0].mxu0
    %v3964 = vadd.f32 0.0, %v3963
    %v3965 = vpop.f32.mrb[0].mxu0
    %v3966 = vadd.f32 0.0, %v3965
    %3967 = vmatprep.mubr.f32.mxu0 %v2220
    %3968 = vmatmul.mubr.f32.gmra.mrb[0].mxu0 %v2218
    %v3969 = vpop.f32.mrb[0].mxu0
    %v3970 = vadd.f32 0.0, %v3969
    %v3971 = vpop.f32.mrb[0].mxu0
    %v3972 = vadd.f32 0.0, %v3971
    %3973 = vmatprep.mubr.f32.mxu0 %v2226
    %3974 = vmatmul.mubr.f32.gmra.mrb[0].mxu0 %v2224
    %v3975 = vpop.f32.mrb[0].mxu0
    %v3976 = vadd.f32 0.0, %v3975
    %v3977 = vpop.f32.mrb[0].mxu0
    %v3978 = vadd.f32 0.0, %v3977
    %3979 = vmatprep.mubr.f32.mxu0 %v2232
    %3980 = vmatmul.mubr.f32.gmra.mrb[0].mxu0 %v2230
    %v3981 = vpop.f32.mrb[0].mxu0
    %v3982 = vadd.f32 0.0, %v3981
    %v3983 = vpop.f32.mrb[0].mxu0
    %v3984 = vadd.f32 0.0, %v3983
    %3985 = vmatprep.mubr.f32.mxu0 %v2238
    %3986 = vmatmul.mubr.f32.gmra.mrb[0].mxu0 %v2236
    %v3987 = vpop.f32.mrb[0].mxu0
    %v3988 = vadd.f32 0.0, %v3987
    %v3989 = vpop.f32.mrb[0].mxu0
    %v3990 = vadd.f32 0.0, %v3989
    %3991 = vmatprep.mubr.f32.mxu0 %v2244
    %3992 = vmatmul.mubr.f32.gmra.mrb[0].mxu0 %v2242
    %v3993 = vpop.f32.mrb[0].mxu0
    %v3994 = vadd.f32 0.0, %v3993
    %v3995 = vpop.f32.mrb[0].mxu0
    %v3996 = vadd.f32 0.0, %v3995
    %3997 = vmatprep.mubr.f32.mxu0 %v2250
    %3998 = vmatmul.mubr.f32.gmra.mrb[0].mxu0 %v2248
    %v3999 = vpop.f32.mrb[0].mxu0
    %v4000 = vadd.f32 0.0, %v3999
    %v4001 = vpop.f32.mrb[0].mxu0
    %v4002 = vadd.f32 0.0, %v4001
    %4003 = vmatprep.mubr.f32.mxu0 %v2256
    %4004 = vmatmul.mubr.f32.gmra.mrb[0].mxu0 %v2254
    %v4005 = vpop.f32.mrb[0].mxu0
    %v4006 = vadd.f32 0.0, %v4005
    %v4007 = vpop.f32.mrb[0].mxu0
    %v4008 = vadd.f32 0.0, %v4007
    %4009 = vmatprep.mubr.f32.mxu0 %v2262
    %4010 = vmatmul.mubr.f32.gmra.mrb[0].mxu0 %v2260
    %v4011 = vpop.f32.mrb[0].mxu0
    %v4012 = vadd.f32 0.0, %v4011
    %v4013 = vpop.f32.mrb[0].mxu0
    %v4014 = vadd.f32 0.0, %v4013
    %4015 = vmatprep.mubr.f32.mxu0 %v2268
    %4016 = vmatmul.mubr.f32.gmra.mrb[0].mxu0 %v2266
    %v4017 = vpop.f32.mrb[0].mxu0
    %v4018 = vadd.f32 0.0, %v4017
    %v4019 = vpop.f32.mrb[0].mxu0
    %v4020 = vadd.f32 0.0, %v4019
    %4021 = vmatprep.mubr.f32.mxu0 %v2274
    %4022 = vmatmul.mubr.f32.gmra.mrb[0].mxu0 %v2272
    %v4023 = vpop.f32.mrb[0].mxu0
    %v4024 = vadd.f32 0.0, %v4023
    %v4025 = vpop.f32.mrb[0].mxu0
    %v4026 = vadd.f32 0.0, %v4025
    %4027 = vmatprep.mubr.f32.mxu0 %v2280
    %4028 = vmatmul.mubr.f32.gmra.mrb[0].mxu0 %v2278
    %v4029 = vpop.f32.mrb[0].mxu0
    %v4030 = vadd.f32 0.0, %v4029
    %v4031 = vpop.f32.mrb[0].mxu0
    %v4032 = vadd.f32 0.0, %v4031
    %4033 = vmatprep.mubr.f32.mxu0 %v2286
    %4034 = vmatmul.mubr.f32.gmra.mrb[0].mxu0 %v2284
    %v4035 = vpop.f32.mrb[0].mxu0
    %v4036 = vadd.f32 0.0, %v4035
    %v4037 = vpop.f32.mrb[0].mxu0
    %v4038 = vadd.f32 0.0, %v4037
    %4039 = vmatprep.mubr.f32.mxu0 %v2292
    %4040 = vmatmul.mubr.f32.gmra.mrb[0].mxu0 %v2290
    %v4041 = vpop.f32.mrb[0].mxu0
    %v4042 = vadd.f32 0.0, %v4041
    %v4043 = vpop.f32.mrb[0].mxu0
    %v4044 = vadd.f32 0.0, %v4043
    %4045 = vmatprep.mubr.f32.mxu0 %v2298
    %4046 = vmatmul.mubr.f32.gmra.mrb[0].mxu0 %v2296
    %v4047 = vpop.f32.mrb[0].mxu0
    %v4048 = vadd.f32 0.0, %v4047
    %v4049 = vpop.f32.mrb[0].mxu0
    %v4050 = vadd.f32 0.0, %v4049
    %4051 = vmatprep.mubr.f32.mxu0 %v2304
    %4052 = vmatmul.mubr.f32.gmra.mrb[0].mxu0 %v2302
    %v4053 = vpop.f32.mrb[0].mxu0
    %v4054 = vadd.f32 0.0, %v4053
    %v4055 = vpop.f32.mrb[0].mxu0
    %v4056 = vadd.f32 0.0, %v4055
    %4057 = vmatprep.mubr.f32.mxu0 %v2310
    %4058 = vmatmul.mubr.f32.gmra.mrb[0].mxu0 %v2308
    %v4059 = vpop.f32.mrb[0].mxu0
    %v4060 = vadd.f32 0.0, %v4059
    %v4061 = vpop.f32.mrb[0].mxu0
    %v4062 = vadd.f32 0.0, %v4061
    %4063 = vdwg.mxu0
    %4064 = vmatprep.subr.mxu0 %v3106
    %4065 = vmatpush1.msra.mxu0 %v3105
    %4066 = vmatprep.subr.mxu0 %v3110
    %4067 = vmatpush1.msra.mxu0 %v3109
    %4068 = vmatprep.subr.mxu0 %v3114
    %4069 = vmatpush1.msra.mxu0 %v3113
    %4070 = vmatprep.subr.mxu0 %v3118
    %4071 = vmatpush1.msra.mxu0 %v3117
    %4072 = vmatprep.subr.mxu0 %v3122
    %4073 = vmatpush1.msra.mxu0 %v3121
    %4074 = vmatprep.subr.mxu0 %v3126
    %4075 = vmatpush1.msra.mxu0 %v3125
    %4076 = vmatprep.subr.mxu0 %v3130
    %4077 = vmatpush1.msra.mxu0 %v3129
    %4078 = vmatprep.subr.mxu0 %v3134
    %4079 = vmatpush1.msra.mxu0 %v3133
    %4080 = vmatprep.subr.mxu0 %v3138
    %4081 = vmatpush1.msra.mxu0 %v3137
    %4082 = vmatprep.subr.mxu0 %v3142
    %4083 = vmatpush1.msra.mxu0 %v3141
    %4084 = vmatprep.subr.mxu0 %v3146
    %4085 = vmatpush1.msra.mxu0 %v3145
    %4086 = vmatprep.subr.mxu0 %v3150
    %4087 = vmatpush1.msra.mxu0 %v3149
    %4088 = vmatprep.subr.mxu0 %v3154
    %4089 = vmatpush1.msra.mxu0 %v3153
    %4090 = vmatprep.subr.mxu0 %v3158
    %4091 = vmatpush1.msra.mxu0 %v3157
    %4092 = vmatprep.subr.mxu0 %v3162
    %4093 = vmatpush1.msra.mxu0 %v3161
    %4094 = vmatprep.subr.mxu0 %v3166
    %4095 = vmatpush1.msra.mxu0 %v3165
    %4096 = vmatprep.subr.mxu0 %v3170
    %4097 = vmatpush1.msra.mxu0 %v3169
    %4098 = vmatprep.subr.mxu0 %v3174
    %4099 = vmatpush1.msra.mxu0 %v3173
    %4100 = vmatprep.subr.mxu0 %v3178
    %4101 = vmatpush1.msra.mxu0 %v3177
    %4102 = vmatprep.subr.mxu0 %v3182
    %4103 = vmatpush1.msra.mxu0 %v3181
    %4104 = vmatprep.subr.mxu0 %v3186
    %4105 = vmatpush1.msra.mxu0 %v3185
    %4106 = vmatprep.subr.mxu0 %v3190
    %4107 = vmatpush1.msra.mxu0 %v3189
    %4108 = vmatprep.subr.mxu0 %v3194
    %4109 = vmatpush1.msra.mxu0 %v3193
    %4110 = vmatprep.subr.mxu0 %v3198
    %4111 = vmatpush1.msra.mxu0 %v3197
    %4112 = vmatprep.subr.mxu0 %v3202
    %4113 = vmatpush1.msra.mxu0 %v3201
    %4114 = vmatprep.subr.mxu0 %v3206
    %4115 = vmatpush1.msra.mxu0 %v3205
    %4116 = vmatprep.subr.mxu0 %v3210
    %4117 = vmatpush1.msra.mxu0 %v3209
    %4118 = vmatprep.subr.mxu0 %v3214
    %4119 = vmatpush1.msra.mxu0 %v3213
    %4120 = vmatprep.subr.mxu0 %v3218
    %4121 = vmatpush1.msra.mxu0 %v3217
    %4122 = vmatprep.subr.mxu0 %v3222
    %4123 = vmatpush1.msra.mxu0 %v3221
    %4124 = vmatprep.subr.mxu0 %v3226
    %4125 = vmatpush1.msra.mxu0 %v3225
    %4126 = vmatprep.subr.mxu0 %v3230
    %4127 = vmatpush1.msra.mxu0 %v3229
    %4128 = vmatprep.mubr.f32.mxu0 %v1548
    %4129 = vmatmul.mubr.f32.gmra.mrb[0].mxu0 %v1546
    %v4130 = vpop.f32.mrb[0].mxu0
    %v4131 = vadd.f32 0.0, %v4130
    %v4132 = vpop.f32.mrb[0].mxu0
    %v4133 = vadd.f32 0.0, %v4132
    %4134 = vmatprep.mubr.f32.mxu0 %v1554
    %4135 = vmatmul.mubr.f32.gmra.mrb[0].mxu0 %v1552
    %v4136 = vpop.f32.mrb[0].mxu0
    %v4137 = vadd.f32 0.0, %v4136
    %v4138 = vpop.f32.mrb[0].mxu0
    %v4139 = vadd.f32 0.0, %v4138
    %4140 = vmatprep.mubr.f32.mxu0 %v1560
    %4141 = vmatmul.mubr.f32.gmra.mrb[0].mxu0 %v1558
    %v4142 = vpop.f32.mrb[0].mxu0
    %v4143 = vadd.f32 0.0, %v4142
    %v4144 = vpop.f32.mrb[0].mxu0
    %v4145 = vadd.f32 0.0, %v4144
    %4146 = vmatprep.mubr.f32.mxu0 %v1566
    %4147 = vmatmul.mubr.f32.gmra.mrb[0].mxu0 %v1564
    %v4148 = vpop.f32.mrb[0].mxu0
    %v4149 = vadd.f32 0.0, %v4148
    %v4150 = vpop.f32.mrb[0].mxu0
    %v4151 = vadd.f32 0.0, %v4150
    %4152 = vmatprep.mubr.f32.mxu0 %v1572
    %4153 = vmatmul.mubr.f32.gmra.mrb[0].mxu0 %v1570
    %v4154 = vpop.f32.mrb[0].mxu0
    %v4155 = vadd.f32 0.0, %v4154
    %v4156 = vpop.f32.mrb[0].mxu0
    %v4157 = vadd.f32 0.0, %v4156
    %4158 = vmatprep.mubr.f32.mxu0 %v1578
    %4159 = vmatmul.mubr.f32.gmra.mrb[0].mxu0 %v1576
    %v4160 = vpop.f32.mrb[0].mxu0
    %v4161 = vadd.f32 0.0, %v4160
    %v4162 = vpop.f32.mrb[0].mxu0
    %v4163 = vadd.f32 0.0, %v4162
    %4164 = vmatprep.mubr.f32.mxu0 %v1584
    %4165 = vmatmul.mubr.f32.gmra.mrb[0].mxu0 %v1582
    %v4166 = vpop.f32.mrb[0].mxu0
    %v4167 = vadd.f32 0.0, %v4166
    %v4168 = vpop.f32.mrb[0].mxu0
    %v4169 = vadd.f32 0.0, %v4168
    %4170 = vmatprep.mubr.f32.mxu0 %v1590
    %4171 = vmatmul.mubr.f32.gmra.mrb[0].mxu0 %v1588
    %v4172 = vpop.f32.mrb[0].mxu0
    %v4173 = vadd.f32 0.0, %v4172
    %v4174 = vpop.f32.mrb[0].mxu0
    %v4175 = vadd.f32 0.0, %v4174
    %4176 = vmatprep.mubr.f32.mxu0 %v1596
    %4177 = vmatmul.mubr.f32.gmra.mrb[0].mxu0 %v1594
    %v4178 = vpop.f32.mrb[0].mxu0
    %v4179 = vadd.f32 0.0, %v4178
    %v4180 = vpop.f32.mrb[0].mxu0
    %v4181 = vadd.f32 0.0, %v4180
    %4182 = vmatprep.mubr.f32.mxu0 %v1602
    %4183 = vmatmul.mubr.f32.gmra.mrb[0].mxu0 %v1600
    %v4184 = vpop.f32.mrb[0].mxu0
    %v4185 = vadd.f32 0.0, %v4184
    %v4186 = vpop.f32.mrb[0].mxu0
    %v4187 = vadd.f32 0.0, %v4186
    %4188 = vmatprep.mubr.f32.mxu0 %v1608
    %4189 = vmatmul.mubr.f32.gmra.mrb[0].mxu0 %v1606
    %v4190 = vpop.f32.mrb[0].mxu0
    %v4191 = vadd.f32 0.0, %v4190
    %v4192 = vpop.f32.mrb[0].mxu0
    %v4193 = vadd.f32 0.0, %v4192
    %4194 = vmatprep.mubr.f32.mxu0 %v1614
    %4195 = vmatmul.mubr.f32.gmra.mrb[0].mxu0 %v1612
    %v4196 = vpop.f32.mrb[0].mxu0
    %v4197 = vadd.f32 0.0, %v4196
    %v4198 = vpop.f32.mrb[0].mxu0
    %v4199 = vadd.f32 0.0, %v4198
    %4200 = vmatprep.mubr.f32.mxu0 %v1620
    %4201 = vmatmul.mubr.f32.gmra.mrb[0].mxu0 %v1618
    %v4202 = vpop.f32.mrb[0].mxu0
    %v4203 = vadd.f32 0.0, %v4202
    %v4204 = vpop.f32.mrb[0].mxu0
    %v4205 = vadd.f32 0.0, %v4204
    %4206 = vmatprep.mubr.f32.mxu0 %v1626
    %4207 = vmatmul.mubr.f32.gmra.mrb[0].mxu0 %v1624
    %v4208 = vpop.f32.mrb[0].mxu0
    %v4209 = vadd.f32 0.0, %v4208
    %v4210 = vpop.f32.mrb[0].mxu0
    %v4211 = vadd.f32 0.0, %v4210
    %4212 = vmatprep.mubr.f32.mxu0 %v1632
    %4213 = vmatmul.mubr.f32.gmra.mrb[0].mxu0 %v1630
    %v4214 = vpop.f32.mrb[0].mxu0
    %v4215 = vadd.f32 0.0, %v4214
    %v4216 = vpop.f32.mrb[0].mxu0
    %v4217 = vadd.f32 0.0, %v4216
    %4218 = vmatprep.mubr.f32.mxu0 %v1638
    %4219 = vmatmul.mubr.f32.gmra.mrb[0].mxu0 %v1636
    %v4220 = vpop.f32.mrb[0].mxu0
    %v4221 = vadd.f32 0.0, %v4220
    %v4222 = vpop.f32.mrb[0].mxu0
    %v4223 = vadd.f32 0.0, %v4222
    %4224 = vmatprep.mubr.f32.mxu0 %v1644
    %4225 = vmatmul.mubr.f32.gmra.mrb[0].mxu0 %v1642
    %v4226 = vpop.f32.mrb[0].mxu0
    %v4227 = vadd.f32 0.0, %v4226
    %v4228 = vpop.f32.mrb[0].mxu0
    %v4229 = vadd.f32 0.0, %v4228
    %4230 = vmatprep.mubr.f32.mxu0 %v1650
    %4231 = vmatmul.mubr.f32.gmra.mrb[0].mxu0 %v1648
    %v4232 = vpop.f32.mrb[0].mxu0
    %v4233 = vadd.f32 0.0, %v4232
    %v4234 = vpop.f32.mrb[0].mxu0
    %v4235 = vadd.f32 0.0, %v4234
    %4236 = vmatprep.mubr.f32.mxu0 %v1656
    %4237 = vmatmul.mubr.f32.gmra.mrb[0].mxu0 %v1654
    %v4238 = vpop.f32.mrb[0].mxu0
    %v4239 = vadd.f32 0.0, %v4238
    %v4240 = vpop.f32.mrb[0].mxu0
    %v4241 = vadd.f32 0.0, %v4240
    %4242 = vmatprep.mubr.f32.mxu0 %v1662
    %4243 = vmatmul.mubr.f32.gmra.mrb[0].mxu0 %v1660
    %v4244 = vpop.f32.mrb[0].mxu0
    %v4245 = vadd.f32 0.0, %v4244
    %v4246 = vpop.f32.mrb[0].mxu0
    %v4247 = vadd.f32 0.0, %v4246
    %4248 = vmatprep.mubr.f32.mxu0 %v1668
    %4249 = vmatmul.mubr.f32.gmra.mrb[0].mxu0 %v1666
    %v4250 = vpop.f32.mrb[0].mxu0
    %v4251 = vadd.f32 0.0, %v4250
    %v4252 = vpop.f32.mrb[0].mxu0
    %v4253 = vadd.f32 0.0, %v4252
    %4254 = vmatprep.mubr.f32.mxu0 %v1674
    %4255 = vmatmul.mubr.f32.gmra.mrb[0].mxu0 %v1672
    %v4256 = vpop.f32.mrb[0].mxu0
    %v4257 = vadd.f32 0.0, %v4256
    %v4258 = vpop.f32.mrb[0].mxu0
    %v4259 = vadd.f32 0.0, %v4258
    %4260 = vmatprep.mubr.f32.mxu0 %v1680
    %4261 = vmatmul.mubr.f32.gmra.mrb[0].mxu0 %v1678
    %v4262 = vpop.f32.mrb[0].mxu0
    %v4263 = vadd.f32 0.0, %v4262
    %v4264 = vpop.f32.mrb[0].mxu0
    %v4265 = vadd.f32 0.0, %v4264
    %4266 = vmatprep.mubr.f32.mxu0 %v1686
    %4267 = vmatmul.mubr.f32.gmra.mrb[0].mxu0 %v1684
    %v4268 = vpop.f32.mrb[0].mxu0
    %v4269 = vadd.f32 0.0, %v4268
    %v4270 = vpop.f32.mrb[0].mxu0
    %v4271 = vadd.f32 0.0, %v4270
    %4272 = vmatprep.mubr.f32.mxu0 %v1692
    %4273 = vmatmul.mubr.f32.gmra.mrb[0].mxu0 %v1690
    %v4274 = vpop.f32.mrb[0].mxu0
    %v4275 = vadd.f32 0.0, %v4274
    %v4276 = vpop.f32.mrb[0].mxu0
    %v4277 = vadd.f32 0.0, %v4276
    %4278 = vmatprep.mubr.f32.mxu0 %v1698
    %4279 = vmatmul.mubr.f32.gmra.mrb[0].mxu0 %v1696
    %v4280 = vpop.f32.mrb[0].mxu0
    %v4281 = vadd.f32 0.0, %v4280
    %v4282 = vpop.f32.mrb[0].mxu0
    %v4283 = vadd.f32 0.0, %v4282
    %4284 = vmatprep.mubr.f32.mxu0 %v1704
    %4285 = vmatmul.mubr.f32.gmra.mrb[0].mxu0 %v1702
    %v4286 = vpop.f32.mrb[0].mxu0
    %v4287 = vadd.f32 0.0, %v4286
    %v4288 = vpop.f32.mrb[0].mxu0
    %v4289 = vadd.f32 0.0, %v4288
    %4290 = vmatprep.mubr.f32.mxu0 %v1710
    %4291 = vmatmul.mubr.f32.gmra.mrb[0].mxu0 %v1708
    %v4292 = vpop.f32.mrb[0].mxu0
    %v4293 = vadd.f32 0.0, %v4292
    %v4294 = vpop.f32.mrb[0].mxu0
    %v4295 = vadd.f32 0.0, %v4294
    %4296 = vmatprep.mubr.f32.mxu0 %v1716
    %4297 = vmatmul.mubr.f32.gmra.mrb[0].mxu0 %v1714
    %v4298 = vpop.f32.mrb[0].mxu0
    %v4299 = vadd.f32 0.0, %v4298
    %v4300 = vpop.f32.mrb[0].mxu0
    %v4301 = vadd.f32 0.0, %v4300
    %4302 = vmatprep.mubr.f32.mxu0 %v1722
    %4303 = vmatmul.mubr.f32.gmra.mrb[0].mxu0 %v1720
    %v4304 = vpop.f32.mrb[0].mxu0
    %v4305 = vadd.f32 0.0, %v4304
    %v4306 = vpop.f32.mrb[0].mxu0
    %v4307 = vadd.f32 0.0, %v4306
    %4308 = vmatprep.mubr.f32.mxu0 %v1728
    %4309 = vmatmul.mubr.f32.gmra.mrb[0].mxu0 %v1726
    %v4310 = vpop.f32.mrb[0].mxu0
    %v4311 = vadd.f32 0.0, %v4310
    %v4312 = vpop.f32.mrb[0].mxu0
    %v4313 = vadd.f32 0.0, %v4312
    %4314 = vmatprep.mubr.f32.mxu0 %v1734
    %4315 = vmatmul.mubr.f32.gmra.mrb[0].mxu0 %v1732
    %v4316 = vpop.f32.mrb[0].mxu0
    %v4317 = vadd.f32 0.0, %v4316
    %v4318 = vpop.f32.mrb[0].mxu0
    %v4319 = vadd.f32 0.0, %v4318
    %4320 = vmatprep.mubr.f32.mxu0 %v1740
    %4321 = vmatmul.mubr.f32.gmra.mrb[0].mxu0 %v1738
    %v4322 = vpop.f32.mrb[0].mxu0
    %v4323 = vadd.f32 0.0, %v4322
    %v4324 = vpop.f32.mrb[0].mxu0
    %v4325 = vadd.f32 0.0, %v4324
    %4326 = vmatprep.mubr.f32.mxu0 %v1746
    %4327 = vmatmul.mubr.f32.gmra.mrb[0].mxu0 %v1744
    %v4328 = vpop.f32.mrb[0].mxu0
    %v4329 = vadd.f32 0.0, %v4328
    %v4330 = vpop.f32.mrb[0].mxu0
    %v4331 = vadd.f32 0.0, %v4330
    %4332 = vmatprep.mubr.f32.mxu0 %v1752
    %4333 = vmatmul.mubr.f32.gmra.mrb[0].mxu0 %v1750
    %v4334 = vpop.f32.mrb[0].mxu0
    %v4335 = vadd.f32 0.0, %v4334
    %v4336 = vpop.f32.mrb[0].mxu0
    %v4337 = vadd.f32 0.0, %v4336
    %4338 = vmatprep.mubr.f32.mxu0 %v1758
    %4339 = vmatmul.mubr.f32.gmra.mrb[0].mxu0 %v1756
    %v4340 = vpop.f32.mrb[0].mxu0
    %v4341 = vadd.f32 0.0, %v4340
    %v4342 = vpop.f32.mrb[0].mxu0
    %v4343 = vadd.f32 0.0, %v4342
    %4344 = vmatprep.mubr.f32.mxu0 %v1764
    %4345 = vmatmul.mubr.f32.gmra.mrb[0].mxu0 %v1762
    %v4346 = vpop.f32.mrb[0].mxu0
    %v4347 = vadd.f32 0.0, %v4346
    %v4348 = vpop.f32.mrb[0].mxu0
    %v4349 = vadd.f32 0.0, %v4348
    %4350 = vmatprep.mubr.f32.mxu0 %v1770
    %4351 = vmatmul.mubr.f32.gmra.mrb[0].mxu0 %v1768
    %v4352 = vpop.f32.mrb[0].mxu0
    %v4353 = vadd.f32 0.0, %v4352
    %v4354 = vpop.f32.mrb[0].mxu0
    %v4355 = vadd.f32 0.0, %v4354
    %4356 = vmatprep.mubr.f32.mxu0 %v1776
    %4357 = vmatmul.mubr.f32.gmra.mrb[0].mxu0 %v1774
    %v4358 = vpop.f32.mrb[0].mxu0
    %v4359 = vadd.f32 0.0, %v4358
    %v4360 = vpop.f32.mrb[0].mxu0
    %v4361 = vadd.f32 0.0, %v4360
    %4362 = vmatprep.mubr.f32.mxu0 %v1782
    %4363 = vmatmul.mubr.f32.gmra.mrb[0].mxu0 %v1780
    %v4364 = vpop.f32.mrb[0].mxu0
    %v4365 = vadd.f32 0.0, %v4364
    %v4366 = vpop.f32.mrb[0].mxu0
    %v4367 = vadd.f32 0.0, %v4366
    %4368 = vmatprep.mubr.f32.mxu0 %v1788
    %4369 = vmatmul.mubr.f32.gmra.mrb[0].mxu0 %v1786
    %v4370 = vpop.f32.mrb[0].mxu0
    %v4371 = vadd.f32 0.0, %v4370
    %v4372 = vpop.f32.mrb[0].mxu0
    %v4373 = vadd.f32 0.0, %v4372
    %4374 = vmatprep.mubr.f32.mxu0 %v1794
    %4375 = vmatmul.mubr.f32.gmra.mrb[0].mxu0 %v1792
    %v4376 = vpop.f32.mrb[0].mxu0
    %v4377 = vadd.f32 0.0, %v4376
    %v4378 = vpop.f32.mrb[0].mxu0
    %v4379 = vadd.f32 0.0, %v4378
    %4380 = vmatprep.mubr.f32.mxu0 %v1800
    %4381 = vmatmul.mubr.f32.gmra.mrb[0].mxu0 %v1798
    %v4382 = vpop.f32.mrb[0].mxu0
    %v4383 = vadd.f32 0.0, %v4382
    %v4384 = vpop.f32.mrb[0].mxu0
    %v4385 = vadd.f32 0.0, %v4384
    %4386 = vmatprep.mubr.f32.mxu0 %v1806
    %4387 = vmatmul.mubr.f32.gmra.mrb[0].mxu0 %v1804
    %v4388 = vpop.f32.mrb[0].mxu0
    %v4389 = vadd.f32 0.0, %v4388
    %v4390 = vpop.f32.mrb[0].mxu0
    %v4391 = vadd.f32 0.0, %v4390
    %4392 = vmatprep.mubr.f32.mxu0 %v1812
    %4393 = vmatmul.mubr.f32.gmra.mrb[0].mxu0 %v1810
    %v4394 = vpop.f32.mrb[0].mxu0
    %v4395 = vadd.f32 0.0, %v4394
    %v4396 = vpop.f32.mrb[0].mxu0
    %v4397 = vadd.f32 0.0, %v4396
    %4398 = vmatprep.mubr.f32.mxu0 %v1818
    %4399 = vmatmul.mubr.f32.gmra.mrb[0].mxu0 %v1816
    %v4400 = vpop.f32.mrb[0].mxu0
    %v4401 = vadd.f32 0.0, %v4400
    %v4402 = vpop.f32.mrb[0].mxu0
    %v4403 = vadd.f32 0.0, %v4402
    %4404 = vmatprep.mubr.f32.mxu0 %v1824
    %4405 = vmatmul.mubr.f32.gmra.mrb[0].mxu0 %v1822
    %v4406 = vpop.f32.mrb[0].mxu0
    %v4407 = vadd.f32 0.0, %v4406
    %v4408 = vpop.f32.mrb[0].mxu0
    %v4409 = vadd.f32 0.0, %v4408
    %4410 = vmatprep.mubr.f32.mxu0 %v1830
    %4411 = vmatmul.mubr.f32.gmra.mrb[0].mxu0 %v1828
    %v4412 = vpop.f32.mrb[0].mxu0
    %v4413 = vadd.f32 0.0, %v4412
    %v4414 = vpop.f32.mrb[0].mxu0
    %v4415 = vadd.f32 0.0, %v4414
    %4416 = vmatprep.mubr.f32.mxu0 %v1836
    %4417 = vmatmul.mubr.f32.gmra.mrb[0].mxu0 %v1834
    %v4418 = vpop.f32.mrb[0].mxu0
    %v4419 = vadd.f32 0.0, %v4418
    %v4420 = vpop.f32.mrb[0].mxu0
    %v4421 = vadd.f32 0.0, %v4420
    %4422 = vmatprep.mubr.f32.mxu0 %v1842
    %4423 = vmatmul.mubr.f32.gmra.mrb[0].mxu0 %v1840
    %v4424 = vpop.f32.mrb[0].mxu0
    %v4425 = vadd.f32 0.0, %v4424
    %v4426 = vpop.f32.mrb[0].mxu0
    %v4427 = vadd.f32 0.0, %v4426
    %4428 = vmatprep.mubr.f32.mxu0 %v1848
    %4429 = vmatmul.mubr.f32.gmra.mrb[0].mxu0 %v1846
    %v4430 = vpop.f32.mrb[0].mxu0
    %v4431 = vadd.f32 0.0, %v4430
    %v4432 = vpop.f32.mrb[0].mxu0
    %v4433 = vadd.f32 0.0, %v4432
    %4434 = vmatprep.mubr.f32.mxu0 %v1854
    %4435 = vmatmul.mubr.f32.gmra.mrb[0].mxu0 %v1852
    %v4436 = vpop.f32.mrb[0].mxu0
    %v4437 = vadd.f32 0.0, %v4436
    %v4438 = vpop.f32.mrb[0].mxu0
    %v4439 = vadd.f32 0.0, %v4438
    %4440 = vmatprep.mubr.f32.mxu0 %v1860
    %4441 = vmatmul.mubr.f32.gmra.mrb[0].mxu0 %v1858
    %v4442 = vpop.f32.mrb[0].mxu0
    %v4443 = vadd.f32 0.0, %v4442
    %v4444 = vpop.f32.mrb[0].mxu0
    %v4445 = vadd.f32 0.0, %v4444
    %4446 = vmatprep.mubr.f32.mxu0 %v1866
    %4447 = vmatmul.mubr.f32.gmra.mrb[0].mxu0 %v1864
    %v4448 = vpop.f32.mrb[0].mxu0
    %v4449 = vadd.f32 0.0, %v4448
    %v4450 = vpop.f32.mrb[0].mxu0
    %v4451 = vadd.f32 0.0, %v4450
    %4452 = vmatprep.mubr.f32.mxu0 %v1872
    %4453 = vmatmul.mubr.f32.gmra.mrb[0].mxu0 %v1870
    %v4454 = vpop.f32.mrb[0].mxu0
    %v4455 = vadd.f32 0.0, %v4454
    %v4456 = vpop.f32.mrb[0].mxu0
    %v4457 = vadd.f32 0.0, %v4456
    %4458 = vmatprep.mubr.f32.mxu0 %v1878
    %4459 = vmatmul.mubr.f32.gmra.mrb[0].mxu0 %v1876
    %v4460 = vpop.f32.mrb[0].mxu0
    %v4461 = vadd.f32 0.0, %v4460
    %v4462 = vpop.f32.mrb[0].mxu0
    %v4463 = vadd.f32 0.0, %v4462
    %4464 = vmatprep.mubr.f32.mxu0 %v1884
    %4465 = vmatmul.mubr.f32.gmra.mrb[0].mxu0 %v1882
    %v4466 = vpop.f32.mrb[0].mxu0
    %v4467 = vadd.f32 0.0, %v4466
    %v4468 = vpop.f32.mrb[0].mxu0
    %v4469 = vadd.f32 0.0, %v4468
    %4470 = vmatprep.mubr.f32.mxu0 %v1890
    %4471 = vmatmul.mubr.f32.gmra.mrb[0].mxu0 %v1888
    %v4472 = vpop.f32.mrb[0].mxu0
    %v4473 = vadd.f32 0.0, %v4472
    %v4474 = vpop.f32.mrb[0].mxu0
    %v4475 = vadd.f32 0.0, %v4474
    %4476 = vmatprep.mubr.f32.mxu0 %v1896
    %4477 = vmatmul.mubr.f32.gmra.mrb[0].mxu0 %v1894
    %v4478 = vpop.f32.mrb[0].mxu0
    %v4479 = vadd.f32 0.0, %v4478
    %v4480 = vpop.f32.mrb[0].mxu0
    %v4481 = vadd.f32 0.0, %v4480
    %4482 = vmatprep.mubr.f32.mxu0 %v1902
    %4483 = vmatmul.mubr.f32.gmra.mrb[0].mxu0 %v1900
    %v4484 = vpop.f32.mrb[0].mxu0
    %v4485 = vadd.f32 0.0, %v4484
    %v4486 = vpop.f32.mrb[0].mxu0
    %v4487 = vadd.f32 0.0, %v4486
    %4488 = vmatprep.mubr.f32.mxu0 %v1908
    %4489 = vmatmul.mubr.f32.gmra.mrb[0].mxu0 %v1906
    %v4490 = vpop.f32.mrb[0].mxu0
    %v4491 = vadd.f32 0.0, %v4490
    %v4492 = vpop.f32.mrb[0].mxu0
    %v4493 = vadd.f32 0.0, %v4492
    %4494 = vmatprep.mubr.f32.mxu0 %v1914
    %4495 = vmatmul.mubr.f32.gmra.mrb[0].mxu0 %v1912
    %v4496 = vpop.f32.mrb[0].mxu0
    %v4497 = vadd.f32 0.0, %v4496
    %v4498 = vpop.f32.mrb[0].mxu0
    %v4499 = vadd.f32 0.0, %v4498
    %4500 = vmatprep.mubr.f32.mxu0 %v1920
    %4501 = vmatmul.mubr.f32.gmra.mrb[0].mxu0 %v1918
    %v4502 = vpop.f32.mrb[0].mxu0
    %v4503 = vadd.f32 0.0, %v4502
    %v4504 = vpop.f32.mrb[0].mxu0
    %v4505 = vadd.f32 0.0, %v4504
    %4506 = vmatprep.mubr.f32.mxu0 %v1926
    %4507 = vmatmul.mubr.f32.gmra.mrb[0].mxu0 %v1924
    %v4508 = vpop.f32.mrb[0].mxu0
    %v4509 = vadd.f32 0.0, %v4508
    %v4510 = vpop.f32.mrb[0].mxu0
    %v4511 = vadd.f32 0.0, %v4510
    %4512 = vmatprep.mubr.f32.mxu0 %v1932
    %4513 = vmatmul.mubr.f32.gmra.mrb[0].mxu0 %v1930
    %v4514 = vpop.f32.mrb[0].mxu0
    %v4515 = vadd.f32 0.0, %v4514
    %v4516 = vpop.f32.mrb[0].mxu0
    %v4517 = vadd.f32 0.0, %v4516
    %4518 = vmatprep.mubr.f32.mxu0 %v1938
    %4519 = vmatmul.mubr.f32.gmra.mrb[0].mxu0 %v1936
    %v4520 = vpop.f32.mrb[0].mxu0
    %v4521 = vadd.f32 0.0, %v4520
    %v4522 = vpop.f32.mrb[0].mxu0
    %v4523 = vadd.f32 0.0, %v4522
    %4524 = vmatprep.mubr.f32.mxu0 %v1944
    %4525 = vmatmul.mubr.f32.gmra.mrb[0].mxu0 %v1942
    %v4526 = vpop.f32.mrb[0].mxu0
    %v4527 = vadd.f32 0.0, %v4526
    %v4528 = vpop.f32.mrb[0].mxu0
    %v4529 = vadd.f32 0.0, %v4528
    %4530 = vmatprep.mubr.f32.mxu0 %v1950
    %4531 = vmatmul.mubr.f32.gmra.mrb[0].mxu0 %v1948
    %v4532 = vpop.f32.mrb[0].mxu0
    %v4533 = vadd.f32 0.0, %v4532
    %v4534 = vpop.f32.mrb[0].mxu0
    %v4535 = vadd.f32 0.0, %v4534
    %4536 = vmatprep.mubr.f32.mxu0 %v1956
    %4537 = vmatmul.mubr.f32.gmra.mrb[0].mxu0 %v1954
    %v4538 = vpop.f32.mrb[0].mxu0
    %v4539 = vadd.f32 0.0, %v4538
    %v4540 = vpop.f32.mrb[0].mxu0
    %v4541 = vadd.f32 0.0, %v4540
    %4542 = vmatprep.mubr.f32.mxu0 %v1962
    %4543 = vmatmul.mubr.f32.gmra.mrb[0].mxu0 %v1960
    %v4544 = vpop.f32.mrb[0].mxu0
    %v4545 = vadd.f32 0.0, %v4544
    %v4546 = vpop.f32.mrb[0].mxu0
    %v4547 = vadd.f32 0.0, %v4546
    %4548 = vmatprep.mubr.f32.mxu0 %v1968
    %4549 = vmatmul.mubr.f32.gmra.mrb[0].mxu0 %v1966
    %v4550 = vpop.f32.mrb[0].mxu0
    %v4551 = vadd.f32 0.0, %v4550
    %v4552 = vpop.f32.mrb[0].mxu0
    %v4553 = vadd.f32 0.0, %v4552
    %4554 = vmatprep.mubr.f32.mxu0 %v1974
    %4555 = vmatmul.mubr.f32.gmra.mrb[0].mxu0 %v1972
    %v4556 = vpop.f32.mrb[0].mxu0
    %v4557 = vadd.f32 0.0, %v4556
    %v4558 = vpop.f32.mrb[0].mxu0
    %v4559 = vadd.f32 0.0, %v4558
    %4560 = vmatprep.mubr.f32.mxu0 %v1980
    %4561 = vmatmul.mubr.f32.gmra.mrb[0].mxu0 %v1978
    %v4562 = vpop.f32.mrb[0].mxu0
    %v4563 = vadd.f32 0.0, %v4562
    %v4564 = vpop.f32.mrb[0].mxu0
    %v4565 = vadd.f32 0.0, %v4564
    %4566 = vmatprep.mubr.f32.mxu0 %v1986
    %4567 = vmatmul.mubr.f32.gmra.mrb[0].mxu0 %v1984
    %v4568 = vpop.f32.mrb[0].mxu0
    %v4569 = vadd.f32 0.0, %v4568
    %v4570 = vpop.f32.mrb[0].mxu0
    %v4571 = vadd.f32 0.0, %v4570
    %4572 = vmatprep.mubr.f32.mxu0 %v1992
    %4573 = vmatmul.mubr.f32.gmra.mrb[0].mxu0 %v1990
    %v4574 = vpop.f32.mrb[0].mxu0
    %v4575 = vadd.f32 0.0, %v4574
    %v4576 = vpop.f32.mrb[0].mxu0
    %v4577 = vadd.f32 0.0, %v4576
    %4578 = vmatprep.mubr.f32.mxu0 %v1998
    %4579 = vmatmul.mubr.f32.gmra.mrb[0].mxu0 %v1996
    %v4580 = vpop.f32.mrb[0].mxu0
    %v4581 = vadd.f32 0.0, %v4580
    %v4582 = vpop.f32.mrb[0].mxu0
    %v4583 = vadd.f32 0.0, %v4582
    %4584 = vmatprep.mubr.f32.mxu0 %v2004
    %4585 = vmatmul.mubr.f32.gmra.mrb[0].mxu0 %v2002
    %v4586 = vpop.f32.mrb[0].mxu0
    %v4587 = vadd.f32 0.0, %v4586
    %v4588 = vpop.f32.mrb[0].mxu0
    %v4589 = vadd.f32 0.0, %v4588
    %4590 = vmatprep.mubr.f32.mxu0 %v2010
    %4591 = vmatmul.mubr.f32.gmra.mrb[0].mxu0 %v2008
    %v4592 = vpop.f32.mrb[0].mxu0
    %v4593 = vadd.f32 0.0, %v4592
    %v4594 = vpop.f32.mrb[0].mxu0
    %v4595 = vadd.f32 0.0, %v4594
    %4596 = vmatprep.mubr.f32.mxu0 %v2016
    %4597 = vmatmul.mubr.f32.gmra.mrb[0].mxu0 %v2014
    %v4598 = vpop.f32.mrb[0].mxu0
    %v4599 = vadd.f32 0.0, %v4598
    %v4600 = vpop.f32.mrb[0].mxu0
    %v4601 = vadd.f32 0.0, %v4600
    %4602 = vmatprep.mubr.f32.mxu0 %v2022
    %4603 = vmatmul.mubr.f32.gmra.mrb[0].mxu0 %v2020
    %v4604 = vpop.f32.mrb[0].mxu0
    %v4605 = vadd.f32 0.0, %v4604
    %v4606 = vpop.f32.mrb[0].mxu0
    %v4607 = vadd.f32 0.0, %v4606
    %4608 = vmatprep.mubr.f32.mxu0 %v2028
    %4609 = vmatmul.mubr.f32.gmra.mrb[0].mxu0 %v2026
    %v4610 = vpop.f32.mrb[0].mxu0
    %v4611 = vadd.f32 0.0, %v4610
    %v4612 = vpop.f32.mrb[0].mxu0
    %v4613 = vadd.f32 0.0, %v4612
    %4614 = vmatprep.mubr.f32.mxu0 %v2034
    %4615 = vmatmul.mubr.f32.gmra.mrb[0].mxu0 %v2032
    %v4616 = vpop.f32.mrb[0].mxu0
    %v4617 = vadd.f32 0.0, %v4616
    %v4618 = vpop.f32.mrb[0].mxu0
    %v4619 = vadd.f32 0.0, %v4618
    %4620 = vmatprep.mubr.f32.mxu0 %v2040
    %4621 = vmatmul.mubr.f32.gmra.mrb[0].mxu0 %v2038
    %v4622 = vpop.f32.mrb[0].mxu0
    %v4623 = vadd.f32 0.0, %v4622
    %v4624 = vpop.f32.mrb[0].mxu0
    %v4625 = vadd.f32 0.0, %v4624
    %4626 = vmatprep.mubr.f32.mxu0 %v2046
    %4627 = vmatmul.mubr.f32.gmra.mrb[0].mxu0 %v2044
    %v4628 = vpop.f32.mrb[0].mxu0
    %v4629 = vadd.f32 0.0, %v4628
    %v4630 = vpop.f32.mrb[0].mxu0
    %v4631 = vadd.f32 0.0, %v4630
    %4632 = vmatprep.mubr.f32.mxu0 %v2052
    %4633 = vmatmul.mubr.f32.gmra.mrb[0].mxu0 %v2050
    %v4634 = vpop.f32.mrb[0].mxu0
    %v4635 = vadd.f32 0.0, %v4634
    %v4636 = vpop.f32.mrb[0].mxu0
    %v4637 = vadd.f32 0.0, %v4636
    %4638 = vmatprep.mubr.f32.mxu0 %v2058
    %4639 = vmatmul.mubr.f32.gmra.mrb[0].mxu0 %v2056
    %v4640 = vpop.f32.mrb[0].mxu0
    %v4641 = vadd.f32 0.0, %v4640
    %v4642 = vpop.f32.mrb[0].mxu0
    %v4643 = vadd.f32 0.0, %v4642
    %4644 = vmatprep.mubr.f32.mxu0 %v2064
    %4645 = vmatmul.mubr.f32.gmra.mrb[0].mxu0 %v2062
    %v4646 = vpop.f32.mrb[0].mxu0
    %v4647 = vadd.f32 0.0, %v4646
    %v4648 = vpop.f32.mrb[0].mxu0
    %v4649 = vadd.f32 0.0, %v4648
    %4650 = vmatprep.mubr.f32.mxu0 %v2070
    %4651 = vmatmul.mubr.f32.gmra.mrb[0].mxu0 %v2068
    %v4652 = vpop.f32.mrb[0].mxu0
    %v4653 = vadd.f32 0.0, %v4652
    %v4654 = vpop.f32.mrb[0].mxu0
    %v4655 = vadd.f32 0.0, %v4654
    %4656 = vmatprep.mubr.f32.mxu0 %v2076
    %4657 = vmatmul.mubr.f32.gmra.mrb[0].mxu0 %v2074
    %v4658 = vpop.f32.mrb[0].mxu0
    %v4659 = vadd.f32 0.0, %v4658
    %v4660 = vpop.f32.mrb[0].mxu0
    %v4661 = vadd.f32 0.0, %v4660
    %4662 = vmatprep.mubr.f32.mxu0 %v2082
    %4663 = vmatmul.mubr.f32.gmra.mrb[0].mxu0 %v2080
    %v4664 = vpop.f32.mrb[0].mxu0
    %v4665 = vadd.f32 0.0, %v4664
    %v4666 = vpop.f32.mrb[0].mxu0
    %v4667 = vadd.f32 0.0, %v4666
    %4668 = vmatprep.mubr.f32.mxu0 %v2088
    %4669 = vmatmul.mubr.f32.gmra.mrb[0].mxu0 %v2086
    %v4670 = vpop.f32.mrb[0].mxu0
    %v4671 = vadd.f32 0.0, %v4670
    %v4672 = vpop.f32.mrb[0].mxu0
    %v4673 = vadd.f32 0.0, %v4672
    %4674 = vmatprep.mubr.f32.mxu0 %v2094
    %4675 = vmatmul.mubr.f32.gmra.mrb[0].mxu0 %v2092
    %v4676 = vpop.f32.mrb[0].mxu0
    %v4677 = vadd.f32 0.0, %v4676
    %v4678 = vpop.f32.mrb[0].mxu0
    %v4679 = vadd.f32 0.0, %v4678
    %4680 = vmatprep.mubr.f32.mxu0 %v2100
    %4681 = vmatmul.mubr.f32.gmra.mrb[0].mxu0 %v2098
    %v4682 = vpop.f32.mrb[0].mxu0
    %v4683 = vadd.f32 0.0, %v4682
    %v4684 = vpop.f32.mrb[0].mxu0
    %v4685 = vadd.f32 0.0, %v4684
    %4686 = vmatprep.mubr.f32.mxu0 %v2106
    %4687 = vmatmul.mubr.f32.gmra.mrb[0].mxu0 %v2104
    %v4688 = vpop.f32.mrb[0].mxu0
    %v4689 = vadd.f32 0.0, %v4688
    %v4690 = vpop.f32.mrb[0].mxu0
    %v4691 = vadd.f32 0.0, %v4690
    %4692 = vmatprep.mubr.f32.mxu0 %v2112
    %4693 = vmatmul.mubr.f32.gmra.mrb[0].mxu0 %v2110
    %v4694 = vpop.f32.mrb[0].mxu0
    %v4695 = vadd.f32 0.0, %v4694
    %v4696 = vpop.f32.mrb[0].mxu0
    %v4697 = vadd.f32 0.0, %v4696
    %4698 = vmatprep.mubr.f32.mxu0 %v2118
    %4699 = vmatmul.mubr.f32.gmra.mrb[0].mxu0 %v2116
    %v4700 = vpop.f32.mrb[0].mxu0
    %v4701 = vadd.f32 0.0, %v4700
    %v4702 = vpop.f32.mrb[0].mxu0
    %v4703 = vadd.f32 0.0, %v4702
    %4704 = vmatprep.mubr.f32.mxu0 %v2124
    %4705 = vmatmul.mubr.f32.gmra.mrb[0].mxu0 %v2122
    %v4706 = vpop.f32.mrb[0].mxu0
    %v4707 = vadd.f32 0.0, %v4706
    %v4708 = vpop.f32.mrb[0].mxu0
    %v4709 = vadd.f32 0.0, %v4708
    %4710 = vmatprep.mubr.f32.mxu0 %v2130
    %4711 = vmatmul.mubr.f32.gmra.mrb[0].mxu0 %v2128
    %v4712 = vpop.f32.mrb[0].mxu0
    %v4713 = vadd.f32 0.0, %v4712
    %v4714 = vpop.f32.mrb[0].mxu0
    %v4715 = vadd.f32 0.0, %v4714
    %4716 = vmatprep.mubr.f32.mxu0 %v2136
    %4717 = vmatmul.mubr.f32.gmra.mrb[0].mxu0 %v2134
    %v4718 = vpop.f32.mrb[0].mxu0
    %v4719 = vadd.f32 0.0, %v4718
    %v4720 = vpop.f32.mrb[0].mxu0
    %v4721 = vadd.f32 0.0, %v4720
    %4722 = vmatprep.mubr.f32.mxu0 %v2142
    %4723 = vmatmul.mubr.f32.gmra.mrb[0].mxu0 %v2140
    %v4724 = vpop.f32.mrb[0].mxu0
    %v4725 = vadd.f32 0.0, %v4724
    %v4726 = vpop.f32.mrb[0].mxu0
    %v4727 = vadd.f32 0.0, %v4726
    %4728 = vmatprep.mubr.f32.mxu0 %v2148
    %4729 = vmatmul.mubr.f32.gmra.mrb[0].mxu0 %v2146
    %v4730 = vpop.f32.mrb[0].mxu0
    %v4731 = vadd.f32 0.0, %v4730
    %v4732 = vpop.f32.mrb[0].mxu0
    %v4733 = vadd.f32 0.0, %v4732
    %4734 = vmatprep.mubr.f32.mxu0 %v2154
    %4735 = vmatmul.mubr.f32.gmra.mrb[0].mxu0 %v2152
    %v4736 = vpop.f32.mrb[0].mxu0
    %v4737 = vadd.f32 0.0, %v4736
    %v4738 = vpop.f32.mrb[0].mxu0
    %v4739 = vadd.f32 0.0, %v4738
    %4740 = vmatprep.mubr.f32.mxu0 %v2160
    %4741 = vmatmul.mubr.f32.gmra.mrb[0].mxu0 %v2158
    %v4742 = vpop.f32.mrb[0].mxu0
    %v4743 = vadd.f32 0.0, %v4742
    %v4744 = vpop.f32.mrb[0].mxu0
    %v4745 = vadd.f32 0.0, %v4744
    %4746 = vmatprep.mubr.f32.mxu0 %v2166
    %4747 = vmatmul.mubr.f32.gmra.mrb[0].mxu0 %v2164
    %v4748 = vpop.f32.mrb[0].mxu0
    %v4749 = vadd.f32 0.0, %v4748
    %v4750 = vpop.f32.mrb[0].mxu0
    %v4751 = vadd.f32 0.0, %v4750
    %4752 = vmatprep.mubr.f32.mxu0 %v2172
    %4753 = vmatmul.mubr.f32.gmra.mrb[0].mxu0 %v2170
    %v4754 = vpop.f32.mrb[0].mxu0
    %v4755 = vadd.f32 0.0, %v4754
    %v4756 = vpop.f32.mrb[0].mxu0
    %v4757 = vadd.f32 0.0, %v4756
    %4758 = vmatprep.mubr.f32.mxu0 %v2178
    %4759 = vmatmul.mubr.f32.gmra.mrb[0].mxu0 %v2176
    %v4760 = vpop.f32.mrb[0].mxu0
    %v4761 = vadd.f32 0.0, %v4760
    %v4762 = vpop.f32.mrb[0].mxu0
    %v4763 = vadd.f32 0.0, %v4762
    %4764 = vmatprep.mubr.f32.mxu0 %v2184
    %4765 = vmatmul.mubr.f32.gmra.mrb[0].mxu0 %v2182
    %v4766 = vpop.f32.mrb[0].mxu0
    %v4767 = vadd.f32 0.0, %v4766
    %v4768 = vpop.f32.mrb[0].mxu0
    %v4769 = vadd.f32 0.0, %v4768
    %4770 = vmatprep.mubr.f32.mxu0 %v2190
    %4771 = vmatmul.mubr.f32.gmra.mrb[0].mxu0 %v2188
    %v4772 = vpop.f32.mrb[0].mxu0
    %v4773 = vadd.f32 0.0, %v4772
    %v4774 = vpop.f32.mrb[0].mxu0
    %v4775 = vadd.f32 0.0, %v4774
    %4776 = vmatprep.mubr.f32.mxu0 %v2196
    %4777 = vmatmul.mubr.f32.gmra.mrb[0].mxu0 %v2194
    %v4778 = vpop.f32.mrb[0].mxu0
    %v4779 = vadd.f32 0.0, %v4778
    %v4780 = vpop.f32.mrb[0].mxu0
    %v4781 = vadd.f32 0.0, %v4780
    %4782 = vmatprep.mubr.f32.mxu0 %v2202
    %4783 = vmatmul.mubr.f32.gmra.mrb[0].mxu0 %v2200
    %v4784 = vpop.f32.mrb[0].mxu0
    %v4785 = vadd.f32 0.0, %v4784
    %v4786 = vpop.f32.mrb[0].mxu0
    %v4787 = vadd.f32 0.0, %v4786
    %4788 = vmatprep.mubr.f32.mxu0 %v2208
    %4789 = vmatmul.mubr.f32.gmra.mrb[0].mxu0 %v2206
    %v4790 = vpop.f32.mrb[0].mxu0
    %v4791 = vadd.f32 0.0, %v4790
    %v4792 = vpop.f32.mrb[0].mxu0
    %v4793 = vadd.f32 0.0, %v4792
    %4794 = vmatprep.mubr.f32.mxu0 %v2214
    %4795 = vmatmul.mubr.f32.gmra.mrb[0].mxu0 %v2212
    %v4796 = vpop.f32.mrb[0].mxu0
    %v4797 = vadd.f32 0.0, %v4796
    %v4798 = vpop.f32.mrb[0].mxu0
    %v4799 = vadd.f32 0.0, %v4798
    %4800 = vmatprep.mubr.f32.mxu0 %v2220
    %4801 = vmatmul.mubr.f32.gmra.mrb[0].mxu0 %v2218
    %v4802 = vpop.f32.mrb[0].mxu0
    %v4803 = vadd.f32 0.0, %v4802
    %v4804 = vpop.f32.mrb[0].mxu0
    %v4805 = vadd.f32 0.0, %v4804
    %4806 = vmatprep.mubr.f32.mxu0 %v2226
    %4807 = vmatmul.mubr.f32.gmra.mrb[0].mxu0 %v2224
    %v4808 = vpop.f32.mrb[0].mxu0
    %v4809 = vadd.f32 0.0, %v4808
    %v4810 = vpop.f32.mrb[0].mxu0
    %v4811 = vadd.f32 0.0, %v4810
    %4812 = vmatprep.mubr.f32.mxu0 %v2232
    %4813 = vmatmul.mubr.f32.gmra.mrb[0].mxu0 %v2230
    %v4814 = vpop.f32.mrb[0].mxu0
    %v4815 = vadd.f32 0.0, %v4814
    %v4816 = vpop.f32.mrb[0].mxu0
    %v4817 = vadd.f32 0.0, %v4816
    %4818 = vmatprep.mubr.f32.mxu0 %v2238
    %4819 = vmatmul.mubr.f32.gmra.mrb[0].mxu0 %v2236
    %v4820 = vpop.f32.mrb[0].mxu0
    %v4821 = vadd.f32 0.0, %v4820
    %v4822 = vpop.f32.mrb[0].mxu0
    %v4823 = vadd.f32 0.0, %v4822
    %4824 = vmatprep.mubr.f32.mxu0 %v2244
    %4825 = vmatmul.mubr.f32.gmra.mrb[0].mxu0 %v2242
    %v4826 = vpop.f32.mrb[0].mxu0
    %v4827 = vadd.f32 0.0, %v4826
    %v4828 = vpop.f32.mrb[0].mxu0
    %v4829 = vadd.f32 0.0, %v4828
    %4830 = vmatprep.mubr.f32.mxu0 %v2250
    %4831 = vmatmul.mubr.f32.gmra.mrb[0].mxu0 %v2248
    %v4832 = vpop.f32.mrb[0].mxu0
    %v4833 = vadd.f32 0.0, %v4832
    %v4834 = vpop.f32.mrb[0].mxu0
    %v4835 = vadd.f32 0.0, %v4834
    %4836 = vmatprep.mubr.f32.mxu0 %v2256
    %4837 = vmatmul.mubr.f32.gmra.mrb[0].mxu0 %v2254
    %v4838 = vpop.f32.mrb[0].mxu0
    %v4839 = vadd.f32 0.0, %v4838
    %v4840 = vpop.f32.mrb[0].mxu0
    %v4841 = vadd.f32 0.0, %v4840
    %4842 = vmatprep.mubr.f32.mxu0 %v2262
    %4843 = vmatmul.mubr.f32.gmra.mrb[0].mxu0 %v2260
    %v4844 = vpop.f32.mrb[0].mxu0
    %v4845 = vadd.f32 0.0, %v4844
    %v4846 = vpop.f32.mrb[0].mxu0
    %v4847 = vadd.f32 0.0, %v4846
    %4848 = vmatprep.mubr.f32.mxu0 %v2268
    %4849 = vmatmul.mubr.f32.gmra.mrb[0].mxu0 %v2266
    %v4850 = vpop.f32.mrb[0].mxu0
    %v4851 = vadd.f32 0.0, %v4850
    %v4852 = vpop.f32.mrb[0].mxu0
    %v4853 = vadd.f32 0.0, %v4852
    %4854 = vmatprep.mubr.f32.mxu0 %v2274
    %4855 = vmatmul.mubr.f32.gmra.mrb[0].mxu0 %v2272
    %v4856 = vpop.f32.mrb[0].mxu0
    %v4857 = vadd.f32 0.0, %v4856
    %v4858 = vpop.f32.mrb[0].mxu0
    %v4859 = vadd.f32 0.0, %v4858
    %4860 = vmatprep.mubr.f32.mxu0 %v2280
    %4861 = vmatmul.mubr.f32.gmra.mrb[0].mxu0 %v2278
    %v4862 = vpop.f32.mrb[0].mxu0
    %v4863 = vadd.f32 0.0, %v4862
    %v4864 = vpop.f32.mrb[0].mxu0
    %v4865 = vadd.f32 0.0, %v4864
    %4866 = vmatprep.mubr.f32.mxu0 %v2286
    %4867 = vmatmul.mubr.f32.gmra.mrb[0].mxu0 %v2284
    %v4868 = vpop.f32.mrb[0].mxu0
    %v4869 = vadd.f32 0.0, %v4868
    %v4870 = vpop.f32.mrb[0].mxu0
    %v4871 = vadd.f32 0.0, %v4870
    %4872 = vmatprep.mubr.f32.mxu0 %v2292
    %4873 = vmatmul.mubr.f32.gmra.mrb[0].mxu0 %v2290
    %v4874 = vpop.f32.mrb[0].mxu0
    %v4875 = vadd.f32 0.0, %v4874
    %v4876 = vpop.f32.mrb[0].mxu0
    %v4877 = vadd.f32 0.0, %v4876
    %4878 = vmatprep.mubr.f32.mxu0 %v2298
    %4879 = vmatmul.mubr.f32.gmra.mrb[0].mxu0 %v2296
    %v4880 = vpop.f32.mrb[0].mxu0
    %v4881 = vadd.f32 0.0, %v4880
    %v4882 = vpop.f32.mrb[0].mxu0
    %v4883 = vadd.f32 0.0, %v4882
    %4884 = vmatprep.mubr.f32.mxu0 %v2304
    %4885 = vmatmul.mubr.f32.gmra.mrb[0].mxu0 %v2302
    %v4886 = vpop.f32.mrb[0].mxu0
    %v4887 = vadd.f32 0.0, %v4886
    %v4888 = vpop.f32.mrb[0].mxu0
    %v4889 = vadd.f32 0.0, %v4888
    %4890 = vmatprep.mubr.f32.mxu0 %v2310
    %4891 = vmatmul.mubr.f32.gmra.mrb[0].mxu0 %v2308
    %v4892 = vpop.f32.mrb[0].mxu0
    %v4893 = vadd.f32 0.0, %v4892
    %v4894 = vpop.f32.mrb[0].mxu0
    %v4895 = vadd.f32 0.0, %v4894
    %4896 = vdwg.mxu0
    %v4905 = vcombine.low %v3016, %v3018
    %v4906 = vcombine.high %v3016, %v3018
    %v4907 = vcombine.low %v3093, %v3095
    %v4908 = vcombine.high %v3093, %v3095
    %v4910 = vunpack.c.l.s4 1966171168
    %v4911 = vunpack.c.0.s8 %v4910
    %v4912 = vlaneseq
    %v4913 = vshrl.u32 %v4912, 7
    %v4914 = vsub.s32 %v4911, %v4913
    %v4915 = vrot.slane %v4905, %v4914
    %v4917 = vunpack.c.l.s4 1966171168
    %v4918 = vunpack.c.0.s8 %v4917
    %v4919 = vlaneseq
    %v4920 = vshrl.u32 %v4919, 7
    %v4921 = vsub.s32 %v4918, %v4920
    %v4922 = vrot.slane %v4906, %v4921
    %v4924 = vunpack.c.l.s4 1966171168
    %v4925 = vunpack.c.0.s8 %v4924
    %v4926 = vlaneseq
    %v4927 = vshrl.u32 %v4926, 7
    %v4928 = vsub.s32 %v4925, %v4927
    %v4929 = vrot.slane %v4907, %v4928
    %v4931 = vunpack.c.l.s4 1966171168
    %v4932 = vunpack.c.0.s8 %v4931
    %v4933 = vlaneseq
    %v4934 = vshrl.u32 %v4933, 7
    %v4935 = vsub.s32 %v4932, %v4934
    %v4936 = vrot.slane %v4908, %v4935
    %v4937 = vcombine.low %v4915, %v4929
    %v4938 = vcombine.high %v4915, %v4929
    %v4939 = vcombine.low %v4922, %v4936
    %v4940 = vcombine.high %v4922, %v4936
    %v4942 = vunpack.c.l.s4 1966171168
    %v4943 = vunpack.c.0.s8 %v4942
    %v4944 = vlaneseq
    %v4945 = vshrl.u32 %v4944, 7
    %v4946 = vsub.s32 %v4943, %v4945
    %v4947 = vrot.slane %v4937, %v4946
    %v4949 = vunpack.c.l.s4 1966171168
    %v4950 = vunpack.c.0.s8 %v4949
    %v4951 = vlaneseq
    %v4952 = vshrl.u32 %v4951, 7
    %v4953 = vsub.s32 %v4950, %v4952
    %v4954 = vrot.slane %v4939, %v4953
    %v4956 = vunpack.c.l.s4 1966171168
    %v4957 = vunpack.c.0.s8 %v4956
    %v4958 = vlaneseq
    %v4959 = vshrl.u32 %v4958, 7
    %v4960 = vsub.s32 %v4957, %v4959
    %v4961 = vrot.slane %v4938, %v4960
    %v4963 = vunpack.c.l.s4 1966171168
    %v4964 = vunpack.c.0.s8 %v4963
    %v4965 = vlaneseq
    %v4966 = vshrl.u32 %v4965, 7
    %v4967 = vsub.s32 %v4964, %v4966
    %v4968 = vrot.slane %v4940, %v4967
    %v4969 = vcombine.high %v4947, %v4947
    %v4970 = vcombine.high %v4954, %v4954
    %v4971 = vcombine.high %v4961, %v4961
    %v4972 = vcombine.high %v4968, %v4968
    %v4973 = vcombine.low %v3022, %v3024
    %v4974 = vcombine.high %v3022, %v3024
    %v4975 = vcombine.low %v3099, %v3101
    %v4976 = vcombine.high %v3099, %v3101
    %v4978 = vunpack.c.l.s4 1966171168
    %v4979 = vunpack.c.0.s8 %v4978
    %v4980 = vlaneseq
    %v4981 = vshrl.u32 %v4980, 7
    %v4982 = vsub.s32 %v4979, %v4981
    %v4983 = vrot.slane %v4973, %v4982
    %v4985 = vunpack.c.l.s4 1966171168
    %v4986 = vunpack.c.0.s8 %v4985
    %v4987 = vlaneseq
    %v4988 = vshrl.u32 %v4987, 7
    %v4989 = vsub.s32 %v4986, %v4988
    %v4990 = vrot.slane %v4974, %v4989
    %v4992 = vunpack.c.l.s4 1966171168
    %v4993 = vunpack.c.0.s8 %v4992
    %v4994 = vlaneseq
    %v4995 = vshrl.u32 %v4994, 7
    %v4996 = vsub.s32 %v4993, %v4995
    %v4997 = vrot.slane %v4975, %v4996
    %v4999 = vunpack.c.l.s4 1966171168
    %v5000 = vunpack.c.0.s8 %v4999
    %v5001 = vlaneseq
    %v5002 = vshrl.u32 %v5001, 7
    %v5003 = vsub.s32 %v5000, %v5002
    %v5004 = vrot.slane %v4976, %v5003
    %v5005 = vcombine.low %v4983, %v4997
    %v5006 = vcombine.high %v4983, %v4997
    %v5007 = vcombine.low %v4990, %v5004
    %v5008 = vcombine.high %v4990, %v5004
    %v5010 = vunpack.c.l.s4 1966171168
    %v5011 = vunpack.c.0.s8 %v5010
    %v5012 = vlaneseq
    %v5013 = vshrl.u32 %v5012, 7
    %v5014 = vsub.s32 %v5011, %v5013
    %v5015 = vrot.slane %v5005, %v5014
    %v5017 = vunpack.c.l.s4 1966171168
    %v5018 = vunpack.c.0.s8 %v5017
    %v5019 = vlaneseq
    %v5020 = vshrl.u32 %v5019, 7
    %v5021 = vsub.s32 %v5018, %v5020
    %v5022 = vrot.slane %v5007, %v5021
    %v5024 = vunpack.c.l.s4 1966171168
    %v5025 = vunpack.c.0.s8 %v5024
    %v5026 = vlaneseq
    %v5027 = vshrl.u32 %v5026, 7
    %v5028 = vsub.s32 %v5025, %v5027
    %v5029 = vrot.slane %v5006, %v5028
    %v5031 = vunpack.c.l.s4 1966171168
    %v5032 = vunpack.c.0.s8 %v5031
    %v5033 = vlaneseq
    %v5034 = vshrl.u32 %v5033, 7
    %v5035 = vsub.s32 %v5032, %v5034
    %v5036 = vrot.slane %v5008, %v5035
    %v5037 = vcombine.high %v5015, %v5015
    %v5038 = vcombine.high %v5022, %v5022
    %v5039 = vcombine.high %v5029, %v5029
    %v5040 = vcombine.high %v5036, %v5036
    %v5041 = vlaneseq
    %v5042 = vshrl.u32 %v5041, 7
    %v5043 = vsub.s32 0, %v5042
    %v5044 = vrot.slane %v4947, %v5043
    %v5045 = vlaneseq
    %v5046 = vshrl.u32 %v5045, 7
    %v5047 = vsub.s32 1, %v5046
    %v5048 = vrot.slane %v4947, %v5047
    %v5049 = vlaneseq
    %v5050 = vshrl.u32 %v5049, 7
    %v5051 = vsub.s32 2, %v5050
    %v5052 = vrot.slane %v4947, %v5051
    %v5053 = vlaneseq
    %v5054 = vshrl.u32 %v5053, 7
    %v5055 = vsub.s32 3, %v5054
    %v5056 = vrot.slane %v4947, %v5055
    %v5057 = vlaneseq
    %v5058 = vshrl.u32 %v5057, 7
    %v5059 = vsub.s32 0, %v5058
    %v5060 = vrot.slane %v4961, %v5059
    %v5061 = vlaneseq
    %v5062 = vshrl.u32 %v5061, 7
    %v5063 = vsub.s32 1, %v5062
    %v5064 = vrot.slane %v4961, %v5063
    %v5065 = vlaneseq
    %v5066 = vshrl.u32 %v5065, 7
    %v5067 = vsub.s32 2, %v5066
    %v5068 = vrot.slane %v4961, %v5067
    %v5069 = vlaneseq
    %v5070 = vshrl.u32 %v5069, 7
    %v5071 = vsub.s32 3, %v5070
    %v5072 = vrot.slane %v4961, %v5071
    %v5073 = vlaneseq
    %v5074 = vshrl.u32 %v5073, 7
    %v5075 = vsub.s32 0, %v5074
    %v5076 = vrot.slane %v4969, %v5075
    %v5077 = vlaneseq
    %v5078 = vshrl.u32 %v5077, 7
    %v5079 = vsub.s32 1, %v5078
    %v5080 = vrot.slane %v4969, %v5079
    %v5081 = vlaneseq
    %v5082 = vshrl.u32 %v5081, 7
    %v5083 = vsub.s32 2, %v5082
    %v5084 = vrot.slane %v4969, %v5083
    %v5085 = vlaneseq
    %v5086 = vshrl.u32 %v5085, 7
    %v5087 = vsub.s32 3, %v5086
    %v5088 = vrot.slane %v4969, %v5087
    %v5089 = vlaneseq
    %v5090 = vshrl.u32 %v5089, 7
    %v5091 = vsub.s32 0, %v5090
    %v5092 = vrot.slane %v4971, %v5091
    %v5093 = vlaneseq
    %v5094 = vshrl.u32 %v5093, 7
    %v5095 = vsub.s32 1, %v5094
    %v5096 = vrot.slane %v4971, %v5095
    %v5097 = vlaneseq
    %v5098 = vshrl.u32 %v5097, 7
    %v5099 = vsub.s32 2, %v5098
    %v5100 = vrot.slane %v4971, %v5099
    %v5101 = vlaneseq
    %v5102 = vshrl.u32 %v5101, 7
    %v5103 = vsub.s32 3, %v5102
    %v5104 = vrot.slane %v4971, %v5103
    %v5105 = vlaneseq
    %v5106 = vshrl.u32 %v5105, 7
    %v5107 = vsub.s32 0, %v5106
    %v5108 = vrot.slane %v4954, %v5107
    %v5109 = vlaneseq
    %v5110 = vshrl.u32 %v5109, 7
    %v5111 = vsub.s32 1, %v5110
    %v5112 = vrot.slane %v4954, %v5111
    %v5113 = vlaneseq
    %v5114 = vshrl.u32 %v5113, 7
    %v5115 = vsub.s32 2, %v5114
    %v5116 = vrot.slane %v4954, %v5115
    %v5117 = vlaneseq
    %v5118 = vshrl.u32 %v5117, 7
    %v5119 = vsub.s32 3, %v5118
    %v5120 = vrot.slane %v4954, %v5119
    %v5121 = vlaneseq
    %v5122 = vshrl.u32 %v5121, 7
    %v5123 = vsub.s32 0, %v5122
    %v5124 = vrot.slane %v4968, %v5123
    %v5125 = vlaneseq
    %v5126 = vshrl.u32 %v5125, 7
    %v5127 = vsub.s32 1, %v5126
    %v5128 = vrot.slane %v4968, %v5127
    %v5129 = vlaneseq
    %v5130 = vshrl.u32 %v5129, 7
    %v5131 = vsub.s32 2, %v5130
    %v5132 = vrot.slane %v4968, %v5131
    %v5133 = vlaneseq
    %v5134 = vshrl.u32 %v5133, 7
    %v5135 = vsub.s32 3, %v5134
    %v5136 = vrot.slane %v4968, %v5135
    %v5137 = vlaneseq
    %v5138 = vshrl.u32 %v5137, 7
    %v5139 = vsub.s32 0, %v5138
    %v5140 = vrot.slane %v4970, %v5139
    %v5141 = vlaneseq
    %v5142 = vshrl.u32 %v5141, 7
    %v5143 = vsub.s32 1, %v5142
    %v5144 = vrot.slane %v4970, %v5143
    %v5145 = vlaneseq
    %v5146 = vshrl.u32 %v5145, 7
    %v5147 = vsub.s32 2, %v5146
    %v5148 = vrot.slane %v4970, %v5147
    %v5149 = vlaneseq
    %v5150 = vshrl.u32 %v5149, 7
    %v5151 = vsub.s32 3, %v5150
    %v5152 = vrot.slane %v4970, %v5151
    %v5153 = vlaneseq
    %v5154 = vshrl.u32 %v5153, 7
    %v5155 = vsub.s32 0, %v5154
    %v5156 = vrot.slane %v4972, %v5155
    %v5157 = vlaneseq
    %v5158 = vshrl.u32 %v5157, 7
    %v5159 = vsub.s32 1, %v5158
    %v5160 = vrot.slane %v4972, %v5159
    %v5161 = vlaneseq
    %v5162 = vshrl.u32 %v5161, 7
    %v5163 = vsub.s32 2, %v5162
    %v5164 = vrot.slane %v4972, %v5163
    %v5165 = vlaneseq
    %v5166 = vshrl.u32 %v5165, 7
    %v5167 = vsub.s32 3, %v5166
    %v5168 = vrot.slane %v4972, %v5167
    %v5169 = vlaneseq
    %v5170 = vshrl.u32 %v5169, 7
    %v5171 = vsub.s32 0, %v5170
    %v5172 = vrot.slane %v5015, %v5171
    %v5173 = vlaneseq
    %v5174 = vshrl.u32 %v5173, 7
    %v5175 = vsub.s32 1, %v5174
    %v5176 = vrot.slane %v5015, %v5175
    %v5177 = vlaneseq
    %v5178 = vshrl.u32 %v5177, 7
    %v5179 = vsub.s32 2, %v5178
    %v5180 = vrot.slane %v5015, %v5179
    %v5181 = vlaneseq
    %v5182 = vshrl.u32 %v5181, 7
    %v5183 = vsub.s32 3, %v5182
    %v5184 = vrot.slane %v5015, %v5183
    %v5185 = vlaneseq
    %v5186 = vshrl.u32 %v5185, 7
    %v5187 = vsub.s32 0, %v5186
    %v5188 = vrot.slane %v5029, %v5187
    %v5189 = vlaneseq
    %v5190 = vshrl.u32 %v5189, 7
    %v5191 = vsub.s32 1, %v5190
    %v5192 = vrot.slane %v5029, %v5191
    %v5193 = vlaneseq
    %v5194 = vshrl.u32 %v5193, 7
    %v5195 = vsub.s32 2, %v5194
    %v5196 = vrot.slane %v5029, %v5195
    %v5197 = vlaneseq
    %v5198 = vshrl.u32 %v5197, 7
    %v5199 = vsub.s32 3, %v5198
    %v5200 = vrot.slane %v5029, %v5199
    %v5201 = vlaneseq
    %v5202 = vshrl.u32 %v5201, 7
    %v5203 = vsub.s32 0, %v5202
    %v5204 = vrot.slane %v5037, %v5203
    %v5205 = vlaneseq
    %v5206 = vshrl.u32 %v5205, 7
    %v5207 = vsub.s32 1, %v5206
    %v5208 = vrot.slane %v5037, %v5207
    %v5209 = vlaneseq
    %v5210 = vshrl.u32 %v5209, 7
    %v5211 = vsub.s32 2, %v5210
    %v5212 = vrot.slane %v5037, %v5211
    %v5213 = vlaneseq
    %v5214 = vshrl.u32 %v5213, 7
    %v5215 = vsub.s32 3, %v5214
    %v5216 = vrot.slane %v5037, %v5215
    %v5217 = vlaneseq
    %v5218 = vshrl.u32 %v5217, 7
    %v5219 = vsub.s32 0, %v5218
    %v5220 = vrot.slane %v5039, %v5219
    %v5221 = vlaneseq
    %v5222 = vshrl.u32 %v5221, 7
    %v5223 = vsub.s32 1, %v5222
    %v5224 = vrot.slane %v5039, %v5223
    %v5225 = vlaneseq
    %v5226 = vshrl.u32 %v5225, 7
    %v5227 = vsub.s32 2, %v5226
    %v5228 = vrot.slane %v5039, %v5227
    %v5229 = vlaneseq
    %v5230 = vshrl.u32 %v5229, 7
    %v5231 = vsub.s32 3, %v5230
    %v5232 = vrot.slane %v5039, %v5231
    %v5233 = vlaneseq
    %v5234 = vshrl.u32 %v5233, 7
    %v5235 = vsub.s32 0, %v5234
    %v5236 = vrot.slane %v5022, %v5235
    %v5237 = vlaneseq
    %v5238 = vshrl.u32 %v5237, 7
    %v5239 = vsub.s32 1, %v5238
    %v5240 = vrot.slane %v5022, %v5239
    %v5241 = vlaneseq
    %v5242 = vshrl.u32 %v5241, 7
    %v5243 = vsub.s32 2, %v5242
    %v5244 = vrot.slane %v5022, %v5243
    %v5245 = vlaneseq
    %v5246 = vshrl.u32 %v5245, 7
    %v5247 = vsub.s32 3, %v5246
    %v5248 = vrot.slane %v5022, %v5247
    %v5249 = vlaneseq
    %v5250 = vshrl.u32 %v5249, 7
    %v5251 = vsub.s32 0, %v5250
    %v5252 = vrot.slane %v5036, %v5251
    %v5253 = vlaneseq
    %v5254 = vshrl.u32 %v5253, 7
    %v5255 = vsub.s32 1, %v5254
    %v5256 = vrot.slane %v5036, %v5255
    %v5257 = vlaneseq
    %v5258 = vshrl.u32 %v5257, 7
    %v5259 = vsub.s32 2, %v5258
    %v5260 = vrot.slane %v5036, %v5259
    %v5261 = vlaneseq
    %v5262 = vshrl.u32 %v5261, 7
    %v5263 = vsub.s32 3, %v5262
    %v5264 = vrot.slane %v5036, %v5263
    %v5265 = vlaneseq
    %v5266 = vshrl.u32 %v5265, 7
    %v5267 = vsub.s32 0, %v5266
    %v5268 = vrot.slane %v5038, %v5267
    %v5269 = vlaneseq
    %v5270 = vshrl.u32 %v5269, 7
    %v5271 = vsub.s32 1, %v5270
    %v5272 = vrot.slane %v5038, %v5271
    %v5273 = vlaneseq
    %v5274 = vshrl.u32 %v5273, 7
    %v5275 = vsub.s32 2, %v5274
    %v5276 = vrot.slane %v5038, %v5275
    %v5277 = vlaneseq
    %v5278 = vshrl.u32 %v5277, 7
    %v5279 = vsub.s32 3, %v5278
    %v5280 = vrot.slane %v5038, %v5279
    %v5281 = vlaneseq
    %v5282 = vshrl.u32 %v5281, 7
    %v5283 = vsub.s32 0, %v5282
    %v5284 = vrot.slane %v5040, %v5283
    %v5285 = vlaneseq
    %v5286 = vshrl.u32 %v5285, 7
    %v5287 = vsub.s32 1, %v5286
    %v5288 = vrot.slane %v5040, %v5287
    %v5289 = vlaneseq
    %v5290 = vshrl.u32 %v5289, 7
    %v5291 = vsub.s32 2, %v5290
    %v5292 = vrot.slane %v5040, %v5291
    %v5293 = vlaneseq
    %v5294 = vshrl.u32 %v5293, 7
    %v5295 = vsub.s32 3, %v5294
    %v5296 = vrot.slane %v5040, %v5295
    %v5361 = vadd.f32 %v3298, %v5044
    %v5362 = vadd.f32 %v3300, %v5048
    %v5363 = vadd.f32 %v4131, %v5052
    %v5364 = vadd.f32 %v4133, %v5056
    %v5365 = vadd.f32 %v3304, %v5044
    %v5366 = vadd.f32 %v3306, %v5048
    %v5367 = vadd.f32 %v4137, %v5052
    %v5368 = vadd.f32 %v4139, %v5056
    %v5369 = vadd.f32 %v3310, %v5044
    %v5370 = vadd.f32 %v3312, %v5048
    %v5371 = vadd.f32 %v4143, %v5052
    %v5372 = vadd.f32 %v4145, %v5056
    %v5373 = vadd.f32 %v3316, %v5044
    %v5374 = vadd.f32 %v3318, %v5048
    %v5375 = vadd.f32 %v4149, %v5052
    %v5376 = vadd.f32 %v4151, %v5056
    %v5377 = vadd.f32 %v3322, %v5044
    %v5378 = vadd.f32 %v3324, %v5048
    %v5379 = vadd.f32 %v4155, %v5052
    %v5380 = vadd.f32 %v4157, %v5056
    %v5381 = vadd.f32 %v3328, %v5044
    %v5382 = vadd.f32 %v3330, %v5048
    %v5383 = vadd.f32 %v4161, %v5052
    %v5384 = vadd.f32 %v4163, %v5056
    %v5385 = vadd.f32 %v3334, %v5044
    %v5386 = vadd.f32 %v3336, %v5048
    %v5387 = vadd.f32 %v4167, %v5052
    %v5388 = vadd.f32 %v4169, %v5056
    %v5389 = vadd.f32 %v3340, %v5044
    %v5390 = vadd.f32 %v3342, %v5048
    %v5391 = vadd.f32 %v4173, %v5052
    %v5392 = vadd.f32 %v4175, %v5056
    %v5393 = vadd.f32 %v3346, %v5060
    %v5394 = vadd.f32 %v3348, %v5064
    %v5395 = vadd.f32 %v4179, %v5068
    %v5396 = vadd.f32 %v4181, %v5072
    %v5397 = vadd.f32 %v3352, %v5060
    %v5398 = vadd.f32 %v3354, %v5064
    %v5399 = vadd.f32 %v4185, %v5068
    %v5400 = vadd.f32 %v4187, %v5072
    %v5401 = vadd.f32 %v3358, %v5060
    %v5402 = vadd.f32 %v3360, %v5064
    %v5403 = vadd.f32 %v4191, %v5068
    %v5404 = vadd.f32 %v4193, %v5072
    %v5405 = vadd.f32 %v3364, %v5060
    %v5406 = vadd.f32 %v3366, %v5064
    %v5407 = vadd.f32 %v4197, %v5068
    %v5408 = vadd.f32 %v4199, %v5072
    %v5409 = vadd.f32 %v3370, %v5060
    %v5410 = vadd.f32 %v3372, %v5064
    %v5411 = vadd.f32 %v4203, %v5068
    %v5412 = vadd.f32 %v4205, %v5072
    %v5413 = vadd.f32 %v3376, %v5060
    %v5414 = vadd.f32 %v3378, %v5064
    %v5415 = vadd.f32 %v4209, %v5068
    %v5416 = vadd.f32 %v4211, %v5072
    %v5417 = vadd.f32 %v3382, %v5060
    %v5418 = vadd.f32 %v3384, %v5064
    %v5419 = vadd.f32 %v4215, %v5068
    %v5420 = vadd.f32 %v4217, %v5072
    %v5421 = vadd.f32 %v3388, %v5060
    %v5422 = vadd.f32 %v3390, %v5064
    %v5423 = vadd.f32 %v4221, %v5068
    %v5424 = vadd.f32 %v4223, %v5072
    %v5425 = vadd.f32 %v3394, %v5076
    %v5426 = vadd.f32 %v3396, %v5080
    %v5427 = vadd.f32 %v4227, %v5084
    %v5428 = vadd.f32 %v4229, %v5088
    %v5429 = vadd.f32 %v3400, %v5076
    %v5430 = vadd.f32 %v3402, %v5080
    %v5431 = vadd.f32 %v4233, %v5084
    %v5432 = vadd.f32 %v4235, %v5088
    %v5433 = vadd.f32 %v3406, %v5076
    %v5434 = vadd.f32 %v3408, %v5080
    %v5435 = vadd.f32 %v4239, %v5084
    %v5436 = vadd.f32 %v4241, %v5088
    %v5437 = vadd.f32 %v3412, %v5076
    %v5438 = vadd.f32 %v3414, %v5080
    %v5439 = vadd.f32 %v4245, %v5084
    %v5440 = vadd.f32 %v4247, %v5088
    %v5441 = vadd.f32 %v3418, %v5076
    %v5442 = vadd.f32 %v3420, %v5080
    %v5443 = vadd.f32 %v4251, %v5084
    %v5444 = vadd.f32 %v4253, %v5088
    %v5445 = vadd.f32 %v3424, %v5076
    %v5446 = vadd.f32 %v3426, %v5080
    %v5447 = vadd.f32 %v4257, %v5084
    %v5448 = vadd.f32 %v4259, %v5088
    %v5449 = vadd.f32 %v3430, %v5076
    %v5450 = vadd.f32 %v3432, %v5080
    %v5451 = vadd.f32 %v4263, %v5084
    %v5452 = vadd.f32 %v4265, %v5088
    %v5453 = vadd.f32 %v3436, %v5076
    %v5454 = vadd.f32 %v3438, %v5080
    %v5455 = vadd.f32 %v4269, %v5084
    %v5456 = vadd.f32 %v4271, %v5088
    %v5457 = vadd.f32 %v3442, %v5092
    %v5458 = vadd.f32 %v3444, %v5096
    %v5459 = vadd.f32 %v4275, %v5100
    %v5460 = vadd.f32 %v4277, %v5104
    %v5461 = vadd.f32 %v3448, %v5092
    %v5462 = vadd.f32 %v3450, %v5096
    %v5463 = vadd.f32 %v4281, %v5100
    %v5464 = vadd.f32 %v4283, %v5104
    %v5465 = vadd.f32 %v3454, %v5092
    %v5466 = vadd.f32 %v3456, %v5096
    %v5467 = vadd.f32 %v4287, %v5100
    %v5468 = vadd.f32 %v4289, %v5104
    %v5469 = vadd.f32 %v3460, %v5092
    %v5470 = vadd.f32 %v3462, %v5096
    %v5471 = vadd.f32 %v4293, %v5100
    %v5472 = vadd.f32 %v4295, %v5104
    %v5473 = vadd.f32 %v3466, %v5092
    %v5474 = vadd.f32 %v3468, %v5096
    %v5475 = vadd.f32 %v4299, %v5100
    %v5476 = vadd.f32 %v4301, %v5104
    %v5477 = vadd.f32 %v3472, %v5092
    %v5478 = vadd.f32 %v3474, %v5096
    %v5479 = vadd.f32 %v4305, %v5100
    %v5480 = vadd.f32 %v4307, %v5104
    %v5481 = vadd.f32 %v3478, %v5092
    %v5482 = vadd.f32 %v3480, %v5096
    %v5483 = vadd.f32 %v4311, %v5100
    %v5484 = vadd.f32 %v4313, %v5104
    %v5485 = vadd.f32 %v3484, %v5092
    %v5486 = vadd.f32 %v3486, %v5096
    %v5487 = vadd.f32 %v4317, %v5100
    %v5488 = vadd.f32 %v4319, %v5104
    %v5489 = vadd.f32 %v3490, %v5108
    %v5490 = vadd.f32 %v3492, %v5112
    %v5491 = vadd.f32 %v4323, %v5116
    %v5492 = vadd.f32 %v4325, %v5120
    %v5493 = vadd.f32 %v3496, %v5108
    %v5494 = vadd.f32 %v3498, %v5112
    %v5495 = vadd.f32 %v4329, %v5116
    %v5496 = vadd.f32 %v4331, %v5120
    %v5497 = vadd.f32 %v3502, %v5108
    %v5498 = vadd.f32 %v3504, %v5112
    %v5499 = vadd.f32 %v4335, %v5116
    %v5500 = vadd.f32 %v4337, %v5120
    %v5501 = vadd.f32 %v3508, %v5108
    %v5502 = vadd.f32 %v3510, %v5112
    %v5503 = vadd.f32 %v4341, %v5116
    %v5504 = vadd.f32 %v4343, %v5120
    %v5505 = vadd.f32 %v3514, %v5108
    %v5506 = vadd.f32 %v3516, %v5112
    %v5507 = vadd.f32 %v4347, %v5116
    %v5508 = vadd.f32 %v4349, %v5120
    %v5509 = vadd.f32 %v3520, %v5108
    %v5510 = vadd.f32 %v3522, %v5112
    %v5511 = vadd.f32 %v4353, %v5116
    %v5512 = vadd.f32 %v4355, %v5120
    %v5513 = vadd.f32 %v3526, %v5108
    %v5514 = vadd.f32 %v3528, %v5112
    %v5515 = vadd.f32 %v4359, %v5116
    %v5516 = vadd.f32 %v4361, %v5120
    %v5517 = vadd.f32 %v3532, %v5108
    %v5518 = vadd.f32 %v3534, %v5112
    %v5519 = vadd.f32 %v4365, %v5116
    %v5520 = vadd.f32 %v4367, %v5120
    %v5521 = vadd.f32 %v3538, %v5124
    %v5522 = vadd.f32 %v3540, %v5128
    %v5523 = vadd.f32 %v4371, %v5132
    %v5524 = vadd.f32 %v4373, %v5136
    %v5525 = vadd.f32 %v3544, %v5124
    %v5526 = vadd.f32 %v3546, %v5128
    %v5527 = vadd.f32 %v4377, %v5132
    %v5528 = vadd.f32 %v4379, %v5136
    %v5529 = vadd.f32 %v3550, %v5124
    %v5530 = vadd.f32 %v3552, %v5128
    %v5531 = vadd.f32 %v4383, %v5132
    %v5532 = vadd.f32 %v4385, %v5136
    %v5533 = vadd.f32 %v3556, %v5124
    %v5534 = vadd.f32 %v3558, %v5128
    %v5535 = vadd.f32 %v4389, %v5132
    %v5536 = vadd.f32 %v4391, %v5136
    %v5537 = vadd.f32 %v3562, %v5124
    %v5538 = vadd.f32 %v3564, %v5128
    %v5539 = vadd.f32 %v4395, %v5132
    %v5540 = vadd.f32 %v4397, %v5136
    %v5541 = vadd.f32 %v3568, %v5124
    %v5542 = vadd.f32 %v3570, %v5128
    %v5543 = vadd.f32 %v4401, %v5132
    %v5544 = vadd.f32 %v4403, %v5136
    %v5545 = vadd.f32 %v3574, %v5124
    %v5546 = vadd.f32 %v3576, %v5128
    %v5547 = vadd.f32 %v4407, %v5132
    %v5548 = vadd.f32 %v4409, %v5136
    %v5549 = vadd.f32 %v3580, %v5124
    %v5550 = vadd.f32 %v3582, %v5128
    %v5551 = vadd.f32 %v4413, %v5132
    %v5552 = vadd.f32 %v4415, %v5136
    %v5553 = vadd.f32 %v3586, %v5140
    %v5554 = vadd.f32 %v3588, %v5144
    %v5555 = vadd.f32 %v4419, %v5148
    %v5556 = vadd.f32 %v4421, %v5152
    %v5557 = vadd.f32 %v3592, %v5140
    %v5558 = vadd.f32 %v3594, %v5144
    %v5559 = vadd.f32 %v4425, %v5148
    %v5560 = vadd.f32 %v4427, %v5152
    %v5561 = vadd.f32 %v3598, %v5140
    %v5562 = vadd.f32 %v3600, %v5144
    %v5563 = vadd.f32 %v4431, %v5148
    %v5564 = vadd.f32 %v4433, %v5152
    %v5565 = vadd.f32 %v3604, %v5140
    %v5566 = vadd.f32 %v3606, %v5144
    %v5567 = vadd.f32 %v4437, %v5148
    %v5568 = vadd.f32 %v4439, %v5152
    %v5569 = vadd.f32 %v3610, %v5140
    %v5570 = vadd.f32 %v3612, %v5144
    %v5571 = vadd.f32 %v4443, %v5148
    %v5572 = vadd.f32 %v4445, %v5152
    %v5573 = vadd.f32 %v3616, %v5140
    %v5574 = vadd.f32 %v3618, %v5144
    %v5575 = vadd.f32 %v4449, %v5148
    %v5576 = vadd.f32 %v4451, %v5152
    %v5577 = vadd.f32 %v3622, %v5140
    %v5578 = vadd.f32 %v3624, %v5144
    %v5579 = vadd.f32 %v4455, %v5148
    %v5580 = vadd.f32 %v4457, %v5152
    %v5581 = vadd.f32 %v3628, %v5140
    %v5582 = vadd.f32 %v3630, %v5144
    %v5583 = vadd.f32 %v4461, %v5148
    %v5584 = vadd.f32 %v4463, %v5152
    %v5585 = vadd.f32 %v3634, %v5156
    %v5586 = vadd.f32 %v3636, %v5160
    %v5587 = vadd.f32 %v4467, %v5164
    %v5588 = vadd.f32 %v4469, %v5168
    %v5589 = vadd.f32 %v3640, %v5156
    %v5590 = vadd.f32 %v3642, %v5160
    %v5591 = vadd.f32 %v4473, %v5164
    %v5592 = vadd.f32 %v4475, %v5168
    %v5593 = vadd.f32 %v3646, %v5156
    %v5594 = vadd.f32 %v3648, %v5160
    %v5595 = vadd.f32 %v4479, %v5164
    %v5596 = vadd.f32 %v4481, %v5168
    %v5597 = vadd.f32 %v3652, %v5156
    %v5598 = vadd.f32 %v3654, %v5160
    %v5599 = vadd.f32 %v4485, %v5164
    %v5600 = vadd.f32 %v4487, %v5168
    %v5601 = vadd.f32 %v3658, %v5156
    %v5602 = vadd.f32 %v3660, %v5160
    %v5603 = vadd.f32 %v4491, %v5164
    %v5604 = vadd.f32 %v4493, %v5168
    %v5605 = vadd.f32 %v3664, %v5156
    %v5606 = vadd.f32 %v3666, %v5160
    %v5607 = vadd.f32 %v4497, %v5164
    %v5608 = vadd.f32 %v4499, %v5168
    %v5609 = vadd.f32 %v3670, %v5156
    %v5610 = vadd.f32 %v3672, %v5160
    %v5611 = vadd.f32 %v4503, %v5164
    %v5612 = vadd.f32 %v4505, %v5168
    %v5613 = vadd.f32 %v3676, %v5156
    %v5614 = vadd.f32 %v3678, %v5160
    %v5615 = vadd.f32 %v4509, %v5164
    %v5616 = vadd.f32 %v4511, %v5168
    %v5617 = vadd.f32 %v3682, %v5172
    %v5618 = vadd.f32 %v3684, %v5176
    %v5619 = vadd.f32 %v4515, %v5180
    %v5620 = vadd.f32 %v4517, %v5184
    %v5621 = vadd.f32 %v3688, %v5172
    %v5622 = vadd.f32 %v3690, %v5176
    %v5623 = vadd.f32 %v4521, %v5180
    %v5624 = vadd.f32 %v4523, %v5184
    %v5625 = vadd.f32 %v3694, %v5172
    %v5626 = vadd.f32 %v3696, %v5176
    %v5627 = vadd.f32 %v4527, %v5180
    %v5628 = vadd.f32 %v4529, %v5184
    %v5629 = vadd.f32 %v3700, %v5172
    %v5630 = vadd.f32 %v3702, %v5176
    %v5631 = vadd.f32 %v4533, %v5180
    %v5632 = vadd.f32 %v4535, %v5184
    %v5633 = vadd.f32 %v3706, %v5172
    %v5634 = vadd.f32 %v3708, %v5176
    %v5635 = vadd.f32 %v4539, %v5180
    %v5636 = vadd.f32 %v4541, %v5184
    %v5637 = vadd.f32 %v3712, %v5172
    %v5638 = vadd.f32 %v3714, %v5176
    %v5639 = vadd.f32 %v4545, %v5180
    %v5640 = vadd.f32 %v4547, %v5184
    %v5641 = vadd.f32 %v3718, %v5172
    %v5642 = vadd.f32 %v3720, %v5176
    %v5643 = vadd.f32 %v4551, %v5180
    %v5644 = vadd.f32 %v4553, %v5184
    %v5645 = vadd.f32 %v3724, %v5172
    %v5646 = vadd.f32 %v3726, %v5176
    %v5647 = vadd.f32 %v4557, %v5180
    %v5648 = vadd.f32 %v4559, %v5184
    %v5649 = vadd.f32 %v3730, %v5188
    %v5650 = vadd.f32 %v3732, %v5192
    %v5651 = vadd.f32 %v4563, %v5196
    %v5652 = vadd.f32 %v4565, %v5200
    %v5653 = vadd.f32 %v3736, %v5188
    %v5654 = vadd.f32 %v3738, %v5192
    %v5655 = vadd.f32 %v4569, %v5196
    %v5656 = vadd.f32 %v4571, %v5200
    %v5657 = vadd.f32 %v3742, %v5188
    %v5658 = vadd.f32 %v3744, %v5192
    %v5659 = vadd.f32 %v4575, %v5196
    %v5660 = vadd.f32 %v4577, %v5200
    %v5661 = vadd.f32 %v3748, %v5188
    %v5662 = vadd.f32 %v3750, %v5192
    %v5663 = vadd.f32 %v4581, %v5196
    %v5664 = vadd.f32 %v4583, %v5200
    %v5665 = vadd.f32 %v3754, %v5188
    %v5666 = vadd.f32 %v3756, %v5192
    %v5667 = vadd.f32 %v4587, %v5196
    %v5668 = vadd.f32 %v4589, %v5200
    %v5669 = vadd.f32 %v3760, %v5188
    %v5670 = vadd.f32 %v3762, %v5192
    %v5671 = vadd.f32 %v4593, %v5196
    %v5672 = vadd.f32 %v4595, %v5200
    %v5673 = vadd.f32 %v3766, %v5188
    %v5674 = vadd.f32 %v3768, %v5192
    %v5675 = vadd.f32 %v4599, %v5196
    %v5676 = vadd.f32 %v4601, %v5200
    %v5677 = vadd.f32 %v3772, %v5188
    %v5678 = vadd.f32 %v3774, %v5192
    %v5679 = vadd.f32 %v4605, %v5196
    %v5680 = vadd.f32 %v4607, %v5200
    %v5681 = vadd.f32 %v3778, %v5204
    %v5682 = vadd.f32 %v3780, %v5208
    %v5683 = vadd.f32 %v4611, %v5212
    %v5684 = vadd.f32 %v4613, %v5216
    %v5685 = vadd.f32 %v3784, %v5204
    %v5686 = vadd.f32 %v3786, %v5208
    %v5687 = vadd.f32 %v4617, %v5212
    %v5688 = vadd.f32 %v4619, %v5216
    %v5689 = vadd.f32 %v3790, %v5204
    %v5690 = vadd.f32 %v3792, %v5208
    %v5691 = vadd.f32 %v4623, %v5212
    %v5692 = vadd.f32 %v4625, %v5216
    %v5693 = vadd.f32 %v3796, %v5204
    %v5694 = vadd.f32 %v3798, %v5208
    %v5695 = vadd.f32 %v4629, %v5212
    %v5696 = vadd.f32 %v4631, %v5216
    %v5697 = vadd.f32 %v3802, %v5204
    %v5698 = vadd.f32 %v3804, %v5208
    %v5699 = vadd.f32 %v4635, %v5212
    %v5700 = vadd.f32 %v4637, %v5216
    %v5701 = vadd.f32 %v3808, %v5204
    %v5702 = vadd.f32 %v3810, %v5208
    %v5703 = vadd.f32 %v4641, %v5212
    %v5704 = vadd.f32 %v4643, %v5216
    %v5705 = vadd.f32 %v3814, %v5204
    %v5706 = vadd.f32 %v3816, %v5208
    %v5707 = vadd.f32 %v4647, %v5212
    %v5708 = vadd.f32 %v4649, %v5216
    %v5709 = vadd.f32 %v3820, %v5204
    %v5710 = vadd.f32 %v3822, %v5208
    %v5711 = vadd.f32 %v4653, %v5212
    %v5712 = vadd.f32 %v4655, %v5216
    %v5713 = vadd.f32 %v3826, %v5220
    %v5714 = vadd.f32 %v3828, %v5224
    %v5715 = vadd.f32 %v4659, %v5228
    %v5716 = vadd.f32 %v4661, %v5232
    %v5717 = vadd.f32 %v3832, %v5220
    %v5718 = vadd.f32 %v3834, %v5224
    %v5719 = vadd.f32 %v4665, %v5228
    %v5720 = vadd.f32 %v4667, %v5232
    %v5721 = vadd.f32 %v3838, %v5220
    %v5722 = vadd.f32 %v3840, %v5224
    %v5723 = vadd.f32 %v4671, %v5228
    %v5724 = vadd.f32 %v4673, %v5232
    %v5725 = vadd.f32 %v3844, %v5220
    %v5726 = vadd.f32 %v3846, %v5224
    %v5727 = vadd.f32 %v4677, %v5228
    %v5728 = vadd.f32 %v4679, %v5232
    %v5729 = vadd.f32 %v3850, %v5220
    %v5730 = vadd.f32 %v3852, %v5224
    %v5731 = vadd.f32 %v4683, %v5228
    %v5732 = vadd.f32 %v4685, %v5232
    %v5733 = vadd.f32 %v3856, %v5220
    %v5734 = vadd.f32 %v3858, %v5224
    %v5735 = vadd.f32 %v4689, %v5228
    %v5736 = vadd.f32 %v4691, %v5232
    %v5737 = vadd.f32 %v3862, %v5220
    %v5738 = vadd.f32 %v3864, %v5224
    %v5739 = vadd.f32 %v4695, %v5228
    %v5740 = vadd.f32 %v4697, %v5232
    %v5741 = vadd.f32 %v3868, %v5220
    %v5742 = vadd.f32 %v3870, %v5224
    %v5743 = vadd.f32 %v4701, %v5228
    %v5744 = vadd.f32 %v4703, %v5232
    %v5745 = vadd.f32 %v3874, %v5236
    %v5746 = vadd.f32 %v3876, %v5240
    %v5747 = vadd.f32 %v4707, %v5244
    %v5748 = vadd.f32 %v4709, %v5248
    %v5749 = vadd.f32 %v3880, %v5236
    %v5750 = vadd.f32 %v3882, %v5240
    %v5751 = vadd.f32 %v4713, %v5244
    %v5752 = vadd.f32 %v4715, %v5248
    %v5753 = vadd.f32 %v3886, %v5236
    %v5754 = vadd.f32 %v3888, %v5240
    %v5755 = vadd.f32 %v4719, %v5244
    %v5756 = vadd.f32 %v4721, %v5248
    %v5757 = vadd.f32 %v3892, %v5236
    %v5758 = vadd.f32 %v3894, %v5240
    %v5759 = vadd.f32 %v4725, %v5244
    %v5760 = vadd.f32 %v4727, %v5248
    %v5761 = vadd.f32 %v3898, %v5236
    %v5762 = vadd.f32 %v3900, %v5240
    %v5763 = vadd.f32 %v4731, %v5244
    %v5764 = vadd.f32 %v4733, %v5248
    %v5765 = vadd.f32 %v3904, %v5236
    %v5766 = vadd.f32 %v3906, %v5240
    %v5767 = vadd.f32 %v4737, %v5244
    %v5768 = vadd.f32 %v4739, %v5248
    %v5769 = vadd.f32 %v3910, %v5236
    %v5770 = vadd.f32 %v3912, %v5240
    %v5771 = vadd.f32 %v4743, %v5244
    %v5772 = vadd.f32 %v4745, %v5248
    %v5773 = vadd.f32 %v3916, %v5236
    %v5774 = vadd.f32 %v3918, %v5240
    %v5775 = vadd.f32 %v4749, %v5244
    %v5776 = vadd.f32 %v4751, %v5248
    %v5777 = vadd.f32 %v3922, %v5252
    %v5778 = vadd.f32 %v3924, %v5256
    %v5779 = vadd.f32 %v4755, %v5260
    %v5780 = vadd.f32 %v4757, %v5264
    %v5781 = vadd.f32 %v3928, %v5252
    %v5782 = vadd.f32 %v3930, %v5256
    %v5783 = vadd.f32 %v4761, %v5260
    %v5784 = vadd.f32 %v4763, %v5264
    %v5785 = vadd.f32 %v3934, %v5252
    %v5786 = vadd.f32 %v3936, %v5256
    %v5787 = vadd.f32 %v4767, %v5260
    %v5788 = vadd.f32 %v4769, %v5264
    %v5789 = vadd.f32 %v3940, %v5252
    %v5790 = vadd.f32 %v3942, %v5256
    %v5791 = vadd.f32 %v4773, %v5260
    %v5792 = vadd.f32 %v4775, %v5264
    %v5793 = vadd.f32 %v3946, %v5252
    %v5794 = vadd.f32 %v3948, %v5256
    %v5795 = vadd.f32 %v4779, %v5260
    %v5796 = vadd.f32 %v4781, %v5264
    %v5797 = vadd.f32 %v3952, %v5252
    %v5798 = vadd.f32 %v3954, %v5256
    %v5799 = vadd.f32 %v4785, %v5260
    %v5800 = vadd.f32 %v4787, %v5264
    %v5801 = vadd.f32 %v3958, %v5252
    %v5802 = vadd.f32 %v3960, %v5256
    %v5803 = vadd.f32 %v4791, %v5260
    %v5804 = vadd.f32 %v4793, %v5264
    %v5805 = vadd.f32 %v3964, %v5252
    %v5806 = vadd.f32 %v3966, %v5256
    %v5807 = vadd.f32 %v4797, %v5260
    %v5808 = vadd.f32 %v4799, %v5264
    %v5809 = vadd.f32 %v3970, %v5268
    %v5810 = vadd.f32 %v3972, %v5272
    %v5811 = vadd.f32 %v4803, %v5276
    %v5812 = vadd.f32 %v4805, %v5280
    %v5813 = vadd.f32 %v3976, %v5268
    %v5814 = vadd.f32 %v3978, %v5272
    %v5815 = vadd.f32 %v4809, %v5276
    %v5816 = vadd.f32 %v4811, %v5280
    %v5817 = vadd.f32 %v3982, %v5268
    %v5818 = vadd.f32 %v3984, %v5272
    %v5819 = vadd.f32 %v4815, %v5276
    %v5820 = vadd.f32 %v4817, %v5280
    %v5821 = vadd.f32 %v3988, %v5268
    %v5822 = vadd.f32 %v3990, %v5272
    %v5823 = vadd.f32 %v4821, %v5276
    %v5824 = vadd.f32 %v4823, %v5280
    %v5825 = vadd.f32 %v3994, %v5268
    %v5826 = vadd.f32 %v3996, %v5272
    %v5827 = vadd.f32 %v4827, %v5276
    %v5828 = vadd.f32 %v4829, %v5280
    %v5829 = vadd.f32 %v4000, %v5268
    %v5830 = vadd.f32 %v4002, %v5272
    %v5831 = vadd.f32 %v4833, %v5276
    %v5832 = vadd.f32 %v4835, %v5280
    %v5833 = vadd.f32 %v4006, %v5268
    %v5834 = vadd.f32 %v4008, %v5272
    %v5835 = vadd.f32 %v4839, %v5276
    %v5836 = vadd.f32 %v4841, %v5280
    %v5837 = vadd.f32 %v4012, %v5268
    %v5838 = vadd.f32 %v4014, %v5272
    %v5839 = vadd.f32 %v4845, %v5276
    %v5840 = vadd.f32 %v4847, %v5280
    %v5841 = vadd.f32 %v4018, %v5284
    %v5842 = vadd.f32 %v4020, %v5288
    %v5843 = vadd.f32 %v4851, %v5292
    %v5844 = vadd.f32 %v4853, %v5296
    %v5845 = vadd.f32 %v4024, %v5284
    %v5846 = vadd.f32 %v4026, %v5288
    %v5847 = vadd.f32 %v4857, %v5292
    %v5848 = vadd.f32 %v4859, %v5296
    %v5849 = vadd.f32 %v4030, %v5284
    %v5850 = vadd.f32 %v4032, %v5288
    %v5851 = vadd.f32 %v4863, %v5292
    %v5852 = vadd.f32 %v4865, %v5296
    %v5853 = vadd.f32 %v4036, %v5284
    %v5854 = vadd.f32 %v4038, %v5288
    %v5855 = vadd.f32 %v4869, %v5292
    %v5856 = vadd.f32 %v4871, %v5296
    %v5857 = vadd.f32 %v4042, %v5284
    %v5858 = vadd.f32 %v4044, %v5288
    %v5859 = vadd.f32 %v4875, %v5292
    %v5860 = vadd.f32 %v4877, %v5296
    %v5861 = vadd.f32 %v4048, %v5284
    %v5862 = vadd.f32 %v4050, %v5288
    %v5863 = vadd.f32 %v4881, %v5292
    %v5864 = vadd.f32 %v4883, %v5296
    %v5865 = vadd.f32 %v4054, %v5284
    %v5866 = vadd.f32 %v4056, %v5288
    %v5867 = vadd.f32 %v4887, %v5292
    %v5868 = vadd.f32 %v4889, %v5296
    %v5869 = vadd.f32 %v4060, %v5284
    %v5870 = vadd.f32 %v4062, %v5288
    %v5871 = vadd.f32 %v4893, %v5292
    %v5872 = vadd.f32 %v4895, %v5296
    %v5873 = vmax.f32 %v5361, 0.0
    %v5874 = vmax.f32 %v5362, 0.0
    %v5875 = vmax.f32 %v5363, 0.0
    %v5876 = vmax.f32 %v5364, 0.0
    %v5877 = vmax.f32 %v5365, 0.0
    %v5878 = vmax.f32 %v5366, 0.0
    %v5879 = vmax.f32 %v5367, 0.0
    %v5880 = vmax.f32 %v5368, 0.0
    %v5881 = vmax.f32 %v5369, 0.0
    %v5882 = vmax.f32 %v5370, 0.0
    %v5883 = vmax.f32 %v5371, 0.0
    %v5884 = vmax.f32 %v5372, 0.0
    %v5885 = vmax.f32 %v5373, 0.0
    %v5886 = vmax.f32 %v5374, 0.0
    %v5887 = vmax.f32 %v5375, 0.0
    %v5888 = vmax.f32 %v5376, 0.0
    %v5889 = vmax.f32 %v5377, 0.0
    %v5890 = vmax.f32 %v5378, 0.0
    %v5891 = vmax.f32 %v5379, 0.0
    %v5892 = vmax.f32 %v5380, 0.0
    %v5893 = vmax.f32 %v5381, 0.0
    %v5894 = vmax.f32 %v5382, 0.0
    %v5895 = vmax.f32 %v5383, 0.0
    %v5896 = vmax.f32 %v5384, 0.0
    %v5897 = vmax.f32 %v5385, 0.0
    %v5898 = vmax.f32 %v5386, 0.0
    %v5899 = vmax.f32 %v5387, 0.0
    %v5900 = vmax.f32 %v5388, 0.0
    %v5901 = vmax.f32 %v5389, 0.0
    %v5902 = vmax.f32 %v5390, 0.0
    %v5903 = vmax.f32 %v5391, 0.0
    %v5904 = vmax.f32 %v5392, 0.0
    %v5905 = vmax.f32 %v5393, 0.0
    %v5906 = vmax.f32 %v5394, 0.0
    %v5907 = vmax.f32 %v5395, 0.0
    %v5908 = vmax.f32 %v5396, 0.0
    %v5909 = vmax.f32 %v5397, 0.0
    %v5910 = vmax.f32 %v5398, 0.0
    %v5911 = vmax.f32 %v5399, 0.0
    %v5912 = vmax.f32 %v5400, 0.0
    %v5913 = vmax.f32 %v5401, 0.0
    %v5914 = vmax.f32 %v5402, 0.0
    %v5915 = vmax.f32 %v5403, 0.0
    %v5916 = vmax.f32 %v5404, 0.0
    %v5917 = vmax.f32 %v5405, 0.0
    %v5918 = vmax.f32 %v5406, 0.0
    %v5919 = vmax.f32 %v5407, 0.0
    %v5920 = vmax.f32 %v5408, 0.0
    %v5921 = vmax.f32 %v5409, 0.0
    %v5922 = vmax.f32 %v5410, 0.0
    %v5923 = vmax.f32 %v5411, 0.0
    %v5924 = vmax.f32 %v5412, 0.0
    %v5925 = vmax.f32 %v5413, 0.0
    %v5926 = vmax.f32 %v5414, 0.0
    %v5927 = vmax.f32 %v5415, 0.0
    %v5928 = vmax.f32 %v5416, 0.0
    %v5929 = vmax.f32 %v5417, 0.0
    %v5930 = vmax.f32 %v5418, 0.0
    %v5931 = vmax.f32 %v5419, 0.0
    %v5932 = vmax.f32 %v5420, 0.0
    %v5933 = vmax.f32 %v5421, 0.0
    %v5934 = vmax.f32 %v5422, 0.0
    %v5935 = vmax.f32 %v5423, 0.0
    %v5936 = vmax.f32 %v5424, 0.0
    %v5937 = vmax.f32 %v5425, 0.0
    %v5938 = vmax.f32 %v5426, 0.0
    %v5939 = vmax.f32 %v5427, 0.0
    %v5940 = vmax.f32 %v5428, 0.0
    %v5941 = vmax.f32 %v5429, 0.0
    %v5942 = vmax.f32 %v5430, 0.0
    %v5943 = vmax.f32 %v5431, 0.0
    %v5944 = vmax.f32 %v5432, 0.0
    %v5945 = vmax.f32 %v5433, 0.0
    %v5946 = vmax.f32 %v5434, 0.0
    %v5947 = vmax.f32 %v5435, 0.0
    %v5948 = vmax.f32 %v5436, 0.0
    %v5949 = vmax.f32 %v5437, 0.0
    %v5950 = vmax.f32 %v5438, 0.0
    %v5951 = vmax.f32 %v5439, 0.0
    %v5952 = vmax.f32 %v5440, 0.0
    %v5953 = vmax.f32 %v5441, 0.0
    %v5954 = vmax.f32 %v5442, 0.0
    %v5955 = vmax.f32 %v5443, 0.0
    %v5956 = vmax.f32 %v5444, 0.0
    %v5957 = vmax.f32 %v5445, 0.0
    %v5958 = vmax.f32 %v5446, 0.0
    %v5959 = vmax.f32 %v5447, 0.0
    %v5960 = vmax.f32 %v5448, 0.0
    %v5961 = vmax.f32 %v5449, 0.0
    %v5962 = vmax.f32 %v5450, 0.0
    %v5963 = vmax.f32 %v5451, 0.0
    %v5964 = vmax.f32 %v5452, 0.0
    %v5965 = vmax.f32 %v5453, 0.0
    %v5966 = vmax.f32 %v5454, 0.0
    %v5967 = vmax.f32 %v5455, 0.0
    %v5968 = vmax.f32 %v5456, 0.0
    %v5969 = vmax.f32 %v5457, 0.0
    %v5970 = vmax.f32 %v5458, 0.0
    %v5971 = vmax.f32 %v5459, 0.0
    %v5972 = vmax.f32 %v5460, 0.0
    %v5973 = vmax.f32 %v5461, 0.0
    %v5974 = vmax.f32 %v5462, 0.0
    %v5975 = vmax.f32 %v5463, 0.0
    %v5976 = vmax.f32 %v5464, 0.0
    %v5977 = vmax.f32 %v5465, 0.0
    %v5978 = vmax.f32 %v5466, 0.0
    %v5979 = vmax.f32 %v5467, 0.0
    %v5980 = vmax.f32 %v5468, 0.0
    %v5981 = vmax.f32 %v5469, 0.0
    %v5982 = vmax.f32 %v5470, 0.0
    %v5983 = vmax.f32 %v5471, 0.0
    %v5984 = vmax.f32 %v5472, 0.0
    %v5985 = vmax.f32 %v5473, 0.0
    %v5986 = vmax.f32 %v5474, 0.0
    %v5987 = vmax.f32 %v5475, 0.0
    %v5988 = vmax.f32 %v5476, 0.0
    %v5989 = vmax.f32 %v5477, 0.0
    %v5990 = vmax.f32 %v5478, 0.0
    %v5991 = vmax.f32 %v5479, 0.0
    %v5992 = vmax.f32 %v5480, 0.0
    %v5993 = vmax.f32 %v5481, 0.0
    %v5994 = vmax.f32 %v5482, 0.0
    %v5995 = vmax.f32 %v5483, 0.0
    %v5996 = vmax.f32 %v5484, 0.0
    %v5997 = vmax.f32 %v5485, 0.0
    %v5998 = vmax.f32 %v5486, 0.0
    %v5999 = vmax.f32 %v5487, 0.0
    %v6000 = vmax.f32 %v5488, 0.0
    %v6001 = vmax.f32 %v5489, 0.0
    %v6002 = vmax.f32 %v5490, 0.0
    %v6003 = vmax.f32 %v5491, 0.0
    %v6004 = vmax.f32 %v5492, 0.0
    %v6005 = vmax.f32 %v5493, 0.0
    %v6006 = vmax.f32 %v5494, 0.0
    %v6007 = vmax.f32 %v5495, 0.0
    %v6008 = vmax.f32 %v5496, 0.0
    %v6009 = vmax.f32 %v5497, 0.0
    %v6010 = vmax.f32 %v5498, 0.0
    %v6011 = vmax.f32 %v5499, 0.0
    %v6012 = vmax.f32 %v5500, 0.0
    %v6013 = vmax.f32 %v5501, 0.0
    %v6014 = vmax.f32 %v5502, 0.0
    %v6015 = vmax.f32 %v5503, 0.0
    %v6016 = vmax.f32 %v5504, 0.0
    %v6017 = vmax.f32 %v5505, 0.0
    %v6018 = vmax.f32 %v5506, 0.0
    %v6019 = vmax.f32 %v5507, 0.0
    %v6020 = vmax.f32 %v5508, 0.0
    %v6021 = vmax.f32 %v5509, 0.0
    %v6022 = vmax.f32 %v5510, 0.0
    %v6023 = vmax.f32 %v5511, 0.0
    %v6024 = vmax.f32 %v5512, 0.0
    %v6025 = vmax.f32 %v5513, 0.0
    %v6026 = vmax.f32 %v5514, 0.0
    %v6027 = vmax.f32 %v5515, 0.0
    %v6028 = vmax.f32 %v5516, 0.0
    %v6029 = vmax.f32 %v5517, 0.0
    %v6030 = vmax.f32 %v5518, 0.0
    %v6031 = vmax.f32 %v5519, 0.0
    %v6032 = vmax.f32 %v5520, 0.0
    %v6033 = vmax.f32 %v5521, 0.0
    %v6034 = vmax.f32 %v5522, 0.0
    %v6035 = vmax.f32 %v5523, 0.0
    %v6036 = vmax.f32 %v5524, 0.0
    %v6037 = vmax.f32 %v5525, 0.0
    %v6038 = vmax.f32 %v5526, 0.0
    %v6039 = vmax.f32 %v5527, 0.0
    %v6040 = vmax.f32 %v5528, 0.0
    %v6041 = vmax.f32 %v5529, 0.0
    %v6042 = vmax.f32 %v5530, 0.0
    %v6043 = vmax.f32 %v5531, 0.0
    %v6044 = vmax.f32 %v5532, 0.0
    %v6045 = vmax.f32 %v5533, 0.0
    %v6046 = vmax.f32 %v5534, 0.0
    %v6047 = vmax.f32 %v5535, 0.0
    %v6048 = vmax.f32 %v5536, 0.0
    %v6049 = vmax.f32 %v5537, 0.0
    %v6050 = vmax.f32 %v5538, 0.0
    %v6051 = vmax.f32 %v5539, 0.0
    %v6052 = vmax.f32 %v5540, 0.0
    %v6053 = vmax.f32 %v5541, 0.0
    %v6054 = vmax.f32 %v5542, 0.0
    %v6055 = vmax.f32 %v5543, 0.0
    %v6056 = vmax.f32 %v5544, 0.0
    %v6057 = vmax.f32 %v5545, 0.0
    %v6058 = vmax.f32 %v5546, 0.0
    %v6059 = vmax.f32 %v5547, 0.0
    %v6060 = vmax.f32 %v5548, 0.0
    %v6061 = vmax.f32 %v5549, 0.0
    %v6062 = vmax.f32 %v5550, 0.0
    %v6063 = vmax.f32 %v5551, 0.0
    %v6064 = vmax.f32 %v5552, 0.0
    %v6065 = vmax.f32 %v5553, 0.0
    %v6066 = vmax.f32 %v5554, 0.0
    %v6067 = vmax.f32 %v5555, 0.0
    %v6068 = vmax.f32 %v5556, 0.0
    %v6069 = vmax.f32 %v5557, 0.0
    %v6070 = vmax.f32 %v5558, 0.0
    %v6071 = vmax.f32 %v5559, 0.0
    %v6072 = vmax.f32 %v5560, 0.0
    %v6073 = vmax.f32 %v5561, 0.0
    %v6074 = vmax.f32 %v5562, 0.0
    %v6075 = vmax.f32 %v5563, 0.0
    %v6076 = vmax.f32 %v5564, 0.0
    %v6077 = vmax.f32 %v5565, 0.0
    %v6078 = vmax.f32 %v5566, 0.0
    %v6079 = vmax.f32 %v5567, 0.0
    %v6080 = vmax.f32 %v5568, 0.0
    %v6081 = vmax.f32 %v5569, 0.0
    %v6082 = vmax.f32 %v5570, 0.0
    %v6083 = vmax.f32 %v5571, 0.0
    %v6084 = vmax.f32 %v5572, 0.0
    %v6085 = vmax.f32 %v5573, 0.0
    %v6086 = vmax.f32 %v5574, 0.0
    %v6087 = vmax.f32 %v5575, 0.0
    %v6088 = vmax.f32 %v5576, 0.0
    %v6089 = vmax.f32 %v5577, 0.0
    %v6090 = vmax.f32 %v5578, 0.0
    %v6091 = vmax.f32 %v5579, 0.0
    %v6092 = vmax.f32 %v5580, 0.0
    %v6093 = vmax.f32 %v5581, 0.0
    %v6094 = vmax.f32 %v5582, 0.0
    %v6095 = vmax.f32 %v5583, 0.0
    %v6096 = vmax.f32 %v5584, 0.0
    %v6097 = vmax.f32 %v5585, 0.0
    %v6098 = vmax.f32 %v5586, 0.0
    %v6099 = vmax.f32 %v5587, 0.0
    %v6100 = vmax.f32 %v5588, 0.0
    %v6101 = vmax.f32 %v5589, 0.0
    %v6102 = vmax.f32 %v5590, 0.0
    %v6103 = vmax.f32 %v5591, 0.0
    %v6104 = vmax.f32 %v5592, 0.0
    %v6105 = vmax.f32 %v5593, 0.0
    %v6106 = vmax.f32 %v5594, 0.0
    %v6107 = vmax.f32 %v5595, 0.0
    %v6108 = vmax.f32 %v5596, 0.0
    %v6109 = vmax.f32 %v5597, 0.0
    %v6110 = vmax.f32 %v5598, 0.0
    %v6111 = vmax.f32 %v5599, 0.0
    %v6112 = vmax.f32 %v5600, 0.0
    %v6113 = vmax.f32 %v5601, 0.0
    %v6114 = vmax.f32 %v5602, 0.0
    %v6115 = vmax.f32 %v5603, 0.0
    %v6116 = vmax.f32 %v5604, 0.0
    %v6117 = vmax.f32 %v5605, 0.0
    %v6118 = vmax.f32 %v5606, 0.0
    %v6119 = vmax.f32 %v5607, 0.0
    %v6120 = vmax.f32 %v5608, 0.0
    %v6121 = vmax.f32 %v5609, 0.0
    %v6122 = vmax.f32 %v5610, 0.0
    %v6123 = vmax.f32 %v5611, 0.0
    %v6124 = vmax.f32 %v5612, 0.0
    %v6125 = vmax.f32 %v5613, 0.0
    %v6126 = vmax.f32 %v5614, 0.0
    %v6127 = vmax.f32 %v5615, 0.0
    %v6128 = vmax.f32 %v5616, 0.0
    %v6129 = vmax.f32 %v5617, 0.0
    %v6130 = vmax.f32 %v5618, 0.0
    %v6131 = vmax.f32 %v5619, 0.0
    %v6132 = vmax.f32 %v5620, 0.0
    %v6133 = vmax.f32 %v5621, 0.0
    %v6134 = vmax.f32 %v5622, 0.0
    %v6135 = vmax.f32 %v5623, 0.0
    %v6136 = vmax.f32 %v5624, 0.0
    %v6137 = vmax.f32 %v5625, 0.0
    %v6138 = vmax.f32 %v5626, 0.0
    %v6139 = vmax.f32 %v5627, 0.0
    %v6140 = vmax.f32 %v5628, 0.0
    %v6141 = vmax.f32 %v5629, 0.0
    %v6142 = vmax.f32 %v5630, 0.0
    %v6143 = vmax.f32 %v5631, 0.0
    %v6144 = vmax.f32 %v5632, 0.0
    %v6145 = vmax.f32 %v5633, 0.0
    %v6146 = vmax.f32 %v5634, 0.0
    %v6147 = vmax.f32 %v5635, 0.0
    %v6148 = vmax.f32 %v5636, 0.0
    %v6149 = vmax.f32 %v5637, 0.0
    %v6150 = vmax.f32 %v5638, 0.0
    %v6151 = vmax.f32 %v5639, 0.0
    %v6152 = vmax.f32 %v5640, 0.0
    %v6153 = vmax.f32 %v5641, 0.0
    %v6154 = vmax.f32 %v5642, 0.0
    %v6155 = vmax.f32 %v5643, 0.0
    %v6156 = vmax.f32 %v5644, 0.0
    %v6157 = vmax.f32 %v5645, 0.0
    %v6158 = vmax.f32 %v5646, 0.0
    %v6159 = vmax.f32 %v5647, 0.0
    %v6160 = vmax.f32 %v5648, 0.0
    %v6161 = vmax.f32 %v5649, 0.0
    %v6162 = vmax.f32 %v5650, 0.0
    %v6163 = vmax.f32 %v5651, 0.0
    %v6164 = vmax.f32 %v5652, 0.0
    %v6165 = vmax.f32 %v5653, 0.0
    %v6166 = vmax.f32 %v5654, 0.0
    %v6167 = vmax.f32 %v5655, 0.0
    %v6168 = vmax.f32 %v5656, 0.0
    %v6169 = vmax.f32 %v5657, 0.0
    %v6170 = vmax.f32 %v5658, 0.0
    %v6171 = vmax.f32 %v5659, 0.0
    %v6172 = vmax.f32 %v5660, 0.0
    %v6173 = vmax.f32 %v5661, 0.0
    %v6174 = vmax.f32 %v5662, 0.0
    %v6175 = vmax.f32 %v5663, 0.0
    %v6176 = vmax.f32 %v5664, 0.0
    %v6177 = vmax.f32 %v5665, 0.0
    %v6178 = vmax.f32 %v5666, 0.0
    %v6179 = vmax.f32 %v5667, 0.0
    %v6180 = vmax.f32 %v5668, 0.0
    %v6181 = vmax.f32 %v5669, 0.0
    %v6182 = vmax.f32 %v5670, 0.0
    %v6183 = vmax.f32 %v5671, 0.0
    %v6184 = vmax.f32 %v5672, 0.0
    %v6185 = vmax.f32 %v5673, 0.0
    %v6186 = vmax.f32 %v5674, 0.0
    %v6187 = vmax.f32 %v5675, 0.0
    %v6188 = vmax.f32 %v5676, 0.0
    %v6189 = vmax.f32 %v5677, 0.0
    %v6190 = vmax.f32 %v5678, 0.0
    %v6191 = vmax.f32 %v5679, 0.0
    %v6192 = vmax.f32 %v5680, 0.0
    %v6193 = vmax.f32 %v5681, 0.0
    %v6194 = vmax.f32 %v5682, 0.0
    %v6195 = vmax.f32 %v5683, 0.0
    %v6196 = vmax.f32 %v5684, 0.0
    %v6197 = vmax.f32 %v5685, 0.0
    %v6198 = vmax.f32 %v5686, 0.0
    %v6199 = vmax.f32 %v5687, 0.0
    %v6200 = vmax.f32 %v5688, 0.0
    %v6201 = vmax.f32 %v5689, 0.0
    %v6202 = vmax.f32 %v5690, 0.0
    %v6203 = vmax.f32 %v5691, 0.0
    %v6204 = vmax.f32 %v5692, 0.0
    %v6205 = vmax.f32 %v5693, 0.0
    %v6206 = vmax.f32 %v5694, 0.0
    %v6207 = vmax.f32 %v5695, 0.0
    %v6208 = vmax.f32 %v5696, 0.0
    %v6209 = vmax.f32 %v5697, 0.0
    %v6210 = vmax.f32 %v5698, 0.0
    %v6211 = vmax.f32 %v5699, 0.0
    %v6212 = vmax.f32 %v5700, 0.0
    %v6213 = vmax.f32 %v5701, 0.0
    %v6214 = vmax.f32 %v5702, 0.0
    %v6215 = vmax.f32 %v5703, 0.0
    %v6216 = vmax.f32 %v5704, 0.0
    %v6217 = vmax.f32 %v5705, 0.0
    %v6218 = vmax.f32 %v5706, 0.0
    %v6219 = vmax.f32 %v5707, 0.0
    %v6220 = vmax.f32 %v5708, 0.0
    %v6221 = vmax.f32 %v5709, 0.0
    %v6222 = vmax.f32 %v5710, 0.0
    %v6223 = vmax.f32 %v5711, 0.0
    %v6224 = vmax.f32 %v5712, 0.0
    %v6225 = vmax.f32 %v5713, 0.0
    %v6226 = vmax.f32 %v5714, 0.0
    %v6227 = vmax.f32 %v5715, 0.0
    %v6228 = vmax.f32 %v5716, 0.0
    %v6229 = vmax.f32 %v5717, 0.0
    %v6230 = vmax.f32 %v5718, 0.0
    %v6231 = vmax.f32 %v5719, 0.0
    %v6232 = vmax.f32 %v5720, 0.0
    %v6233 = vmax.f32 %v5721, 0.0
    %v6234 = vmax.f32 %v5722, 0.0
    %v6235 = vmax.f32 %v5723, 0.0
    %v6236 = vmax.f32 %v5724, 0.0
    %v6237 = vmax.f32 %v5725, 0.0
    %v6238 = vmax.f32 %v5726, 0.0
    %v6239 = vmax.f32 %v5727, 0.0
    %v6240 = vmax.f32 %v5728, 0.0
    %v6241 = vmax.f32 %v5729, 0.0
    %v6242 = vmax.f32 %v5730, 0.0
    %v6243 = vmax.f32 %v5731, 0.0
    %v6244 = vmax.f32 %v5732, 0.0
    %v6245 = vmax.f32 %v5733, 0.0
    %v6246 = vmax.f32 %v5734, 0.0
    %v6247 = vmax.f32 %v5735, 0.0
    %v6248 = vmax.f32 %v5736, 0.0
    %v6249 = vmax.f32 %v5737, 0.0
    %v6250 = vmax.f32 %v5738, 0.0
    %v6251 = vmax.f32 %v5739, 0.0
    %v6252 = vmax.f32 %v5740, 0.0
    %v6253 = vmax.f32 %v5741, 0.0
    %v6254 = vmax.f32 %v5742, 0.0
    %v6255 = vmax.f32 %v5743, 0.0
    %v6256 = vmax.f32 %v5744, 0.0
    %v6257 = vmax.f32 %v5745, 0.0
    %v6258 = vmax.f32 %v5746, 0.0
    %v6259 = vmax.f32 %v5747, 0.0
    %v6260 = vmax.f32 %v5748, 0.0
    %v6261 = vmax.f32 %v5749, 0.0
    %v6262 = vmax.f32 %v5750, 0.0
    %v6263 = vmax.f32 %v5751, 0.0
    %v6264 = vmax.f32 %v5752, 0.0
    %v6265 = vmax.f32 %v5753, 0.0
    %v6266 = vmax.f32 %v5754, 0.0
    %v6267 = vmax.f32 %v5755, 0.0
    %v6268 = vmax.f32 %v5756, 0.0
    %v6269 = vmax.f32 %v5757, 0.0
    %v6270 = vmax.f32 %v5758, 0.0
    %v6271 = vmax.f32 %v5759, 0.0
    %v6272 = vmax.f32 %v5760, 0.0
    %v6273 = vmax.f32 %v5761, 0.0
    %v6274 = vmax.f32 %v5762, 0.0
    %v6275 = vmax.f32 %v5763, 0.0
    %v6276 = vmax.f32 %v5764, 0.0
    %v6277 = vmax.f32 %v5765, 0.0
    %v6278 = vmax.f32 %v5766, 0.0
    %v6279 = vmax.f32 %v5767, 0.0
    %v6280 = vmax.f32 %v5768, 0.0
    %v6281 = vmax.f32 %v5769, 0.0
    %v6282 = vmax.f32 %v5770, 0.0
    %v6283 = vmax.f32 %v5771, 0.0
    %v6284 = vmax.f32 %v5772, 0.0
    %v6285 = vmax.f32 %v5773, 0.0
    %v6286 = vmax.f32 %v5774, 0.0
    %v6287 = vmax.f32 %v5775, 0.0
    %v6288 = vmax.f32 %v5776, 0.0
    %v6289 = vmax.f32 %v5777, 0.0
    %v6290 = vmax.f32 %v5778, 0.0
    %v6291 = vmax.f32 %v5779, 0.0
    %v6292 = vmax.f32 %v5780, 0.0
    %v6293 = vmax.f32 %v5781, 0.0
    %v6294 = vmax.f32 %v5782, 0.0
    %v6295 = vmax.f32 %v5783, 0.0
    %v6296 = vmax.f32 %v5784, 0.0
    %v6297 = vmax.f32 %v5785, 0.0
    %v6298 = vmax.f32 %v5786, 0.0
    %v6299 = vmax.f32 %v5787, 0.0
    %v6300 = vmax.f32 %v5788, 0.0
    %v6301 = vmax.f32 %v5789, 0.0
    %v6302 = vmax.f32 %v5790, 0.0
    %v6303 = vmax.f32 %v5791, 0.0
    %v6304 = vmax.f32 %v5792, 0.0
    %v6305 = vmax.f32 %v5793, 0.0
    %v6306 = vmax.f32 %v5794, 0.0
    %v6307 = vmax.f32 %v5795, 0.0
    %v6308 = vmax.f32 %v5796, 0.0
    %v6309 = vmax.f32 %v5797, 0.0
    %v6310 = vmax.f32 %v5798, 0.0
    %v6311 = vmax.f32 %v5799, 0.0
    %v6312 = vmax.f32 %v5800, 0.0
    %v6313 = vmax.f32 %v5801, 0.0
    %v6314 = vmax.f32 %v5802, 0.0
    %v6315 = vmax.f32 %v5803, 0.0
    %v6316 = vmax.f32 %v5804, 0.0
    %v6317 = vmax.f32 %v5805, 0.0
    %v6318 = vmax.f32 %v5806, 0.0
    %v6319 = vmax.f32 %v5807, 0.0
    %v6320 = vmax.f32 %v5808, 0.0
    %v6321 = vmax.f32 %v5809, 0.0
    %v6322 = vmax.f32 %v5810, 0.0
    %v6323 = vmax.f32 %v5811, 0.0
    %v6324 = vmax.f32 %v5812, 0.0
    %v6325 = vmax.f32 %v5813, 0.0
    %v6326 = vmax.f32 %v5814, 0.0
    %v6327 = vmax.f32 %v5815, 0.0
    %v6328 = vmax.f32 %v5816, 0.0
    %v6329 = vmax.f32 %v5817, 0.0
    %v6330 = vmax.f32 %v5818, 0.0
    %v6331 = vmax.f32 %v5819, 0.0
    %v6332 = vmax.f32 %v5820, 0.0
    %v6333 = vmax.f32 %v5821, 0.0
    %v6334 = vmax.f32 %v5822, 0.0
    %v6335 = vmax.f32 %v5823, 0.0
    %v6336 = vmax.f32 %v5824, 0.0
    %v6337 = vmax.f32 %v5825, 0.0
    %v6338 = vmax.f32 %v5826, 0.0
    %v6339 = vmax.f32 %v5827, 0.0
    %v6340 = vmax.f32 %v5828, 0.0
    %v6341 = vmax.f32 %v5829, 0.0
    %v6342 = vmax.f32 %v5830, 0.0
    %v6343 = vmax.f32 %v5831, 0.0
    %v6344 = vmax.f32 %v5832, 0.0
    %v6345 = vmax.f32 %v5833, 0.0
    %v6346 = vmax.f32 %v5834, 0.0
    %v6347 = vmax.f32 %v5835, 0.0
    %v6348 = vmax.f32 %v5836, 0.0
    %v6349 = vmax.f32 %v5837, 0.0
    %v6350 = vmax.f32 %v5838, 0.0
    %v6351 = vmax.f32 %v5839, 0.0
    %v6352 = vmax.f32 %v5840, 0.0
    %v6353 = vmax.f32 %v5841, 0.0
    %v6354 = vmax.f32 %v5842, 0.0
    %v6355 = vmax.f32 %v5843, 0.0
    %v6356 = vmax.f32 %v5844, 0.0
    %v6357 = vmax.f32 %v5845, 0.0
    %v6358 = vmax.f32 %v5846, 0.0
    %v6359 = vmax.f32 %v5847, 0.0
    %v6360 = vmax.f32 %v5848, 0.0
    %v6361 = vmax.f32 %v5849, 0.0
    %v6362 = vmax.f32 %v5850, 0.0
    %v6363 = vmax.f32 %v5851, 0.0
    %v6364 = vmax.f32 %v5852, 0.0
    %v6365 = vmax.f32 %v5853, 0.0
    %v6366 = vmax.f32 %v5854, 0.0
    %v6367 = vmax.f32 %v5855, 0.0
    %v6368 = vmax.f32 %v5856, 0.0
    %v6369 = vmax.f32 %v5857, 0.0
    %v6370 = vmax.f32 %v5858, 0.0
    %v6371 = vmax.f32 %v5859, 0.0
    %v6372 = vmax.f32 %v5860, 0.0
    %v6373 = vmax.f32 %v5861, 0.0
    %v6374 = vmax.f32 %v5862, 0.0
    %v6375 = vmax.f32 %v5863, 0.0
    %v6376 = vmax.f32 %v5864, 0.0
    %v6377 = vmax.f32 %v5865, 0.0
    %v6378 = vmax.f32 %v5866, 0.0
    %v6379 = vmax.f32 %v5867, 0.0
    %v6380 = vmax.f32 %v5868, 0.0
    %v6381 = vmax.f32 %v5869, 0.0
    %v6382 = vmax.f32 %v5870, 0.0
    %v6383 = vmax.f32 %v5871, 0.0
    %v6384 = vmax.f32 %v5872, 0.0
    %v6385 = vld [vmem:[#allocation7] sm:$0xff]
    %v6386 = vld [vmem:[#allocation7 + $0x8] sm:$0xff]
    %v6387 = vld [vmem:[#allocation7 + $0x10] sm:$0xff]
    %v6388 = vld [vmem:[#allocation7 + $0x18] sm:$0xff]
    %v6389 = vld [vmem:[#allocation7 + $0x20] sm:$0xff]
    %v6390 = vld [vmem:[#allocation7 + $0x28] sm:$0xff]
    %v6391 = vld [vmem:[#allocation7 + $0x30] sm:$0xff]
    %v6392 = vld [vmem:[#allocation7 + $0x38] sm:$0xff]
    %v6393 = vld [vmem:[#allocation7 + $0x40] sm:$0xff]
    %v6394 = vld [vmem:[#allocation7 + $0x48] sm:$0xff]
    %v6395 = vld [vmem:[#allocation7 + $0x50] sm:$0xff]
    %v6396 = vld [vmem:[#allocation7 + $0x58] sm:$0xff]
    %v6397 = vld [vmem:[#allocation7 + $0x60] sm:$0xff]
    %v6398 = vld [vmem:[#allocation7 + $0x68] sm:$0xff]
    %v6399 = vld [vmem:[#allocation7 + $0x70] sm:$0xff]
    %v6400 = vld [vmem:[#allocation7 + $0x78] sm:$0xff]
    %v6401 = vld [vmem:[#allocation7 + $0x80] sm:$0xff]
    %v6402 = vld [vmem:[#allocation7 + $0x88] sm:$0xff]
    %v6403 = vld [vmem:[#allocation7 + $0x90] sm:$0xff]
    %v6404 = vld [vmem:[#allocation7 + $0x98] sm:$0xff]
    %v6405 = vld [vmem:[#allocation7 + $0xa0] sm:$0xff]
    %v6406 = vld [vmem:[#allocation7 + $0xa8] sm:$0xff]
    %v6407 = vld [vmem:[#allocation7 + $0xb0] sm:$0xff]
    %v6408 = vld [vmem:[#allocation7 + $0xb8] sm:$0xff]
    %v6409 = vld [vmem:[#allocation7 + $0xc0] sm:$0xff]
    %v6410 = vld [vmem:[#allocation7 + $0xc8] sm:$0xff]
    %v6411 = vld [vmem:[#allocation7 + $0xd0] sm:$0xff]
    %v6412 = vld [vmem:[#allocation7 + $0xd8] sm:$0xff]
    %v6413 = vld [vmem:[#allocation7 + $0xe0] sm:$0xff]
    %v6414 = vld [vmem:[#allocation7 + $0xe8] sm:$0xff]
    %v6415 = vld [vmem:[#allocation7 + $0xf0] sm:$0xff]
    %v6416 = vld [vmem:[#allocation7 + $0xf8] sm:$0xff]
    %v6417 = vld [vmem:[#allocation7 + $0x100] sm:$0xff]
    %v6418 = vld [vmem:[#allocation7 + $0x108] sm:$0xff]
    %v6419 = vld [vmem:[#allocation7 + $0x110] sm:$0xff]
    %v6420 = vld [vmem:[#allocation7 + $0x118] sm:$0xff]
    %v6421 = vld [vmem:[#allocation7 + $0x120] sm:$0xff]
    %v6422 = vld [vmem:[#allocation7 + $0x128] sm:$0xff]
    %v6423 = vld [vmem:[#allocation7 + $0x130] sm:$0xff]
    %v6424 = vld [vmem:[#allocation7 + $0x138] sm:$0xff]
    %v6425 = vld [vmem:[#allocation7 + $0x140] sm:$0xff]
    %v6426 = vld [vmem:[#allocation7 + $0x148] sm:$0xff]
    %v6427 = vld [vmem:[#allocation7 + $0x150] sm:$0xff]
    %v6428 = vld [vmem:[#allocation7 + $0x158] sm:$0xff]
    %v6429 = vld [vmem:[#allocation7 + $0x160] sm:$0xff]
    %v6430 = vld [vmem:[#allocation7 + $0x168] sm:$0xff]
    %v6431 = vld [vmem:[#allocation7 + $0x170] sm:$0xff]
    %v6432 = vld [vmem:[#allocation7 + $0x178] sm:$0xff]
    %v6433 = vld [vmem:[#allocation7 + $0x180] sm:$0xff]
    %v6434 = vld [vmem:[#allocation7 + $0x188] sm:$0xff]
    %v6435 = vld [vmem:[#allocation7 + $0x190] sm:$0xff]
    %v6436 = vld [vmem:[#allocation7 + $0x198] sm:$0xff]
    %v6437 = vld [vmem:[#allocation7 + $0x1a0] sm:$0xff]
    %v6438 = vld [vmem:[#allocation7 + $0x1a8] sm:$0xff]
    %v6439 = vld [vmem:[#allocation7 + $0x1b0] sm:$0xff]
    %v6440 = vld [vmem:[#allocation7 + $0x1b8] sm:$0xff]
    %v6441 = vld [vmem:[#allocation7 + $0x1c0] sm:$0xff]
    %v6442 = vld [vmem:[#allocation7 + $0x1c8] sm:$0xff]
    %v6443 = vld [vmem:[#allocation7 + $0x1d0] sm:$0xff]
    %v6444 = vld [vmem:[#allocation7 + $0x1d8] sm:$0xff]
    %v6445 = vld [vmem:[#allocation7 + $0x1e0] sm:$0xff]
    %v6446 = vld [vmem:[#allocation7 + $0x1e8] sm:$0xff]
    %v6447 = vld [vmem:[#allocation7 + $0x1f0] sm:$0xff]
    %v6448 = vld [vmem:[#allocation7 + $0x1f8] sm:$0xff]
    %v6449 = vld [vmem:[%s9] sm:$0x1]
    %v6451 = vlaneseq
    %v6452 = vshrl.u32 %v6451, 7
    %v6453 = vsub.s32 0, %v6452
    %v6454 = vrot.slane %v6449, %v6453
    %6456 = vmatprep.subr.mxu0 0.0
    %6457 = vmatpush1.msra.mxu0 %v6385
    %6458 = vmatprep.subr.mxu0 0.0
    %6459 = vmatpush1.msra.mxu0 %v6386
    %6460 = vmatprep.subr.mxu0 0.0
    %6461 = vmatpush1.msra.mxu0 %v6387
    %6462 = vmatprep.subr.mxu0 0.0
    %6463 = vmatpush1.msra.mxu0 %v6388
    %6464 = vmatprep.subr.mxu0 0.0
    %6465 = vmatpush1.msra.mxu0 %v6389
    %6466 = vmatprep.subr.mxu0 0.0
    %6467 = vmatpush1.msra.mxu0 %v6390
    %6468 = vmatprep.subr.mxu0 0.0
    %6469 = vmatpush1.msra.mxu0 %v6391
    %6470 = vmatprep.subr.mxu0 0.0
    %6471 = vmatpush1.msra.mxu0 %v6392
    %6472 = vmatprep.subr.mxu0 0.0
    %6473 = vmatpush1.msra.mxu0 %v6393
    %6474 = vmatprep.subr.mxu0 0.0
    %6475 = vmatpush1.msra.mxu0 %v6394
    %6476 = vmatprep.subr.mxu0 0.0
    %6477 = vmatpush1.msra.mxu0 %v6395
    %6478 = vmatprep.subr.mxu0 0.0
    %6479 = vmatpush1.msra.mxu0 %v6396
    %6480 = vmatprep.subr.mxu0 0.0
    %6481 = vmatpush1.msra.mxu0 %v6397
    %6482 = vmatprep.subr.mxu0 0.0
    %6483 = vmatpush1.msra.mxu0 %v6398
    %6484 = vmatprep.subr.mxu0 0.0
    %6485 = vmatpush1.msra.mxu0 %v6399
    %6486 = vmatprep.subr.mxu0 0.0
    %6487 = vmatpush1.msra.mxu0 %v6400
    %6488 = vmatprep.subr.mxu0 0.0
    %6489 = vmatpush1.msra.mxu0 %v6401
    %6490 = vmatprep.subr.mxu0 0.0
    %6491 = vmatpush1.msra.mxu0 %v6402
    %6492 = vmatprep.subr.mxu0 0.0
    %6493 = vmatpush1.msra.mxu0 %v6403
    %6494 = vmatprep.subr.mxu0 0.0
    %6495 = vmatpush1.msra.mxu0 %v6404
    %6496 = vmatprep.subr.mxu0 0.0
    %6497 = vmatpush1.msra.mxu0 %v6405
    %6498 = vmatprep.subr.mxu0 0.0
    %6499 = vmatpush1.msra.mxu0 %v6406
    %6500 = vmatprep.subr.mxu0 0.0
    %6501 = vmatpush1.msra.mxu0 %v6407
    %6502 = vmatprep.subr.mxu0 0.0
    %6503 = vmatpush1.msra.mxu0 %v6408
    %6504 = vmatprep.subr.mxu0 0.0
    %6505 = vmatpush1.msra.mxu0 %v6409
    %6506 = vmatprep.subr.mxu0 0.0
    %6507 = vmatpush1.msra.mxu0 %v6410
    %6508 = vmatprep.subr.mxu0 0.0
    %6509 = vmatpush1.msra.mxu0 %v6411
    %6510 = vmatprep.subr.mxu0 0.0
    %6511 = vmatpush1.msra.mxu0 %v6412
    %6512 = vmatprep.subr.mxu0 0.0
    %6513 = vmatpush1.msra.mxu0 %v6413
    %6514 = vmatprep.subr.mxu0 0.0
    %6515 = vmatpush1.msra.mxu0 %v6414
    %6516 = vmatprep.subr.mxu0 0.0
    %6517 = vmatpush1.msra.mxu0 %v6415
    %6518 = vmatprep.subr.mxu0 0.0
    %6519 = vmatpush1.msra.mxu0 %v6416
    %6520 = vmatprep.mubr.f32.mxu0 %v5874
    %6521 = vmatmul.mubr.f32.gmra.mrb[0].mxu0 %v5873
    %v6522 = vpop.f32.mrb[0].mxu0
    %v6523 = vadd.f32 %v6454, %v6522
    %v6524 = vpop.f32.mrb[0].mxu0
    %6525 = vmatprep.mubr.f32.mxu0 %v5878
    %6526 = vmatmul.mubr.f32.gmra.mrb[0].mxu0 %v5877
    %v6527 = vpop.f32.mrb[0].mxu0
    %v6528 = vadd.f32 %v6454, %v6527
    %v6529 = vpop.f32.mrb[0].mxu0
    %6530 = vmatprep.mubr.f32.mxu0 %v5882
    %6531 = vmatmul.mubr.f32.gmra.mrb[0].mxu0 %v5881
    %v6532 = vpop.f32.mrb[0].mxu0
    %v6533 = vadd.f32 %v6454, %v6532
    %v6534 = vpop.f32.mrb[0].mxu0
    %6535 = vmatprep.mubr.f32.mxu0 %v5886
    %6536 = vmatmul.mubr.f32.gmra.mrb[0].mxu0 %v5885
    %v6537 = vpop.f32.mrb[0].mxu0
    %v6538 = vadd.f32 %v6454, %v6537
    %v6539 = vpop.f32.mrb[0].mxu0
    %6540 = vmatprep.mubr.f32.mxu0 %v5890
    %6541 = vmatmul.mubr.f32.gmra.mrb[0].mxu0 %v5889
    %v6542 = vpop.f32.mrb[0].mxu0
    %v6543 = vadd.f32 %v6454, %v6542
    %v6544 = vpop.f32.mrb[0].mxu0
    %6545 = vmatprep.mubr.f32.mxu0 %v5894
    %6546 = vmatmul.mubr.f32.gmra.mrb[0].mxu0 %v5893
    %v6547 = vpop.f32.mrb[0].mxu0
    %v6548 = vadd.f32 %v6454, %v6547
    %v6549 = vpop.f32.mrb[0].mxu0
    %6550 = vmatprep.mubr.f32.mxu0 %v5898
    %6551 = vmatmul.mubr.f32.gmra.mrb[0].mxu0 %v5897
    %v6552 = vpop.f32.mrb[0].mxu0
    %v6553 = vadd.f32 %v6454, %v6552
    %v6554 = vpop.f32.mrb[0].mxu0
    %6555 = vmatprep.mubr.f32.mxu0 %v5902
    %6556 = vmatmul.mubr.f32.gmra.mrb[0].mxu0 %v5901
    %v6557 = vpop.f32.mrb[0].mxu0
    %v6558 = vadd.f32 %v6454, %v6557
    %v6559 = vpop.f32.mrb[0].mxu0
    %6560 = vmatprep.mubr.f32.mxu0 %v5906
    %6561 = vmatmul.mubr.f32.gmra.mrb[0].mxu0 %v5905
    %v6562 = vpop.f32.mrb[0].mxu0
    %v6563 = vadd.f32 %v6454, %v6562
    %v6564 = vpop.f32.mrb[0].mxu0
    %6565 = vmatprep.mubr.f32.mxu0 %v5910
    %6566 = vmatmul.mubr.f32.gmra.mrb[0].mxu0 %v5909
    %v6567 = vpop.f32.mrb[0].mxu0
    %v6568 = vadd.f32 %v6454, %v6567
    %v6569 = vpop.f32.mrb[0].mxu0
    %6570 = vmatprep.mubr.f32.mxu0 %v5914
    %6571 = vmatmul.mubr.f32.gmra.mrb[0].mxu0 %v5913
    %v6572 = vpop.f32.mrb[0].mxu0
    %v6573 = vadd.f32 %v6454, %v6572
    %v6574 = vpop.f32.mrb[0].mxu0
    %6575 = vmatprep.mubr.f32.mxu0 %v5918
    %6576 = vmatmul.mubr.f32.gmra.mrb[0].mxu0 %v5917
    %v6577 = vpop.f32.mrb[0].mxu0
    %v6578 = vadd.f32 %v6454, %v6577
    %v6579 = vpop.f32.mrb[0].mxu0
    %6580 = vmatprep.mubr.f32.mxu0 %v5922
    %6581 = vmatmul.mubr.f32.gmra.mrb[0].mxu0 %v5921
    %v6582 = vpop.f32.mrb[0].mxu0
    %v6583 = vadd.f32 %v6454, %v6582
    %v6584 = vpop.f32.mrb[0].mxu0
    %6585 = vmatprep.mubr.f32.mxu0 %v5926
    %6586 = vmatmul.mubr.f32.gmra.mrb[0].mxu0 %v5925
    %v6587 = vpop.f32.mrb[0].mxu0
    %v6588 = vadd.f32 %v6454, %v6587
    %v6589 = vpop.f32.mrb[0].mxu0
    %6590 = vmatprep.mubr.f32.mxu0 %v5930
    %6591 = vmatmul.mubr.f32.gmra.mrb[0].mxu0 %v5929
    %v6592 = vpop.f32.mrb[0].mxu0
    %v6593 = vadd.f32 %v6454, %v6592
    %v6594 = vpop.f32.mrb[0].mxu0
    %6595 = vmatprep.mubr.f32.mxu0 %v5934
    %6596 = vmatmul.mubr.f32.gmra.mrb[0].mxu0 %v5933
    %v6597 = vpop.f32.mrb[0].mxu0
    %v6598 = vadd.f32 %v6454, %v6597
    %v6599 = vpop.f32.mrb[0].mxu0
    %6600 = vmatprep.mubr.f32.mxu0 %v5938
    %6601 = vmatmul.mubr.f32.gmra.mrb[0].mxu0 %v5937
    %v6602 = vpop.f32.mrb[0].mxu0
    %v6603 = vadd.f32 %v6454, %v6602
    %v6604 = vpop.f32.mrb[0].mxu0
    %6605 = vmatprep.mubr.f32.mxu0 %v5942
    %6606 = vmatmul.mubr.f32.gmra.mrb[0].mxu0 %v5941
    %v6607 = vpop.f32.mrb[0].mxu0
    %v6608 = vadd.f32 %v6454, %v6607
    %v6609 = vpop.f32.mrb[0].mxu0
    %6610 = vmatprep.mubr.f32.mxu0 %v5946
    %6611 = vmatmul.mubr.f32.gmra.mrb[0].mxu0 %v5945
    %v6612 = vpop.f32.mrb[0].mxu0
    %v6613 = vadd.f32 %v6454, %v6612
    %v6614 = vpop.f32.mrb[0].mxu0
    %6615 = vmatprep.mubr.f32.mxu0 %v5950
    %6616 = vmatmul.mubr.f32.gmra.mrb[0].mxu0 %v5949
    %v6617 = vpop.f32.mrb[0].mxu0
    %v6618 = vadd.f32 %v6454, %v6617
    %v6619 = vpop.f32.mrb[0].mxu0
    %6620 = vmatprep.mubr.f32.mxu0 %v5954
    %6621 = vmatmul.mubr.f32.gmra.mrb[0].mxu0 %v5953
    %v6622 = vpop.f32.mrb[0].mxu0
    %v6623 = vadd.f32 %v6454, %v6622
    %v6624 = vpop.f32.mrb[0].mxu0
    %6625 = vmatprep.mubr.f32.mxu0 %v5958
    %6626 = vmatmul.mubr.f32.gmra.mrb[0].mxu0 %v5957
    %v6627 = vpop.f32.mrb[0].mxu0
    %v6628 = vadd.f32 %v6454, %v6627
    %v6629 = vpop.f32.mrb[0].mxu0
    %6630 = vmatprep.mubr.f32.mxu0 %v5962
    %6631 = vmatmul.mubr.f32.gmra.mrb[0].mxu0 %v5961
    %v6632 = vpop.f32.mrb[0].mxu0
    %v6633 = vadd.f32 %v6454, %v6632
    %v6634 = vpop.f32.mrb[0].mxu0
    %6635 = vmatprep.mubr.f32.mxu0 %v5966
    %6636 = vmatmul.mubr.f32.gmra.mrb[0].mxu0 %v5965
    %v6637 = vpop.f32.mrb[0].mxu0
    %v6638 = vadd.f32 %v6454, %v6637
    %v6639 = vpop.f32.mrb[0].mxu0
    %6640 = vmatprep.mubr.f32.mxu0 %v5970
    %6641 = vmatmul.mubr.f32.gmra.mrb[0].mxu0 %v5969
    %v6642 = vpop.f32.mrb[0].mxu0
    %v6643 = vadd.f32 %v6454, %v6642
    %v6644 = vpop.f32.mrb[0].mxu0
    %6645 = vmatprep.mubr.f32.mxu0 %v5974
    %6646 = vmatmul.mubr.f32.gmra.mrb[0].mxu0 %v5973
    %v6647 = vpop.f32.mrb[0].mxu0
    %v6648 = vadd.f32 %v6454, %v6647
    %v6649 = vpop.f32.mrb[0].mxu0
    %6650 = vmatprep.mubr.f32.mxu0 %v5978
    %6651 = vmatmul.mubr.f32.gmra.mrb[0].mxu0 %v5977
    %v6652 = vpop.f32.mrb[0].mxu0
    %v6653 = vadd.f32 %v6454, %v6652
    %v6654 = vpop.f32.mrb[0].mxu0
    %6655 = vmatprep.mubr.f32.mxu0 %v5982
    %6656 = vmatmul.mubr.f32.gmra.mrb[0].mxu0 %v5981
    %v6657 = vpop.f32.mrb[0].mxu0
    %v6658 = vadd.f32 %v6454, %v6657
    %v6659 = vpop.f32.mrb[0].mxu0
    %6660 = vmatprep.mubr.f32.mxu0 %v5986
    %6661 = vmatmul.mubr.f32.gmra.mrb[0].mxu0 %v5985
    %v6662 = vpop.f32.mrb[0].mxu0
    %v6663 = vadd.f32 %v6454, %v6662
    %v6664 = vpop.f32.mrb[0].mxu0
    %6665 = vmatprep.mubr.f32.mxu0 %v5990
    %6666 = vmatmul.mubr.f32.gmra.mrb[0].mxu0 %v5989
    %v6667 = vpop.f32.mrb[0].mxu0
    %v6668 = vadd.f32 %v6454, %v6667
    %v6669 = vpop.f32.mrb[0].mxu0
    %6670 = vmatprep.mubr.f32.mxu0 %v5994
    %6671 = vmatmul.mubr.f32.gmra.mrb[0].mxu0 %v5993
    %v6672 = vpop.f32.mrb[0].mxu0
    %v6673 = vadd.f32 %v6454, %v6672
    %v6674 = vpop.f32.mrb[0].mxu0
    %6675 = vmatprep.mubr.f32.mxu0 %v5998
    %6676 = vmatmul.mubr.f32.gmra.mrb[0].mxu0 %v5997
    %v6677 = vpop.f32.mrb[0].mxu0
    %v6678 = vadd.f32 %v6454, %v6677
    %v6679 = vpop.f32.mrb[0].mxu0
    %6680 = vmatprep.mubr.f32.mxu0 %v6002
    %6681 = vmatmul.mubr.f32.gmra.mrb[0].mxu0 %v6001
    %v6682 = vpop.f32.mrb[0].mxu0
    %v6683 = vadd.f32 %v6454, %v6682
    %v6684 = vpop.f32.mrb[0].mxu0
    %6685 = vmatprep.mubr.f32.mxu0 %v6006
    %6686 = vmatmul.mubr.f32.gmra.mrb[0].mxu0 %v6005
    %v6687 = vpop.f32.mrb[0].mxu0
    %v6688 = vadd.f32 %v6454, %v6687
    %v6689 = vpop.f32.mrb[0].mxu0
    %6690 = vmatprep.mubr.f32.mxu0 %v6010
    %6691 = vmatmul.mubr.f32.gmra.mrb[0].mxu0 %v6009
    %v6692 = vpop.f32.mrb[0].mxu0
    %v6693 = vadd.f32 %v6454, %v6692
    %v6694 = vpop.f32.mrb[0].mxu0
    %6695 = vmatprep.mubr.f32.mxu0 %v6014
    %6696 = vmatmul.mubr.f32.gmra.mrb[0].mxu0 %v6013
    %v6697 = vpop.f32.mrb[0].mxu0
    %v6698 = vadd.f32 %v6454, %v6697
    %v6699 = vpop.f32.mrb[0].mxu0
    %6700 = vmatprep.mubr.f32.mxu0 %v6018
    %6701 = vmatmul.mubr.f32.gmra.mrb[0].mxu0 %v6017
    %v6702 = vpop.f32.mrb[0].mxu0
    %v6703 = vadd.f32 %v6454, %v6702
    %v6704 = vpop.f32.mrb[0].mxu0
    %6705 = vmatprep.mubr.f32.mxu0 %v6022
    %6706 = vmatmul.mubr.f32.gmra.mrb[0].mxu0 %v6021
    %v6707 = vpop.f32.mrb[0].mxu0
    %v6708 = vadd.f32 %v6454, %v6707
    %v6709 = vpop.f32.mrb[0].mxu0
    %6710 = vmatprep.mubr.f32.mxu0 %v6026
    %6711 = vmatmul.mubr.f32.gmra.mrb[0].mxu0 %v6025
    %v6712 = vpop.f32.mrb[0].mxu0
    %v6713 = vadd.f32 %v6454, %v6712
    %v6714 = vpop.f32.mrb[0].mxu0
    %6715 = vmatprep.mubr.f32.mxu0 %v6030
    %6716 = vmatmul.mubr.f32.gmra.mrb[0].mxu0 %v6029
    %v6717 = vpop.f32.mrb[0].mxu0
    %v6718 = vadd.f32 %v6454, %v6717
    %v6719 = vpop.f32.mrb[0].mxu0
    %6720 = vmatprep.mubr.f32.mxu0 %v6034
    %6721 = vmatmul.mubr.f32.gmra.mrb[0].mxu0 %v6033
    %v6722 = vpop.f32.mrb[0].mxu0
    %v6723 = vadd.f32 %v6454, %v6722
    %v6724 = vpop.f32.mrb[0].mxu0
    %6725 = vmatprep.mubr.f32.mxu0 %v6038
    %6726 = vmatmul.mubr.f32.gmra.mrb[0].mxu0 %v6037
    %v6727 = vpop.f32.mrb[0].mxu0
    %v6728 = vadd.f32 %v6454, %v6727
    %v6729 = vpop.f32.mrb[0].mxu0
    %6730 = vmatprep.mubr.f32.mxu0 %v6042
    %6731 = vmatmul.mubr.f32.gmra.mrb[0].mxu0 %v6041
    %v6732 = vpop.f32.mrb[0].mxu0
    %v6733 = vadd.f32 %v6454, %v6732
    %v6734 = vpop.f32.mrb[0].mxu0
    %6735 = vmatprep.mubr.f32.mxu0 %v6046
    %6736 = vmatmul.mubr.f32.gmra.mrb[0].mxu0 %v6045
    %v6737 = vpop.f32.mrb[0].mxu0
    %v6738 = vadd.f32 %v6454, %v6737
    %v6739 = vpop.f32.mrb[0].mxu0
    %6740 = vmatprep.mubr.f32.mxu0 %v6050
    %6741 = vmatmul.mubr.f32.gmra.mrb[0].mxu0 %v6049
    %v6742 = vpop.f32.mrb[0].mxu0
    %v6743 = vadd.f32 %v6454, %v6742
    %v6744 = vpop.f32.mrb[0].mxu0
    %6745 = vmatprep.mubr.f32.mxu0 %v6054
    %6746 = vmatmul.mubr.f32.gmra.mrb[0].mxu0 %v6053
    %v6747 = vpop.f32.mrb[0].mxu0
    %v6748 = vadd.f32 %v6454, %v6747
    %v6749 = vpop.f32.mrb[0].mxu0
    %6750 = vmatprep.mubr.f32.mxu0 %v6058
    %6751 = vmatmul.mubr.f32.gmra.mrb[0].mxu0 %v6057
    %v6752 = vpop.f32.mrb[0].mxu0
    %v6753 = vadd.f32 %v6454, %v6752
    %v6754 = vpop.f32.mrb[0].mxu0
    %6755 = vmatprep.mubr.f32.mxu0 %v6062
    %6756 = vmatmul.mubr.f32.gmra.mrb[0].mxu0 %v6061
    %v6757 = vpop.f32.mrb[0].mxu0
    %v6758 = vadd.f32 %v6454, %v6757
    %v6759 = vpop.f32.mrb[0].mxu0
    %6760 = vmatprep.mubr.f32.mxu0 %v6066
    %6761 = vmatmul.mubr.f32.gmra.mrb[0].mxu0 %v6065
    %v6762 = vpop.f32.mrb[0].mxu0
    %v6763 = vadd.f32 %v6454, %v6762
    %v6764 = vpop.f32.mrb[0].mxu0
    %6765 = vmatprep.mubr.f32.mxu0 %v6070
    %6766 = vmatmul.mubr.f32.gmra.mrb[0].mxu0 %v6069
    %v6767 = vpop.f32.mrb[0].mxu0
    %v6768 = vadd.f32 %v6454, %v6767
    %v6769 = vpop.f32.mrb[0].mxu0
    %6770 = vmatprep.mubr.f32.mxu0 %v6074
    %6771 = vmatmul.mubr.f32.gmra.mrb[0].mxu0 %v6073
    %v6772 = vpop.f32.mrb[0].mxu0
    %v6773 = vadd.f32 %v6454, %v6772
    %v6774 = vpop.f32.mrb[0].mxu0
    %6775 = vmatprep.mubr.f32.mxu0 %v6078
    %6776 = vmatmul.mubr.f32.gmra.mrb[0].mxu0 %v6077
    %v6777 = vpop.f32.mrb[0].mxu0
    %v6778 = vadd.f32 %v6454, %v6777
    %v6779 = vpop.f32.mrb[0].mxu0
    %6780 = vmatprep.mubr.f32.mxu0 %v6082
    %6781 = vmatmul.mubr.f32.gmra.mrb[0].mxu0 %v6081
    %v6782 = vpop.f32.mrb[0].mxu0
    %v6783 = vadd.f32 %v6454, %v6782
    %v6784 = vpop.f32.mrb[0].mxu0
    %6785 = vmatprep.mubr.f32.mxu0 %v6086
    %6786 = vmatmul.mubr.f32.gmra.mrb[0].mxu0 %v6085
    %v6787 = vpop.f32.mrb[0].mxu0
    %v6788 = vadd.f32 %v6454, %v6787
    %v6789 = vpop.f32.mrb[0].mxu0
    %6790 = vmatprep.mubr.f32.mxu0 %v6090
    %6791 = vmatmul.mubr.f32.gmra.mrb[0].mxu0 %v6089
    %v6792 = vpop.f32.mrb[0].mxu0
    %v6793 = vadd.f32 %v6454, %v6792
    %v6794 = vpop.f32.mrb[0].mxu0
    %6795 = vmatprep.mubr.f32.mxu0 %v6094
    %6796 = vmatmul.mubr.f32.gmra.mrb[0].mxu0 %v6093
    %v6797 = vpop.f32.mrb[0].mxu0
    %v6798 = vadd.f32 %v6454, %v6797
    %v6799 = vpop.f32.mrb[0].mxu0
    %6800 = vmatprep.mubr.f32.mxu0 %v6098
    %6801 = vmatmul.mubr.f32.gmra.mrb[0].mxu0 %v6097
    %v6802 = vpop.f32.mrb[0].mxu0
    %v6803 = vadd.f32 %v6454, %v6802
    %v6804 = vpop.f32.mrb[0].mxu0
    %6805 = vmatprep.mubr.f32.mxu0 %v6102
    %6806 = vmatmul.mubr.f32.gmra.mrb[0].mxu0 %v6101
    %v6807 = vpop.f32.mrb[0].mxu0
    %v6808 = vadd.f32 %v6454, %v6807
    %v6809 = vpop.f32.mrb[0].mxu0
    %6810 = vmatprep.mubr.f32.mxu0 %v6106
    %6811 = vmatmul.mubr.f32.gmra.mrb[0].mxu0 %v6105
    %v6812 = vpop.f32.mrb[0].mxu0
    %v6813 = vadd.f32 %v6454, %v6812
    %v6814 = vpop.f32.mrb[0].mxu0
    %6815 = vmatprep.mubr.f32.mxu0 %v6110
    %6816 = vmatmul.mubr.f32.gmra.mrb[0].mxu0 %v6109
    %v6817 = vpop.f32.mrb[0].mxu0
    %v6818 = vadd.f32 %v6454, %v6817
    %v6819 = vpop.f32.mrb[0].mxu0
    %6820 = vmatprep.mubr.f32.mxu0 %v6114
    %6821 = vmatmul.mubr.f32.gmra.mrb[0].mxu0 %v6113
    %v6822 = vpop.f32.mrb[0].mxu0
    %v6823 = vadd.f32 %v6454, %v6822
    %v6824 = vpop.f32.mrb[0].mxu0
    %6825 = vmatprep.mubr.f32.mxu0 %v6118
    %6826 = vmatmul.mubr.f32.gmra.mrb[0].mxu0 %v6117
    %v6827 = vpop.f32.mrb[0].mxu0
    %v6828 = vadd.f32 %v6454, %v6827
    %v6829 = vpop.f32.mrb[0].mxu0
    %6830 = vmatprep.mubr.f32.mxu0 %v6122
    %6831 = vmatmul.mubr.f32.gmra.mrb[0].mxu0 %v6121
    %v6832 = vpop.f32.mrb[0].mxu0
    %v6833 = vadd.f32 %v6454, %v6832
    %v6834 = vpop.f32.mrb[0].mxu0
    %6835 = vmatprep.mubr.f32.mxu0 %v6126
    %6836 = vmatmul.mubr.f32.gmra.mrb[0].mxu0 %v6125
    %v6837 = vpop.f32.mrb[0].mxu0
    %v6838 = vadd.f32 %v6454, %v6837
    %v6839 = vpop.f32.mrb[0].mxu0
    %6840 = vmatprep.mubr.f32.mxu0 %v6130
    %6841 = vmatmul.mubr.f32.gmra.mrb[0].mxu0 %v6129
    %v6842 = vpop.f32.mrb[0].mxu0
    %v6843 = vadd.f32 %v6454, %v6842
    %v6844 = vpop.f32.mrb[0].mxu0
    %6845 = vmatprep.mubr.f32.mxu0 %v6134
    %6846 = vmatmul.mubr.f32.gmra.mrb[0].mxu0 %v6133
    %v6847 = vpop.f32.mrb[0].mxu0
    %v6848 = vadd.f32 %v6454, %v6847
    %v6849 = vpop.f32.mrb[0].mxu0
    %6850 = vmatprep.mubr.f32.mxu0 %v6138
    %6851 = vmatmul.mubr.f32.gmra.mrb[0].mxu0 %v6137
    %v6852 = vpop.f32.mrb[0].mxu0
    %v6853 = vadd.f32 %v6454, %v6852
    %v6854 = vpop.f32.mrb[0].mxu0
    %6855 = vmatprep.mubr.f32.mxu0 %v6142
    %6856 = vmatmul.mubr.f32.gmra.mrb[0].mxu0 %v6141
    %v6857 = vpop.f32.mrb[0].mxu0
    %v6858 = vadd.f32 %v6454, %v6857
    %v6859 = vpop.f32.mrb[0].mxu0
    %6860 = vmatprep.mubr.f32.mxu0 %v6146
    %6861 = vmatmul.mubr.f32.gmra.mrb[0].mxu0 %v6145
    %v6862 = vpop.f32.mrb[0].mxu0
    %v6863 = vadd.f32 %v6454, %v6862
    %v6864 = vpop.f32.mrb[0].mxu0
    %6865 = vmatprep.mubr.f32.mxu0 %v6150
    %6866 = vmatmul.mubr.f32.gmra.mrb[0].mxu0 %v6149
    %v6867 = vpop.f32.mrb[0].mxu0
    %v6868 = vadd.f32 %v6454, %v6867
    %v6869 = vpop.f32.mrb[0].mxu0
    %6870 = vmatprep.mubr.f32.mxu0 %v6154
    %6871 = vmatmul.mubr.f32.gmra.mrb[0].mxu0 %v6153
    %v6872 = vpop.f32.mrb[0].mxu0
    %v6873 = vadd.f32 %v6454, %v6872
    %v6874 = vpop.f32.mrb[0].mxu0
    %6875 = vmatprep.mubr.f32.mxu0 %v6158
    %6876 = vmatmul.mubr.f32.gmra.mrb[0].mxu0 %v6157
    %v6877 = vpop.f32.mrb[0].mxu0
    %v6878 = vadd.f32 %v6454, %v6877
    %v6879 = vpop.f32.mrb[0].mxu0
    %6880 = vmatprep.mubr.f32.mxu0 %v6162
    %6881 = vmatmul.mubr.f32.gmra.mrb[0].mxu0 %v6161
    %v6882 = vpop.f32.mrb[0].mxu0
    %v6883 = vadd.f32 %v6454, %v6882
    %v6884 = vpop.f32.mrb[0].mxu0
    %6885 = vmatprep.mubr.f32.mxu0 %v6166
    %6886 = vmatmul.mubr.f32.gmra.mrb[0].mxu0 %v6165
    %v6887 = vpop.f32.mrb[0].mxu0
    %v6888 = vadd.f32 %v6454, %v6887
    %v6889 = vpop.f32.mrb[0].mxu0
    %6890 = vmatprep.mubr.f32.mxu0 %v6170
    %6891 = vmatmul.mubr.f32.gmra.mrb[0].mxu0 %v6169
    %v6892 = vpop.f32.mrb[0].mxu0
    %v6893 = vadd.f32 %v6454, %v6892
    %v6894 = vpop.f32.mrb[0].mxu0
    %6895 = vmatprep.mubr.f32.mxu0 %v6174
    %6896 = vmatmul.mubr.f32.gmra.mrb[0].mxu0 %v6173
    %v6897 = vpop.f32.mrb[0].mxu0
    %v6898 = vadd.f32 %v6454, %v6897
    %v6899 = vpop.f32.mrb[0].mxu0
    %6900 = vmatprep.mubr.f32.mxu0 %v6178
    %6901 = vmatmul.mubr.f32.gmra.mrb[0].mxu0 %v6177
    %v6902 = vpop.f32.mrb[0].mxu0
    %v6903 = vadd.f32 %v6454, %v6902
    %v6904 = vpop.f32.mrb[0].mxu0
    %6905 = vmatprep.mubr.f32.mxu0 %v6182
    %6906 = vmatmul.mubr.f32.gmra.mrb[0].mxu0 %v6181
    %v6907 = vpop.f32.mrb[0].mxu0
    %v6908 = vadd.f32 %v6454, %v6907
    %v6909 = vpop.f32.mrb[0].mxu0
    %6910 = vmatprep.mubr.f32.mxu0 %v6186
    %6911 = vmatmul.mubr.f32.gmra.mrb[0].mxu0 %v6185
    %v6912 = vpop.f32.mrb[0].mxu0
    %v6913 = vadd.f32 %v6454, %v6912
    %v6914 = vpop.f32.mrb[0].mxu0
    %6915 = vmatprep.mubr.f32.mxu0 %v6190
    %6916 = vmatmul.mubr.f32.gmra.mrb[0].mxu0 %v6189
    %v6917 = vpop.f32.mrb[0].mxu0
    %v6918 = vadd.f32 %v6454, %v6917
    %v6919 = vpop.f32.mrb[0].mxu0
    %6920 = vmatprep.mubr.f32.mxu0 %v6194
    %6921 = vmatmul.mubr.f32.gmra.mrb[0].mxu0 %v6193
    %v6922 = vpop.f32.mrb[0].mxu0
    %v6923 = vadd.f32 %v6454, %v6922
    %v6924 = vpop.f32.mrb[0].mxu0
    %6925 = vmatprep.mubr.f32.mxu0 %v6198
    %6926 = vmatmul.mubr.f32.gmra.mrb[0].mxu0 %v6197
    %v6927 = vpop.f32.mrb[0].mxu0
    %v6928 = vadd.f32 %v6454, %v6927
    %v6929 = vpop.f32.mrb[0].mxu0
    %6930 = vmatprep.mubr.f32.mxu0 %v6202
    %6931 = vmatmul.mubr.f32.gmra.mrb[0].mxu0 %v6201
    %v6932 = vpop.f32.mrb[0].mxu0
    %v6933 = vadd.f32 %v6454, %v6932
    %v6934 = vpop.f32.mrb[0].mxu0
    %6935 = vmatprep.mubr.f32.mxu0 %v6206
    %6936 = vmatmul.mubr.f32.gmra.mrb[0].mxu0 %v6205
    %v6937 = vpop.f32.mrb[0].mxu0
    %v6938 = vadd.f32 %v6454, %v6937
    %v6939 = vpop.f32.mrb[0].mxu0
    %6940 = vmatprep.mubr.f32.mxu0 %v6210
    %6941 = vmatmul.mubr.f32.gmra.mrb[0].mxu0 %v6209
    %v6942 = vpop.f32.mrb[0].mxu0
    %v6943 = vadd.f32 %v6454, %v6942
    %v6944 = vpop.f32.mrb[0].mxu0
    %6945 = vmatprep.mubr.f32.mxu0 %v6214
    %6946 = vmatmul.mubr.f32.gmra.mrb[0].mxu0 %v6213
    %v6947 = vpop.f32.mrb[0].mxu0
    %v6948 = vadd.f32 %v6454, %v6947
    %v6949 = vpop.f32.mrb[0].mxu0
    %6950 = vmatprep.mubr.f32.mxu0 %v6218
    %6951 = vmatmul.mubr.f32.gmra.mrb[0].mxu0 %v6217
    %v6952 = vpop.f32.mrb[0].mxu0
    %v6953 = vadd.f32 %v6454, %v6952
    %v6954 = vpop.f32.mrb[0].mxu0
    %6955 = vmatprep.mubr.f32.mxu0 %v6222
    %6956 = vmatmul.mubr.f32.gmra.mrb[0].mxu0 %v6221
    %v6957 = vpop.f32.mrb[0].mxu0
    %v6958 = vadd.f32 %v6454, %v6957
    %v6959 = vpop.f32.mrb[0].mxu0
    %6960 = vmatprep.mubr.f32.mxu0 %v6226
    %6961 = vmatmul.mubr.f32.gmra.mrb[0].mxu0 %v6225
    %v6962 = vpop.f32.mrb[0].mxu0
    %v6963 = vadd.f32 %v6454, %v6962
    %v6964 = vpop.f32.mrb[0].mxu0
    %6965 = vmatprep.mubr.f32.mxu0 %v6230
    %6966 = vmatmul.mubr.f32.gmra.mrb[0].mxu0 %v6229
    %v6967 = vpop.f32.mrb[0].mxu0
    %v6968 = vadd.f32 %v6454, %v6967
    %v6969 = vpop.f32.mrb[0].mxu0
    %6970 = vmatprep.mubr.f32.mxu0 %v6234
    %6971 = vmatmul.mubr.f32.gmra.mrb[0].mxu0 %v6233
    %v6972 = vpop.f32.mrb[0].mxu0
    %v6973 = vadd.f32 %v6454, %v6972
    %v6974 = vpop.f32.mrb[0].mxu0
    %6975 = vmatprep.mubr.f32.mxu0 %v6238
    %6976 = vmatmul.mubr.f32.gmra.mrb[0].mxu0 %v6237
    %v6977 = vpop.f32.mrb[0].mxu0
    %v6978 = vadd.f32 %v6454, %v6977
    %v6979 = vpop.f32.mrb[0].mxu0
    %6980 = vmatprep.mubr.f32.mxu0 %v6242
    %6981 = vmatmul.mubr.f32.gmra.mrb[0].mxu0 %v6241
    %v6982 = vpop.f32.mrb[0].mxu0
    %v6983 = vadd.f32 %v6454, %v6982
    %v6984 = vpop.f32.mrb[0].mxu0
    %6985 = vmatprep.mubr.f32.mxu0 %v6246
    %6986 = vmatmul.mubr.f32.gmra.mrb[0].mxu0 %v6245
    %v6987 = vpop.f32.mrb[0].mxu0
    %v6988 = vadd.f32 %v6454, %v6987
    %v6989 = vpop.f32.mrb[0].mxu0
    %6990 = vmatprep.mubr.f32.mxu0 %v6250
    %6991 = vmatmul.mubr.f32.gmra.mrb[0].mxu0 %v6249
    %v6992 = vpop.f32.mrb[0].mxu0
    %v6993 = vadd.f32 %v6454, %v6992
    %v6994 = vpop.f32.mrb[0].mxu0
    %6995 = vmatprep.mubr.f32.mxu0 %v6254
    %6996 = vmatmul.mubr.f32.gmra.mrb[0].mxu0 %v6253
    %v6997 = vpop.f32.mrb[0].mxu0
    %v6998 = vadd.f32 %v6454, %v6997
    %v6999 = vpop.f32.mrb[0].mxu0
    %7000 = vmatprep.mubr.f32.mxu0 %v6258
    %7001 = vmatmul.mubr.f32.gmra.mrb[0].mxu0 %v6257
    %v7002 = vpop.f32.mrb[0].mxu0
    %v7003 = vadd.f32 %v6454, %v7002
    %v7004 = vpop.f32.mrb[0].mxu0
    %7005 = vmatprep.mubr.f32.mxu0 %v6262
    %7006 = vmatmul.mubr.f32.gmra.mrb[0].mxu0 %v6261
    %v7007 = vpop.f32.mrb[0].mxu0
    %v7008 = vadd.f32 %v6454, %v7007
    %v7009 = vpop.f32.mrb[0].mxu0
    %7010 = vmatprep.mubr.f32.mxu0 %v6266
    %7011 = vmatmul.mubr.f32.gmra.mrb[0].mxu0 %v6265
    %v7012 = vpop.f32.mrb[0].mxu0
    %v7013 = vadd.f32 %v6454, %v7012
    %v7014 = vpop.f32.mrb[0].mxu0
    %7015 = vmatprep.mubr.f32.mxu0 %v6270
    %7016 = vmatmul.mubr.f32.gmra.mrb[0].mxu0 %v6269
    %v7017 = vpop.f32.mrb[0].mxu0
    %v7018 = vadd.f32 %v6454, %v7017
    %v7019 = vpop.f32.mrb[0].mxu0
    %7020 = vmatprep.mubr.f32.mxu0 %v6274
    %7021 = vmatmul.mubr.f32.gmra.mrb[0].mxu0 %v6273
    %v7022 = vpop.f32.mrb[0].mxu0
    %v7023 = vadd.f32 %v6454, %v7022
    %v7024 = vpop.f32.mrb[0].mxu0
    %7025 = vmatprep.mubr.f32.mxu0 %v6278
    %7026 = vmatmul.mubr.f32.gmra.mrb[0].mxu0 %v6277
    %v7027 = vpop.f32.mrb[0].mxu0
    %v7028 = vadd.f32 %v6454, %v7027
    %v7029 = vpop.f32.mrb[0].mxu0
    %7030 = vmatprep.mubr.f32.mxu0 %v6282
    %7031 = vmatmul.mubr.f32.gmra.mrb[0].mxu0 %v6281
    %v7032 = vpop.f32.mrb[0].mxu0
    %v7033 = vadd.f32 %v6454, %v7032
    %v7034 = vpop.f32.mrb[0].mxu0
    %7035 = vmatprep.mubr.f32.mxu0 %v6286
    %7036 = vmatmul.mubr.f32.gmra.mrb[0].mxu0 %v6285
    %v7037 = vpop.f32.mrb[0].mxu0
    %v7038 = vadd.f32 %v6454, %v7037
    %v7039 = vpop.f32.mrb[0].mxu0
    %7040 = vmatprep.mubr.f32.mxu0 %v6290
    %7041 = vmatmul.mubr.f32.gmra.mrb[0].mxu0 %v6289
    %v7042 = vpop.f32.mrb[0].mxu0
    %v7043 = vadd.f32 %v6454, %v7042
    %v7044 = vpop.f32.mrb[0].mxu0
    %7045 = vmatprep.mubr.f32.mxu0 %v6294
    %7046 = vmatmul.mubr.f32.gmra.mrb[0].mxu0 %v6293
    %v7047 = vpop.f32.mrb[0].mxu0
    %v7048 = vadd.f32 %v6454, %v7047
    %v7049 = vpop.f32.mrb[0].mxu0
    %7050 = vmatprep.mubr.f32.mxu0 %v6298
    %7051 = vmatmul.mubr.f32.gmra.mrb[0].mxu0 %v6297
    %v7052 = vpop.f32.mrb[0].mxu0
    %v7053 = vadd.f32 %v6454, %v7052
    %v7054 = vpop.f32.mrb[0].mxu0
    %7055 = vmatprep.mubr.f32.mxu0 %v6302
    %7056 = vmatmul.mubr.f32.gmra.mrb[0].mxu0 %v6301
    %v7057 = vpop.f32.mrb[0].mxu0
    %v7058 = vadd.f32 %v6454, %v7057
    %v7059 = vpop.f32.mrb[0].mxu0
    %7060 = vmatprep.mubr.f32.mxu0 %v6306
    %7061 = vmatmul.mubr.f32.gmra.mrb[0].mxu0 %v6305
    %v7062 = vpop.f32.mrb[0].mxu0
    %v7063 = vadd.f32 %v6454, %v7062
    %v7064 = vpop.f32.mrb[0].mxu0
    %7065 = vmatprep.mubr.f32.mxu0 %v6310
    %7066 = vmatmul.mubr.f32.gmra.mrb[0].mxu0 %v6309
    %v7067 = vpop.f32.mrb[0].mxu0
    %v7068 = vadd.f32 %v6454, %v7067
    %v7069 = vpop.f32.mrb[0].mxu0
    %7070 = vmatprep.mubr.f32.mxu0 %v6314
    %7071 = vmatmul.mubr.f32.gmra.mrb[0].mxu0 %v6313
    %v7072 = vpop.f32.mrb[0].mxu0
    %v7073 = vadd.f32 %v6454, %v7072
    %v7074 = vpop.f32.mrb[0].mxu0
    %7075 = vmatprep.mubr.f32.mxu0 %v6318
    %7076 = vmatmul.mubr.f32.gmra.mrb[0].mxu0 %v6317
    %v7077 = vpop.f32.mrb[0].mxu0
    %v7078 = vadd.f32 %v6454, %v7077
    %v7079 = vpop.f32.mrb[0].mxu0
    %7080 = vmatprep.mubr.f32.mxu0 %v6322
    %7081 = vmatmul.mubr.f32.gmra.mrb[0].mxu0 %v6321
    %v7082 = vpop.f32.mrb[0].mxu0
    %v7083 = vadd.f32 %v6454, %v7082
    %v7084 = vpop.f32.mrb[0].mxu0
    %7085 = vmatprep.mubr.f32.mxu0 %v6326
    %7086 = vmatmul.mubr.f32.gmra.mrb[0].mxu0 %v6325
    %v7087 = vpop.f32.mrb[0].mxu0
    %v7088 = vadd.f32 %v6454, %v7087
    %v7089 = vpop.f32.mrb[0].mxu0
    %7090 = vmatprep.mubr.f32.mxu0 %v6330
    %7091 = vmatmul.mubr.f32.gmra.mrb[0].mxu0 %v6329
    %v7092 = vpop.f32.mrb[0].mxu0
    %v7093 = vadd.f32 %v6454, %v7092
    %v7094 = vpop.f32.mrb[0].mxu0
    %7095 = vmatprep.mubr.f32.mxu0 %v6334
    %7096 = vmatmul.mubr.f32.gmra.mrb[0].mxu0 %v6333
    %v7097 = vpop.f32.mrb[0].mxu0
    %v7098 = vadd.f32 %v6454, %v7097
    %v7099 = vpop.f32.mrb[0].mxu0
    %7100 = vmatprep.mubr.f32.mxu0 %v6338
    %7101 = vmatmul.mubr.f32.gmra.mrb[0].mxu0 %v6337
    %v7102 = vpop.f32.mrb[0].mxu0
    %v7103 = vadd.f32 %v6454, %v7102
    %v7104 = vpop.f32.mrb[0].mxu0
    %7105 = vmatprep.mubr.f32.mxu0 %v6342
    %7106 = vmatmul.mubr.f32.gmra.mrb[0].mxu0 %v6341
    %v7107 = vpop.f32.mrb[0].mxu0
    %v7108 = vadd.f32 %v6454, %v7107
    %v7109 = vpop.f32.mrb[0].mxu0
    %7110 = vmatprep.mubr.f32.mxu0 %v6346
    %7111 = vmatmul.mubr.f32.gmra.mrb[0].mxu0 %v6345
    %v7112 = vpop.f32.mrb[0].mxu0
    %v7113 = vadd.f32 %v6454, %v7112
    %v7114 = vpop.f32.mrb[0].mxu0
    %7115 = vmatprep.mubr.f32.mxu0 %v6350
    %7116 = vmatmul.mubr.f32.gmra.mrb[0].mxu0 %v6349
    %v7117 = vpop.f32.mrb[0].mxu0
    %v7118 = vadd.f32 %v6454, %v7117
    %v7119 = vpop.f32.mrb[0].mxu0
    %7120 = vmatprep.mubr.f32.mxu0 %v6354
    %7121 = vmatmul.mubr.f32.gmra.mrb[0].mxu0 %v6353
    %v7122 = vpop.f32.mrb[0].mxu0
    %v7123 = vadd.f32 %v6454, %v7122
    %v7124 = vpop.f32.mrb[0].mxu0
    %7125 = vmatprep.mubr.f32.mxu0 %v6358
    %7126 = vmatmul.mubr.f32.gmra.mrb[0].mxu0 %v6357
    %v7127 = vpop.f32.mrb[0].mxu0
    %v7128 = vadd.f32 %v6454, %v7127
    %v7129 = vpop.f32.mrb[0].mxu0
    %7130 = vmatprep.mubr.f32.mxu0 %v6362
    %7131 = vmatmul.mubr.f32.gmra.mrb[0].mxu0 %v6361
    %v7132 = vpop.f32.mrb[0].mxu0
    %v7133 = vadd.f32 %v6454, %v7132
    %v7134 = vpop.f32.mrb[0].mxu0
    %7135 = vmatprep.mubr.f32.mxu0 %v6366
    %7136 = vmatmul.mubr.f32.gmra.mrb[0].mxu0 %v6365
    %v7137 = vpop.f32.mrb[0].mxu0
    %v7138 = vadd.f32 %v6454, %v7137
    %v7139 = vpop.f32.mrb[0].mxu0
    %7140 = vmatprep.mubr.f32.mxu0 %v6370
    %7141 = vmatmul.mubr.f32.gmra.mrb[0].mxu0 %v6369
    %v7142 = vpop.f32.mrb[0].mxu0
    %v7143 = vadd.f32 %v6454, %v7142
    %v7144 = vpop.f32.mrb[0].mxu0
    %7145 = vmatprep.mubr.f32.mxu0 %v6374
    %7146 = vmatmul.mubr.f32.gmra.mrb[0].mxu0 %v6373
    %v7147 = vpop.f32.mrb[0].mxu0
    %v7148 = vadd.f32 %v6454, %v7147
    %v7149 = vpop.f32.mrb[0].mxu0
    %7150 = vmatprep.mubr.f32.mxu0 %v6378
    %7151 = vmatmul.mubr.f32.gmra.mrb[0].mxu0 %v6377
    %v7152 = vpop.f32.mrb[0].mxu0
    %v7153 = vadd.f32 %v6454, %v7152
    %v7154 = vpop.f32.mrb[0].mxu0
    %7155 = vmatprep.mubr.f32.mxu0 %v6382
    %7156 = vmatmul.mubr.f32.gmra.mrb[0].mxu0 %v6381
    %v7157 = vpop.f32.mrb[0].mxu0
    %v7158 = vadd.f32 %v6454, %v7157
    %v7159 = vpop.f32.mrb[0].mxu0
    %7160 = vdwg.mxu0
    %7161 = vmatprep.subr.mxu0 0.0
    %7162 = vmatpush1.msra.mxu0 %v6417
    %7163 = vmatprep.subr.mxu0 0.0
    %7164 = vmatpush1.msra.mxu0 %v6418
    %7165 = vmatprep.subr.mxu0 0.0
    %7166 = vmatpush1.msra.mxu0 %v6419
    %7167 = vmatprep.subr.mxu0 0.0
    %7168 = vmatpush1.msra.mxu0 %v6420
    %7169 = vmatprep.subr.mxu0 0.0
    %7170 = vmatpush1.msra.mxu0 %v6421
    %7171 = vmatprep.subr.mxu0 0.0
    %7172 = vmatpush1.msra.mxu0 %v6422
    %7173 = vmatprep.subr.mxu0 0.0
    %7174 = vmatpush1.msra.mxu0 %v6423
    %7175 = vmatprep.subr.mxu0 0.0
    %7176 = vmatpush1.msra.mxu0 %v6424
    %7177 = vmatprep.subr.mxu0 0.0
    %7178 = vmatpush1.msra.mxu0 %v6425
    %7179 = vmatprep.subr.mxu0 0.0
    %7180 = vmatpush1.msra.mxu0 %v6426
    %7181 = vmatprep.subr.mxu0 0.0
    %7182 = vmatpush1.msra.mxu0 %v6427
    %7183 = vmatprep.subr.mxu0 0.0
    %7184 = vmatpush1.msra.mxu0 %v6428
    %7185 = vmatprep.subr.mxu0 0.0
    %7186 = vmatpush1.msra.mxu0 %v6429
    %7187 = vmatprep.subr.mxu0 0.0
    %7188 = vmatpush1.msra.mxu0 %v6430
    %7189 = vmatprep.subr.mxu0 0.0
    %7190 = vmatpush1.msra.mxu0 %v6431
    %7191 = vmatprep.subr.mxu0 0.0
    %7192 = vmatpush1.msra.mxu0 %v6432
    %7193 = vmatprep.subr.mxu0 0.0
    %7194 = vmatpush1.msra.mxu0 %v6433
    %7195 = vmatprep.subr.mxu0 0.0
    %7196 = vmatpush1.msra.mxu0 %v6434
    %7197 = vmatprep.subr.mxu0 0.0
    %7198 = vmatpush1.msra.mxu0 %v6435
    %7199 = vmatprep.subr.mxu0 0.0
    %7200 = vmatpush1.msra.mxu0 %v6436
    %7201 = vmatprep.subr.mxu0 0.0
    %7202 = vmatpush1.msra.mxu0 %v6437
    %7203 = vmatprep.subr.mxu0 0.0
    %7204 = vmatpush1.msra.mxu0 %v6438
    %7205 = vmatprep.subr.mxu0 0.0
    %7206 = vmatpush1.msra.mxu0 %v6439
    %7207 = vmatprep.subr.mxu0 0.0
    %7208 = vmatpush1.msra.mxu0 %v6440
    %7209 = vmatprep.subr.mxu0 0.0
    %7210 = vmatpush1.msra.mxu0 %v6441
    %7211 = vmatprep.subr.mxu0 0.0
    %7212 = vmatpush1.msra.mxu0 %v6442
    %7213 = vmatprep.subr.mxu0 0.0
    %7214 = vmatpush1.msra.mxu0 %v6443
    %7215 = vmatprep.subr.mxu0 0.0
    %7216 = vmatpush1.msra.mxu0 %v6444
    %7217 = vmatprep.subr.mxu0 0.0
    %7218 = vmatpush1.msra.mxu0 %v6445
    %7219 = vmatprep.subr.mxu0 0.0
    %7220 = vmatpush1.msra.mxu0 %v6446
    %7221 = vmatprep.subr.mxu0 0.0
    %7222 = vmatpush1.msra.mxu0 %v6447
    %7223 = vmatprep.subr.mxu0 0.0
    %7224 = vmatpush1.msra.mxu0 %v6448
    %7225 = vmatprep.mubr.f32.mxu0 %v5876
    %7226 = vmatmul.mubr.f32.gmra.mrb[0].mxu0 %v5875
    %v7227 = vpop.f32.mrb[0].mxu0
    %v7228 = vadd.f32 %v6523, %v7227
    %v7229 = vpop.f32.mrb[0].mxu0
    %7230 = vmatprep.mubr.f32.mxu0 %v5880
    %7231 = vmatmul.mubr.f32.gmra.mrb[0].mxu0 %v5879
    %v7232 = vpop.f32.mrb[0].mxu0
    %v7233 = vadd.f32 %v6528, %v7232
    %v7234 = vpop.f32.mrb[0].mxu0
    %7235 = vmatprep.mubr.f32.mxu0 %v5884
    %7236 = vmatmul.mubr.f32.gmra.mrb[0].mxu0 %v5883
    %v7237 = vpop.f32.mrb[0].mxu0
    %v7238 = vadd.f32 %v6533, %v7237
    %v7239 = vpop.f32.mrb[0].mxu0
    %7240 = vmatprep.mubr.f32.mxu0 %v5888
    %7241 = vmatmul.mubr.f32.gmra.mrb[0].mxu0 %v5887
    %v7242 = vpop.f32.mrb[0].mxu0
    %v7243 = vadd.f32 %v6538, %v7242
    %v7244 = vpop.f32.mrb[0].mxu0
    %7245 = vmatprep.mubr.f32.mxu0 %v5892
    %7246 = vmatmul.mubr.f32.gmra.mrb[0].mxu0 %v5891
    %v7247 = vpop.f32.mrb[0].mxu0
    %v7248 = vadd.f32 %v6543, %v7247
    %v7249 = vpop.f32.mrb[0].mxu0
    %7250 = vmatprep.mubr.f32.mxu0 %v5896
    %7251 = vmatmul.mubr.f32.gmra.mrb[0].mxu0 %v5895
    %v7252 = vpop.f32.mrb[0].mxu0
    %v7253 = vadd.f32 %v6548, %v7252
    %v7254 = vpop.f32.mrb[0].mxu0
    %7255 = vmatprep.mubr.f32.mxu0 %v5900
    %7256 = vmatmul.mubr.f32.gmra.mrb[0].mxu0 %v5899
    %v7257 = vpop.f32.mrb[0].mxu0
    %v7258 = vadd.f32 %v6553, %v7257
    %v7259 = vpop.f32.mrb[0].mxu0
    %7260 = vmatprep.mubr.f32.mxu0 %v5904
    %7261 = vmatmul.mubr.f32.gmra.mrb[0].mxu0 %v5903
    %v7262 = vpop.f32.mrb[0].mxu0
    %v7263 = vadd.f32 %v6558, %v7262
    %v7264 = vpop.f32.mrb[0].mxu0
    %7265 = vmatprep.mubr.f32.mxu0 %v5908
    %7266 = vmatmul.mubr.f32.gmra.mrb[0].mxu0 %v5907
    %v7267 = vpop.f32.mrb[0].mxu0
    %v7268 = vadd.f32 %v6563, %v7267
    %v7269 = vpop.f32.mrb[0].mxu0
    %7270 = vmatprep.mubr.f32.mxu0 %v5912
    %7271 = vmatmul.mubr.f32.gmra.mrb[0].mxu0 %v5911
    %v7272 = vpop.f32.mrb[0].mxu0
    %v7273 = vadd.f32 %v6568, %v7272
    %v7274 = vpop.f32.mrb[0].mxu0
    %7275 = vmatprep.mubr.f32.mxu0 %v5916
    %7276 = vmatmul.mubr.f32.gmra.mrb[0].mxu0 %v5915
    %v7277 = vpop.f32.mrb[0].mxu0
    %v7278 = vadd.f32 %v6573, %v7277
    %v7279 = vpop.f32.mrb[0].mxu0
    %7280 = vmatprep.mubr.f32.mxu0 %v5920
    %7281 = vmatmul.mubr.f32.gmra.mrb[0].mxu0 %v5919
    %v7282 = vpop.f32.mrb[0].mxu0
    %v7283 = vadd.f32 %v6578, %v7282
    %v7284 = vpop.f32.mrb[0].mxu0
    %7285 = vmatprep.mubr.f32.mxu0 %v5924
    %7286 = vmatmul.mubr.f32.gmra.mrb[0].mxu0 %v5923
    %v7287 = vpop.f32.mrb[0].mxu0
    %v7288 = vadd.f32 %v6583, %v7287
    %v7289 = vpop.f32.mrb[0].mxu0
    %7290 = vmatprep.mubr.f32.mxu0 %v5928
    %7291 = vmatmul.mubr.f32.gmra.mrb[0].mxu0 %v5927
    %v7292 = vpop.f32.mrb[0].mxu0
    %v7293 = vadd.f32 %v6588, %v7292
    %v7294 = vpop.f32.mrb[0].mxu0
    %7295 = vmatprep.mubr.f32.mxu0 %v5932
    %7296 = vmatmul.mubr.f32.gmra.mrb[0].mxu0 %v5931
    %v7297 = vpop.f32.mrb[0].mxu0
    %v7298 = vadd.f32 %v6593, %v7297
    %v7299 = vpop.f32.mrb[0].mxu0
    %7300 = vmatprep.mubr.f32.mxu0 %v5936
    %7301 = vmatmul.mubr.f32.gmra.mrb[0].mxu0 %v5935
    %v7302 = vpop.f32.mrb[0].mxu0
    %v7303 = vadd.f32 %v6598, %v7302
    %v7304 = vpop.f32.mrb[0].mxu0
    %7305 = vmatprep.mubr.f32.mxu0 %v5940
    %7306 = vmatmul.mubr.f32.gmra.mrb[0].mxu0 %v5939
    %v7307 = vpop.f32.mrb[0].mxu0
    %v7308 = vadd.f32 %v6603, %v7307
    %v7309 = vpop.f32.mrb[0].mxu0
    %7310 = vmatprep.mubr.f32.mxu0 %v5944
    %7311 = vmatmul.mubr.f32.gmra.mrb[0].mxu0 %v5943
    %v7312 = vpop.f32.mrb[0].mxu0
    %v7313 = vadd.f32 %v6608, %v7312
    %v7314 = vpop.f32.mrb[0].mxu0
    %7315 = vmatprep.mubr.f32.mxu0 %v5948
    %7316 = vmatmul.mubr.f32.gmra.mrb[0].mxu0 %v5947
    %v7317 = vpop.f32.mrb[0].mxu0
    %v7318 = vadd.f32 %v6613, %v7317
    %v7319 = vpop.f32.mrb[0].mxu0
    %7320 = vmatprep.mubr.f32.mxu0 %v5952
    %7321 = vmatmul.mubr.f32.gmra.mrb[0].mxu0 %v5951
    %v7322 = vpop.f32.mrb[0].mxu0
    %v7323 = vadd.f32 %v6618, %v7322
    %v7324 = vpop.f32.mrb[0].mxu0
    %7325 = vmatprep.mubr.f32.mxu0 %v5956
    %7326 = vmatmul.mubr.f32.gmra.mrb[0].mxu0 %v5955
    %v7327 = vpop.f32.mrb[0].mxu0
    %v7328 = vadd.f32 %v6623, %v7327
    %v7329 = vpop.f32.mrb[0].mxu0
    %7330 = vmatprep.mubr.f32.mxu0 %v5960
    %7331 = vmatmul.mubr.f32.gmra.mrb[0].mxu0 %v5959
    %v7332 = vpop.f32.mrb[0].mxu0
    %v7333 = vadd.f32 %v6628, %v7332
    %v7334 = vpop.f32.mrb[0].mxu0
    %7335 = vmatprep.mubr.f32.mxu0 %v5964
    %7336 = vmatmul.mubr.f32.gmra.mrb[0].mxu0 %v5963
    %v7337 = vpop.f32.mrb[0].mxu0
    %v7338 = vadd.f32 %v6633, %v7337
    %v7339 = vpop.f32.mrb[0].mxu0
    %7340 = vmatprep.mubr.f32.mxu0 %v5968
    %7341 = vmatmul.mubr.f32.gmra.mrb[0].mxu0 %v5967
    %v7342 = vpop.f32.mrb[0].mxu0
    %v7343 = vadd.f32 %v6638, %v7342
    %v7344 = vpop.f32.mrb[0].mxu0
    %7345 = vmatprep.mubr.f32.mxu0 %v5972
    %7346 = vmatmul.mubr.f32.gmra.mrb[0].mxu0 %v5971
    %v7347 = vpop.f32.mrb[0].mxu0
    %v7348 = vadd.f32 %v6643, %v7347
    %v7349 = vpop.f32.mrb[0].mxu0
    %7350 = vmatprep.mubr.f32.mxu0 %v5976
    %7351 = vmatmul.mubr.f32.gmra.mrb[0].mxu0 %v5975
    %v7352 = vpop.f32.mrb[0].mxu0
    %v7353 = vadd.f32 %v6648, %v7352
    %v7354 = vpop.f32.mrb[0].mxu0
    %7355 = vmatprep.mubr.f32.mxu0 %v5980
    %7356 = vmatmul.mubr.f32.gmra.mrb[0].mxu0 %v5979
    %v7357 = vpop.f32.mrb[0].mxu0
    %v7358 = vadd.f32 %v6653, %v7357
    %v7359 = vpop.f32.mrb[0].mxu0
    %7360 = vmatprep.mubr.f32.mxu0 %v5984
    %7361 = vmatmul.mubr.f32.gmra.mrb[0].mxu0 %v5983
    %v7362 = vpop.f32.mrb[0].mxu0
    %v7363 = vadd.f32 %v6658, %v7362
    %v7364 = vpop.f32.mrb[0].mxu0
    %7365 = vmatprep.mubr.f32.mxu0 %v5988
    %7366 = vmatmul.mubr.f32.gmra.mrb[0].mxu0 %v5987
    %v7367 = vpop.f32.mrb[0].mxu0
    %v7368 = vadd.f32 %v6663, %v7367
    %v7369 = vpop.f32.mrb[0].mxu0
    %7370 = vmatprep.mubr.f32.mxu0 %v5992
    %7371 = vmatmul.mubr.f32.gmra.mrb[0].mxu0 %v5991
    %v7372 = vpop.f32.mrb[0].mxu0
    %v7373 = vadd.f32 %v6668, %v7372
    %v7374 = vpop.f32.mrb[0].mxu0
    %7375 = vmatprep.mubr.f32.mxu0 %v5996
    %7376 = vmatmul.mubr.f32.gmra.mrb[0].mxu0 %v5995
    %v7377 = vpop.f32.mrb[0].mxu0
    %v7378 = vadd.f32 %v6673, %v7377
    %v7379 = vpop.f32.mrb[0].mxu0
    %7380 = vmatprep.mubr.f32.mxu0 %v6000
    %7381 = vmatmul.mubr.f32.gmra.mrb[0].mxu0 %v5999
    %v7382 = vpop.f32.mrb[0].mxu0
    %v7383 = vadd.f32 %v6678, %v7382
    %v7384 = vpop.f32.mrb[0].mxu0
    %7385 = vmatprep.mubr.f32.mxu0 %v6004
    %7386 = vmatmul.mubr.f32.gmra.mrb[0].mxu0 %v6003
    %v7387 = vpop.f32.mrb[0].mxu0
    %v7388 = vadd.f32 %v6683, %v7387
    %v7389 = vpop.f32.mrb[0].mxu0
    %7390 = vmatprep.mubr.f32.mxu0 %v6008
    %7391 = vmatmul.mubr.f32.gmra.mrb[0].mxu0 %v6007
    %v7392 = vpop.f32.mrb[0].mxu0
    %v7393 = vadd.f32 %v6688, %v7392
    %v7394 = vpop.f32.mrb[0].mxu0
    %7395 = vmatprep.mubr.f32.mxu0 %v6012
    %7396 = vmatmul.mubr.f32.gmra.mrb[0].mxu0 %v6011
    %v7397 = vpop.f32.mrb[0].mxu0
    %v7398 = vadd.f32 %v6693, %v7397
    %v7399 = vpop.f32.mrb[0].mxu0
    %7400 = vmatprep.mubr.f32.mxu0 %v6016
    %7401 = vmatmul.mubr.f32.gmra.mrb[0].mxu0 %v6015
    %v7402 = vpop.f32.mrb[0].mxu0
    %v7403 = vadd.f32 %v6698, %v7402
    %v7404 = vpop.f32.mrb[0].mxu0
    %7405 = vmatprep.mubr.f32.mxu0 %v6020
    %7406 = vmatmul.mubr.f32.gmra.mrb[0].mxu0 %v6019
    %v7407 = vpop.f32.mrb[0].mxu0
    %v7408 = vadd.f32 %v6703, %v7407
    %v7409 = vpop.f32.mrb[0].mxu0
    %7410 = vmatprep.mubr.f32.mxu0 %v6024
    %7411 = vmatmul.mubr.f32.gmra.mrb[0].mxu0 %v6023
    %v7412 = vpop.f32.mrb[0].mxu0
    %v7413 = vadd.f32 %v6708, %v7412
    %v7414 = vpop.f32.mrb[0].mxu0
    %7415 = vmatprep.mubr.f32.mxu0 %v6028
    %7416 = vmatmul.mubr.f32.gmra.mrb[0].mxu0 %v6027
    %v7417 = vpop.f32.mrb[0].mxu0
    %v7418 = vadd.f32 %v6713, %v7417
    %v7419 = vpop.f32.mrb[0].mxu0
    %7420 = vmatprep.mubr.f32.mxu0 %v6032
    %7421 = vmatmul.mubr.f32.gmra.mrb[0].mxu0 %v6031
    %v7422 = vpop.f32.mrb[0].mxu0
    %v7423 = vadd.f32 %v6718, %v7422
    %v7424 = vpop.f32.mrb[0].mxu0
    %7425 = vmatprep.mubr.f32.mxu0 %v6036
    %7426 = vmatmul.mubr.f32.gmra.mrb[0].mxu0 %v6035
    %v7427 = vpop.f32.mrb[0].mxu0
    %v7428 = vadd.f32 %v6723, %v7427
    %v7429 = vpop.f32.mrb[0].mxu0
    %7430 = vmatprep.mubr.f32.mxu0 %v6040
    %7431 = vmatmul.mubr.f32.gmra.mrb[0].mxu0 %v6039
    %v7432 = vpop.f32.mrb[0].mxu0
    %v7433 = vadd.f32 %v6728, %v7432
    %v7434 = vpop.f32.mrb[0].mxu0
    %7435 = vmatprep.mubr.f32.mxu0 %v6044
    %7436 = vmatmul.mubr.f32.gmra.mrb[0].mxu0 %v6043
    %v7437 = vpop.f32.mrb[0].mxu0
    %v7438 = vadd.f32 %v6733, %v7437
    %v7439 = vpop.f32.mrb[0].mxu0
    %7440 = vmatprep.mubr.f32.mxu0 %v6048
    %7441 = vmatmul.mubr.f32.gmra.mrb[0].mxu0 %v6047
    %v7442 = vpop.f32.mrb[0].mxu0
    %v7443 = vadd.f32 %v6738, %v7442
    %v7444 = vpop.f32.mrb[0].mxu0
    %7445 = vmatprep.mubr.f32.mxu0 %v6052
    %7446 = vmatmul.mubr.f32.gmra.mrb[0].mxu0 %v6051
    %v7447 = vpop.f32.mrb[0].mxu0
    %v7448 = vadd.f32 %v6743, %v7447
    %v7449 = vpop.f32.mrb[0].mxu0
    %7450 = vmatprep.mubr.f32.mxu0 %v6056
    %7451 = vmatmul.mubr.f32.gmra.mrb[0].mxu0 %v6055
    %v7452 = vpop.f32.mrb[0].mxu0
    %v7453 = vadd.f32 %v6748, %v7452
    %v7454 = vpop.f32.mrb[0].mxu0
    %7455 = vmatprep.mubr.f32.mxu0 %v6060
    %7456 = vmatmul.mubr.f32.gmra.mrb[0].mxu0 %v6059
    %v7457 = vpop.f32.mrb[0].mxu0
    %v7458 = vadd.f32 %v6753, %v7457
    %v7459 = vpop.f32.mrb[0].mxu0
    %7460 = vmatprep.mubr.f32.mxu0 %v6064
    %7461 = vmatmul.mubr.f32.gmra.mrb[0].mxu0 %v6063
    %v7462 = vpop.f32.mrb[0].mxu0
    %v7463 = vadd.f32 %v6758, %v7462
    %v7464 = vpop.f32.mrb[0].mxu0
    %7465 = vmatprep.mubr.f32.mxu0 %v6068
    %7466 = vmatmul.mubr.f32.gmra.mrb[0].mxu0 %v6067
    %v7467 = vpop.f32.mrb[0].mxu0
    %v7468 = vadd.f32 %v6763, %v7467
    %v7469 = vpop.f32.mrb[0].mxu0
    %7470 = vmatprep.mubr.f32.mxu0 %v6072
    %7471 = vmatmul.mubr.f32.gmra.mrb[0].mxu0 %v6071
    %v7472 = vpop.f32.mrb[0].mxu0
    %v7473 = vadd.f32 %v6768, %v7472
    %v7474 = vpop.f32.mrb[0].mxu0
    %7475 = vmatprep.mubr.f32.mxu0 %v6076
    %7476 = vmatmul.mubr.f32.gmra.mrb[0].mxu0 %v6075
    %v7477 = vpop.f32.mrb[0].mxu0
    %v7478 = vadd.f32 %v6773, %v7477
    %v7479 = vpop.f32.mrb[0].mxu0
    %7480 = vmatprep.mubr.f32.mxu0 %v6080
    %7481 = vmatmul.mubr.f32.gmra.mrb[0].mxu0 %v6079
    %v7482 = vpop.f32.mrb[0].mxu0
    %v7483 = vadd.f32 %v6778, %v7482
    %v7484 = vpop.f32.mrb[0].mxu0
    %7485 = vmatprep.mubr.f32.mxu0 %v6084
    %7486 = vmatmul.mubr.f32.gmra.mrb[0].mxu0 %v6083
    %v7487 = vpop.f32.mrb[0].mxu0
    %v7488 = vadd.f32 %v6783, %v7487
    %v7489 = vpop.f32.mrb[0].mxu0
    %7490 = vmatprep.mubr.f32.mxu0 %v6088
    %7491 = vmatmul.mubr.f32.gmra.mrb[0].mxu0 %v6087
    %v7492 = vpop.f32.mrb[0].mxu0
    %v7493 = vadd.f32 %v6788, %v7492
    %v7494 = vpop.f32.mrb[0].mxu0
    %7495 = vmatprep.mubr.f32.mxu0 %v6092
    %7496 = vmatmul.mubr.f32.gmra.mrb[0].mxu0 %v6091
    %v7497 = vpop.f32.mrb[0].mxu0
    %v7498 = vadd.f32 %v6793, %v7497
    %v7499 = vpop.f32.mrb[0].mxu0
    %7500 = vmatprep.mubr.f32.mxu0 %v6096
    %7501 = vmatmul.mubr.f32.gmra.mrb[0].mxu0 %v6095
    %v7502 = vpop.f32.mrb[0].mxu0
    %v7503 = vadd.f32 %v6798, %v7502
    %v7504 = vpop.f32.mrb[0].mxu0
    %7505 = vmatprep.mubr.f32.mxu0 %v6100
    %7506 = vmatmul.mubr.f32.gmra.mrb[0].mxu0 %v6099
    %v7507 = vpop.f32.mrb[0].mxu0
    %v7508 = vadd.f32 %v6803, %v7507
    %v7509 = vpop.f32.mrb[0].mxu0
    %7510 = vmatprep.mubr.f32.mxu0 %v6104
    %7511 = vmatmul.mubr.f32.gmra.mrb[0].mxu0 %v6103
    %v7512 = vpop.f32.mrb[0].mxu0
    %v7513 = vadd.f32 %v6808, %v7512
    %v7514 = vpop.f32.mrb[0].mxu0
    %7515 = vmatprep.mubr.f32.mxu0 %v6108
    %7516 = vmatmul.mubr.f32.gmra.mrb[0].mxu0 %v6107
    %v7517 = vpop.f32.mrb[0].mxu0
    %v7518 = vadd.f32 %v6813, %v7517
    %v7519 = vpop.f32.mrb[0].mxu0
    %7520 = vmatprep.mubr.f32.mxu0 %v6112
    %7521 = vmatmul.mubr.f32.gmra.mrb[0].mxu0 %v6111
    %v7522 = vpop.f32.mrb[0].mxu0
    %v7523 = vadd.f32 %v6818, %v7522
    %v7524 = vpop.f32.mrb[0].mxu0
    %7525 = vmatprep.mubr.f32.mxu0 %v6116
    %7526 = vmatmul.mubr.f32.gmra.mrb[0].mxu0 %v6115
    %v7527 = vpop.f32.mrb[0].mxu0
    %v7528 = vadd.f32 %v6823, %v7527
    %v7529 = vpop.f32.mrb[0].mxu0
    %7530 = vmatprep.mubr.f32.mxu0 %v6120
    %7531 = vmatmul.mubr.f32.gmra.mrb[0].mxu0 %v6119
    %v7532 = vpop.f32.mrb[0].mxu0
    %v7533 = vadd.f32 %v6828, %v7532
    %v7534 = vpop.f32.mrb[0].mxu0
    %7535 = vmatprep.mubr.f32.mxu0 %v6124
    %7536 = vmatmul.mubr.f32.gmra.mrb[0].mxu0 %v6123
    %v7537 = vpop.f32.mrb[0].mxu0
    %v7538 = vadd.f32 %v6833, %v7537
    %v7539 = vpop.f32.mrb[0].mxu0
    %7540 = vmatprep.mubr.f32.mxu0 %v6128
    %7541 = vmatmul.mubr.f32.gmra.mrb[0].mxu0 %v6127
    %v7542 = vpop.f32.mrb[0].mxu0
    %v7543 = vadd.f32 %v6838, %v7542
    %v7544 = vpop.f32.mrb[0].mxu0
    %7545 = vmatprep.mubr.f32.mxu0 %v6132
    %7546 = vmatmul.mubr.f32.gmra.mrb[0].mxu0 %v6131
    %v7547 = vpop.f32.mrb[0].mxu0
    %v7548 = vadd.f32 %v6843, %v7547
    %v7549 = vpop.f32.mrb[0].mxu0
    %7550 = vmatprep.mubr.f32.mxu0 %v6136
    %7551 = vmatmul.mubr.f32.gmra.mrb[0].mxu0 %v6135
    %v7552 = vpop.f32.mrb[0].mxu0
    %v7553 = vadd.f32 %v6848, %v7552
    %v7554 = vpop.f32.mrb[0].mxu0
    %7555 = vmatprep.mubr.f32.mxu0 %v6140
    %7556 = vmatmul.mubr.f32.gmra.mrb[0].mxu0 %v6139
    %v7557 = vpop.f32.mrb[0].mxu0
    %v7558 = vadd.f32 %v6853, %v7557
    %v7559 = vpop.f32.mrb[0].mxu0
    %7560 = vmatprep.mubr.f32.mxu0 %v6144
    %7561 = vmatmul.mubr.f32.gmra.mrb[0].mxu0 %v6143
    %v7562 = vpop.f32.mrb[0].mxu0
    %v7563 = vadd.f32 %v6858, %v7562
    %v7564 = vpop.f32.mrb[0].mxu0
    %7565 = vmatprep.mubr.f32.mxu0 %v6148
    %7566 = vmatmul.mubr.f32.gmra.mrb[0].mxu0 %v6147
    %v7567 = vpop.f32.mrb[0].mxu0
    %v7568 = vadd.f32 %v6863, %v7567
    %v7569 = vpop.f32.mrb[0].mxu0
    %7570 = vmatprep.mubr.f32.mxu0 %v6152
    %7571 = vmatmul.mubr.f32.gmra.mrb[0].mxu0 %v6151
    %v7572 = vpop.f32.mrb[0].mxu0
    %v7573 = vadd.f32 %v6868, %v7572
    %v7574 = vpop.f32.mrb[0].mxu0
    %7575 = vmatprep.mubr.f32.mxu0 %v6156
    %7576 = vmatmul.mubr.f32.gmra.mrb[0].mxu0 %v6155
    %v7577 = vpop.f32.mrb[0].mxu0
    %v7578 = vadd.f32 %v6873, %v7577
    %v7579 = vpop.f32.mrb[0].mxu0
    %7580 = vmatprep.mubr.f32.mxu0 %v6160
    %7581 = vmatmul.mubr.f32.gmra.mrb[0].mxu0 %v6159
    %v7582 = vpop.f32.mrb[0].mxu0
    %v7583 = vadd.f32 %v6878, %v7582
    %v7584 = vpop.f32.mrb[0].mxu0
    %7585 = vmatprep.mubr.f32.mxu0 %v6164
    %7586 = vmatmul.mubr.f32.gmra.mrb[0].mxu0 %v6163
    %v7587 = vpop.f32.mrb[0].mxu0
    %v7588 = vadd.f32 %v6883, %v7587
    %v7589 = vpop.f32.mrb[0].mxu0
    %7590 = vmatprep.mubr.f32.mxu0 %v6168
    %7591 = vmatmul.mubr.f32.gmra.mrb[0].mxu0 %v6167
    %v7592 = vpop.f32.mrb[0].mxu0
    %v7593 = vadd.f32 %v6888, %v7592
    %v7594 = vpop.f32.mrb[0].mxu0
    %7595 = vmatprep.mubr.f32.mxu0 %v6172
    %7596 = vmatmul.mubr.f32.gmra.mrb[0].mxu0 %v6171
    %v7597 = vpop.f32.mrb[0].mxu0
    %v7598 = vadd.f32 %v6893, %v7597
    %v7599 = vpop.f32.mrb[0].mxu0
    %7600 = vmatprep.mubr.f32.mxu0 %v6176
    %7601 = vmatmul.mubr.f32.gmra.mrb[0].mxu0 %v6175
    %v7602 = vpop.f32.mrb[0].mxu0
    %v7603 = vadd.f32 %v6898, %v7602
    %v7604 = vpop.f32.mrb[0].mxu0
    %7605 = vmatprep.mubr.f32.mxu0 %v6180
    %7606 = vmatmul.mubr.f32.gmra.mrb[0].mxu0 %v6179
    %v7607 = vpop.f32.mrb[0].mxu0
    %v7608 = vadd.f32 %v6903, %v7607
    %v7609 = vpop.f32.mrb[0].mxu0
    %7610 = vmatprep.mubr.f32.mxu0 %v6184
    %7611 = vmatmul.mubr.f32.gmra.mrb[0].mxu0 %v6183
    %v7612 = vpop.f32.mrb[0].mxu0
    %v7613 = vadd.f32 %v6908, %v7612
    %v7614 = vpop.f32.mrb[0].mxu0
    %7615 = vmatprep.mubr.f32.mxu0 %v6188
    %7616 = vmatmul.mubr.f32.gmra.mrb[0].mxu0 %v6187
    %v7617 = vpop.f32.mrb[0].mxu0
    %v7618 = vadd.f32 %v6913, %v7617
    %v7619 = vpop.f32.mrb[0].mxu0
    %7620 = vmatprep.mubr.f32.mxu0 %v6192
    %7621 = vmatmul.mubr.f32.gmra.mrb[0].mxu0 %v6191
    %v7622 = vpop.f32.mrb[0].mxu0
    %v7623 = vadd.f32 %v6918, %v7622
    %v7624 = vpop.f32.mrb[0].mxu0
    %7625 = vmatprep.mubr.f32.mxu0 %v6196
    %7626 = vmatmul.mubr.f32.gmra.mrb[0].mxu0 %v6195
    %v7627 = vpop.f32.mrb[0].mxu0
    %v7628 = vadd.f32 %v6923, %v7627
    %v7629 = vpop.f32.mrb[0].mxu0
    %7630 = vmatprep.mubr.f32.mxu0 %v6200
    %7631 = vmatmul.mubr.f32.gmra.mrb[0].mxu0 %v6199
    %v7632 = vpop.f32.mrb[0].mxu0
    %v7633 = vadd.f32 %v6928, %v7632
    %v7634 = vpop.f32.mrb[0].mxu0
    %7635 = vmatprep.mubr.f32.mxu0 %v6204
    %7636 = vmatmul.mubr.f32.gmra.mrb[0].mxu0 %v6203
    %v7637 = vpop.f32.mrb[0].mxu0
    %v7638 = vadd.f32 %v6933, %v7637
    %v7639 = vpop.f32.mrb[0].mxu0
    %7640 = vmatprep.mubr.f32.mxu0 %v6208
    %7641 = vmatmul.mubr.f32.gmra.mrb[0].mxu0 %v6207
    %v7642 = vpop.f32.mrb[0].mxu0
    %v7643 = vadd.f32 %v6938, %v7642
    %v7644 = vpop.f32.mrb[0].mxu0
    %7645 = vmatprep.mubr.f32.mxu0 %v6212
    %7646 = vmatmul.mubr.f32.gmra.mrb[0].mxu0 %v6211
    %v7647 = vpop.f32.mrb[0].mxu0
    %v7648 = vadd.f32 %v6943, %v7647
    %v7649 = vpop.f32.mrb[0].mxu0
    %7650 = vmatprep.mubr.f32.mxu0 %v6216
    %7651 = vmatmul.mubr.f32.gmra.mrb[0].mxu0 %v6215
    %v7652 = vpop.f32.mrb[0].mxu0
    %v7653 = vadd.f32 %v6948, %v7652
    %v7654 = vpop.f32.mrb[0].mxu0
    %7655 = vmatprep.mubr.f32.mxu0 %v6220
    %7656 = vmatmul.mubr.f32.gmra.mrb[0].mxu0 %v6219
    %v7657 = vpop.f32.mrb[0].mxu0
    %v7658 = vadd.f32 %v6953, %v7657
    %v7659 = vpop.f32.mrb[0].mxu0
    %7660 = vmatprep.mubr.f32.mxu0 %v6224
    %7661 = vmatmul.mubr.f32.gmra.mrb[0].mxu0 %v6223
    %v7662 = vpop.f32.mrb[0].mxu0
    %v7663 = vadd.f32 %v6958, %v7662
    %v7664 = vpop.f32.mrb[0].mxu0
    %7665 = vmatprep.mubr.f32.mxu0 %v6228
    %7666 = vmatmul.mubr.f32.gmra.mrb[0].mxu0 %v6227
    %v7667 = vpop.f32.mrb[0].mxu0
    %v7668 = vadd.f32 %v6963, %v7667
    %v7669 = vpop.f32.mrb[0].mxu0
    %7670 = vmatprep.mubr.f32.mxu0 %v6232
    %7671 = vmatmul.mubr.f32.gmra.mrb[0].mxu0 %v6231
    %v7672 = vpop.f32.mrb[0].mxu0
    %v7673 = vadd.f32 %v6968, %v7672
    %v7674 = vpop.f32.mrb[0].mxu0
    %7675 = vmatprep.mubr.f32.mxu0 %v6236
    %7676 = vmatmul.mubr.f32.gmra.mrb[0].mxu0 %v6235
    %v7677 = vpop.f32.mrb[0].mxu0
    %v7678 = vadd.f32 %v6973, %v7677
    %v7679 = vpop.f32.mrb[0].mxu0
    %7680 = vmatprep.mubr.f32.mxu0 %v6240
    %7681 = vmatmul.mubr.f32.gmra.mrb[0].mxu0 %v6239
    %v7682 = vpop.f32.mrb[0].mxu0
    %v7683 = vadd.f32 %v6978, %v7682
    %v7684 = vpop.f32.mrb[0].mxu0
    %7685 = vmatprep.mubr.f32.mxu0 %v6244
    %7686 = vmatmul.mubr.f32.gmra.mrb[0].mxu0 %v6243
    %v7687 = vpop.f32.mrb[0].mxu0
    %v7688 = vadd.f32 %v6983, %v7687
    %v7689 = vpop.f32.mrb[0].mxu0
    %7690 = vmatprep.mubr.f32.mxu0 %v6248
    %7691 = vmatmul.mubr.f32.gmra.mrb[0].mxu0 %v6247
    %v7692 = vpop.f32.mrb[0].mxu0
    %v7693 = vadd.f32 %v6988, %v7692
    %v7694 = vpop.f32.mrb[0].mxu0
    %7695 = vmatprep.mubr.f32.mxu0 %v6252
    %7696 = vmatmul.mubr.f32.gmra.mrb[0].mxu0 %v6251
    %v7697 = vpop.f32.mrb[0].mxu0
    %v7698 = vadd.f32 %v6993, %v7697
    %v7699 = vpop.f32.mrb[0].mxu0
    %7700 = vmatprep.mubr.f32.mxu0 %v6256
    %7701 = vmatmul.mubr.f32.gmra.mrb[0].mxu0 %v6255
    %v7702 = vpop.f32.mrb[0].mxu0
    %v7703 = vadd.f32 %v6998, %v7702
    %v7704 = vpop.f32.mrb[0].mxu0
    %7705 = vmatprep.mubr.f32.mxu0 %v6260
    %7706 = vmatmul.mubr.f32.gmra.mrb[0].mxu0 %v6259
    %v7707 = vpop.f32.mrb[0].mxu0
    %v7708 = vadd.f32 %v7003, %v7707
    %v7709 = vpop.f32.mrb[0].mxu0
    %7710 = vmatprep.mubr.f32.mxu0 %v6264
    %7711 = vmatmul.mubr.f32.gmra.mrb[0].mxu0 %v6263
    %v7712 = vpop.f32.mrb[0].mxu0
    %v7713 = vadd.f32 %v7008, %v7712
    %v7714 = vpop.f32.mrb[0].mxu0
    %7715 = vmatprep.mubr.f32.mxu0 %v6268
    %7716 = vmatmul.mubr.f32.gmra.mrb[0].mxu0 %v6267
    %v7717 = vpop.f32.mrb[0].mxu0
    %v7718 = vadd.f32 %v7013, %v7717
    %v7719 = vpop.f32.mrb[0].mxu0
    %7720 = vmatprep.mubr.f32.mxu0 %v6272
    %7721 = vmatmul.mubr.f32.gmra.mrb[0].mxu0 %v6271
    %v7722 = vpop.f32.mrb[0].mxu0
    %v7723 = vadd.f32 %v7018, %v7722
    %v7724 = vpop.f32.mrb[0].mxu0
    %7725 = vmatprep.mubr.f32.mxu0 %v6276
    %7726 = vmatmul.mubr.f32.gmra.mrb[0].mxu0 %v6275
    %v7727 = vpop.f32.mrb[0].mxu0
    %v7728 = vadd.f32 %v7023, %v7727
    %v7729 = vpop.f32.mrb[0].mxu0
    %7730 = vmatprep.mubr.f32.mxu0 %v6280
    %7731 = vmatmul.mubr.f32.gmra.mrb[0].mxu0 %v6279
    %v7732 = vpop.f32.mrb[0].mxu0
    %v7733 = vadd.f32 %v7028, %v7732
    %v7734 = vpop.f32.mrb[0].mxu0
    %7735 = vmatprep.mubr.f32.mxu0 %v6284
    %7736 = vmatmul.mubr.f32.gmra.mrb[0].mxu0 %v6283
    %v7737 = vpop.f32.mrb[0].mxu0
    %v7738 = vadd.f32 %v7033, %v7737
    %v7739 = vpop.f32.mrb[0].mxu0
    %7740 = vmatprep.mubr.f32.mxu0 %v6288
    %7741 = vmatmul.mubr.f32.gmra.mrb[0].mxu0 %v6287
    %v7742 = vpop.f32.mrb[0].mxu0
    %v7743 = vadd.f32 %v7038, %v7742
    %v7744 = vpop.f32.mrb[0].mxu0
    %7745 = vmatprep.mubr.f32.mxu0 %v6292
    %7746 = vmatmul.mubr.f32.gmra.mrb[0].mxu0 %v6291
    %v7747 = vpop.f32.mrb[0].mxu0
    %v7748 = vadd.f32 %v7043, %v7747
    %v7749 = vpop.f32.mrb[0].mxu0
    %7750 = vmatprep.mubr.f32.mxu0 %v6296
    %7751 = vmatmul.mubr.f32.gmra.mrb[0].mxu0 %v6295
    %v7752 = vpop.f32.mrb[0].mxu0
    %v7753 = vadd.f32 %v7048, %v7752
    %v7754 = vpop.f32.mrb[0].mxu0
    %7755 = vmatprep.mubr.f32.mxu0 %v6300
    %7756 = vmatmul.mubr.f32.gmra.mrb[0].mxu0 %v6299
    %v7757 = vpop.f32.mrb[0].mxu0
    %v7758 = vadd.f32 %v7053, %v7757
    %v7759 = vpop.f32.mrb[0].mxu0
    %7760 = vmatprep.mubr.f32.mxu0 %v6304
    %7761 = vmatmul.mubr.f32.gmra.mrb[0].mxu0 %v6303
    %v7762 = vpop.f32.mrb[0].mxu0
    %v7763 = vadd.f32 %v7058, %v7762
    %v7764 = vpop.f32.mrb[0].mxu0
    %7765 = vmatprep.mubr.f32.mxu0 %v6308
    %7766 = vmatmul.mubr.f32.gmra.mrb[0].mxu0 %v6307
    %v7767 = vpop.f32.mrb[0].mxu0
    %v7768 = vadd.f32 %v7063, %v7767
    %v7769 = vpop.f32.mrb[0].mxu0
    %7770 = vmatprep.mubr.f32.mxu0 %v6312
    %7771 = vmatmul.mubr.f32.gmra.mrb[0].mxu0 %v6311
    %v7772 = vpop.f32.mrb[0].mxu0
    %v7773 = vadd.f32 %v7068, %v7772
    %v7774 = vpop.f32.mrb[0].mxu0
    %7775 = vmatprep.mubr.f32.mxu0 %v6316
    %7776 = vmatmul.mubr.f32.gmra.mrb[0].mxu0 %v6315
    %v7777 = vpop.f32.mrb[0].mxu0
    %v7778 = vadd.f32 %v7073, %v7777
    %v7779 = vpop.f32.mrb[0].mxu0
    %7780 = vmatprep.mubr.f32.mxu0 %v6320
    %7781 = vmatmul.mubr.f32.gmra.mrb[0].mxu0 %v6319
    %v7782 = vpop.f32.mrb[0].mxu0
    %v7783 = vadd.f32 %v7078, %v7782
    %v7784 = vpop.f32.mrb[0].mxu0
    %7785 = vmatprep.mubr.f32.mxu0 %v6324
    %7786 = vmatmul.mubr.f32.gmra.mrb[0].mxu0 %v6323
    %v7787 = vpop.f32.mrb[0].mxu0
    %v7788 = vadd.f32 %v7083, %v7787
    %v7789 = vpop.f32.mrb[0].mxu0
    %7790 = vmatprep.mubr.f32.mxu0 %v6328
    %7791 = vmatmul.mubr.f32.gmra.mrb[0].mxu0 %v6327
    %v7792 = vpop.f32.mrb[0].mxu0
    %v7793 = vadd.f32 %v7088, %v7792
    %v7794 = vpop.f32.mrb[0].mxu0
    %7795 = vmatprep.mubr.f32.mxu0 %v6332
    %7796 = vmatmul.mubr.f32.gmra.mrb[0].mxu0 %v6331
    %v7797 = vpop.f32.mrb[0].mxu0
    %v7798 = vadd.f32 %v7093, %v7797
    %v7799 = vpop.f32.mrb[0].mxu0
    %7800 = vmatprep.mubr.f32.mxu0 %v6336
    %7801 = vmatmul.mubr.f32.gmra.mrb[0].mxu0 %v6335
    %v7802 = vpop.f32.mrb[0].mxu0
    %v7803 = vadd.f32 %v7098, %v7802
    %v7804 = vpop.f32.mrb[0].mxu0
    %7805 = vmatprep.mubr.f32.mxu0 %v6340
    %7806 = vmatmul.mubr.f32.gmra.mrb[0].mxu0 %v6339
    %v7807 = vpop.f32.mrb[0].mxu0
    %v7808 = vadd.f32 %v7103, %v7807
    %v7809 = vpop.f32.mrb[0].mxu0
    %7810 = vmatprep.mubr.f32.mxu0 %v6344
    %7811 = vmatmul.mubr.f32.gmra.mrb[0].mxu0 %v6343
    %v7812 = vpop.f32.mrb[0].mxu0
    %v7813 = vadd.f32 %v7108, %v7812
    %v7814 = vpop.f32.mrb[0].mxu0
    %7815 = vmatprep.mubr.f32.mxu0 %v6348
    %7816 = vmatmul.mubr.f32.gmra.mrb[0].mxu0 %v6347
    %v7817 = vpop.f32.mrb[0].mxu0
    %v7818 = vadd.f32 %v7113, %v7817
    %v7819 = vpop.f32.mrb[0].mxu0
    %7820 = vmatprep.mubr.f32.mxu0 %v6352
    %7821 = vmatmul.mubr.f32.gmra.mrb[0].mxu0 %v6351
    %v7822 = vpop.f32.mrb[0].mxu0
    %v7823 = vadd.f32 %v7118, %v7822
    %v7824 = vpop.f32.mrb[0].mxu0
    %7825 = vmatprep.mubr.f32.mxu0 %v6356
    %7826 = vmatmul.mubr.f32.gmra.mrb[0].mxu0 %v6355
    %v7827 = vpop.f32.mrb[0].mxu0
    %v7828 = vadd.f32 %v7123, %v7827
    %v7829 = vpop.f32.mrb[0].mxu0
    %7830 = vmatprep.mubr.f32.mxu0 %v6360
    %7831 = vmatmul.mubr.f32.gmra.mrb[0].mxu0 %v6359
    %v7832 = vpop.f32.mrb[0].mxu0
    %v7833 = vadd.f32 %v7128, %v7832
    %v7834 = vpop.f32.mrb[0].mxu0
    %7835 = vmatprep.mubr.f32.mxu0 %v6364
    %7836 = vmatmul.mubr.f32.gmra.mrb[0].mxu0 %v6363
    %v7837 = vpop.f32.mrb[0].mxu0
    %v7838 = vadd.f32 %v7133, %v7837
    %v7839 = vpop.f32.mrb[0].mxu0
    %7840 = vmatprep.mubr.f32.mxu0 %v6368
    %7841 = vmatmul.mubr.f32.gmra.mrb[0].mxu0 %v6367
    %v7842 = vpop.f32.mrb[0].mxu0
    %v7843 = vadd.f32 %v7138, %v7842
    %v7844 = vpop.f32.mrb[0].mxu0
    %7845 = vmatprep.mubr.f32.mxu0 %v6372
    %7846 = vmatmul.mubr.f32.gmra.mrb[0].mxu0 %v6371
    %v7847 = vpop.f32.mrb[0].mxu0
    %v7848 = vadd.f32 %v7143, %v7847
    %v7849 = vpop.f32.mrb[0].mxu0
    %7850 = vmatprep.mubr.f32.mxu0 %v6376
    %7851 = vmatmul.mubr.f32.gmra.mrb[0].mxu0 %v6375
    %v7852 = vpop.f32.mrb[0].mxu0
    %v7853 = vadd.f32 %v7148, %v7852
    %v7854 = vpop.f32.mrb[0].mxu0
    %7855 = vmatprep.mubr.f32.mxu0 %v6380
    %7856 = vmatmul.mubr.f32.gmra.mrb[0].mxu0 %v6379
    %v7857 = vpop.f32.mrb[0].mxu0
    %v7858 = vadd.f32 %v7153, %v7857
    %v7859 = vpop.f32.mrb[0].mxu0
    %7860 = vmatprep.mubr.f32.mxu0 %v6384
    %7861 = vmatmul.mubr.f32.gmra.mrb[0].mxu0 %v6383
    %v7862 = vpop.f32.mrb[0].mxu0
    %v7863 = vadd.f32 %v7158, %v7862
    %v7864 = vpop.f32.mrb[0].mxu0
    %7865 = vdwg.mxu0
    %v7866 = vmax.f32 %v7228, %v7233
    %v7867 = vmax.f32 %v7866, %v7238
    %v7868 = vmax.f32 %v7867, %v7243
    %v7869 = vmax.f32 %v7868, %v7248
    %v7870 = vmax.f32 %v7869, %v7253
    %v7871 = vmax.f32 %v7870, %v7258
    %v7872 = vmax.f32 %v7871, %v7263
    %v7873 = vrot.slane %v7872, 4
    %v7874 = vmax.f32 %v7872, %v7873
    %v7875 = vrot.slane %v7874, 2
    %v7876 = vmax.f32 %v7874, %v7875
    %v7877 = vrot.slane %v7876, 1
    %v7878 = vmax.f32 %v7876, %v7877
    %v7879 = vmax.f32 %v7268, %v7273
    %v7880 = vmax.f32 %v7879, %v7278
    %v7881 = vmax.f32 %v7880, %v7283
    %v7882 = vmax.f32 %v7881, %v7288
    %v7883 = vmax.f32 %v7882, %v7293
    %v7884 = vmax.f32 %v7883, %v7298
    %v7885 = vmax.f32 %v7884, %v7303
    %v7886 = vrot.slane %v7885, 4
    %v7887 = vmax.f32 %v7885, %v7886
    %v7888 = vrot.slane %v7887, 2
    %v7889 = vmax.f32 %v7887, %v7888
    %v7890 = vrot.slane %v7889, 1
    %v7891 = vmax.f32 %v7889, %v7890
    %v7892 = vmax.f32 %v7308, %v7313
    %v7893 = vmax.f32 %v7892, %v7318
    %v7894 = vmax.f32 %v7893, %v7323
    %v7895 = vmax.f32 %v7894, %v7328
    %v7896 = vmax.f32 %v7895, %v7333
    %v7897 = vmax.f32 %v7896, %v7338
    %v7898 = vmax.f32 %v7897, %v7343
    %v7899 = vrot.slane %v7898, 4
    %v7900 = vmax.f32 %v7898, %v7899
    %v7901 = vrot.slane %v7900, 2
    %v7902 = vmax.f32 %v7900, %v7901
    %v7903 = vrot.slane %v7902, 1
    %v7904 = vmax.f32 %v7902, %v7903
    %v7905 = vmax.f32 %v7348, %v7353
    %v7906 = vmax.f32 %v7905, %v7358
    %v7907 = vmax.f32 %v7906, %v7363
    %v7908 = vmax.f32 %v7907, %v7368
    %v7909 = vmax.f32 %v7908, %v7373
    %v7910 = vmax.f32 %v7909, %v7378
    %v7911 = vmax.f32 %v7910, %v7383
    %v7912 = vrot.slane %v7911, 4
    %v7913 = vmax.f32 %v7911, %v7912
    %v7914 = vrot.slane %v7913, 2
    %v7915 = vmax.f32 %v7913, %v7914
    %v7916 = vrot.slane %v7915, 1
    %v7917 = vmax.f32 %v7915, %v7916
    %v7918 = vmax.f32 %v7388, %v7393
    %v7919 = vmax.f32 %v7918, %v7398
    %v7920 = vmax.f32 %v7919, %v7403
    %v7921 = vmax.f32 %v7920, %v7408
    %v7922 = vmax.f32 %v7921, %v7413
    %v7923 = vmax.f32 %v7922, %v7418
    %v7924 = vmax.f32 %v7923, %v7423
    %v7925 = vrot.slane %v7924, 4
    %v7926 = vmax.f32 %v7924, %v7925
    %v7927 = vrot.slane %v7926, 2
    %v7928 = vmax.f32 %v7926, %v7927
    %v7929 = vrot.slane %v7928, 1
    %v7930 = vmax.f32 %v7928, %v7929
    %v7931 = vmax.f32 %v7428, %v7433
    %v7932 = vmax.f32 %v7931, %v7438
    %v7933 = vmax.f32 %v7932, %v7443
    %v7934 = vmax.f32 %v7933, %v7448
    %v7935 = vmax.f32 %v7934, %v7453
    %v7936 = vmax.f32 %v7935, %v7458
    %v7937 = vmax.f32 %v7936, %v7463
    %v7938 = vrot.slane %v7937, 4
    %v7939 = vmax.f32 %v7937, %v7938
    %v7940 = vrot.slane %v7939, 2
    %v7941 = vmax.f32 %v7939, %v7940
    %v7942 = vrot.slane %v7941, 1
    %v7943 = vmax.f32 %v7941, %v7942
    %v7944 = vmax.f32 %v7468, %v7473
    %v7945 = vmax.f32 %v7944, %v7478
    %v7946 = vmax.f32 %v7945, %v7483
    %v7947 = vmax.f32 %v7946, %v7488
    %v7948 = vmax.f32 %v7947, %v7493
    %v7949 = vmax.f32 %v7948, %v7498
    %v7950 = vmax.f32 %v7949, %v7503
    %v7951 = vrot.slane %v7950, 4
    %v7952 = vmax.f32 %v7950, %v7951
    %v7953 = vrot.slane %v7952, 2
    %v7954 = vmax.f32 %v7952, %v7953
    %v7955 = vrot.slane %v7954, 1
    %v7956 = vmax.f32 %v7954, %v7955
    %v7957 = vmax.f32 %v7508, %v7513
    %v7958 = vmax.f32 %v7957, %v7518
    %v7959 = vmax.f32 %v7958, %v7523
    %v7960 = vmax.f32 %v7959, %v7528
    %v7961 = vmax.f32 %v7960, %v7533
    %v7962 = vmax.f32 %v7961, %v7538
    %v7963 = vmax.f32 %v7962, %v7543
    %v7964 = vrot.slane %v7963, 4
    %v7965 = vmax.f32 %v7963, %v7964
    %v7966 = vrot.slane %v7965, 2
    %v7967 = vmax.f32 %v7965, %v7966
    %v7968 = vrot.slane %v7967, 1
    %v7969 = vmax.f32 %v7967, %v7968
    %v7970 = vmax.f32 %v7548, %v7553
    %v7971 = vmax.f32 %v7970, %v7558
    %v7972 = vmax.f32 %v7971, %v7563
    %v7973 = vmax.f32 %v7972, %v7568
    %v7974 = vmax.f32 %v7973, %v7573
    %v7975 = vmax.f32 %v7974, %v7578
    %v7976 = vmax.f32 %v7975, %v7583
    %v7977 = vrot.slane %v7976, 4
    %v7978 = vmax.f32 %v7976, %v7977
    %v7979 = vrot.slane %v7978, 2
    %v7980 = vmax.f32 %v7978, %v7979
    %v7981 = vrot.slane %v7980, 1
    %v7982 = vmax.f32 %v7980, %v7981
    %v7983 = vmax.f32 %v7588, %v7593
    %v7984 = vmax.f32 %v7983, %v7598
    %v7985 = vmax.f32 %v7984, %v7603
    %v7986 = vmax.f32 %v7985, %v7608
    %v7987 = vmax.f32 %v7986, %v7613
    %v7988 = vmax.f32 %v7987, %v7618
    %v7989 = vmax.f32 %v7988, %v7623
    %v7990 = vrot.slane %v7989, 4
    %v7991 = vmax.f32 %v7989, %v7990
    %v7992 = vrot.slane %v7991, 2
    %v7993 = vmax.f32 %v7991, %v7992
    %v7994 = vrot.slane %v7993, 1
    %v7995 = vmax.f32 %v7993, %v7994
    %v7996 = vmax.f32 %v7628, %v7633
    %v7997 = vmax.f32 %v7996, %v7638
    %v7998 = vmax.f32 %v7997, %v7643
    %v7999 = vmax.f32 %v7998, %v7648
    %v8000 = vmax.f32 %v7999, %v7653
    %v8001 = vmax.f32 %v8000, %v7658
    %v8002 = vmax.f32 %v8001, %v7663
    %v8003 = vrot.slane %v8002, 4
    %v8004 = vmax.f32 %v8002, %v8003
    %v8005 = vrot.slane %v8004, 2
    %v8006 = vmax.f32 %v8004, %v8005
    %v8007 = vrot.slane %v8006, 1
    %v8008 = vmax.f32 %v8006, %v8007
    %v8009 = vmax.f32 %v7668, %v7673
    %v8010 = vmax.f32 %v8009, %v7678
    %v8011 = vmax.f32 %v8010, %v7683
    %v8012 = vmax.f32 %v8011, %v7688
    %v8013 = vmax.f32 %v8012, %v7693
    %v8014 = vmax.f32 %v8013, %v7698
    %v8015 = vmax.f32 %v8014, %v7703
    %v8016 = vrot.slane %v8015, 4
    %v8017 = vmax.f32 %v8015, %v8016
    %v8018 = vrot.slane %v8017, 2
    %v8019 = vmax.f32 %v8017, %v8018
    %v8020 = vrot.slane %v8019, 1
    %v8021 = vmax.f32 %v8019, %v8020
    %v8022 = vmax.f32 %v7708, %v7713
    %v8023 = vmax.f32 %v8022, %v7718
    %v8024 = vmax.f32 %v8023, %v7723
    %v8025 = vmax.f32 %v8024, %v7728
    %v8026 = vmax.f32 %v8025, %v7733
    %v8027 = vmax.f32 %v8026, %v7738
    %v8028 = vmax.f32 %v8027, %v7743
    %v8029 = vrot.slane %v8028, 4
    %v8030 = vmax.f32 %v8028, %v8029
    %v8031 = vrot.slane %v8030, 2
    %v8032 = vmax.f32 %v8030, %v8031
    %v8033 = vrot.slane %v8032, 1
    %v8034 = vmax.f32 %v8032, %v8033
    %v8035 = vmax.f32 %v7748, %v7753
    %v8036 = vmax.f32 %v8035, %v7758
    %v8037 = vmax.f32 %v8036, %v7763
    %v8038 = vmax.f32 %v8037, %v7768
    %v8039 = vmax.f32 %v8038, %v7773
    %v8040 = vmax.f32 %v8039, %v7778
    %v8041 = vmax.f32 %v8040, %v7783
    %v8042 = vrot.slane %v8041, 4
    %v8043 = vmax.f32 %v8041, %v8042
    %v8044 = vrot.slane %v8043, 2
    %v8045 = vmax.f32 %v8043, %v8044
    %v8046 = vrot.slane %v8045, 1
    %v8047 = vmax.f32 %v8045, %v8046
    %v8048 = vmax.f32 %v7788, %v7793
    %v8049 = vmax.f32 %v8048, %v7798
    %v8050 = vmax.f32 %v8049, %v7803
    %v8051 = vmax.f32 %v8050, %v7808
    %v8052 = vmax.f32 %v8051, %v7813
    %v8053 = vmax.f32 %v8052, %v7818
    %v8054 = vmax.f32 %v8053, %v7823
    %v8055 = vrot.slane %v8054, 4
    %v8056 = vmax.f32 %v8054, %v8055
    %v8057 = vrot.slane %v8056, 2
    %v8058 = vmax.f32 %v8056, %v8057
    %v8059 = vrot.slane %v8058, 1
    %v8060 = vmax.f32 %v8058, %v8059
    %v8061 = vmax.f32 %v7828, %v7833
    %v8062 = vmax.f32 %v8061, %v7838
    %v8063 = vmax.f32 %v8062, %v7843
    %v8064 = vmax.f32 %v8063, %v7848
    %v8065 = vmax.f32 %v8064, %v7853
    %v8066 = vmax.f32 %v8065, %v7858
    %v8067 = vmax.f32 %v8066, %v7863
    %v8068 = vrot.slane %v8067, 4
    %v8069 = vmax.f32 %v8067, %v8068
    %v8070 = vrot.slane %v8069, 2
    %v8071 = vmax.f32 %v8069, %v8070
    %v8072 = vrot.slane %v8071, 1
    %v8073 = vmax.f32 %v8071, %v8072
    %v8090 = vsel %vm2910, %v7891, %v7878
    %v8091 = vsel %vm2912, %v7904, %v8090
    %v8092 = vsel %vm2914, %v7917, %v8091
    %v8093 = vsel %vm2916, %v7930, %v8092
    %v8094 = vsel %vm2918, %v7943, %v8093
    %v8095 = vsel %vm2920, %v7956, %v8094
    %v8096 = vsel %vm2922, %v7969, %v8095
    %v8097 = vsel %vm2910, %v7995, %v7982
    %v8098 = vsel %vm2912, %v8008, %v8097
    %v8099 = vsel %vm2914, %v8021, %v8098
    %v8100 = vsel %vm2916, %v8034, %v8099
    %v8101 = vsel %vm2918, %v8047, %v8100
    %v8102 = vsel %vm2920, %v8060, %v8101
    %v8103 = vsel %vm2922, %v8073, %v8102
    %8106 = vst [vmem:[#allocation8] sm:$0xff] %v8096
    %8107 = vst [vmem:[#allocation8 + $0x8] sm:$0xff] %v8103
    // Predicated region
    $region54: #{tpu_custom_call.1} parent=1 // pred_check
      _
    $region55: #{tpu_custom_call.1} parent=1 // pred_check_branch
      %8109 = sbr.rel (0) target = $region57
    $region56: #{tpu_custom_call.1} parent=1 // pred_region
      %s8111 = ssub.s32 256, 256
      %8112 = vsyncadd [#allocation4], %s8111
      %s8113 = sshll.u32 [#allocation8], 4
      %s8114 = int_to_ptr.vmem [resolvable:$true] %s8113
      %8119 = dma.vmem_to_hbm [thread:$0]  %s8114, 256, %s10, [#allocation4], 128, 128, 8
    $region57: #{tpu_custom_call.1} parent=1 // pred_fallthru
      _
    // Predicated region
    $region58: #{tpu_custom_call.1} parent=1 // pred_check
      _
    $region59: #{tpu_custom_call.1} parent=1 // pred_check_branch
      %8121 = sbr.rel (0) target = $region61
    $region60: #{tpu_custom_call.1} parent=1 // pred_region
      %8122 = dma.done [#allocation4], 256
    $region61: #{tpu_custom_call.1} parent=1 // pred_fallthru
      _
    %8123 = vsyncpa [#allocation3], 1
    %8124 = vsyncpa [#allocation6], 1
    %8125 = vsyncpa [#allocation4], 1

</llo_original>
